<compile_context>
chip_gen: v7x
topology: tpu7x:2x2x1
jax: 0.10.0
libtpu: 0.0.40
codegen_flags: <defaults>
</compile_context>

<pallas_src>
import jax
import jax.numpy as jnp
import numpy as np
from jax.experimental import pallas as pl
from jax.experimental.pallas import tpu as pltpu


# ----------------------------------------------------------------------------
# Fused conv + bias + 2x2 maxpool + relu kernel (single grid step)
# ----------------------------------------------------------------------------
def _conv_pool_relu_kernel(p_ref, w_ref, b_ref, o_ref):
    # p_ref: (K, 4*Mp_pad)  -- pool-position patch slabs concatenated on lanes
    # w_ref: (Cout, K)      -- conv weight (resident)
    # b_ref: (Cout, 1)      -- conv bias (resident)
    # o_ref: (Cout, Mp_pad) -- pooled + relu'd output (lane-dense pixels)
    m = o_ref.shape[-1]
    y = jnp.dot(w_ref[...], p_ref[...], preferred_element_type=jnp.float32)
    y = jnp.maximum(jnp.maximum(y[:, 0 * m:1 * m], y[:, 1 * m:2 * m]),
                    jnp.maximum(y[:, 2 * m:3 * m], y[:, 3 * m:4 * m]))
    o_ref[...] = jnp.maximum(y + b_ref[...], 0.0).astype(o_ref.dtype)


def _pool_patches(xc, kh, kw, mp_pad):
    """xc: (C, B, H, W) -> (K, 4*mp_pad) f32 patch slabs.

    Row k is patch element (c, i, j) in PyTorch OIHW flatten order.  Lane block
    q*mp_pad:(q+1)*mp_pad holds the patches of pool-window position q; within a
    block, pixels are ordered (b, ph, pw).  Order-safe, few XLA ops, tiny data.
    """
    C, B, H, W = xc.shape
    Ho, Wo = H - kh + 1, W - kw + 1
    Hp, Wp = Ho // 2, Wo // 2
    Mp = B * Hp * Wp

    slabs = jnp.stack([xc[:, :, i:i + Ho, j:j + Wo]
                       for i in range(kh) for j in range(kw)],
                      axis=1)                                   # (C, kh*kw, B, Ho, Wo)
    qs = [slabs[:, :, :, qi::2, qj::2][:, :, :, :Hp, :Wp]
          for qi in (0, 1) for qj in (0, 1)]                    # 4 x (C, kh*kw, B, Hp, Wp)
    p4 = jnp.stack(qs, axis=0).reshape(4, C * kh * kw, Mp)      # (4, K, Mp)
    p4 = jnp.pad(p4, ((0, 0), (0, 0), (0, mp_pad - Mp)))
    return jnp.concatenate([p4[0], p4[1], p4[2], p4[3]], axis=-1)


def conv_pool_relu(xc, w, b):
    """relu(max_pool2d(conv2d(x, w, 'VALID') + b, 2)) with channel-major I/O.

    xc: (C, B, H, W) -> (Cout, B, Hp, Wp), single fused Pallas kernel.
    """
    C, B, H, W = xc.shape
    Cout, Cin, kh, kw = w.shape
    assert Cin == C
    Ho, Wo = H - kh + 1, W - kw + 1
    Hp, Wp = Ho // 2, Wo // 2
    K = C * kh * kw
    Mp = B * Hp * Wp
    Mp_pad = pl.cdiv(Mp, 128) * 128

    p4 = _pool_patches(xc, kh, kw, Mp_pad)                       # (K, 4*Mp_pad)
    wf = w.reshape(Cout, K)
    bf = b.reshape(Cout, 1)

    flops = 2 * Cout * K * 4 * Mp_pad
    bytes_accessed = (p4.size * 4 + wf.size * 4 + bf.size * 4 + Cout * Mp_pad * 4)

    out = pl.pallas_call(
        _conv_pool_relu_kernel,
        out_shape=jax.ShapeDtypeStruct((Cout, Mp_pad), jnp.float32),
        grid=(1,),
        in_specs=[
            pl.BlockSpec((K, 4 * Mp_pad), lambda i: (0, 0)),   # patches (full block)
            pl.BlockSpec((Cout, K), lambda i: (0, 0)),         # weight (resident)
            pl.BlockSpec((Cout, 1), lambda i: (0, 0)),         # bias (resident)
        ],
        out_specs=pl.BlockSpec((Cout, Mp_pad), lambda i: (0, 0)),
        compiler_params=pltpu.CompilerParams(
            dimension_semantics=("arbitrary",)),
        cost_estimate=pl.CostEstimate(flops=flops, transcendentals=0,
                                      bytes_accessed=bytes_accessed),
    )(p4, wf, bf)

    # Padded pixel columns hold relu(bias) garbage; drop them.  No transpose:
    # (Cout, B, Hp, Wp) is exactly the layout the next conv's patch prep wants.
    return out[:, :Mp].reshape(Cout, B, Hp, Wp)


# ----------------------------------------------------------------------------
# Fused fc1 + relu + fc2 kernel (dropout is identity in eval mode)
# ----------------------------------------------------------------------------
def _mlp_head_kernel(f_ref, w1_ref, b1_ref, w2_ref, b2_ref, o_ref):
    # bf16 activations x bf16 fc1 weights straight into the MXU, f32 accumulate.
    h = jnp.dot(f_ref[...], w1_ref[...], preferred_element_type=jnp.float32)
    h = jnp.maximum(h + b1_ref[...], 0.0)
    o_ref[...] = (jnp.dot(h, w2_ref[...], preferred_element_type=jnp.float32)
                  + b2_ref[...]).astype(o_ref.dtype)


def mlp_head(f, w1, b1, w2, b2):
    """fc2(relu(fc1(f))) fused, single grid step (pure weight streaming)."""
    B, K = f.shape
    N1 = w1.shape[1]
    N2 = w2.shape[1]

    flops = 2 * B * K * N1 + 2 * B * N1 * N2
    bytes_accessed = (f.size * f.dtype.itemsize + w1.size * w1.dtype.itemsize
                      + b1.size * 4 + w2.size * 4 + b2.size * 4 + B * N2 * 4)

    return pl.pallas_call(
        _mlp_head_kernel,
        out_shape=jax.ShapeDtypeStruct((B, N2), jnp.float32),
        grid=(1,),
        in_specs=[
            pl.BlockSpec((B, K), lambda i: (0, 0)),      # activations (bf16)
            pl.BlockSpec((K, N1), lambda i: (0, 0)),     # fc1 weight (bf16, resident)
            pl.BlockSpec((1, N1), lambda i: (0, 0)),     # fc1 bias
            pl.BlockSpec((N1, N2), lambda i: (0, 0)),    # fc2 weight
            pl.BlockSpec((1, N2), lambda i: (0, 0)),     # fc2 bias
        ],
        out_specs=pl.BlockSpec((B, N2), lambda i: (0, 0)),
        compiler_params=pltpu.CompilerParams(
            dimension_semantics=("arbitrary",)),
        cost_estimate=pl.CostEstimate(flops=flops, transcendentals=0,
                                      bytes_accessed=bytes_accessed),
    )(f, w1, b1.reshape(1, N1), w2, b2.reshape(1, N2))


# ----------------------------------------------------------------------------
# Full forward pass
# ----------------------------------------------------------------------------
def mini_model_forward(x, params):
    B = x.shape[0]

    # Channel-major layout for the whole conv tower (free for C=1; tiny anyway).
    xc = jnp.transpose(x, (1, 0, 2, 3))                          # (1, B, 48, 48)

    # conv1 (1 -> 16, k=5) + maxpool(2) + relu, fused             -> (16, B, 22, 22)
    y = conv_pool_relu(xc, params["conv1_w"], params["conv1_b"])

    # conv2 (16 -> 32, k=5) + [Dropout2d = eval noop] + maxpool(2) + relu
    y = conv_pool_relu(y, params["conv2_w"], params["conv2_b"])  # (32, B, 9, 9)

    # flatten in torch.flatten(NCHW) order; ~20 KB transpose is the only glue.
    Cout, _, Hp, Wp = y.shape
    f = jnp.transpose(y, (1, 0, 2, 3)).reshape(B, Cout * Hp * Wp)
    f = f.astype(jnp.bfloat16)                                   # bf16 into the MXU

    # fc1 + relu + [F.dropout = eval noop] + fc2, fused           -> (B, 14)
    return mlp_head(f, params["fc1_w"], params["fc1_b"],
                    params["fc2_w"], params["fc2_b"])


# ----------------------------------------------------------------------------
# Pure-JAX reference (correctness check)
# ----------------------------------------------------------------------------
def reference_forward(x, params):
    def conv(x, w, b):
        y = jax.lax.conv_general_dilated(
            x, w, (1, 1), "VALID",
            dimension_numbers=("NCHW", "OIHW", "NCHW"))
        return y + b[None, :, None, None]

    def pool_relu(x):
        y = jax.lax.reduce_window(x, -jnp.inf, jax.lax.max,
                                  (1, 1, 2, 2), (1, 1, 2, 2), "VALID")
        return jnp.maximum(y, 0.0)

    y = pool_relu(conv(x, params["conv1_w"], params["conv1_b"]))
    y = pool_relu(conv(y, params["conv2_w"], params["conv2_b"]))
    f = y.reshape(x.shape[0], -1)
    # Match the kernel's fc1 dtype policy: bf16 activations x bf16 weights.
    f = f.astype(jnp.bfloat16).astype(jnp.float32)
    w1 = params["fc1_w"].astype(jnp.float32)
    h = jnp.maximum(f @ w1 + params["fc1_b"], 0.0)
    return h @ params["fc2_w"] + params["fc2_b"]


# ----------------------------------------------------------------------------
# Main
# ----------------------------------------------------------------------------
def make_params():
    num_classes = 14
    keys = jax.random.split(jax.random.PRNGKey(42), 8)
    return {
        "conv1_w": jax.random.normal(keys[0], (16, 1, 5, 5), jnp.float32) * 0.10,
        "conv1_b": jax.random.normal(keys[1], (16,), jnp.float32) * 0.10,
        "conv2_w": jax.random.normal(keys[2], (32, 16, 5, 5), jnp.float32) * 0.05,
        "conv2_b": jax.random.normal(keys[3], (32,), jnp.float32) * 0.10,
        # fc1 weights kept in bf16: the layer is HBM-bandwidth bound.
        "fc1_w": (jax.random.normal(keys[4], (2592, 1024), jnp.float32)
                  * 0.02).astype(jnp.bfloat16),
        "fc1_b": jax.random.normal(keys[5], (1024,), jnp.float32) * 0.10,
        "fc2_w": jax.random.normal(keys[6], (1024, num_classes), jnp.float32) * 0.05,
        "fc2_b": jax.random.normal(keys[7], (num_classes,), jnp.float32) * 0.10,
    }


if __name__ == "__main__":
    params = make_params()
    x = jax.random.normal(jax.random.PRNGKey(0), (2, 1, 48, 48), jnp.float32)

    fwd = jax.jit(mini_model_forward)
    out = jax.block_until_ready(fwd(x, params))
    assert out.shape == (2, 14), out.shape

    ref = jax.block_until_ready(reference_forward(x, params))
    np.testing.assert_allclose(np.asarray(out), np.asarray(ref),
                               rtol=1e-2, atol=1e-2)

    print("KERNEL_OK")
</pallas_src>

<mosaic_0001>
module attributes {stable_mosaic.version = 11 : i64} {
  func.func @_conv_pool_relu_kernel(%arg0: i32, %arg1: memref<25x4096xf32, #tpu.memory_space<vmem>>, %arg2: memref<16x25xf32, #tpu.memory_space<vmem>>, %arg3: memref<16x1xf32, #tpu.memory_space<vmem>>, %arg4: memref<16x1024xf32, #tpu.memory_space<vmem>>) attributes {dimension_semantics = [#tpu.dimension_semantics<arbitrary>], iteration_bounds = array<i64: 1>, scalar_prefetch = 0 : i64, scratch_operands = 0 : i64, tpu.core_type = #tpu.core_type<tc>, window_params = [{pipeline_mode = #tpu.pipeline_mode<synchronous>, transform_indices = @transform_0, window_bounds = array<i64: 25, 4096>}, {pipeline_mode = #tpu.pipeline_mode<synchronous>, transform_indices = @transform_1, window_bounds = array<i64: 16, 25>}, {pipeline_mode = #tpu.pipeline_mode<synchronous>, transform_indices = @transform_2, window_bounds = array<i64: 16, 1>}, {pipeline_mode = #tpu.pipeline_mode<synchronous>, transform_indices = @transform_3, window_bounds = array<i64: 16, 1024>}]} {
    %c0 = arith.constant 0 : index
    %c0_0 = arith.constant 0 : index
    %0 = vector.load %arg2[%c0, %c0_0] : memref<16x25xf32, #tpu.memory_space<vmem>>, vector<16x25xf32>
    %c0_1 = arith.constant 0 : index
    %c0_2 = arith.constant 0 : index
    %1 = vector.load %arg1[%c0_1, %c0_2] : memref<25x4096xf32, #tpu.memory_space<vmem>>, vector<25x4096xf32>
    %cst = arith.constant dense<0.000000e+00> : vector<16x4096xf32>
    %2 = tpu.matmul %0, %1, %cst {dimension_numbers = #tpu.dot_dimension_numbers<[1], [0], [0], [1], [0, 0, 1, 1], [], []>} : vector<16x25xf32>, vector<25x4096xf32>, vector<16x4096xf32> -> vector<16x4096xf32>
    %3 = vector.extract_strided_slice %2 {offsets = [0, 0], sizes = [16, 1024], strides = [1, 1]} : vector<16x4096xf32> to vector<16x1024xf32>
    %4 = vector.extract_strided_slice %2 {offsets = [0, 1024], sizes = [16, 1024], strides = [1, 1]} : vector<16x4096xf32> to vector<16x1024xf32>
    %5 = arith.maximumf %3, %4 : vector<16x1024xf32>
    %6 = vector.extract_strided_slice %2 {offsets = [0, 2048], sizes = [16, 1024], strides = [1, 1]} : vector<16x4096xf32> to vector<16x1024xf32>
    %7 = vector.extract_strided_slice %2 {offsets = [0, 3072], sizes = [16, 1024], strides = [1, 1]} : vector<16x4096xf32> to vector<16x1024xf32>
    %8 = arith.maximumf %6, %7 : vector<16x1024xf32>
    %9 = arith.maximumf %5, %8 : vector<16x1024xf32>
    %c0_3 = arith.constant 0 : index
    %c0_4 = arith.constant 0 : index
    %10 = vector.load %arg3[%c0_3, %c0_4] : memref<16x1xf32, #tpu.memory_space<vmem>>, vector<16x1xf32>
    %11 = vector.broadcast %10 : vector<16x1xf32> to vector<16x1024xf32>
    %12 = arith.addf %9, %11 : vector<16x1024xf32>
    %cst_5 = arith.constant 0.000000e+00 : f32
    %13 = vector.broadcast %cst_5 : f32 to vector<16x1024xf32>
    %14 = arith.maximumf %12, %13 : vector<16x1024xf32>
    %c0_6 = arith.constant 0 : index
    %c0_7 = arith.constant 0 : index
    %15 = vector.load %arg4[%c0_6, %c0_7] : memref<16x1024xf32, #tpu.memory_space<vmem>>, vector<16x1024xf32>
    tpu.vector_store %arg4[%c0_6, %c0_7], %14 {strides = array<i32>} : memref<16x1024xf32, #tpu.memory_space<vmem>>, vector<16x1024xf32>,
    return
  }
  func.func @transform_0(%arg0: i32) -> (i32, i32) {
    %c0_i32 = arith.constant 0 : i32
    %c0_i32_0 = arith.constant 0 : i32
    %c0_i32_1 = arith.constant 0 : i32
    return %c0_i32, %c0_i32_0 : i32, i32
  }
  func.func @transform_1(%arg0: i32) -> (i32, i32) {
    %c0_i32 = arith.constant 0 : i32
    %c0_i32_0 = arith.constant 0 : i32
    %c0_i32_1 = arith.constant 0 : i32
    return %c0_i32, %c0_i32_0 : i32, i32
  }
  func.func @transform_2(%arg0: i32) -> (i32, i32) {
    %c0_i32 = arith.constant 0 : i32
    %c0_i32_0 = arith.constant 0 : i32
    %c0_i32_1 = arith.constant 0 : i32
    return %c0_i32, %c0_i32_0 : i32, i32
  }
  func.func @transform_3(%arg0: i32) -> (i32, i32) {
    %c0_i32 = arith.constant 0 : i32
    %c0_i32_0 = arith.constant 0 : i32
    %c0_i32_1 = arith.constant 0 : i32
    return %c0_i32, %c0_i32_0 : i32, i32
  }
}

module attributes {stable_mosaic.version = 11 : i64} {
  func.func @_conv_pool_relu_kernel(%arg0: i32, %arg1: memref<400x1024xf32, #tpu.memory_space<vmem>>, %arg2: memref<32x400xf32, #tpu.memory_space<vmem>>, %arg3: memref<32x1xf32, #tpu.memory_space<vmem>>, %arg4: memref<32x256xf32, #tpu.memory_space<vmem>>) attributes {dimension_semantics = [#tpu.dimension_semantics<arbitrary>], iteration_bounds = array<i64: 1>, scalar_prefetch = 0 : i64, scratch_operands = 0 : i64, tpu.core_type = #tpu.core_type<tc>, window_params = [{pipeline_mode = #tpu.pipeline_mode<synchronous>, transform_indices = @transform_0, window_bounds = array<i64: 400, 1024>}, {pipeline_mode = #tpu.pipeline_mode<synchronous>, transform_indices = @transform_1, window_bounds = array<i64: 32, 400>}, {pipeline_mode = #tpu.pipeline_mode<synchronous>, transform_indices = @transform_2, window_bounds = array<i64: 32, 1>}, {pipeline_mode = #tpu.pipeline_mode<synchronous>, transform_indices = @transform_3, window_bounds = array<i64: 32, 256>}]} {
    %c0 = arith.constant 0 : index
    %c0_0 = arith.constant 0 : index
    %0 = vector.load %arg2[%c0, %c0_0] : memref<32x400xf32, #tpu.memory_space<vmem>>, vector<32x400xf32>
    %c0_1 = arith.constant 0 : index
    %c0_2 = arith.constant 0 : index
    %1 = vector.load %arg1[%c0_1, %c0_2] : memref<400x1024xf32, #tpu.memory_space<vmem>>, vector<400x1024xf32>
    %cst = arith.constant dense<0.000000e+00> : vector<32x1024xf32>
    %2 = tpu.matmul %0, %1, %cst {dimension_numbers = #tpu.dot_dimension_numbers<[1], [0], [0], [1], [0, 0, 1, 1], [], []>} : vector<32x400xf32>, vector<400x1024xf32>, vector<32x1024xf32> -> vector<32x1024xf32>
    %3 = vector.extract_strided_slice %2 {offsets = [0, 0], sizes = [32, 256], strides = [1, 1]} : vector<32x1024xf32> to vector<32x256xf32>
    %4 = vector.extract_strided_slice %2 {offsets = [0, 256], sizes = [32, 256], strides = [1, 1]} : vector<32x1024xf32> to vector<32x256xf32>
    %5 = arith.maximumf %3, %4 : vector<32x256xf32>
    %6 = vector.extract_strided_slice %2 {offsets = [0, 512], sizes = [32, 256], strides = [1, 1]} : vector<32x1024xf32> to vector<32x256xf32>
    %7 = vector.extract_strided_slice %2 {offsets = [0, 768], sizes = [32, 256], strides = [1, 1]} : vector<32x1024xf32> to vector<32x256xf32>
    %8 = arith.maximumf %6, %7 : vector<32x256xf32>
    %9 = arith.maximumf %5, %8 : vector<32x256xf32>
    %c0_3 = arith.constant 0 : index
    %c0_4 = arith.constant 0 : index
    %10 = vector.load %arg3[%c0_3, %c0_4] : memref<32x1xf32, #tpu.memory_space<vmem>>, vector<32x1xf32>
    %11 = vector.broadcast %10 : vector<32x1xf32> to vector<32x256xf32>
    %12 = arith.addf %9, %11 : vector<32x256xf32>
    %cst_5 = arith.constant 0.000000e+00 : f32
    %13 = vector.broadcast %cst_5 : f32 to vector<32x256xf32>
    %14 = arith.maximumf %12, %13 : vector<32x256xf32>
    %c0_6 = arith.constant 0 : index
    %c0_7 = arith.constant 0 : index
    %15 = vector.load %arg4[%c0_6, %c0_7] : memref<32x256xf32, #tpu.memory_space<vmem>>, vector<32x256xf32>
    tpu.vector_store %arg4[%c0_6, %c0_7], %14 {strides = array<i32>} : memref<32x256xf32, #tpu.memory_space<vmem>>, vector<32x256xf32>,
    return
  }
  func.func @transform_0(%arg0: i32) -> (i32, i32) {
    %c0_i32 = arith.constant 0 : i32
    %c0_i32_0 = arith.constant 0 : i32
    %c0_i32_1 = arith.constant 0 : i32
    return %c0_i32, %c0_i32_0 : i32, i32
  }
  func.func @transform_1(%arg0: i32) -> (i32, i32) {
    %c0_i32 = arith.constant 0 : i32
    %c0_i32_0 = arith.constant 0 : i32
    %c0_i32_1 = arith.constant 0 : i32
    return %c0_i32, %c0_i32_0 : i32, i32
  }
  func.func @transform_2(%arg0: i32) -> (i32, i32) {
    %c0_i32 = arith.constant 0 : i32
    %c0_i32_0 = arith.constant 0 : i32
    %c0_i32_1 = arith.constant 0 : i32
    return %c0_i32, %c0_i32_0 : i32, i32
  }
  func.func @transform_3(%arg0: i32) -> (i32, i32) {
    %c0_i32 = arith.constant 0 : i32
    %c0_i32_0 = arith.constant 0 : i32
    %c0_i32_1 = arith.constant 0 : i32
    return %c0_i32, %c0_i32_0 : i32, i32
  }
}

module attributes {stable_mosaic.version = 11 : i64} {
  func.func @_mlp_head_kernel(%arg0: i32, %arg1: memref<2x2592xbf16, #tpu.memory_space<vmem>>, %arg2: memref<2592x1024xbf16, #tpu.memory_space<vmem>>, %arg3: memref<1x1024xf32, #tpu.memory_space<vmem>>, %arg4: memref<1024x14xf32, #tpu.memory_space<vmem>>, %arg5: memref<1x14xf32, #tpu.memory_space<vmem>>, %arg6: memref<2x14xf32, #tpu.memory_space<vmem>>) attributes {dimension_semantics = [#tpu.dimension_semantics<arbitrary>], iteration_bounds = array<i64: 1>, scalar_prefetch = 0 : i64, scratch_operands = 0 : i64, tpu.core_type = #tpu.core_type<tc>, window_params = [{pipeline_mode = #tpu.pipeline_mode<synchronous>, transform_indices = @transform_0, window_bounds = array<i64: 2, 2592>}, {pipeline_mode = #tpu.pipeline_mode<synchronous>, transform_indices = @transform_1, window_bounds = array<i64: 2592, 1024>}, {pipeline_mode = #tpu.pipeline_mode<synchronous>, transform_indices = @transform_2, window_bounds = array<i64: 1, 1024>}, {pipeline_mode = #tpu.pipeline_mode<synchronous>, transform_indices = @transform_3, window_bounds = array<i64: 1024, 14>}, {pipeline_mode = #tpu.pipeline_mode<synchronous>, transform_indices = @transform_4, window_bounds = array<i64: 1, 14>}, {pipeline_mode = #tpu.pipeline_mode<synchronous>, transform_indices = @transform_5, window_bounds = array<i64: 2, 14>}]} {
    %c0 = arith.constant 0 : index
    %c0_0 = arith.constant 0 : index
    %0 = vector.load %arg1[%c0, %c0_0] : memref<2x2592xbf16, #tpu.memory_space<vmem>>, vector<2x2592xbf16>
    %c0_1 = arith.constant 0 : index
    %c0_2 = arith.constant 0 : index
    %1 = vector.load %arg2[%c0_1, %c0_2] : memref<2592x1024xbf16, #tpu.memory_space<vmem>>, vector<2592x1024xbf16>
    %cst = arith.constant dense<0.000000e+00> : vector<2x1024xf32>
    %2 = tpu.matmul %0, %1, %cst {dimension_numbers = #tpu.dot_dimension_numbers<[1], [0], [0], [1], [0, 0, 1, 1], [], []>} : vector<2x2592xbf16>, vector<2592x1024xbf16>, vector<2x1024xf32> -> vector<2x1024xf32>
    %c0_3 = arith.constant 0 : index
    %c0_4 = arith.constant 0 : index
    %3 = vector.load %arg3[%c0_3, %c0_4] : memref<1x1024xf32, #tpu.memory_space<vmem>>, vector<1x1024xf32>
    %4 = vector.broadcast %3 : vector<1x1024xf32> to vector<2x1024xf32>
    %5 = arith.addf %2, %4 : vector<2x1024xf32>
    %cst_5 = arith.constant 0.000000e+00 : f32
    %6 = vector.broadcast %cst_5 : f32 to vector<2x1024xf32>
    %7 = arith.maximumf %5, %6 : vector<2x1024xf32>
    %c0_6 = arith.constant 0 : index
    %c0_7 = arith.constant 0 : index
    %8 = vector.load %arg4[%c0_6, %c0_7] : memref<1024x14xf32, #tpu.memory_space<vmem>>, vector<1024x14xf32>
    %cst_8 = arith.constant dense<0.000000e+00> : vector<2x14xf32>
    %9 = tpu.matmul %7, %8, %cst_8 {dimension_numbers = #tpu.dot_dimension_numbers<[1], [0], [0], [1], [0, 0, 1, 1], [], []>} : vector<2x1024xf32>, vector<1024x14xf32>, vector<2x14xf32> -> vector<2x14xf32>
    %c0_9 = arith.constant 0 : index
    %c0_10 = arith.constant 0 : index
    %10 = vector.load %arg5[%c0_9, %c0_10] : memref<1x14xf32, #tpu.memory_space<vmem>>, vector<1x14xf32>
    %11 = vector.broadcast %10 : vector<1x14xf32> to vector<2x14xf32>
    %12 = arith.addf %9, %11 : vector<2x14xf32>
    %c0_11 = arith.constant 0 : index
    %c0_12 = arith.constant 0 : index
    %13 = vector.load %arg6[%c0_11, %c0_12] : memref<2x14xf32, #tpu.memory_space<vmem>>, vector<2x14xf32>
    tpu.vector_store %arg6[%c0_11, %c0_12], %12 {strides = array<i32>} : memref<2x14xf32, #tpu.memory_space<vmem>>, vector<2x14xf32>,
    return
  }
  func.func @transform_0(%arg0: i32) -> (i32, i32) {
    %c0_i32 = arith.constant 0 : i32
    %c0_i32_0 = arith.constant 0 : i32
    %c0_i32_1 = arith.constant 0 : i32
    return %c0_i32, %c0_i32_0 : i32, i32
  }
  func.func @transform_1(%arg0: i32) -> (i32, i32) {
    %c0_i32 = arith.constant 0 : i32
    %c0_i32_0 = arith.constant 0 : i32
    %c0_i32_1 = arith.constant 0 : i32
    return %c0_i32, %c0_i32_0 : i32, i32
  }
  func.func @transform_2(%arg0: i32) -> (i32, i32) {
    %c0_i32 = arith.constant 0 : i32
    %c0_i32_0 = arith.constant 0 : i32
    %c0_i32_1 = arith.constant 0 : i32
    return %c0_i32, %c0_i32_0 : i32, i32
  }
  func.func @transform_3(%arg0: i32) -> (i32, i32) {
    %c0_i32 = arith.constant 0 : i32
    %c0_i32_0 = arith.constant 0 : i32
    %c0_i32_1 = arith.constant 0 : i32
    return %c0_i32, %c0_i32_0 : i32, i32
  }
  func.func @transform_4(%arg0: i32) -> (i32, i32) {
    %c0_i32 = arith.constant 0 : i32
    %c0_i32_0 = arith.constant 0 : i32
    %c0_i32_1 = arith.constant 0 : i32
    return %c0_i32, %c0_i32_0 : i32, i32
  }
  func.func @transform_5(%arg0: i32) -> (i32, i32) {
    %c0_i32 = arith.constant 0 : i32
    %c0_i32_0 = arith.constant 0 : i32
    %c0_i32_1 = arith.constant 0 : i32
    return %c0_i32, %c0_i32_0 : i32, i32
  }
}

</mosaic_0001>

<llo_original>
// kernel: mini_model_forward.3
$region0: #{mini_model_forward.3}
  #allocation0 [shape = 'u32[]', space=smem, size = 0x4, offset = 0x4, fixed_abs, tag = 'smem constant byte address 0x4 - core index']
  #allocation1 [shape = 'u32[144,128]{1,0:T(1,128)}', space=vmem, size = 0x12000, scoped, tag = 'internal scratch']
  %s0 = inlined_call_operand.vmem [shape: f32[25,4096], index: 0, kind: input, shape index: {}]
  %s1 = inlined_call_operand.vmem [shape: f32[16,25], index: 1, kind: input, shape index: {}]
  %s2 = inlined_call_operand.vmem [shape: f32[16,1], index: 2, kind: input, shape index: {}]
  %s3 = inlined_call_operand.vmem [shape: f32[16,1024], index: 3, kind: output, shape index: {}]
  %s4 = sld [smem:[#allocation0]]
  $region22: #{mini_model_forward.3} parent=0
    _
  %s6 = ssub.s32 1, %s4
  %s7 = scalar_select 0, %s6, %s4
  // Predicated region
  $region2: #{mini_model_forward.3} parent=0 // pred_check
    _
  $region3: #{mini_model_forward.3} parent=0 // pred_check_branch
    %9 = sbr.rel (0) target = $region5
  $region4: #{mini_model_forward.3} parent=0 // pred_region
    _
  $region5: #{mini_model_forward.3} parent=0 // pred_fallthru
    _
  // Predicated region
  $region6: #{mini_model_forward.3} parent=0 // pred_check
    _
  $region7: #{mini_model_forward.3} parent=0 // pred_check_branch
    %11 = sbr.rel (0) target = $region9
  $region8: #{mini_model_forward.3} parent=0 // pred_region
    _
  $region9: #{mini_model_forward.3} parent=0 // pred_fallthru
    _
  // Predicated region
  $region10: #{mini_model_forward.3} parent=0 // pred_check
    _
  $region11: #{mini_model_forward.3} parent=0 // pred_check_branch
    %13 = sbr.rel (0) target = $region13
  $region12: #{mini_model_forward.3} parent=0 // pred_region
    _
  $region13: #{mini_model_forward.3} parent=0 // pred_fallthru
    _
  %v14 = vld [vmem:[%s1] sm:$0xff]
  %v15 = vld [vmem:[%s1 + $0x8] sm:$0xff]
  %v16 = vld [vmem:[%s0] sm:$0xff]
  %v17 = vld [vmem:[%s0 + $0x8] sm:$0xff]
  %v18 = vld [vmem:[%s0 + $0x10] sm:$0xff]
  %v19 = vld [vmem:[%s0 + $0x18] sm:$0xff]
  %v20 = vld [vmem:[%s0 + $0x20] sm:$0xff]
  %v21 = vld [vmem:[%s0 + $0x28] sm:$0xff]
  %v22 = vld [vmem:[%s0 + $0x30] sm:$0xff]
  %v23 = vld [vmem:[%s0 + $0x38] sm:$0xff]
  %v24 = vld [vmem:[%s0 + $0x40] sm:$0xff]
  %v25 = vld [vmem:[%s0 + $0x48] sm:$0xff]
  %v26 = vld [vmem:[%s0 + $0x50] sm:$0xff]
  %v27 = vld [vmem:[%s0 + $0x58] sm:$0xff]
  %v28 = vld [vmem:[%s0 + $0x60] sm:$0xff]
  %v29 = vld [vmem:[%s0 + $0x68] sm:$0xff]
  %v30 = vld [vmem:[%s0 + $0x70] sm:$0xff]
  %v31 = vld [vmem:[%s0 + $0x78] sm:$0xff]
  %v32 = vld [vmem:[%s0 + $0x80] sm:$0xff]
  %v33 = vld [vmem:[%s0 + $0x88] sm:$0xff]
  %v34 = vld [vmem:[%s0 + $0x90] sm:$0xff]
  %v35 = vld [vmem:[%s0 + $0x98] sm:$0xff]
  %v36 = vld [vmem:[%s0 + $0xa0] sm:$0xff]
  %v37 = vld [vmem:[%s0 + $0xa8] sm:$0xff]
  %v38 = vld [vmem:[%s0 + $0xb0] sm:$0xff]
  %v39 = vld [vmem:[%s0 + $0xb8] sm:$0xff]
  %v40 = vld [vmem:[%s0 + $0xc0] sm:$0xff]
  %v41 = vld [vmem:[%s0 + $0xc8] sm:$0xff]
  %v42 = vld [vmem:[%s0 + $0xd0] sm:$0xff]
  %v43 = vld [vmem:[%s0 + $0xd8] sm:$0xff]
  %v44 = vld [vmem:[%s0 + $0xe0] sm:$0xff]
  %v45 = vld [vmem:[%s0 + $0xe8] sm:$0xff]
  %v46 = vld [vmem:[%s0 + $0xf0] sm:$0xff]
  %v47 = vld [vmem:[%s0 + $0xf8] sm:$0xff]
  %v48 = vld [vmem:[%s0 + $0x100] sm:$0xff]
  %v49 = vld [vmem:[%s0 + $0x108] sm:$0xff]
  %v50 = vld [vmem:[%s0 + $0x110] sm:$0xff]
  %v51 = vld [vmem:[%s0 + $0x118] sm:$0xff]
  %v52 = vld [vmem:[%s0 + $0x120] sm:$0xff]
  %v53 = vld [vmem:[%s0 + $0x128] sm:$0xff]
  %v54 = vld [vmem:[%s0 + $0x130] sm:$0xff]
  %v55 = vld [vmem:[%s0 + $0x138] sm:$0xff]
  %v56 = vld [vmem:[%s0 + $0x140] sm:$0xff]
  %v57 = vld [vmem:[%s0 + $0x148] sm:$0xff]
  %v58 = vld [vmem:[%s0 + $0x150] sm:$0xff]
  %v59 = vld [vmem:[%s0 + $0x158] sm:$0xff]
  %v60 = vld [vmem:[%s0 + $0x160] sm:$0xff]
  %v61 = vld [vmem:[%s0 + $0x168] sm:$0xff]
  %v62 = vld [vmem:[%s0 + $0x170] sm:$0xff]
  %v63 = vld [vmem:[%s0 + $0x178] sm:$0xff]
  %v64 = vld [vmem:[%s0 + $0x180] sm:$0xff]
  %v65 = vld [vmem:[%s0 + $0x188] sm:$0xff]
  %v66 = vld [vmem:[%s0 + $0x190] sm:$0xff]
  %v67 = vld [vmem:[%s0 + $0x198] sm:$0xff]
  %v68 = vld [vmem:[%s0 + $0x1a0] sm:$0xff]
  %v69 = vld [vmem:[%s0 + $0x1a8] sm:$0xff]
  %v70 = vld [vmem:[%s0 + $0x1b0] sm:$0xff]
  %v71 = vld [vmem:[%s0 + $0x1b8] sm:$0xff]
  %v72 = vld [vmem:[%s0 + $0x1c0] sm:$0xff]
  %v73 = vld [vmem:[%s0 + $0x1c8] sm:$0xff]
  %v74 = vld [vmem:[%s0 + $0x1d0] sm:$0xff]
  %v75 = vld [vmem:[%s0 + $0x1d8] sm:$0xff]
  %v76 = vld [vmem:[%s0 + $0x1e0] sm:$0xff]
  %v77 = vld [vmem:[%s0 + $0x1e8] sm:$0xff]
  %v78 = vld [vmem:[%s0 + $0x1f0] sm:$0xff]
  %v79 = vld [vmem:[%s0 + $0x1f8] sm:$0xff]
  %v80 = vld [vmem:[%s0 + $0x200] sm:$0xff]
  %v81 = vld [vmem:[%s0 + $0x208] sm:$0xff]
  %v82 = vld [vmem:[%s0 + $0x210] sm:$0xff]
  %v83 = vld [vmem:[%s0 + $0x218] sm:$0xff]
  %v84 = vld [vmem:[%s0 + $0x220] sm:$0xff]
  %v85 = vld [vmem:[%s0 + $0x228] sm:$0xff]
  %v86 = vld [vmem:[%s0 + $0x230] sm:$0xff]
  %v87 = vld [vmem:[%s0 + $0x238] sm:$0xff]
  %v88 = vld [vmem:[%s0 + $0x240] sm:$0xff]
  %v89 = vld [vmem:[%s0 + $0x248] sm:$0xff]
  %v90 = vld [vmem:[%s0 + $0x250] sm:$0xff]
  %v91 = vld [vmem:[%s0 + $0x258] sm:$0xff]
  %v92 = vld [vmem:[%s0 + $0x260] sm:$0xff]
  %v93 = vld [vmem:[%s0 + $0x268] sm:$0xff]
  %v94 = vld [vmem:[%s0 + $0x270] sm:$0xff]
  %v95 = vld [vmem:[%s0 + $0x278] sm:$0xff]
  %v96 = vld [vmem:[%s0 + $0x280] sm:$0xff]
  %v97 = vld [vmem:[%s0 + $0x288] sm:$0xff]
  %v98 = vld [vmem:[%s0 + $0x290] sm:$0xff]
  %v99 = vld [vmem:[%s0 + $0x298] sm:$0xff]
  %v100 = vld [vmem:[%s0 + $0x2a0] sm:$0xff]
  %v101 = vld [vmem:[%s0 + $0x2a8] sm:$0xff]
  %v102 = vld [vmem:[%s0 + $0x2b0] sm:$0xff]
  %v103 = vld [vmem:[%s0 + $0x2b8] sm:$0xff]
  %v104 = vld [vmem:[%s0 + $0x2c0] sm:$0xff]
  %v105 = vld [vmem:[%s0 + $0x2c8] sm:$0xff]
  %v106 = vld [vmem:[%s0 + $0x2d0] sm:$0xff]
  %v107 = vld [vmem:[%s0 + $0x2d8] sm:$0xff]
  %v108 = vld [vmem:[%s0 + $0x2e0] sm:$0xff]
  %v109 = vld [vmem:[%s0 + $0x2e8] sm:$0xff]
  %v110 = vld [vmem:[%s0 + $0x2f0] sm:$0xff]
  %v111 = vld [vmem:[%s0 + $0x2f8] sm:$0xff]
  %v112 = vld [vmem:[%s0 + $0x300] sm:$0x1]
  %v113 = vld [vmem:[%s0 + $0x308] sm:$0x1]
  %v114 = vld [vmem:[%s0 + $0x310] sm:$0x1]
  %v115 = vld [vmem:[%s0 + $0x318] sm:$0x1]
  %v116 = vld [vmem:[%s0 + $0x320] sm:$0x1]
  %v117 = vld [vmem:[%s0 + $0x328] sm:$0x1]
  %v118 = vld [vmem:[%s0 + $0x330] sm:$0x1]
  %v119 = vld [vmem:[%s0 + $0x338] sm:$0x1]
  %v120 = vld [vmem:[%s0 + $0x340] sm:$0x1]
  %v121 = vld [vmem:[%s0 + $0x348] sm:$0x1]
  %v122 = vld [vmem:[%s0 + $0x350] sm:$0x1]
  %v123 = vld [vmem:[%s0 + $0x358] sm:$0x1]
  %v124 = vld [vmem:[%s0 + $0x360] sm:$0x1]
  %v125 = vld [vmem:[%s0 + $0x368] sm:$0x1]
  %v126 = vld [vmem:[%s0 + $0x370] sm:$0x1]
  %v127 = vld [vmem:[%s0 + $0x378] sm:$0x1]
  %v128 = vld [vmem:[%s0 + $0x380] sm:$0x1]
  %v129 = vld [vmem:[%s0 + $0x388] sm:$0x1]
  %v130 = vld [vmem:[%s0 + $0x390] sm:$0x1]
  %v131 = vld [vmem:[%s0 + $0x398] sm:$0x1]
  %v132 = vld [vmem:[%s0 + $0x3a0] sm:$0x1]
  %v133 = vld [vmem:[%s0 + $0x3a8] sm:$0x1]
  %v134 = vld [vmem:[%s0 + $0x3b0] sm:$0x1]
  %v135 = vld [vmem:[%s0 + $0x3b8] sm:$0x1]
  %v136 = vld [vmem:[%s0 + $0x3c0] sm:$0x1]
  %v137 = vld [vmem:[%s0 + $0x3c8] sm:$0x1]
  %v138 = vld [vmem:[%s0 + $0x3d0] sm:$0x1]
  %v139 = vld [vmem:[%s0 + $0x3d8] sm:$0x1]
  %v140 = vld [vmem:[%s0 + $0x3e0] sm:$0x1]
  %v141 = vld [vmem:[%s0 + $0x3e8] sm:$0x1]
  %v142 = vld [vmem:[%s0 + $0x3f0] sm:$0x1]
  %v143 = vld [vmem:[%s0 + $0x3f8] sm:$0x1]
  %vm144 = vcmask 203776
  %v146 = vsel %vm144, %v14, 0
  %v149 = vsel %vm144, %v15, 0
  %vm151 = vcmask 1040384
  %v153 = vsel %vm151, %v112, 0
  %v156 = vsel %vm151, %v113, 0
  %v159 = vsel %vm151, %v114, 0
  %v162 = vsel %vm151, %v115, 0
  %v165 = vsel %vm151, %v116, 0
  %v168 = vsel %vm151, %v117, 0
  %v171 = vsel %vm151, %v118, 0
  %v174 = vsel %vm151, %v119, 0
  %v177 = vsel %vm151, %v120, 0
  %v180 = vsel %vm151, %v121, 0
  %v183 = vsel %vm151, %v122, 0
  %v186 = vsel %vm151, %v123, 0
  %v189 = vsel %vm151, %v124, 0
  %v192 = vsel %vm151, %v125, 0
  %v195 = vsel %vm151, %v126, 0
  %v198 = vsel %vm151, %v127, 0
  %v201 = vsel %vm151, %v128, 0
  %v204 = vsel %vm151, %v129, 0
  %v207 = vsel %vm151, %v130, 0
  %v210 = vsel %vm151, %v131, 0
  %v213 = vsel %vm151, %v132, 0
  %v216 = vsel %vm151, %v133, 0
  %v219 = vsel %vm151, %v134, 0
  %v222 = vsel %vm151, %v135, 0
  %v225 = vsel %vm151, %v136, 0
  %v228 = vsel %vm151, %v137, 0
  %v231 = vsel %vm151, %v138, 0
  %v234 = vsel %vm151, %v139, 0
  %v237 = vsel %vm151, %v140, 0
  %v240 = vsel %vm151, %v141, 0
  %v243 = vsel %vm151, %v142, 0
  %v246 = vsel %vm151, %v143, 0
  %248 = vmatprep.subr.mxu0 %v17
  %249 = vmatpush1.msra.mxu0 %v16
  %250 = vmatprep.subr.mxu0 %v49
  %251 = vmatpush1.msra.mxu0 %v48
  %252 = vmatprep.subr.mxu0 %v81
  %253 = vmatpush1.msra.mxu0 %v80
  %254 = vmatprep.subr.mxu0 %v156
  %255 = vmatpush1.msra.mxu0 %v153
  %256 = vmatprep.subr.mxu0 0.0
  %257 = vmatpush1.msra.mxu0 0.0
  %258 = vmatprep.subr.mxu0 0.0
  %259 = vmatpush1.msra.mxu0 0.0
  %260 = vmatprep.subr.mxu0 0.0
  %261 = vmatpush1.msra.mxu0 0.0
  %262 = vmatprep.subr.mxu0 0.0
  %263 = vmatpush1.msra.mxu0 0.0
  %264 = vmatprep.subr.mxu0 0.0
  %265 = vmatpush1.msra.mxu0 0.0
  %266 = vmatprep.subr.mxu0 0.0
  %267 = vmatpush1.msra.mxu0 0.0
  %268 = vmatprep.subr.mxu0 0.0
  %269 = vmatpush1.msra.mxu0 0.0
  %270 = vmatprep.subr.mxu0 0.0
  %271 = vmatpush1.msra.mxu0 0.0
  %272 = vmatprep.subr.mxu0 0.0
  %273 = vmatpush1.msra.mxu0 0.0
  %274 = vmatprep.subr.mxu0 0.0
  %275 = vmatpush1.msra.mxu0 0.0
  %276 = vmatprep.subr.mxu0 0.0
  %277 = vmatpush1.msra.mxu0 0.0
  %278 = vmatprep.subr.mxu0 0.0
  %279 = vmatpush1.msra.mxu0 0.0
  %280 = vmatprep.subr.mxu0 0.0
  %281 = vmatpush1.msra.mxu0 0.0
  %282 = vmatprep.subr.mxu0 0.0
  %283 = vmatpush1.msra.mxu0 0.0
  %284 = vmatprep.subr.mxu0 0.0
  %285 = vmatpush1.msra.mxu0 0.0
  %286 = vmatprep.subr.mxu0 0.0
  %287 = vmatpush1.msra.mxu0 0.0
  %288 = vmatprep.subr.mxu0 0.0
  %289 = vmatpush1.msra.mxu0 0.0
  %290 = vmatprep.subr.mxu0 0.0
  %291 = vmatpush1.msra.mxu0 0.0
  %292 = vmatprep.subr.mxu0 0.0
  %293 = vmatpush1.msra.mxu0 0.0
  %294 = vmatprep.subr.mxu0 0.0
  %295 = vmatpush1.msra.mxu0 0.0
  %296 = vmatprep.subr.mxu0 0.0
  %297 = vmatpush1.msra.mxu0 0.0
  %298 = vmatprep.subr.mxu0 0.0
  %299 = vmatpush1.msra.mxu0 0.0
  %300 = vmatprep.subr.mxu0 0.0
  %301 = vmatpush1.msra.mxu0 0.0
  %302 = vmatprep.subr.mxu0 0.0
  %303 = vmatpush1.msra.mxu0 0.0
  %304 = vmatprep.subr.mxu0 0.0
  %305 = vmatpush1.msra.mxu0 0.0
  %306 = vmatprep.subr.mxu0 0.0
  %307 = vmatpush1.msra.mxu0 0.0
  %308 = vmatprep.subr.mxu0 0.0
  %309 = vmatpush1.msra.mxu0 0.0
  %310 = vmatprep.subr.mxu0 0.0
  %311 = vmatpush1.msra.mxu0 0.0
  %312 = vmatprep.mubr.f32.mxu0 0.0
  %313 = vmatmul.mubr.f32.gmra.mrb[0].mxu0 %v146
  %v314 = vpop.f32.mrb[0].mxu0
  %v315 = vadd.f32 0.0, %v314
  %v316 = vpop.f32.mrb[0].mxu0
  %v317 = vadd.f32 0.0, %v316
  %318 = vmatprep.mubr.f32.mxu0 0.0
  %319 = vmatmul.mubr.f32.gmra.mrb[0].mxu0 %v149
  %v320 = vpop.f32.mrb[0].mxu0
  %v321 = vadd.f32 0.0, %v320
  %v322 = vpop.f32.mrb[0].mxu0
  %v323 = vadd.f32 0.0, %v322
  %324 = vdwg.mxu0
  %325 = vmatprep.subr.mxu0 %v19
  %326 = vmatpush1.msra.mxu0 %v18
  %327 = vmatprep.subr.mxu0 %v51
  %328 = vmatpush1.msra.mxu0 %v50
  %329 = vmatprep.subr.mxu0 %v83
  %330 = vmatpush1.msra.mxu0 %v82
  %331 = vmatprep.subr.mxu0 %v162
  %332 = vmatpush1.msra.mxu0 %v159
  %333 = vmatprep.subr.mxu0 0.0
  %334 = vmatpush1.msra.mxu0 0.0
  %335 = vmatprep.subr.mxu0 0.0
  %336 = vmatpush1.msra.mxu0 0.0
  %337 = vmatprep.subr.mxu0 0.0
  %338 = vmatpush1.msra.mxu0 0.0
  %339 = vmatprep.subr.mxu0 0.0
  %340 = vmatpush1.msra.mxu0 0.0
  %341 = vmatprep.subr.mxu0 0.0
  %342 = vmatpush1.msra.mxu0 0.0
  %343 = vmatprep.subr.mxu0 0.0
  %344 = vmatpush1.msra.mxu0 0.0
  %345 = vmatprep.subr.mxu0 0.0
  %346 = vmatpush1.msra.mxu0 0.0
  %347 = vmatprep.subr.mxu0 0.0
  %348 = vmatpush1.msra.mxu0 0.0
  %349 = vmatprep.subr.mxu0 0.0
  %350 = vmatpush1.msra.mxu0 0.0
  %351 = vmatprep.subr.mxu0 0.0
  %352 = vmatpush1.msra.mxu0 0.0
  %353 = vmatprep.subr.mxu0 0.0
  %354 = vmatpush1.msra.mxu0 0.0
  %355 = vmatprep.subr.mxu0 0.0
  %356 = vmatpush1.msra.mxu0 0.0
  %357 = vmatprep.subr.mxu0 0.0
  %358 = vmatpush1.msra.mxu0 0.0
  %359 = vmatprep.subr.mxu0 0.0
  %360 = vmatpush1.msra.mxu0 0.0
  %361 = vmatprep.subr.mxu0 0.0
  %362 = vmatpush1.msra.mxu0 0.0
  %363 = vmatprep.subr.mxu0 0.0
  %364 = vmatpush1.msra.mxu0 0.0
  %365 = vmatprep.subr.mxu0 0.0
  %366 = vmatpush1.msra.mxu0 0.0
  %367 = vmatprep.subr.mxu0 0.0
  %368 = vmatpush1.msra.mxu0 0.0
  %369 = vmatprep.subr.mxu0 0.0
  %370 = vmatpush1.msra.mxu0 0.0
  %371 = vmatprep.subr.mxu0 0.0
  %372 = vmatpush1.msra.mxu0 0.0
  %373 = vmatprep.subr.mxu0 0.0
  %374 = vmatpush1.msra.mxu0 0.0
  %375 = vmatprep.subr.mxu0 0.0
  %376 = vmatpush1.msra.mxu0 0.0
  %377 = vmatprep.subr.mxu0 0.0
  %378 = vmatpush1.msra.mxu0 0.0
  %379 = vmatprep.subr.mxu0 0.0
  %380 = vmatpush1.msra.mxu0 0.0
  %381 = vmatprep.subr.mxu0 0.0
  %382 = vmatpush1.msra.mxu0 0.0
  %383 = vmatprep.subr.mxu0 0.0
  %384 = vmatpush1.msra.mxu0 0.0
  %385 = vmatprep.subr.mxu0 0.0
  %386 = vmatpush1.msra.mxu0 0.0
  %387 = vmatprep.subr.mxu0 0.0
  %388 = vmatpush1.msra.mxu0 0.0
  %389 = vmatprep.mubr.f32.mxu0 0.0
  %390 = vmatmul.mubr.f32.gmra.mrb[0].mxu0 %v146
  %v391 = vpop.f32.mrb[0].mxu0
  %v392 = vadd.f32 0.0, %v391
  %v393 = vpop.f32.mrb[0].mxu0
  %v394 = vadd.f32 0.0, %v393
  %395 = vmatprep.mubr.f32.mxu0 0.0
  %396 = vmatmul.mubr.f32.gmra.mrb[0].mxu0 %v149
  %v397 = vpop.f32.mrb[0].mxu0
  %v398 = vadd.f32 0.0, %v397
  %v399 = vpop.f32.mrb[0].mxu0
  %v400 = vadd.f32 0.0, %v399
  %401 = vdwg.mxu0
  %402 = vmatprep.subr.mxu0 %v21
  %403 = vmatpush1.msra.mxu0 %v20
  %404 = vmatprep.subr.mxu0 %v53
  %405 = vmatpush1.msra.mxu0 %v52
  %406 = vmatprep.subr.mxu0 %v85
  %407 = vmatpush1.msra.mxu0 %v84
  %408 = vmatprep.subr.mxu0 %v168
  %409 = vmatpush1.msra.mxu0 %v165
  %410 = vmatprep.subr.mxu0 0.0
  %411 = vmatpush1.msra.mxu0 0.0
  %412 = vmatprep.subr.mxu0 0.0
  %413 = vmatpush1.msra.mxu0 0.0
  %414 = vmatprep.subr.mxu0 0.0
  %415 = vmatpush1.msra.mxu0 0.0
  %416 = vmatprep.subr.mxu0 0.0
  %417 = vmatpush1.msra.mxu0 0.0
  %418 = vmatprep.subr.mxu0 0.0
  %419 = vmatpush1.msra.mxu0 0.0
  %420 = vmatprep.subr.mxu0 0.0
  %421 = vmatpush1.msra.mxu0 0.0
  %422 = vmatprep.subr.mxu0 0.0
  %423 = vmatpush1.msra.mxu0 0.0
  %424 = vmatprep.subr.mxu0 0.0
  %425 = vmatpush1.msra.mxu0 0.0
  %426 = vmatprep.subr.mxu0 0.0
  %427 = vmatpush1.msra.mxu0 0.0
  %428 = vmatprep.subr.mxu0 0.0
  %429 = vmatpush1.msra.mxu0 0.0
  %430 = vmatprep.subr.mxu0 0.0
  %431 = vmatpush1.msra.mxu0 0.0
  %432 = vmatprep.subr.mxu0 0.0
  %433 = vmatpush1.msra.mxu0 0.0
  %434 = vmatprep.subr.mxu0 0.0
  %435 = vmatpush1.msra.mxu0 0.0
  %436 = vmatprep.subr.mxu0 0.0
  %437 = vmatpush1.msra.mxu0 0.0
  %438 = vmatprep.subr.mxu0 0.0
  %439 = vmatpush1.msra.mxu0 0.0
  %440 = vmatprep.subr.mxu0 0.0
  %441 = vmatpush1.msra.mxu0 0.0
  %442 = vmatprep.subr.mxu0 0.0
  %443 = vmatpush1.msra.mxu0 0.0
  %444 = vmatprep.subr.mxu0 0.0
  %445 = vmatpush1.msra.mxu0 0.0
  %446 = vmatprep.subr.mxu0 0.0
  %447 = vmatpush1.msra.mxu0 0.0
  %448 = vmatprep.subr.mxu0 0.0
  %449 = vmatpush1.msra.mxu0 0.0
  %450 = vmatprep.subr.mxu0 0.0
  %451 = vmatpush1.msra.mxu0 0.0
  %452 = vmatprep.subr.mxu0 0.0
  %453 = vmatpush1.msra.mxu0 0.0
  %454 = vmatprep.subr.mxu0 0.0
  %455 = vmatpush1.msra.mxu0 0.0
  %456 = vmatprep.subr.mxu0 0.0
  %457 = vmatpush1.msra.mxu0 0.0
  %458 = vmatprep.subr.mxu0 0.0
  %459 = vmatpush1.msra.mxu0 0.0
  %460 = vmatprep.subr.mxu0 0.0
  %461 = vmatpush1.msra.mxu0 0.0
  %462 = vmatprep.subr.mxu0 0.0
  %463 = vmatpush1.msra.mxu0 0.0
  %464 = vmatprep.subr.mxu0 0.0
  %465 = vmatpush1.msra.mxu0 0.0
  %466 = vmatprep.mubr.f32.mxu0 0.0
  %467 = vmatmul.mubr.f32.gmra.mrb[0].mxu0 %v146
  %v468 = vpop.f32.mrb[0].mxu0
  %v469 = vadd.f32 0.0, %v468
  %v470 = vpop.f32.mrb[0].mxu0
  %v471 = vadd.f32 0.0, %v470
  %472 = vmatprep.mubr.f32.mxu0 0.0
  %473 = vmatmul.mubr.f32.gmra.mrb[0].mxu0 %v149
  %v474 = vpop.f32.mrb[0].mxu0
  %v475 = vadd.f32 0.0, %v474
  %v476 = vpop.f32.mrb[0].mxu0
  %v477 = vadd.f32 0.0, %v476
  %478 = vdwg.mxu0
  %479 = vmatprep.subr.mxu0 %v23
  %480 = vmatpush1.msra.mxu0 %v22
  %481 = vmatprep.subr.mxu0 %v55
  %482 = vmatpush1.msra.mxu0 %v54
  %483 = vmatprep.subr.mxu0 %v87
  %484 = vmatpush1.msra.mxu0 %v86
  %485 = vmatprep.subr.mxu0 %v174
  %486 = vmatpush1.msra.mxu0 %v171
  %487 = vmatprep.subr.mxu0 0.0
  %488 = vmatpush1.msra.mxu0 0.0
  %489 = vmatprep.subr.mxu0 0.0
  %490 = vmatpush1.msra.mxu0 0.0
  %491 = vmatprep.subr.mxu0 0.0
  %492 = vmatpush1.msra.mxu0 0.0
  %493 = vmatprep.subr.mxu0 0.0
  %494 = vmatpush1.msra.mxu0 0.0
  %495 = vmatprep.subr.mxu0 0.0
  %496 = vmatpush1.msra.mxu0 0.0
  %497 = vmatprep.subr.mxu0 0.0
  %498 = vmatpush1.msra.mxu0 0.0
  %499 = vmatprep.subr.mxu0 0.0
  %500 = vmatpush1.msra.mxu0 0.0
  %501 = vmatprep.subr.mxu0 0.0
  %502 = vmatpush1.msra.mxu0 0.0
  %503 = vmatprep.subr.mxu0 0.0
  %504 = vmatpush1.msra.mxu0 0.0
  %505 = vmatprep.subr.mxu0 0.0
  %506 = vmatpush1.msra.mxu0 0.0
  %507 = vmatprep.subr.mxu0 0.0
  %508 = vmatpush1.msra.mxu0 0.0
  %509 = vmatprep.subr.mxu0 0.0
  %510 = vmatpush1.msra.mxu0 0.0
  %511 = vmatprep.subr.mxu0 0.0
  %512 = vmatpush1.msra.mxu0 0.0
  %513 = vmatprep.subr.mxu0 0.0
  %514 = vmatpush1.msra.mxu0 0.0
  %515 = vmatprep.subr.mxu0 0.0
  %516 = vmatpush1.msra.mxu0 0.0
  %517 = vmatprep.subr.mxu0 0.0
  %518 = vmatpush1.msra.mxu0 0.0
  %519 = vmatprep.subr.mxu0 0.0
  %520 = vmatpush1.msra.mxu0 0.0
  %521 = vmatprep.subr.mxu0 0.0
  %522 = vmatpush1.msra.mxu0 0.0
  %523 = vmatprep.subr.mxu0 0.0
  %524 = vmatpush1.msra.mxu0 0.0
  %525 = vmatprep.subr.mxu0 0.0
  %526 = vmatpush1.msra.mxu0 0.0
  %527 = vmatprep.subr.mxu0 0.0
  %528 = vmatpush1.msra.mxu0 0.0
  %529 = vmatprep.subr.mxu0 0.0
  %530 = vmatpush1.msra.mxu0 0.0
  %531 = vmatprep.subr.mxu0 0.0
  %532 = vmatpush1.msra.mxu0 0.0
  %533 = vmatprep.subr.mxu0 0.0
  %534 = vmatpush1.msra.mxu0 0.0
  %535 = vmatprep.subr.mxu0 0.0
  %536 = vmatpush1.msra.mxu0 0.0
  %537 = vmatprep.subr.mxu0 0.0
  %538 = vmatpush1.msra.mxu0 0.0
  %539 = vmatprep.subr.mxu0 0.0
  %540 = vmatpush1.msra.mxu0 0.0
  %541 = vmatprep.subr.mxu0 0.0
  %542 = vmatpush1.msra.mxu0 0.0
  %543 = vmatprep.mubr.f32.mxu0 0.0
  %544 = vmatmul.mubr.f32.gmra.mrb[0].mxu0 %v146
  %v545 = vpop.f32.mrb[0].mxu0
  %v546 = vadd.f32 0.0, %v545
  %v547 = vpop.f32.mrb[0].mxu0
  %v548 = vadd.f32 0.0, %v547
  %549 = vmatprep.mubr.f32.mxu0 0.0
  %550 = vmatmul.mubr.f32.gmra.mrb[0].mxu0 %v149
  %v551 = vpop.f32.mrb[0].mxu0
  %v552 = vadd.f32 0.0, %v551
  %v553 = vpop.f32.mrb[0].mxu0
  %v554 = vadd.f32 0.0, %v553
  %555 = vdwg.mxu0
  %556 = vmatprep.subr.mxu0 %v25
  %557 = vmatpush1.msra.mxu0 %v24
  %558 = vmatprep.subr.mxu0 %v57
  %559 = vmatpush1.msra.mxu0 %v56
  %560 = vmatprep.subr.mxu0 %v89
  %561 = vmatpush1.msra.mxu0 %v88
  %562 = vmatprep.subr.mxu0 %v180
  %563 = vmatpush1.msra.mxu0 %v177
  %564 = vmatprep.subr.mxu0 0.0
  %565 = vmatpush1.msra.mxu0 0.0
  %566 = vmatprep.subr.mxu0 0.0
  %567 = vmatpush1.msra.mxu0 0.0
  %568 = vmatprep.subr.mxu0 0.0
  %569 = vmatpush1.msra.mxu0 0.0
  %570 = vmatprep.subr.mxu0 0.0
  %571 = vmatpush1.msra.mxu0 0.0
  %572 = vmatprep.subr.mxu0 0.0
  %573 = vmatpush1.msra.mxu0 0.0
  %574 = vmatprep.subr.mxu0 0.0
  %575 = vmatpush1.msra.mxu0 0.0
  %576 = vmatprep.subr.mxu0 0.0
  %577 = vmatpush1.msra.mxu0 0.0
  %578 = vmatprep.subr.mxu0 0.0
  %579 = vmatpush1.msra.mxu0 0.0
  %580 = vmatprep.subr.mxu0 0.0
  %581 = vmatpush1.msra.mxu0 0.0
  %582 = vmatprep.subr.mxu0 0.0
  %583 = vmatpush1.msra.mxu0 0.0
  %584 = vmatprep.subr.mxu0 0.0
  %585 = vmatpush1.msra.mxu0 0.0
  %586 = vmatprep.subr.mxu0 0.0
  %587 = vmatpush1.msra.mxu0 0.0
  %588 = vmatprep.subr.mxu0 0.0
  %589 = vmatpush1.msra.mxu0 0.0
  %590 = vmatprep.subr.mxu0 0.0
  %591 = vmatpush1.msra.mxu0 0.0
  %592 = vmatprep.subr.mxu0 0.0
  %593 = vmatpush1.msra.mxu0 0.0
  %594 = vmatprep.subr.mxu0 0.0
  %595 = vmatpush1.msra.mxu0 0.0
  %596 = vmatprep.subr.mxu0 0.0
  %597 = vmatpush1.msra.mxu0 0.0
  %598 = vmatprep.subr.mxu0 0.0
  %599 = vmatpush1.msra.mxu0 0.0
  %600 = vmatprep.subr.mxu0 0.0
  %601 = vmatpush1.msra.mxu0 0.0
  %602 = vmatprep.subr.mxu0 0.0
  %603 = vmatpush1.msra.mxu0 0.0
  %604 = vmatprep.subr.mxu0 0.0
  %605 = vmatpush1.msra.mxu0 0.0
  %606 = vmatprep.subr.mxu0 0.0
  %607 = vmatpush1.msra.mxu0 0.0
  %608 = vmatprep.subr.mxu0 0.0
  %609 = vmatpush1.msra.mxu0 0.0
  %610 = vmatprep.subr.mxu0 0.0
  %611 = vmatpush1.msra.mxu0 0.0
  %612 = vmatprep.subr.mxu0 0.0
  %613 = vmatpush1.msra.mxu0 0.0
  %614 = vmatprep.subr.mxu0 0.0
  %615 = vmatpush1.msra.mxu0 0.0
  %616 = vmatprep.subr.mxu0 0.0
  %617 = vmatpush1.msra.mxu0 0.0
  %618 = vmatprep.subr.mxu0 0.0
  %619 = vmatpush1.msra.mxu0 0.0
  %620 = vmatprep.mubr.f32.mxu0 0.0
  %621 = vmatmul.mubr.f32.gmra.mrb[0].mxu0 %v146
  %v622 = vpop.f32.mrb[0].mxu0
  %v623 = vadd.f32 0.0, %v622
  %v624 = vpop.f32.mrb[0].mxu0
  %v625 = vadd.f32 0.0, %v624
  %626 = vmatprep.mubr.f32.mxu0 0.0
  %627 = vmatmul.mubr.f32.gmra.mrb[0].mxu0 %v149
  %v628 = vpop.f32.mrb[0].mxu0
  %v629 = vadd.f32 0.0, %v628
  %v630 = vpop.f32.mrb[0].mxu0
  %v631 = vadd.f32 0.0, %v630
  %632 = vdwg.mxu0
  %633 = vmatprep.subr.mxu0 %v27
  %634 = vmatpush1.msra.mxu0 %v26
  %635 = vmatprep.subr.mxu0 %v59
  %636 = vmatpush1.msra.mxu0 %v58
  %637 = vmatprep.subr.mxu0 %v91
  %638 = vmatpush1.msra.mxu0 %v90
  %639 = vmatprep.subr.mxu0 %v186
  %640 = vmatpush1.msra.mxu0 %v183
  %641 = vmatprep.subr.mxu0 0.0
  %642 = vmatpush1.msra.mxu0 0.0
  %643 = vmatprep.subr.mxu0 0.0
  %644 = vmatpush1.msra.mxu0 0.0
  %645 = vmatprep.subr.mxu0 0.0
  %646 = vmatpush1.msra.mxu0 0.0
  %647 = vmatprep.subr.mxu0 0.0
  %648 = vmatpush1.msra.mxu0 0.0
  %649 = vmatprep.subr.mxu0 0.0
  %650 = vmatpush1.msra.mxu0 0.0
  %651 = vmatprep.subr.mxu0 0.0
  %652 = vmatpush1.msra.mxu0 0.0
  %653 = vmatprep.subr.mxu0 0.0
  %654 = vmatpush1.msra.mxu0 0.0
  %655 = vmatprep.subr.mxu0 0.0
  %656 = vmatpush1.msra.mxu0 0.0
  %657 = vmatprep.subr.mxu0 0.0
  %658 = vmatpush1.msra.mxu0 0.0
  %659 = vmatprep.subr.mxu0 0.0
  %660 = vmatpush1.msra.mxu0 0.0
  %661 = vmatprep.subr.mxu0 0.0
  %662 = vmatpush1.msra.mxu0 0.0
  %663 = vmatprep.subr.mxu0 0.0
  %664 = vmatpush1.msra.mxu0 0.0
  %665 = vmatprep.subr.mxu0 0.0
  %666 = vmatpush1.msra.mxu0 0.0
  %667 = vmatprep.subr.mxu0 0.0
  %668 = vmatpush1.msra.mxu0 0.0
  %669 = vmatprep.subr.mxu0 0.0
  %670 = vmatpush1.msra.mxu0 0.0
  %671 = vmatprep.subr.mxu0 0.0
  %672 = vmatpush1.msra.mxu0 0.0
  %673 = vmatprep.subr.mxu0 0.0
  %674 = vmatpush1.msra.mxu0 0.0
  %675 = vmatprep.subr.mxu0 0.0
  %676 = vmatpush1.msra.mxu0 0.0
  %677 = vmatprep.subr.mxu0 0.0
  %678 = vmatpush1.msra.mxu0 0.0
  %679 = vmatprep.subr.mxu0 0.0
  %680 = vmatpush1.msra.mxu0 0.0
  %681 = vmatprep.subr.mxu0 0.0
  %682 = vmatpush1.msra.mxu0 0.0
  %683 = vmatprep.subr.mxu0 0.0
  %684 = vmatpush1.msra.mxu0 0.0
  %685 = vmatprep.subr.mxu0 0.0
  %686 = vmatpush1.msra.mxu0 0.0
  %687 = vmatprep.subr.mxu0 0.0
  %688 = vmatpush1.msra.mxu0 0.0
  %689 = vmatprep.subr.mxu0 0.0
  %690 = vmatpush1.msra.mxu0 0.0
  %691 = vmatprep.subr.mxu0 0.0
  %692 = vmatpush1.msra.mxu0 0.0
  %693 = vmatprep.subr.mxu0 0.0
  %694 = vmatpush1.msra.mxu0 0.0
  %695 = vmatprep.subr.mxu0 0.0
  %696 = vmatpush1.msra.mxu0 0.0
  %697 = vmatprep.mubr.f32.mxu0 0.0
  %698 = vmatmul.mubr.f32.gmra.mrb[0].mxu0 %v146
  %v699 = vpop.f32.mrb[0].mxu0
  %v700 = vadd.f32 0.0, %v699
  %v701 = vpop.f32.mrb[0].mxu0
  %v702 = vadd.f32 0.0, %v701
  %703 = vmatprep.mubr.f32.mxu0 0.0
  %704 = vmatmul.mubr.f32.gmra.mrb[0].mxu0 %v149
  %v705 = vpop.f32.mrb[0].mxu0
  %v706 = vadd.f32 0.0, %v705
  %v707 = vpop.f32.mrb[0].mxu0
  %v708 = vadd.f32 0.0, %v707
  %709 = vdwg.mxu0
  %710 = vmatprep.subr.mxu0 %v29
  %711 = vmatpush1.msra.mxu0 %v28
  %712 = vmatprep.subr.mxu0 %v61
  %713 = vmatpush1.msra.mxu0 %v60
  %714 = vmatprep.subr.mxu0 %v93
  %715 = vmatpush1.msra.mxu0 %v92
  %716 = vmatprep.subr.mxu0 %v192
  %717 = vmatpush1.msra.mxu0 %v189
  %718 = vmatprep.subr.mxu0 0.0
  %719 = vmatpush1.msra.mxu0 0.0
  %720 = vmatprep.subr.mxu0 0.0
  %721 = vmatpush1.msra.mxu0 0.0
  %722 = vmatprep.subr.mxu0 0.0
  %723 = vmatpush1.msra.mxu0 0.0
  %724 = vmatprep.subr.mxu0 0.0
  %725 = vmatpush1.msra.mxu0 0.0
  %726 = vmatprep.subr.mxu0 0.0
  %727 = vmatpush1.msra.mxu0 0.0
  %728 = vmatprep.subr.mxu0 0.0
  %729 = vmatpush1.msra.mxu0 0.0
  %730 = vmatprep.subr.mxu0 0.0
  %731 = vmatpush1.msra.mxu0 0.0
  %732 = vmatprep.subr.mxu0 0.0
  %733 = vmatpush1.msra.mxu0 0.0
  %734 = vmatprep.subr.mxu0 0.0
  %735 = vmatpush1.msra.mxu0 0.0
  %736 = vmatprep.subr.mxu0 0.0
  %737 = vmatpush1.msra.mxu0 0.0
  %738 = vmatprep.subr.mxu0 0.0
  %739 = vmatpush1.msra.mxu0 0.0
  %740 = vmatprep.subr.mxu0 0.0
  %741 = vmatpush1.msra.mxu0 0.0
  %742 = vmatprep.subr.mxu0 0.0
  %743 = vmatpush1.msra.mxu0 0.0
  %744 = vmatprep.subr.mxu0 0.0
  %745 = vmatpush1.msra.mxu0 0.0
  %746 = vmatprep.subr.mxu0 0.0
  %747 = vmatpush1.msra.mxu0 0.0
  %748 = vmatprep.subr.mxu0 0.0
  %749 = vmatpush1.msra.mxu0 0.0
  %750 = vmatprep.subr.mxu0 0.0
  %751 = vmatpush1.msra.mxu0 0.0
  %752 = vmatprep.subr.mxu0 0.0
  %753 = vmatpush1.msra.mxu0 0.0
  %754 = vmatprep.subr.mxu0 0.0
  %755 = vmatpush1.msra.mxu0 0.0
  %756 = vmatprep.subr.mxu0 0.0
  %757 = vmatpush1.msra.mxu0 0.0
  %758 = vmatprep.subr.mxu0 0.0
  %759 = vmatpush1.msra.mxu0 0.0
  %760 = vmatprep.subr.mxu0 0.0
  %761 = vmatpush1.msra.mxu0 0.0
  %762 = vmatprep.subr.mxu0 0.0
  %763 = vmatpush1.msra.mxu0 0.0
  %764 = vmatprep.subr.mxu0 0.0
  %765 = vmatpush1.msra.mxu0 0.0
  %766 = vmatprep.subr.mxu0 0.0
  %767 = vmatpush1.msra.mxu0 0.0
  %768 = vmatprep.subr.mxu0 0.0
  %769 = vmatpush1.msra.mxu0 0.0
  %770 = vmatprep.subr.mxu0 0.0
  %771 = vmatpush1.msra.mxu0 0.0
  %772 = vmatprep.subr.mxu0 0.0
  %773 = vmatpush1.msra.mxu0 0.0
  %774 = vmatprep.mubr.f32.mxu0 0.0
  %775 = vmatmul.mubr.f32.gmra.mrb[0].mxu0 %v146
  %v776 = vpop.f32.mrb[0].mxu0
  %v777 = vadd.f32 0.0, %v776
  %v778 = vpop.f32.mrb[0].mxu0
  %v779 = vadd.f32 0.0, %v778
  %780 = vmatprep.mubr.f32.mxu0 0.0
  %781 = vmatmul.mubr.f32.gmra.mrb[0].mxu0 %v149
  %v782 = vpop.f32.mrb[0].mxu0
  %v783 = vadd.f32 0.0, %v782
  %v784 = vpop.f32.mrb[0].mxu0
  %v785 = vadd.f32 0.0, %v784
  %786 = vdwg.mxu0
  %787 = vmatprep.subr.mxu0 %v31
  %788 = vmatpush1.msra.mxu0 %v30
  %789 = vmatprep.subr.mxu0 %v63
  %790 = vmatpush1.msra.mxu0 %v62
  %791 = vmatprep.subr.mxu0 %v95
  %792 = vmatpush1.msra.mxu0 %v94
  %793 = vmatprep.subr.mxu0 %v198
  %794 = vmatpush1.msra.mxu0 %v195
  %795 = vmatprep.subr.mxu0 0.0
  %796 = vmatpush1.msra.mxu0 0.0
  %797 = vmatprep.subr.mxu0 0.0
  %798 = vmatpush1.msra.mxu0 0.0
  %799 = vmatprep.subr.mxu0 0.0
  %800 = vmatpush1.msra.mxu0 0.0
  %801 = vmatprep.subr.mxu0 0.0
  %802 = vmatpush1.msra.mxu0 0.0
  %803 = vmatprep.subr.mxu0 0.0
  %804 = vmatpush1.msra.mxu0 0.0
  %805 = vmatprep.subr.mxu0 0.0
  %806 = vmatpush1.msra.mxu0 0.0
  %807 = vmatprep.subr.mxu0 0.0
  %808 = vmatpush1.msra.mxu0 0.0
  %809 = vmatprep.subr.mxu0 0.0
  %810 = vmatpush1.msra.mxu0 0.0
  %811 = vmatprep.subr.mxu0 0.0
  %812 = vmatpush1.msra.mxu0 0.0
  %813 = vmatprep.subr.mxu0 0.0
  %814 = vmatpush1.msra.mxu0 0.0
  %815 = vmatprep.subr.mxu0 0.0
  %816 = vmatpush1.msra.mxu0 0.0
  %817 = vmatprep.subr.mxu0 0.0
  %818 = vmatpush1.msra.mxu0 0.0
  %819 = vmatprep.subr.mxu0 0.0
  %820 = vmatpush1.msra.mxu0 0.0
  %821 = vmatprep.subr.mxu0 0.0
  %822 = vmatpush1.msra.mxu0 0.0
  %823 = vmatprep.subr.mxu0 0.0
  %824 = vmatpush1.msra.mxu0 0.0
  %825 = vmatprep.subr.mxu0 0.0
  %826 = vmatpush1.msra.mxu0 0.0
  %827 = vmatprep.subr.mxu0 0.0
  %828 = vmatpush1.msra.mxu0 0.0
  %829 = vmatprep.subr.mxu0 0.0
  %830 = vmatpush1.msra.mxu0 0.0
  %831 = vmatprep.subr.mxu0 0.0
  %832 = vmatpush1.msra.mxu0 0.0
  %833 = vmatprep.subr.mxu0 0.0
  %834 = vmatpush1.msra.mxu0 0.0
  %835 = vmatprep.subr.mxu0 0.0
  %836 = vmatpush1.msra.mxu0 0.0
  %837 = vmatprep.subr.mxu0 0.0
  %838 = vmatpush1.msra.mxu0 0.0
  %839 = vmatprep.subr.mxu0 0.0
  %840 = vmatpush1.msra.mxu0 0.0
  %841 = vmatprep.subr.mxu0 0.0
  %842 = vmatpush1.msra.mxu0 0.0
  %843 = vmatprep.subr.mxu0 0.0
  %844 = vmatpush1.msra.mxu0 0.0
  %845 = vmatprep.subr.mxu0 0.0
  %846 = vmatpush1.msra.mxu0 0.0
  %847 = vmatprep.subr.mxu0 0.0
  %848 = vmatpush1.msra.mxu0 0.0
  %849 = vmatprep.subr.mxu0 0.0
  %850 = vmatpush1.msra.mxu0 0.0
  %851 = vmatprep.mubr.f32.mxu0 0.0
  %852 = vmatmul.mubr.f32.gmra.mrb[0].mxu0 %v146
  %v853 = vpop.f32.mrb[0].mxu0
  %v854 = vadd.f32 0.0, %v853
  %v855 = vpop.f32.mrb[0].mxu0
  %v856 = vadd.f32 0.0, %v855
  %857 = vmatprep.mubr.f32.mxu0 0.0
  %858 = vmatmul.mubr.f32.gmra.mrb[0].mxu0 %v149
  %v859 = vpop.f32.mrb[0].mxu0
  %v860 = vadd.f32 0.0, %v859
  %v861 = vpop.f32.mrb[0].mxu0
  %v862 = vadd.f32 0.0, %v861
  %863 = vdwg.mxu0
  %864 = vmatprep.subr.mxu0 %v33
  %865 = vmatpush1.msra.mxu0 %v32
  %866 = vmatprep.subr.mxu0 %v65
  %867 = vmatpush1.msra.mxu0 %v64
  %868 = vmatprep.subr.mxu0 %v97
  %869 = vmatpush1.msra.mxu0 %v96
  %870 = vmatprep.subr.mxu0 %v204
  %871 = vmatpush1.msra.mxu0 %v201
  %872 = vmatprep.subr.mxu0 0.0
  %873 = vmatpush1.msra.mxu0 0.0
  %874 = vmatprep.subr.mxu0 0.0
  %875 = vmatpush1.msra.mxu0 0.0
  %876 = vmatprep.subr.mxu0 0.0
  %877 = vmatpush1.msra.mxu0 0.0
  %878 = vmatprep.subr.mxu0 0.0
  %879 = vmatpush1.msra.mxu0 0.0
  %880 = vmatprep.subr.mxu0 0.0
  %881 = vmatpush1.msra.mxu0 0.0
  %882 = vmatprep.subr.mxu0 0.0
  %883 = vmatpush1.msra.mxu0 0.0
  %884 = vmatprep.subr.mxu0 0.0
  %885 = vmatpush1.msra.mxu0 0.0
  %886 = vmatprep.subr.mxu0 0.0
  %887 = vmatpush1.msra.mxu0 0.0
  %888 = vmatprep.subr.mxu0 0.0
  %889 = vmatpush1.msra.mxu0 0.0
  %890 = vmatprep.subr.mxu0 0.0
  %891 = vmatpush1.msra.mxu0 0.0
  %892 = vmatprep.subr.mxu0 0.0
  %893 = vmatpush1.msra.mxu0 0.0
  %894 = vmatprep.subr.mxu0 0.0
  %895 = vmatpush1.msra.mxu0 0.0
  %896 = vmatprep.subr.mxu0 0.0
  %897 = vmatpush1.msra.mxu0 0.0
  %898 = vmatprep.subr.mxu0 0.0
  %899 = vmatpush1.msra.mxu0 0.0
  %900 = vmatprep.subr.mxu0 0.0
  %901 = vmatpush1.msra.mxu0 0.0
  %902 = vmatprep.subr.mxu0 0.0
  %903 = vmatpush1.msra.mxu0 0.0
  %904 = vmatprep.subr.mxu0 0.0
  %905 = vmatpush1.msra.mxu0 0.0
  %906 = vmatprep.subr.mxu0 0.0
  %907 = vmatpush1.msra.mxu0 0.0
  %908 = vmatprep.subr.mxu0 0.0
  %909 = vmatpush1.msra.mxu0 0.0
  %910 = vmatprep.subr.mxu0 0.0
  %911 = vmatpush1.msra.mxu0 0.0
  %912 = vmatprep.subr.mxu0 0.0
  %913 = vmatpush1.msra.mxu0 0.0
  %914 = vmatprep.subr.mxu0 0.0
  %915 = vmatpush1.msra.mxu0 0.0
  %916 = vmatprep.subr.mxu0 0.0
  %917 = vmatpush1.msra.mxu0 0.0
  %918 = vmatprep.subr.mxu0 0.0
  %919 = vmatpush1.msra.mxu0 0.0
  %920 = vmatprep.subr.mxu0 0.0
  %921 = vmatpush1.msra.mxu0 0.0
  %922 = vmatprep.subr.mxu0 0.0
  %923 = vmatpush1.msra.mxu0 0.0
  %924 = vmatprep.subr.mxu0 0.0
  %925 = vmatpush1.msra.mxu0 0.0
  %926 = vmatprep.subr.mxu0 0.0
  %927 = vmatpush1.msra.mxu0 0.0
  %928 = vmatprep.mubr.f32.mxu0 0.0
  %929 = vmatmul.mubr.f32.gmra.mrb[0].mxu0 %v146
  %v930 = vpop.f32.mrb[0].mxu0
  %v931 = vadd.f32 0.0, %v930
  %v932 = vpop.f32.mrb[0].mxu0
  %v933 = vadd.f32 0.0, %v932
  %934 = vmatprep.mubr.f32.mxu0 0.0
  %935 = vmatmul.mubr.f32.gmra.mrb[0].mxu0 %v149
  %v936 = vpop.f32.mrb[0].mxu0
  %v937 = vadd.f32 0.0, %v936
  %v938 = vpop.f32.mrb[0].mxu0
  %v939 = vadd.f32 0.0, %v938
  %940 = vdwg.mxu0
  %941 = vmatprep.subr.mxu0 %v35
  %942 = vmatpush1.msra.mxu0 %v34
  %943 = vmatprep.subr.mxu0 %v67
  %944 = vmatpush1.msra.mxu0 %v66
  %945 = vmatprep.subr.mxu0 %v99
  %946 = vmatpush1.msra.mxu0 %v98
  %947 = vmatprep.subr.mxu0 %v210
  %948 = vmatpush1.msra.mxu0 %v207
  %949 = vmatprep.subr.mxu0 0.0
  %950 = vmatpush1.msra.mxu0 0.0
  %951 = vmatprep.subr.mxu0 0.0
  %952 = vmatpush1.msra.mxu0 0.0
  %953 = vmatprep.subr.mxu0 0.0
  %954 = vmatpush1.msra.mxu0 0.0
  %955 = vmatprep.subr.mxu0 0.0
  %956 = vmatpush1.msra.mxu0 0.0
  %957 = vmatprep.subr.mxu0 0.0
  %958 = vmatpush1.msra.mxu0 0.0
  %959 = vmatprep.subr.mxu0 0.0
  %960 = vmatpush1.msra.mxu0 0.0
  %961 = vmatprep.subr.mxu0 0.0
  %962 = vmatpush1.msra.mxu0 0.0
  %963 = vmatprep.subr.mxu0 0.0
  %964 = vmatpush1.msra.mxu0 0.0
  %965 = vmatprep.subr.mxu0 0.0
  %966 = vmatpush1.msra.mxu0 0.0
  %967 = vmatprep.subr.mxu0 0.0
  %968 = vmatpush1.msra.mxu0 0.0
  %969 = vmatprep.subr.mxu0 0.0
  %970 = vmatpush1.msra.mxu0 0.0
  %971 = vmatprep.subr.mxu0 0.0
  %972 = vmatpush1.msra.mxu0 0.0
  %973 = vmatprep.subr.mxu0 0.0
  %974 = vmatpush1.msra.mxu0 0.0
  %975 = vmatprep.subr.mxu0 0.0
  %976 = vmatpush1.msra.mxu0 0.0
  %977 = vmatprep.subr.mxu0 0.0
  %978 = vmatpush1.msra.mxu0 0.0
  %979 = vmatprep.subr.mxu0 0.0
  %980 = vmatpush1.msra.mxu0 0.0
  %981 = vmatprep.subr.mxu0 0.0
  %982 = vmatpush1.msra.mxu0 0.0
  %983 = vmatprep.subr.mxu0 0.0
  %984 = vmatpush1.msra.mxu0 0.0
  %985 = vmatprep.subr.mxu0 0.0
  %986 = vmatpush1.msra.mxu0 0.0
  %987 = vmatprep.subr.mxu0 0.0
  %988 = vmatpush1.msra.mxu0 0.0
  %989 = vmatprep.subr.mxu0 0.0
  %990 = vmatpush1.msra.mxu0 0.0
  %991 = vmatprep.subr.mxu0 0.0
  %992 = vmatpush1.msra.mxu0 0.0
  %993 = vmatprep.subr.mxu0 0.0
  %994 = vmatpush1.msra.mxu0 0.0
  %995 = vmatprep.subr.mxu0 0.0
  %996 = vmatpush1.msra.mxu0 0.0
  %997 = vmatprep.subr.mxu0 0.0
  %998 = vmatpush1.msra.mxu0 0.0
  %999 = vmatprep.subr.mxu0 0.0
  %1000 = vmatpush1.msra.mxu0 0.0
  %1001 = vmatprep.subr.mxu0 0.0
  %1002 = vmatpush1.msra.mxu0 0.0
  %1003 = vmatprep.subr.mxu0 0.0
  %1004 = vmatpush1.msra.mxu0 0.0
  %1005 = vmatprep.mubr.f32.mxu0 0.0
  %1006 = vmatmul.mubr.f32.gmra.mrb[0].mxu0 %v146
  %v1007 = vpop.f32.mrb[0].mxu0
  %v1008 = vadd.f32 0.0, %v1007
  %v1009 = vpop.f32.mrb[0].mxu0
  %v1010 = vadd.f32 0.0, %v1009
  %1011 = vmatprep.mubr.f32.mxu0 0.0
  %1012 = vmatmul.mubr.f32.gmra.mrb[0].mxu0 %v149
  %v1013 = vpop.f32.mrb[0].mxu0
  %v1014 = vadd.f32 0.0, %v1013
  %v1015 = vpop.f32.mrb[0].mxu0
  %v1016 = vadd.f32 0.0, %v1015
  %1017 = vdwg.mxu0
  %1018 = vmatprep.subr.mxu0 %v37
  %1019 = vmatpush1.msra.mxu0 %v36
  %1020 = vmatprep.subr.mxu0 %v69
  %1021 = vmatpush1.msra.mxu0 %v68
  %1022 = vmatprep.subr.mxu0 %v101
  %1023 = vmatpush1.msra.mxu0 %v100
  %1024 = vmatprep.subr.mxu0 %v216
  %1025 = vmatpush1.msra.mxu0 %v213
  %1026 = vmatprep.subr.mxu0 0.0
  %1027 = vmatpush1.msra.mxu0 0.0
  %1028 = vmatprep.subr.mxu0 0.0
  %1029 = vmatpush1.msra.mxu0 0.0
  %1030 = vmatprep.subr.mxu0 0.0
  %1031 = vmatpush1.msra.mxu0 0.0
  %1032 = vmatprep.subr.mxu0 0.0
  %1033 = vmatpush1.msra.mxu0 0.0
  %1034 = vmatprep.subr.mxu0 0.0
  %1035 = vmatpush1.msra.mxu0 0.0
  %1036 = vmatprep.subr.mxu0 0.0
  %1037 = vmatpush1.msra.mxu0 0.0
  %1038 = vmatprep.subr.mxu0 0.0
  %1039 = vmatpush1.msra.mxu0 0.0
  %1040 = vmatprep.subr.mxu0 0.0
  %1041 = vmatpush1.msra.mxu0 0.0
  %1042 = vmatprep.subr.mxu0 0.0
  %1043 = vmatpush1.msra.mxu0 0.0
  %1044 = vmatprep.subr.mxu0 0.0
  %1045 = vmatpush1.msra.mxu0 0.0
  %1046 = vmatprep.subr.mxu0 0.0
  %1047 = vmatpush1.msra.mxu0 0.0
  %1048 = vmatprep.subr.mxu0 0.0
  %1049 = vmatpush1.msra.mxu0 0.0
  %1050 = vmatprep.subr.mxu0 0.0
  %1051 = vmatpush1.msra.mxu0 0.0
  %1052 = vmatprep.subr.mxu0 0.0
  %1053 = vmatpush1.msra.mxu0 0.0
  %1054 = vmatprep.subr.mxu0 0.0
  %1055 = vmatpush1.msra.mxu0 0.0
  %1056 = vmatprep.subr.mxu0 0.0
  %1057 = vmatpush1.msra.mxu0 0.0
  %1058 = vmatprep.subr.mxu0 0.0
  %1059 = vmatpush1.msra.mxu0 0.0
  %1060 = vmatprep.subr.mxu0 0.0
  %1061 = vmatpush1.msra.mxu0 0.0
  %1062 = vmatprep.subr.mxu0 0.0
  %1063 = vmatpush1.msra.mxu0 0.0
  %1064 = vmatprep.subr.mxu0 0.0
  %1065 = vmatpush1.msra.mxu0 0.0
  %1066 = vmatprep.subr.mxu0 0.0
  %1067 = vmatpush1.msra.mxu0 0.0
  %1068 = vmatprep.subr.mxu0 0.0
  %1069 = vmatpush1.msra.mxu0 0.0
  %1070 = vmatprep.subr.mxu0 0.0
  %1071 = vmatpush1.msra.mxu0 0.0
  %1072 = vmatprep.subr.mxu0 0.0
  %1073 = vmatpush1.msra.mxu0 0.0
  %1074 = vmatprep.subr.mxu0 0.0
  %1075 = vmatpush1.msra.mxu0 0.0
  %1076 = vmatprep.subr.mxu0 0.0
  %1077 = vmatpush1.msra.mxu0 0.0
  %1078 = vmatprep.subr.mxu0 0.0
  %1079 = vmatpush1.msra.mxu0 0.0
  %1080 = vmatprep.subr.mxu0 0.0
  %1081 = vmatpush1.msra.mxu0 0.0
  %1082 = vmatprep.mubr.f32.mxu0 0.0
  %1083 = vmatmul.mubr.f32.gmra.mrb[0].mxu0 %v146
  %v1084 = vpop.f32.mrb[0].mxu0
  %v1085 = vadd.f32 0.0, %v1084
  %v1086 = vpop.f32.mrb[0].mxu0
  %v1087 = vadd.f32 0.0, %v1086
  %1088 = vmatprep.mubr.f32.mxu0 0.0
  %1089 = vmatmul.mubr.f32.gmra.mrb[0].mxu0 %v149
  %v1090 = vpop.f32.mrb[0].mxu0
  %v1091 = vadd.f32 0.0, %v1090
  %v1092 = vpop.f32.mrb[0].mxu0
  %v1093 = vadd.f32 0.0, %v1092
  %1094 = vdwg.mxu0
  %1095 = vmatprep.subr.mxu0 %v39
  %1096 = vmatpush1.msra.mxu0 %v38
  %1097 = vmatprep.subr.mxu0 %v71
  %1098 = vmatpush1.msra.mxu0 %v70
  %1099 = vmatprep.subr.mxu0 %v103
  %1100 = vmatpush1.msra.mxu0 %v102
  %1101 = vmatprep.subr.mxu0 %v222
  %1102 = vmatpush1.msra.mxu0 %v219
  %1103 = vmatprep.subr.mxu0 0.0
  %1104 = vmatpush1.msra.mxu0 0.0
  %1105 = vmatprep.subr.mxu0 0.0
  %1106 = vmatpush1.msra.mxu0 0.0
  %1107 = vmatprep.subr.mxu0 0.0
  %1108 = vmatpush1.msra.mxu0 0.0
  %1109 = vmatprep.subr.mxu0 0.0
  %1110 = vmatpush1.msra.mxu0 0.0
  %1111 = vmatprep.subr.mxu0 0.0
  %1112 = vmatpush1.msra.mxu0 0.0
  %1113 = vmatprep.subr.mxu0 0.0
  %1114 = vmatpush1.msra.mxu0 0.0
  %1115 = vmatprep.subr.mxu0 0.0
  %1116 = vmatpush1.msra.mxu0 0.0
  %1117 = vmatprep.subr.mxu0 0.0
  %1118 = vmatpush1.msra.mxu0 0.0
  %1119 = vmatprep.subr.mxu0 0.0
  %1120 = vmatpush1.msra.mxu0 0.0
  %1121 = vmatprep.subr.mxu0 0.0
  %1122 = vmatpush1.msra.mxu0 0.0
  %1123 = vmatprep.subr.mxu0 0.0
  %1124 = vmatpush1.msra.mxu0 0.0
  %1125 = vmatprep.subr.mxu0 0.0
  %1126 = vmatpush1.msra.mxu0 0.0
  %1127 = vmatprep.subr.mxu0 0.0
  %1128 = vmatpush1.msra.mxu0 0.0
  %1129 = vmatprep.subr.mxu0 0.0
  %1130 = vmatpush1.msra.mxu0 0.0
  %1131 = vmatprep.subr.mxu0 0.0
  %1132 = vmatpush1.msra.mxu0 0.0
  %1133 = vmatprep.subr.mxu0 0.0
  %1134 = vmatpush1.msra.mxu0 0.0
  %1135 = vmatprep.subr.mxu0 0.0
  %1136 = vmatpush1.msra.mxu0 0.0
  %1137 = vmatprep.subr.mxu0 0.0
  %1138 = vmatpush1.msra.mxu0 0.0
  %1139 = vmatprep.subr.mxu0 0.0
  %1140 = vmatpush1.msra.mxu0 0.0
  %1141 = vmatprep.subr.mxu0 0.0
  %1142 = vmatpush1.msra.mxu0 0.0
  %1143 = vmatprep.subr.mxu0 0.0
  %1144 = vmatpush1.msra.mxu0 0.0
  %1145 = vmatprep.subr.mxu0 0.0
  %1146 = vmatpush1.msra.mxu0 0.0
  %1147 = vmatprep.subr.mxu0 0.0
  %1148 = vmatpush1.msra.mxu0 0.0
  %1149 = vmatprep.subr.mxu0 0.0
  %1150 = vmatpush1.msra.mxu0 0.0
  %1151 = vmatprep.subr.mxu0 0.0
  %1152 = vmatpush1.msra.mxu0 0.0
  %1153 = vmatprep.subr.mxu0 0.0
  %1154 = vmatpush1.msra.mxu0 0.0
  %1155 = vmatprep.subr.mxu0 0.0
  %1156 = vmatpush1.msra.mxu0 0.0
  %1157 = vmatprep.subr.mxu0 0.0
  %1158 = vmatpush1.msra.mxu0 0.0
  %1159 = vmatprep.mubr.f32.mxu0 0.0
  %1160 = vmatmul.mubr.f32.gmra.mrb[0].mxu0 %v146
  %v1161 = vpop.f32.mrb[0].mxu0
  %v1162 = vadd.f32 0.0, %v1161
  %v1163 = vpop.f32.mrb[0].mxu0
  %v1164 = vadd.f32 0.0, %v1163
  %1165 = vmatprep.mubr.f32.mxu0 0.0
  %1166 = vmatmul.mubr.f32.gmra.mrb[0].mxu0 %v149
  %v1167 = vpop.f32.mrb[0].mxu0
  %v1168 = vadd.f32 0.0, %v1167
  %v1169 = vpop.f32.mrb[0].mxu0
  %v1170 = vadd.f32 0.0, %v1169
  %1171 = vdwg.mxu0
  %1172 = vmatprep.subr.mxu0 %v41
  %1173 = vmatpush1.msra.mxu0 %v40
  %1174 = vmatprep.subr.mxu0 %v73
  %1175 = vmatpush1.msra.mxu0 %v72
  %1176 = vmatprep.subr.mxu0 %v105
  %1177 = vmatpush1.msra.mxu0 %v104
  %1178 = vmatprep.subr.mxu0 %v228
  %1179 = vmatpush1.msra.mxu0 %v225
  %1180 = vmatprep.subr.mxu0 0.0
  %1181 = vmatpush1.msra.mxu0 0.0
  %1182 = vmatprep.subr.mxu0 0.0
  %1183 = vmatpush1.msra.mxu0 0.0
  %1184 = vmatprep.subr.mxu0 0.0
  %1185 = vmatpush1.msra.mxu0 0.0
  %1186 = vmatprep.subr.mxu0 0.0
  %1187 = vmatpush1.msra.mxu0 0.0
  %1188 = vmatprep.subr.mxu0 0.0
  %1189 = vmatpush1.msra.mxu0 0.0
  %1190 = vmatprep.subr.mxu0 0.0
  %1191 = vmatpush1.msra.mxu0 0.0
  %1192 = vmatprep.subr.mxu0 0.0
  %1193 = vmatpush1.msra.mxu0 0.0
  %1194 = vmatprep.subr.mxu0 0.0
  %1195 = vmatpush1.msra.mxu0 0.0
  %1196 = vmatprep.subr.mxu0 0.0
  %1197 = vmatpush1.msra.mxu0 0.0
  %1198 = vmatprep.subr.mxu0 0.0
  %1199 = vmatpush1.msra.mxu0 0.0
  %1200 = vmatprep.subr.mxu0 0.0
  %1201 = vmatpush1.msra.mxu0 0.0
  %1202 = vmatprep.subr.mxu0 0.0
  %1203 = vmatpush1.msra.mxu0 0.0
  %1204 = vmatprep.subr.mxu0 0.0
  %1205 = vmatpush1.msra.mxu0 0.0
  %1206 = vmatprep.subr.mxu0 0.0
  %1207 = vmatpush1.msra.mxu0 0.0
  %1208 = vmatprep.subr.mxu0 0.0
  %1209 = vmatpush1.msra.mxu0 0.0
  %1210 = vmatprep.subr.mxu0 0.0
  %1211 = vmatpush1.msra.mxu0 0.0
  %1212 = vmatprep.subr.mxu0 0.0
  %1213 = vmatpush1.msra.mxu0 0.0
  %1214 = vmatprep.subr.mxu0 0.0
  %1215 = vmatpush1.msra.mxu0 0.0
  %1216 = vmatprep.subr.mxu0 0.0
  %1217 = vmatpush1.msra.mxu0 0.0
  %1218 = vmatprep.subr.mxu0 0.0
  %1219 = vmatpush1.msra.mxu0 0.0
  %1220 = vmatprep.subr.mxu0 0.0
  %1221 = vmatpush1.msra.mxu0 0.0
  %1222 = vmatprep.subr.mxu0 0.0
  %1223 = vmatpush1.msra.mxu0 0.0
  %1224 = vmatprep.subr.mxu0 0.0
  %1225 = vmatpush1.msra.mxu0 0.0
  %1226 = vmatprep.subr.mxu0 0.0
  %1227 = vmatpush1.msra.mxu0 0.0
  %1228 = vmatprep.subr.mxu0 0.0
  %1229 = vmatpush1.msra.mxu0 0.0
  %1230 = vmatprep.subr.mxu0 0.0
  %1231 = vmatpush1.msra.mxu0 0.0
  %1232 = vmatprep.subr.mxu0 0.0
  %1233 = vmatpush1.msra.mxu0 0.0
  %1234 = vmatprep.subr.mxu0 0.0
  %1235 = vmatpush1.msra.mxu0 0.0
  %1236 = vmatprep.mubr.f32.mxu0 0.0
  %1237 = vmatmul.mubr.f32.gmra.mrb[0].mxu0 %v146
  %v1238 = vpop.f32.mrb[0].mxu0
  %v1239 = vadd.f32 0.0, %v1238
  %v1240 = vpop.f32.mrb[0].mxu0
  %v1241 = vadd.f32 0.0, %v1240
  %1242 = vmatprep.mubr.f32.mxu0 0.0
  %1243 = vmatmul.mubr.f32.gmra.mrb[0].mxu0 %v149
  %v1244 = vpop.f32.mrb[0].mxu0
  %v1245 = vadd.f32 0.0, %v1244
  %v1246 = vpop.f32.mrb[0].mxu0
  %v1247 = vadd.f32 0.0, %v1246
  %1248 = vdwg.mxu0
  %1249 = vmatprep.subr.mxu0 %v43
  %1250 = vmatpush1.msra.mxu0 %v42
  %1251 = vmatprep.subr.mxu0 %v75
  %1252 = vmatpush1.msra.mxu0 %v74
  %1253 = vmatprep.subr.mxu0 %v107
  %1254 = vmatpush1.msra.mxu0 %v106
  %1255 = vmatprep.subr.mxu0 %v234
  %1256 = vmatpush1.msra.mxu0 %v231
  %1257 = vmatprep.subr.mxu0 0.0
  %1258 = vmatpush1.msra.mxu0 0.0
  %1259 = vmatprep.subr.mxu0 0.0
  %1260 = vmatpush1.msra.mxu0 0.0
  %1261 = vmatprep.subr.mxu0 0.0
  %1262 = vmatpush1.msra.mxu0 0.0
  %1263 = vmatprep.subr.mxu0 0.0
  %1264 = vmatpush1.msra.mxu0 0.0
  %1265 = vmatprep.subr.mxu0 0.0
  %1266 = vmatpush1.msra.mxu0 0.0
  %1267 = vmatprep.subr.mxu0 0.0
  %1268 = vmatpush1.msra.mxu0 0.0
  %1269 = vmatprep.subr.mxu0 0.0
  %1270 = vmatpush1.msra.mxu0 0.0
  %1271 = vmatprep.subr.mxu0 0.0
  %1272 = vmatpush1.msra.mxu0 0.0
  %1273 = vmatprep.subr.mxu0 0.0
  %1274 = vmatpush1.msra.mxu0 0.0
  %1275 = vmatprep.subr.mxu0 0.0
  %1276 = vmatpush1.msra.mxu0 0.0
  %1277 = vmatprep.subr.mxu0 0.0
  %1278 = vmatpush1.msra.mxu0 0.0
  %1279 = vmatprep.subr.mxu0 0.0
  %1280 = vmatpush1.msra.mxu0 0.0
  %1281 = vmatprep.subr.mxu0 0.0
  %1282 = vmatpush1.msra.mxu0 0.0
  %1283 = vmatprep.subr.mxu0 0.0
  %1284 = vmatpush1.msra.mxu0 0.0
  %1285 = vmatprep.subr.mxu0 0.0
  %1286 = vmatpush1.msra.mxu0 0.0
  %1287 = vmatprep.subr.mxu0 0.0
  %1288 = vmatpush1.msra.mxu0 0.0
  %1289 = vmatprep.subr.mxu0 0.0
  %1290 = vmatpush1.msra.mxu0 0.0
  %1291 = vmatprep.subr.mxu0 0.0
  %1292 = vmatpush1.msra.mxu0 0.0
  %1293 = vmatprep.subr.mxu0 0.0
  %1294 = vmatpush1.msra.mxu0 0.0
  %1295 = vmatprep.subr.mxu0 0.0
  %1296 = vmatpush1.msra.mxu0 0.0
  %1297 = vmatprep.subr.mxu0 0.0
  %1298 = vmatpush1.msra.mxu0 0.0
  %1299 = vmatprep.subr.mxu0 0.0
  %1300 = vmatpush1.msra.mxu0 0.0
  %1301 = vmatprep.subr.mxu0 0.0
  %1302 = vmatpush1.msra.mxu0 0.0
  %1303 = vmatprep.subr.mxu0 0.0
  %1304 = vmatpush1.msra.mxu0 0.0
  %1305 = vmatprep.subr.mxu0 0.0
  %1306 = vmatpush1.msra.mxu0 0.0
  %1307 = vmatprep.subr.mxu0 0.0
  %1308 = vmatpush1.msra.mxu0 0.0
  %1309 = vmatprep.subr.mxu0 0.0
  %1310 = vmatpush1.msra.mxu0 0.0
  %1311 = vmatprep.subr.mxu0 0.0
  %1312 = vmatpush1.msra.mxu0 0.0
  %1313 = vmatprep.mubr.f32.mxu0 0.0
  %1314 = vmatmul.mubr.f32.gmra.mrb[0].mxu0 %v146
  %v1315 = vpop.f32.mrb[0].mxu0
  %v1316 = vadd.f32 0.0, %v1315
  %v1317 = vpop.f32.mrb[0].mxu0
  %v1318 = vadd.f32 0.0, %v1317
  %1319 = vmatprep.mubr.f32.mxu0 0.0
  %1320 = vmatmul.mubr.f32.gmra.mrb[0].mxu0 %v149
  %v1321 = vpop.f32.mrb[0].mxu0
  %v1322 = vadd.f32 0.0, %v1321
  %v1323 = vpop.f32.mrb[0].mxu0
  %v1324 = vadd.f32 0.0, %v1323
  %1325 = vdwg.mxu0
  %1326 = vmatprep.subr.mxu0 %v45
  %1327 = vmatpush1.msra.mxu0 %v44
  %1328 = vmatprep.subr.mxu0 %v77
  %1329 = vmatpush1.msra.mxu0 %v76
  %1330 = vmatprep.subr.mxu0 %v109
  %1331 = vmatpush1.msra.mxu0 %v108
  %1332 = vmatprep.subr.mxu0 %v240
  %1333 = vmatpush1.msra.mxu0 %v237
  %1334 = vmatprep.subr.mxu0 0.0
  %1335 = vmatpush1.msra.mxu0 0.0
  %1336 = vmatprep.subr.mxu0 0.0
  %1337 = vmatpush1.msra.mxu0 0.0
  %1338 = vmatprep.subr.mxu0 0.0
  %1339 = vmatpush1.msra.mxu0 0.0
  %1340 = vmatprep.subr.mxu0 0.0
  %1341 = vmatpush1.msra.mxu0 0.0
  %1342 = vmatprep.subr.mxu0 0.0
  %1343 = vmatpush1.msra.mxu0 0.0
  %1344 = vmatprep.subr.mxu0 0.0
  %1345 = vmatpush1.msra.mxu0 0.0
  %1346 = vmatprep.subr.mxu0 0.0
  %1347 = vmatpush1.msra.mxu0 0.0
  %1348 = vmatprep.subr.mxu0 0.0
  %1349 = vmatpush1.msra.mxu0 0.0
  %1350 = vmatprep.subr.mxu0 0.0
  %1351 = vmatpush1.msra.mxu0 0.0
  %1352 = vmatprep.subr.mxu0 0.0
  %1353 = vmatpush1.msra.mxu0 0.0
  %1354 = vmatprep.subr.mxu0 0.0
  %1355 = vmatpush1.msra.mxu0 0.0
  %1356 = vmatprep.subr.mxu0 0.0
  %1357 = vmatpush1.msra.mxu0 0.0
  %1358 = vmatprep.subr.mxu0 0.0
  %1359 = vmatpush1.msra.mxu0 0.0
  %1360 = vmatprep.subr.mxu0 0.0
  %1361 = vmatpush1.msra.mxu0 0.0
  %1362 = vmatprep.subr.mxu0 0.0
  %1363 = vmatpush1.msra.mxu0 0.0
  %1364 = vmatprep.subr.mxu0 0.0
  %1365 = vmatpush1.msra.mxu0 0.0
  %1366 = vmatprep.subr.mxu0 0.0
  %1367 = vmatpush1.msra.mxu0 0.0
  %1368 = vmatprep.subr.mxu0 0.0
  %1369 = vmatpush1.msra.mxu0 0.0
  %1370 = vmatprep.subr.mxu0 0.0
  %1371 = vmatpush1.msra.mxu0 0.0
  %1372 = vmatprep.subr.mxu0 0.0
  %1373 = vmatpush1.msra.mxu0 0.0
  %1374 = vmatprep.subr.mxu0 0.0
  %1375 = vmatpush1.msra.mxu0 0.0
  %1376 = vmatprep.subr.mxu0 0.0
  %1377 = vmatpush1.msra.mxu0 0.0
  %1378 = vmatprep.subr.mxu0 0.0
  %1379 = vmatpush1.msra.mxu0 0.0
  %1380 = vmatprep.subr.mxu0 0.0
  %1381 = vmatpush1.msra.mxu0 0.0
  %1382 = vmatprep.subr.mxu0 0.0
  %1383 = vmatpush1.msra.mxu0 0.0
  %1384 = vmatprep.subr.mxu0 0.0
  %1385 = vmatpush1.msra.mxu0 0.0
  %1386 = vmatprep.subr.mxu0 0.0
  %1387 = vmatpush1.msra.mxu0 0.0
  %1388 = vmatprep.subr.mxu0 0.0
  %1389 = vmatpush1.msra.mxu0 0.0
  %1390 = vmatprep.mubr.f32.mxu0 0.0
  %1391 = vmatmul.mubr.f32.gmra.mrb[0].mxu0 %v146
  %v1392 = vpop.f32.mrb[0].mxu0
  %v1393 = vadd.f32 0.0, %v1392
  %v1394 = vpop.f32.mrb[0].mxu0
  %v1395 = vadd.f32 0.0, %v1394
  %1396 = vmatprep.mubr.f32.mxu0 0.0
  %1397 = vmatmul.mubr.f32.gmra.mrb[0].mxu0 %v149
  %v1398 = vpop.f32.mrb[0].mxu0
  %v1399 = vadd.f32 0.0, %v1398
  %v1400 = vpop.f32.mrb[0].mxu0
  %v1401 = vadd.f32 0.0, %v1400
  %1402 = vdwg.mxu0
  %1403 = vmatprep.subr.mxu0 %v47
  %1404 = vmatpush1.msra.mxu0 %v46
  %1405 = vmatprep.subr.mxu0 %v79
  %1406 = vmatpush1.msra.mxu0 %v78
  %1407 = vmatprep.subr.mxu0 %v111
  %1408 = vmatpush1.msra.mxu0 %v110
  %1409 = vmatprep.subr.mxu0 %v246
  %1410 = vmatpush1.msra.mxu0 %v243
  %1411 = vmatprep.subr.mxu0 0.0
  %1412 = vmatpush1.msra.mxu0 0.0
  %1413 = vmatprep.subr.mxu0 0.0
  %1414 = vmatpush1.msra.mxu0 0.0
  %1415 = vmatprep.subr.mxu0 0.0
  %1416 = vmatpush1.msra.mxu0 0.0
  %1417 = vmatprep.subr.mxu0 0.0
  %1418 = vmatpush1.msra.mxu0 0.0
  %1419 = vmatprep.subr.mxu0 0.0
  %1420 = vmatpush1.msra.mxu0 0.0
  %1421 = vmatprep.subr.mxu0 0.0
  %1422 = vmatpush1.msra.mxu0 0.0
  %1423 = vmatprep.subr.mxu0 0.0
  %1424 = vmatpush1.msra.mxu0 0.0
  %1425 = vmatprep.subr.mxu0 0.0
  %1426 = vmatpush1.msra.mxu0 0.0
  %1427 = vmatprep.subr.mxu0 0.0
  %1428 = vmatpush1.msra.mxu0 0.0
  %1429 = vmatprep.subr.mxu0 0.0
  %1430 = vmatpush1.msra.mxu0 0.0
  %1431 = vmatprep.subr.mxu0 0.0
  %1432 = vmatpush1.msra.mxu0 0.0
  %1433 = vmatprep.subr.mxu0 0.0
  %1434 = vmatpush1.msra.mxu0 0.0
  %1435 = vmatprep.subr.mxu0 0.0
  %1436 = vmatpush1.msra.mxu0 0.0
  %1437 = vmatprep.subr.mxu0 0.0
  %1438 = vmatpush1.msra.mxu0 0.0
  %1439 = vmatprep.subr.mxu0 0.0
  %1440 = vmatpush1.msra.mxu0 0.0
  %1441 = vmatprep.subr.mxu0 0.0
  %1442 = vmatpush1.msra.mxu0 0.0
  %1443 = vmatprep.subr.mxu0 0.0
  %1444 = vmatpush1.msra.mxu0 0.0
  %1445 = vmatprep.subr.mxu0 0.0
  %1446 = vmatpush1.msra.mxu0 0.0
  %1447 = vmatprep.subr.mxu0 0.0
  %1448 = vmatpush1.msra.mxu0 0.0
  %1449 = vmatprep.subr.mxu0 0.0
  %1450 = vmatpush1.msra.mxu0 0.0
  %1451 = vmatprep.subr.mxu0 0.0
  %1452 = vmatpush1.msra.mxu0 0.0
  %1453 = vmatprep.subr.mxu0 0.0
  %1454 = vmatpush1.msra.mxu0 0.0
  %1455 = vmatprep.subr.mxu0 0.0
  %1456 = vmatpush1.msra.mxu0 0.0
  %1457 = vmatprep.subr.mxu0 0.0
  %1458 = vmatpush1.msra.mxu0 0.0
  %1459 = vmatprep.subr.mxu0 0.0
  %1460 = vmatpush1.msra.mxu0 0.0
  %1461 = vmatprep.subr.mxu0 0.0
  %1462 = vmatpush1.msra.mxu0 0.0
  %1463 = vmatprep.subr.mxu0 0.0
  %1464 = vmatpush1.msra.mxu0 0.0
  %1465 = vmatprep.subr.mxu0 0.0
  %1466 = vmatpush1.msra.mxu0 0.0
  %1467 = vmatprep.mubr.f32.mxu0 0.0
  %1468 = vmatmul.mubr.f32.gmra.mrb[0].mxu0 %v146
  %v1469 = vpop.f32.mrb[0].mxu0
  %v1470 = vadd.f32 0.0, %v1469
  %v1471 = vpop.f32.mrb[0].mxu0
  %v1472 = vadd.f32 0.0, %v1471
  %1473 = vmatprep.mubr.f32.mxu0 0.0
  %1474 = vmatmul.mubr.f32.gmra.mrb[0].mxu0 %v149
  %v1475 = vpop.f32.mrb[0].mxu0
  %v1476 = vadd.f32 0.0, %v1475
  %v1477 = vpop.f32.mrb[0].mxu0
  %v1478 = vadd.f32 0.0, %v1477
  %1479 = vdwg.mxu0
  %v1480 = vmax.f32 %v315, %v623
  %v1481 = vmax.f32 %v317, %v625
  %v1482 = vmax.f32 %v392, %v700
  %v1483 = vmax.f32 %v394, %v702
  %v1484 = vmax.f32 %v469, %v777
  %v1485 = vmax.f32 %v471, %v779
  %v1486 = vmax.f32 %v546, %v854
  %v1487 = vmax.f32 %v548, %v856
  %v1488 = vmax.f32 %v321, %v629
  %v1489 = vmax.f32 %v323, %v631
  %v1490 = vmax.f32 %v398, %v706
  %v1491 = vmax.f32 %v400, %v708
  %v1492 = vmax.f32 %v475, %v783
  %v1493 = vmax.f32 %v477, %v785
  %v1494 = vmax.f32 %v552, %v860
  %v1495 = vmax.f32 %v554, %v862
  %v1496 = vmax.f32 %v931, %v1239
  %v1497 = vmax.f32 %v933, %v1241
  %v1498 = vmax.f32 %v1008, %v1316
  %v1499 = vmax.f32 %v1010, %v1318
  %v1500 = vmax.f32 %v1085, %v1393
  %v1501 = vmax.f32 %v1087, %v1395
  %v1502 = vmax.f32 %v1162, %v1470
  %v1503 = vmax.f32 %v1164, %v1472
  %v1504 = vmax.f32 %v937, %v1245
  %v1505 = vmax.f32 %v939, %v1247
  %v1506 = vmax.f32 %v1014, %v1322
  %v1507 = vmax.f32 %v1016, %v1324
  %v1508 = vmax.f32 %v1091, %v1399
  %v1509 = vmax.f32 %v1093, %v1401
  %v1510 = vmax.f32 %v1168, %v1476
  %v1511 = vmax.f32 %v1170, %v1478
  %v1512 = vmax.f32 %v1480, %v1496
  %v1513 = vmax.f32 %v1481, %v1497
  %v1514 = vmax.f32 %v1482, %v1498
  %v1515 = vmax.f32 %v1483, %v1499
  %v1516 = vmax.f32 %v1484, %v1500
  %v1517 = vmax.f32 %v1485, %v1501
  %v1518 = vmax.f32 %v1486, %v1502
  %v1519 = vmax.f32 %v1487, %v1503
  %v1520 = vmax.f32 %v1488, %v1504
  %v1521 = vmax.f32 %v1489, %v1505
  %v1522 = vmax.f32 %v1490, %v1506
  %v1523 = vmax.f32 %v1491, %v1507
  %v1524 = vmax.f32 %v1492, %v1508
  %v1525 = vmax.f32 %v1493, %v1509
  %v1526 = vmax.f32 %v1494, %v1510
  %v1527 = vmax.f32 %v1495, %v1511
  %v1528 = vld [vmem:[%s2] sm:$0xff]
  %v1529 = vld [vmem:[%s2 + $0x8] sm:$0xff]
  %1531 = vset.pattern.permute.xlu0 0
  %1532 = vperm.xlu0 %1531, %v1528
  %v1533 = vpop.permute.xlu0 %1532
  %1536 = vset.pattern.permute.xlu0 0
  %1537 = vperm.xlu0 %1536, %v1529
  %v1538 = vpop.permute.xlu0 %1537
  %v1540 = vadd.f32 %v1512, %v1533
  %v1541 = vadd.f32 %v1513, %v1533
  %v1542 = vadd.f32 %v1514, %v1533
  %v1543 = vadd.f32 %v1515, %v1533
  %v1544 = vadd.f32 %v1516, %v1533
  %v1545 = vadd.f32 %v1517, %v1533
  %v1546 = vadd.f32 %v1518, %v1533
  %v1547 = vadd.f32 %v1519, %v1533
  %v1548 = vadd.f32 %v1520, %v1538
  %v1549 = vadd.f32 %v1521, %v1538
  %v1550 = vadd.f32 %v1522, %v1538
  %v1551 = vadd.f32 %v1523, %v1538
  %v1552 = vadd.f32 %v1524, %v1538
  %v1553 = vadd.f32 %v1525, %v1538
  %v1554 = vadd.f32 %v1526, %v1538
  %v1555 = vadd.f32 %v1527, %v1538
  %v1556 = vmax.f32 %v1540, 0.0
  %v1557 = vmax.f32 %v1541, 0.0
  %v1558 = vmax.f32 %v1542, 0.0
  %v1559 = vmax.f32 %v1543, 0.0
  %v1560 = vmax.f32 %v1544, 0.0
  %v1561 = vmax.f32 %v1545, 0.0
  %v1562 = vmax.f32 %v1546, 0.0
  %v1563 = vmax.f32 %v1547, 0.0
  %v1564 = vmax.f32 %v1548, 0.0
  %v1565 = vmax.f32 %v1549, 0.0
  %v1566 = vmax.f32 %v1550, 0.0
  %v1567 = vmax.f32 %v1551, 0.0
  %v1568 = vmax.f32 %v1552, 0.0
  %v1569 = vmax.f32 %v1553, 0.0
  %v1570 = vmax.f32 %v1554, 0.0
  %v1571 = vmax.f32 %v1555, 0.0
  %1572 = vst [vmem:[%s3] sm:$0xff] %v1556
  %1573 = vst [vmem:[%s3 + $0x8] sm:$0xff] %v1557
  %1574 = vst [vmem:[%s3 + $0x10] sm:$0xff] %v1558
  %1575 = vst [vmem:[%s3 + $0x18] sm:$0xff] %v1559
  %1576 = vst [vmem:[%s3 + $0x20] sm:$0xff] %v1560
  %1577 = vst [vmem:[%s3 + $0x28] sm:$0xff] %v1561
  %1578 = vst [vmem:[%s3 + $0x30] sm:$0xff] %v1562
  %1579 = vst [vmem:[%s3 + $0x38] sm:$0xff] %v1563
  %1580 = vst [vmem:[%s3 + $0x40] sm:$0xff] %v1564
  %1581 = vst [vmem:[%s3 + $0x48] sm:$0xff] %v1565
  %1582 = vst [vmem:[%s3 + $0x50] sm:$0xff] %v1566
  %1583 = vst [vmem:[%s3 + $0x58] sm:$0xff] %v1567
  %1584 = vst [vmem:[%s3 + $0x60] sm:$0xff] %v1568
  %1585 = vst [vmem:[%s3 + $0x68] sm:$0xff] %v1569
  %1586 = vst [vmem:[%s3 + $0x70] sm:$0xff] %v1570
  %1587 = vst [vmem:[%s3 + $0x78] sm:$0xff] %v1571
  // Predicated region
  $region14: #{mini_model_forward.3} parent=0 // pred_check
    _
  $region15: #{mini_model_forward.3} parent=0 // pred_check_branch
    %1589 = sbr.rel (0) target = $region17
  $region16: #{mini_model_forward.3} parent=0 // pred_region
    _
  $region17: #{mini_model_forward.3} parent=0 // pred_fallthru
    _
  // Predicated region
  $region18: #{mini_model_forward.3} parent=0 // pred_check
    _
  $region19: #{mini_model_forward.3} parent=0 // pred_check_branch
    %1591 = sbr.rel (0) target = $region21
  $region20: #{mini_model_forward.3} parent=0 // pred_region
    _
  $region21: #{mini_model_forward.3} parent=0 // pred_fallthru
    _

// kernel: mini_model_forward.4
$region0: #{mini_model_forward.4}
  #allocation0 [shape = 'u32[]', space=smem, size = 0x4, offset = 0x4, fixed_abs, tag = 'smem constant byte address 0x4 - core index']
  #allocation1 [shape = 'u32[144,128]{1,0:T(1,128)}', space=vmem, size = 0x12000, scoped, tag = 'internal scratch']
  %s0 = inlined_call_operand.vmem [shape: f32[400,1024], index: 0, kind: input, shape index: {}]
  %s1 = inlined_call_operand.vmem [shape: f32[32,400], index: 1, kind: input, shape index: {}]
  %s2 = inlined_call_operand.vmem [shape: f32[32,1], index: 2, kind: input, shape index: {}]
  %s3 = inlined_call_operand.vmem [shape: f32[32,256], index: 3, kind: output, shape index: {}]
  %s4 = sld [smem:[#allocation0]]
  $region22: #{mini_model_forward.4} parent=0
    _
  %s6 = ssub.s32 1, %s4
  %s7 = scalar_select 0, %s6, %s4
  // Predicated region
  $region2: #{mini_model_forward.4} parent=0 // pred_check
    _
  $region3: #{mini_model_forward.4} parent=0 // pred_check_branch
    %9 = sbr.rel (0) target = $region5
  $region4: #{mini_model_forward.4} parent=0 // pred_region
    _
  $region5: #{mini_model_forward.4} parent=0 // pred_fallthru
    _
  // Predicated region
  $region6: #{mini_model_forward.4} parent=0 // pred_check
    _
  $region7: #{mini_model_forward.4} parent=0 // pred_check_branch
    %11 = sbr.rel (0) target = $region9
  $region8: #{mini_model_forward.4} parent=0 // pred_region
    _
  $region9: #{mini_model_forward.4} parent=0 // pred_fallthru
    _
  // Predicated region
  $region10: #{mini_model_forward.4} parent=0 // pred_check
    _
  $region11: #{mini_model_forward.4} parent=0 // pred_check_branch
    %13 = sbr.rel (0) target = $region13
  $region12: #{mini_model_forward.4} parent=0 // pred_region
    _
  $region13: #{mini_model_forward.4} parent=0 // pred_fallthru
    _
  %v14 = vld [vmem:[%s1] sm:$0xff]
  %v15 = vld [vmem:[%s1 + $0x8] sm:$0xff]
  %v16 = vld [vmem:[%s1 + $0x10] sm:$0xff]
  %v17 = vld [vmem:[%s1 + $0x18] sm:$0xff]
  %v18 = vld [vmem:[%s1 + $0x20] sm:$0xff]
  %v19 = vld [vmem:[%s1 + $0x28] sm:$0xff]
  %v20 = vld [vmem:[%s1 + $0x30] sm:$0xff]
  %v21 = vld [vmem:[%s1 + $0x38] sm:$0xff]
  %v22 = vld [vmem:[%s1 + $0x40] sm:$0xff]
  %v23 = vld [vmem:[%s1 + $0x48] sm:$0xff]
  %v24 = vld [vmem:[%s1 + $0x50] sm:$0xff]
  %v25 = vld [vmem:[%s1 + $0x58] sm:$0xff]
  %v26 = vld [vmem:[%s1 + $0x60] sm:$0xff]
  %v27 = vld [vmem:[%s1 + $0x68] sm:$0xff]
  %v28 = vld [vmem:[%s1 + $0x70] sm:$0xff]
  %v29 = vld [vmem:[%s1 + $0x78] sm:$0xff]
  %v30 = vld [vmem:[%s0] sm:$0xff]
  %v31 = vld [vmem:[%s0 + $0x8] sm:$0xff]
  %v32 = vld [vmem:[%s0 + $0x10] sm:$0xff]
  %v33 = vld [vmem:[%s0 + $0x18] sm:$0xff]
  %v34 = vld [vmem:[%s0 + $0x20] sm:$0xff]
  %v35 = vld [vmem:[%s0 + $0x28] sm:$0xff]
  %v36 = vld [vmem:[%s0 + $0x30] sm:$0xff]
  %v37 = vld [vmem:[%s0 + $0x38] sm:$0xff]
  %v38 = vld [vmem:[%s0 + $0x40] sm:$0xff]
  %v39 = vld [vmem:[%s0 + $0x48] sm:$0xff]
  %v40 = vld [vmem:[%s0 + $0x50] sm:$0xff]
  %v41 = vld [vmem:[%s0 + $0x58] sm:$0xff]
  %v42 = vld [vmem:[%s0 + $0x60] sm:$0xff]
  %v43 = vld [vmem:[%s0 + $0x68] sm:$0xff]
  %v44 = vld [vmem:[%s0 + $0x70] sm:$0xff]
  %v45 = vld [vmem:[%s0 + $0x78] sm:$0xff]
  %v46 = vld [vmem:[%s0 + $0x80] sm:$0xff]
  %v47 = vld [vmem:[%s0 + $0x88] sm:$0xff]
  %v48 = vld [vmem:[%s0 + $0x90] sm:$0xff]
  %v49 = vld [vmem:[%s0 + $0x98] sm:$0xff]
  %v50 = vld [vmem:[%s0 + $0xa0] sm:$0xff]
  %v51 = vld [vmem:[%s0 + $0xa8] sm:$0xff]
  %v52 = vld [vmem:[%s0 + $0xb0] sm:$0xff]
  %v53 = vld [vmem:[%s0 + $0xb8] sm:$0xff]
  %v54 = vld [vmem:[%s0 + $0xc0] sm:$0xff]
  %v55 = vld [vmem:[%s0 + $0xc8] sm:$0xff]
  %v56 = vld [vmem:[%s0 + $0xd0] sm:$0xff]
  %v57 = vld [vmem:[%s0 + $0xd8] sm:$0xff]
  %v58 = vld [vmem:[%s0 + $0xe0] sm:$0xff]
  %v59 = vld [vmem:[%s0 + $0xe8] sm:$0xff]
  %v60 = vld [vmem:[%s0 + $0xf0] sm:$0xff]
  %v61 = vld [vmem:[%s0 + $0xf8] sm:$0xff]
  %v62 = vld [vmem:[%s0 + $0x100] sm:$0xff]
  %v63 = vld [vmem:[%s0 + $0x108] sm:$0xff]
  %v64 = vld [vmem:[%s0 + $0x110] sm:$0xff]
  %v65 = vld [vmem:[%s0 + $0x118] sm:$0xff]
  %v66 = vld [vmem:[%s0 + $0x120] sm:$0xff]
  %v67 = vld [vmem:[%s0 + $0x128] sm:$0xff]
  %v68 = vld [vmem:[%s0 + $0x130] sm:$0xff]
  %v69 = vld [vmem:[%s0 + $0x138] sm:$0xff]
  %v70 = vld [vmem:[%s0 + $0x140] sm:$0xff]
  %v71 = vld [vmem:[%s0 + $0x148] sm:$0xff]
  %v72 = vld [vmem:[%s0 + $0x150] sm:$0xff]
  %v73 = vld [vmem:[%s0 + $0x158] sm:$0xff]
  %v74 = vld [vmem:[%s0 + $0x160] sm:$0xff]
  %v75 = vld [vmem:[%s0 + $0x168] sm:$0xff]
  %v76 = vld [vmem:[%s0 + $0x170] sm:$0xff]
  %v77 = vld [vmem:[%s0 + $0x178] sm:$0xff]
  %v78 = vld [vmem:[%s0 + $0x180] sm:$0xff]
  %v79 = vld [vmem:[%s0 + $0x188] sm:$0xff]
  %v80 = vld [vmem:[%s0 + $0x190] sm:$0xff]
  %v81 = vld [vmem:[%s0 + $0x198] sm:$0xff]
  %v82 = vld [vmem:[%s0 + $0x1a0] sm:$0xff]
  %v83 = vld [vmem:[%s0 + $0x1a8] sm:$0xff]
  %v84 = vld [vmem:[%s0 + $0x1b0] sm:$0xff]
  %v85 = vld [vmem:[%s0 + $0x1b8] sm:$0xff]
  %v86 = vld [vmem:[%s0 + $0x1c0] sm:$0xff]
  %v87 = vld [vmem:[%s0 + $0x1c8] sm:$0xff]
  %v88 = vld [vmem:[%s0 + $0x1d0] sm:$0xff]
  %v89 = vld [vmem:[%s0 + $0x1d8] sm:$0xff]
  %v90 = vld [vmem:[%s0 + $0x1e0] sm:$0xff]
  %v91 = vld [vmem:[%s0 + $0x1e8] sm:$0xff]
  %v92 = vld [vmem:[%s0 + $0x1f0] sm:$0xff]
  %v93 = vld [vmem:[%s0 + $0x1f8] sm:$0xff]
  %v94 = vld [vmem:[%s0 + $0x200] sm:$0xff]
  %v95 = vld [vmem:[%s0 + $0x208] sm:$0xff]
  %v96 = vld [vmem:[%s0 + $0x210] sm:$0xff]
  %v97 = vld [vmem:[%s0 + $0x218] sm:$0xff]
  %v98 = vld [vmem:[%s0 + $0x220] sm:$0xff]
  %v99 = vld [vmem:[%s0 + $0x228] sm:$0xff]
  %v100 = vld [vmem:[%s0 + $0x230] sm:$0xff]
  %v101 = vld [vmem:[%s0 + $0x238] sm:$0xff]
  %v102 = vld [vmem:[%s0 + $0x240] sm:$0xff]
  %v103 = vld [vmem:[%s0 + $0x248] sm:$0xff]
  %v104 = vld [vmem:[%s0 + $0x250] sm:$0xff]
  %v105 = vld [vmem:[%s0 + $0x258] sm:$0xff]
  %v106 = vld [vmem:[%s0 + $0x260] sm:$0xff]
  %v107 = vld [vmem:[%s0 + $0x268] sm:$0xff]
  %v108 = vld [vmem:[%s0 + $0x270] sm:$0xff]
  %v109 = vld [vmem:[%s0 + $0x278] sm:$0xff]
  %v110 = vld [vmem:[%s0 + $0x280] sm:$0xff]
  %v111 = vld [vmem:[%s0 + $0x288] sm:$0xff]
  %v112 = vld [vmem:[%s0 + $0x290] sm:$0xff]
  %v113 = vld [vmem:[%s0 + $0x298] sm:$0xff]
  %v114 = vld [vmem:[%s0 + $0x2a0] sm:$0xff]
  %v115 = vld [vmem:[%s0 + $0x2a8] sm:$0xff]
  %v116 = vld [vmem:[%s0 + $0x2b0] sm:$0xff]
  %v117 = vld [vmem:[%s0 + $0x2b8] sm:$0xff]
  %v118 = vld [vmem:[%s0 + $0x2c0] sm:$0xff]
  %v119 = vld [vmem:[%s0 + $0x2c8] sm:$0xff]
  %v120 = vld [vmem:[%s0 + $0x2d0] sm:$0xff]
  %v121 = vld [vmem:[%s0 + $0x2d8] sm:$0xff]
  %v122 = vld [vmem:[%s0 + $0x2e0] sm:$0xff]
  %v123 = vld [vmem:[%s0 + $0x2e8] sm:$0xff]
  %v124 = vld [vmem:[%s0 + $0x2f0] sm:$0xff]
  %v125 = vld [vmem:[%s0 + $0x2f8] sm:$0xff]
  %v126 = vld [vmem:[%s0 + $0x300] sm:$0xff]
  %v127 = vld [vmem:[%s0 + $0x308] sm:$0xff]
  %v128 = vld [vmem:[%s0 + $0x310] sm:$0xff]
  %v129 = vld [vmem:[%s0 + $0x318] sm:$0xff]
  %v130 = vld [vmem:[%s0 + $0x320] sm:$0xff]
  %v131 = vld [vmem:[%s0 + $0x328] sm:$0xff]
  %v132 = vld [vmem:[%s0 + $0x330] sm:$0xff]
  %v133 = vld [vmem:[%s0 + $0x338] sm:$0xff]
  %v134 = vld [vmem:[%s0 + $0x340] sm:$0xff]
  %v135 = vld [vmem:[%s0 + $0x348] sm:$0xff]
  %v136 = vld [vmem:[%s0 + $0x350] sm:$0xff]
  %v137 = vld [vmem:[%s0 + $0x358] sm:$0xff]
  %v138 = vld [vmem:[%s0 + $0x360] sm:$0xff]
  %v139 = vld [vmem:[%s0 + $0x368] sm:$0xff]
  %v140 = vld [vmem:[%s0 + $0x370] sm:$0xff]
  %v141 = vld [vmem:[%s0 + $0x378] sm:$0xff]
  %v142 = vld [vmem:[%s0 + $0x380] sm:$0xff]
  %v143 = vld [vmem:[%s0 + $0x388] sm:$0xff]
  %v144 = vld [vmem:[%s0 + $0x390] sm:$0xff]
  %v145 = vld [vmem:[%s0 + $0x398] sm:$0xff]
  %v146 = vld [vmem:[%s0 + $0x3a0] sm:$0xff]
  %v147 = vld [vmem:[%s0 + $0x3a8] sm:$0xff]
  %v148 = vld [vmem:[%s0 + $0x3b0] sm:$0xff]
  %v149 = vld [vmem:[%s0 + $0x3b8] sm:$0xff]
  %v150 = vld [vmem:[%s0 + $0x3c0] sm:$0xff]
  %v151 = vld [vmem:[%s0 + $0x3c8] sm:$0xff]
  %v152 = vld [vmem:[%s0 + $0x3d0] sm:$0xff]
  %v153 = vld [vmem:[%s0 + $0x3d8] sm:$0xff]
  %v154 = vld [vmem:[%s0 + $0x3e0] sm:$0xff]
  %v155 = vld [vmem:[%s0 + $0x3e8] sm:$0xff]
  %v156 = vld [vmem:[%s0 + $0x3f0] sm:$0xff]
  %v157 = vld [vmem:[%s0 + $0x3f8] sm:$0xff]
  %v158 = vld [vmem:[%s0 + $0x400] sm:$0xff]
  %v159 = vld [vmem:[%s0 + $0x408] sm:$0xff]
  %v160 = vld [vmem:[%s0 + $0x410] sm:$0xff]
  %v161 = vld [vmem:[%s0 + $0x418] sm:$0xff]
  %v162 = vld [vmem:[%s0 + $0x420] sm:$0xff]
  %v163 = vld [vmem:[%s0 + $0x428] sm:$0xff]
  %v164 = vld [vmem:[%s0 + $0x430] sm:$0xff]
  %v165 = vld [vmem:[%s0 + $0x438] sm:$0xff]
  %v166 = vld [vmem:[%s0 + $0x440] sm:$0xff]
  %v167 = vld [vmem:[%s0 + $0x448] sm:$0xff]
  %v168 = vld [vmem:[%s0 + $0x450] sm:$0xff]
  %v169 = vld [vmem:[%s0 + $0x458] sm:$0xff]
  %v170 = vld [vmem:[%s0 + $0x460] sm:$0xff]
  %v171 = vld [vmem:[%s0 + $0x468] sm:$0xff]
  %v172 = vld [vmem:[%s0 + $0x470] sm:$0xff]
  %v173 = vld [vmem:[%s0 + $0x478] sm:$0xff]
  %v174 = vld [vmem:[%s0 + $0x480] sm:$0xff]
  %v175 = vld [vmem:[%s0 + $0x488] sm:$0xff]
  %v176 = vld [vmem:[%s0 + $0x490] sm:$0xff]
  %v177 = vld [vmem:[%s0 + $0x498] sm:$0xff]
  %v178 = vld [vmem:[%s0 + $0x4a0] sm:$0xff]
  %v179 = vld [vmem:[%s0 + $0x4a8] sm:$0xff]
  %v180 = vld [vmem:[%s0 + $0x4b0] sm:$0xff]
  %v181 = vld [vmem:[%s0 + $0x4b8] sm:$0xff]
  %v182 = vld [vmem:[%s0 + $0x4c0] sm:$0xff]
  %v183 = vld [vmem:[%s0 + $0x4c8] sm:$0xff]
  %v184 = vld [vmem:[%s0 + $0x4d0] sm:$0xff]
  %v185 = vld [vmem:[%s0 + $0x4d8] sm:$0xff]
  %v186 = vld [vmem:[%s0 + $0x4e0] sm:$0xff]
  %v187 = vld [vmem:[%s0 + $0x4e8] sm:$0xff]
  %v188 = vld [vmem:[%s0 + $0x4f0] sm:$0xff]
  %v189 = vld [vmem:[%s0 + $0x4f8] sm:$0xff]
  %v190 = vld [vmem:[%s0 + $0x500] sm:$0xff]
  %v191 = vld [vmem:[%s0 + $0x508] sm:$0xff]
  %v192 = vld [vmem:[%s0 + $0x510] sm:$0xff]
  %v193 = vld [vmem:[%s0 + $0x518] sm:$0xff]
  %v194 = vld [vmem:[%s0 + $0x520] sm:$0xff]
  %v195 = vld [vmem:[%s0 + $0x528] sm:$0xff]
  %v196 = vld [vmem:[%s0 + $0x530] sm:$0xff]
  %v197 = vld [vmem:[%s0 + $0x538] sm:$0xff]
  %v198 = vld [vmem:[%s0 + $0x540] sm:$0xff]
  %v199 = vld [vmem:[%s0 + $0x548] sm:$0xff]
  %v200 = vld [vmem:[%s0 + $0x550] sm:$0xff]
  %v201 = vld [vmem:[%s0 + $0x558] sm:$0xff]
  %v202 = vld [vmem:[%s0 + $0x560] sm:$0xff]
  %v203 = vld [vmem:[%s0 + $0x568] sm:$0xff]
  %v204 = vld [vmem:[%s0 + $0x570] sm:$0xff]
  %v205 = vld [vmem:[%s0 + $0x578] sm:$0xff]
  %v206 = vld [vmem:[%s0 + $0x580] sm:$0xff]
  %v207 = vld [vmem:[%s0 + $0x588] sm:$0xff]
  %v208 = vld [vmem:[%s0 + $0x590] sm:$0xff]
  %v209 = vld [vmem:[%s0 + $0x598] sm:$0xff]
  %v210 = vld [vmem:[%s0 + $0x5a0] sm:$0xff]
  %v211 = vld [vmem:[%s0 + $0x5a8] sm:$0xff]
  %v212 = vld [vmem:[%s0 + $0x5b0] sm:$0xff]
  %v213 = vld [vmem:[%s0 + $0x5b8] sm:$0xff]
  %v214 = vld [vmem:[%s0 + $0x5c0] sm:$0xff]
  %v215 = vld [vmem:[%s0 + $0x5c8] sm:$0xff]
  %v216 = vld [vmem:[%s0 + $0x5d0] sm:$0xff]
  %v217 = vld [vmem:[%s0 + $0x5d8] sm:$0xff]
  %v218 = vld [vmem:[%s0 + $0x5e0] sm:$0xff]
  %v219 = vld [vmem:[%s0 + $0x5e8] sm:$0xff]
  %v220 = vld [vmem:[%s0 + $0x5f0] sm:$0xff]
  %v221 = vld [vmem:[%s0 + $0x5f8] sm:$0xff]
  %v222 = vld [vmem:[%s0 + $0x600] sm:$0xff]
  %v223 = vld [vmem:[%s0 + $0x608] sm:$0xff]
  %v224 = vld [vmem:[%s0 + $0x610] sm:$0xff]
  %v225 = vld [vmem:[%s0 + $0x618] sm:$0xff]
  %v226 = vld [vmem:[%s0 + $0x620] sm:$0xff]
  %v227 = vld [vmem:[%s0 + $0x628] sm:$0xff]
  %v228 = vld [vmem:[%s0 + $0x630] sm:$0xff]
  %v229 = vld [vmem:[%s0 + $0x638] sm:$0xff]
  %v230 = vld [vmem:[%s0 + $0x640] sm:$0xff]
  %v231 = vld [vmem:[%s0 + $0x648] sm:$0xff]
  %v232 = vld [vmem:[%s0 + $0x650] sm:$0xff]
  %v233 = vld [vmem:[%s0 + $0x658] sm:$0xff]
  %v234 = vld [vmem:[%s0 + $0x660] sm:$0xff]
  %v235 = vld [vmem:[%s0 + $0x668] sm:$0xff]
  %v236 = vld [vmem:[%s0 + $0x670] sm:$0xff]
  %v237 = vld [vmem:[%s0 + $0x678] sm:$0xff]
  %v238 = vld [vmem:[%s0 + $0x680] sm:$0xff]
  %v239 = vld [vmem:[%s0 + $0x688] sm:$0xff]
  %v240 = vld [vmem:[%s0 + $0x690] sm:$0xff]
  %v241 = vld [vmem:[%s0 + $0x698] sm:$0xff]
  %v242 = vld [vmem:[%s0 + $0x6a0] sm:$0xff]
  %v243 = vld [vmem:[%s0 + $0x6a8] sm:$0xff]
  %v244 = vld [vmem:[%s0 + $0x6b0] sm:$0xff]
  %v245 = vld [vmem:[%s0 + $0x6b8] sm:$0xff]
  %v246 = vld [vmem:[%s0 + $0x6c0] sm:$0xff]
  %v247 = vld [vmem:[%s0 + $0x6c8] sm:$0xff]
  %v248 = vld [vmem:[%s0 + $0x6d0] sm:$0xff]
  %v249 = vld [vmem:[%s0 + $0x6d8] sm:$0xff]
  %v250 = vld [vmem:[%s0 + $0x6e0] sm:$0xff]
  %v251 = vld [vmem:[%s0 + $0x6e8] sm:$0xff]
  %v252 = vld [vmem:[%s0 + $0x6f0] sm:$0xff]
  %v253 = vld [vmem:[%s0 + $0x6f8] sm:$0xff]
  %v254 = vld [vmem:[%s0 + $0x700] sm:$0xff]
  %v255 = vld [vmem:[%s0 + $0x708] sm:$0xff]
  %v256 = vld [vmem:[%s0 + $0x710] sm:$0xff]
  %v257 = vld [vmem:[%s0 + $0x718] sm:$0xff]
  %v258 = vld [vmem:[%s0 + $0x720] sm:$0xff]
  %v259 = vld [vmem:[%s0 + $0x728] sm:$0xff]
  %v260 = vld [vmem:[%s0 + $0x730] sm:$0xff]
  %v261 = vld [vmem:[%s0 + $0x738] sm:$0xff]
  %v262 = vld [vmem:[%s0 + $0x740] sm:$0xff]
  %v263 = vld [vmem:[%s0 + $0x748] sm:$0xff]
  %v264 = vld [vmem:[%s0 + $0x750] sm:$0xff]
  %v265 = vld [vmem:[%s0 + $0x758] sm:$0xff]
  %v266 = vld [vmem:[%s0 + $0x760] sm:$0xff]
  %v267 = vld [vmem:[%s0 + $0x768] sm:$0xff]
  %v268 = vld [vmem:[%s0 + $0x770] sm:$0xff]
  %v269 = vld [vmem:[%s0 + $0x778] sm:$0xff]
  %v270 = vld [vmem:[%s0 + $0x780] sm:$0xff]
  %v271 = vld [vmem:[%s0 + $0x788] sm:$0xff]
  %v272 = vld [vmem:[%s0 + $0x790] sm:$0xff]
  %v273 = vld [vmem:[%s0 + $0x798] sm:$0xff]
  %v274 = vld [vmem:[%s0 + $0x7a0] sm:$0xff]
  %v275 = vld [vmem:[%s0 + $0x7a8] sm:$0xff]
  %v276 = vld [vmem:[%s0 + $0x7b0] sm:$0xff]
  %v277 = vld [vmem:[%s0 + $0x7b8] sm:$0xff]
  %v278 = vld [vmem:[%s0 + $0x7c0] sm:$0xff]
  %v279 = vld [vmem:[%s0 + $0x7c8] sm:$0xff]
  %v280 = vld [vmem:[%s0 + $0x7d0] sm:$0xff]
  %v281 = vld [vmem:[%s0 + $0x7d8] sm:$0xff]
  %v282 = vld [vmem:[%s0 + $0x7e0] sm:$0xff]
  %v283 = vld [vmem:[%s0 + $0x7e8] sm:$0xff]
  %v284 = vld [vmem:[%s0 + $0x7f0] sm:$0xff]
  %v285 = vld [vmem:[%s0 + $0x7f8] sm:$0xff]
  %v286 = vld [vmem:[%s0 + $0x800] sm:$0xff]
  %v287 = vld [vmem:[%s0 + $0x808] sm:$0xff]
  %v288 = vld [vmem:[%s0 + $0x810] sm:$0xff]
  %v289 = vld [vmem:[%s0 + $0x818] sm:$0xff]
  %v290 = vld [vmem:[%s0 + $0x820] sm:$0xff]
  %v291 = vld [vmem:[%s0 + $0x828] sm:$0xff]
  %v292 = vld [vmem:[%s0 + $0x830] sm:$0xff]
  %v293 = vld [vmem:[%s0 + $0x838] sm:$0xff]
  %v294 = vld [vmem:[%s0 + $0x840] sm:$0xff]
  %v295 = vld [vmem:[%s0 + $0x848] sm:$0xff]
  %v296 = vld [vmem:[%s0 + $0x850] sm:$0xff]
  %v297 = vld [vmem:[%s0 + $0x858] sm:$0xff]
  %v298 = vld [vmem:[%s0 + $0x860] sm:$0xff]
  %v299 = vld [vmem:[%s0 + $0x868] sm:$0xff]
  %v300 = vld [vmem:[%s0 + $0x870] sm:$0xff]
  %v301 = vld [vmem:[%s0 + $0x878] sm:$0xff]
  %v302 = vld [vmem:[%s0 + $0x880] sm:$0xff]
  %v303 = vld [vmem:[%s0 + $0x888] sm:$0xff]
  %v304 = vld [vmem:[%s0 + $0x890] sm:$0xff]
  %v305 = vld [vmem:[%s0 + $0x898] sm:$0xff]
  %v306 = vld [vmem:[%s0 + $0x8a0] sm:$0xff]
  %v307 = vld [vmem:[%s0 + $0x8a8] sm:$0xff]
  %v308 = vld [vmem:[%s0 + $0x8b0] sm:$0xff]
  %v309 = vld [vmem:[%s0 + $0x8b8] sm:$0xff]
  %v310 = vld [vmem:[%s0 + $0x8c0] sm:$0xff]
  %v311 = vld [vmem:[%s0 + $0x8c8] sm:$0xff]
  %v312 = vld [vmem:[%s0 + $0x8d0] sm:$0xff]
  %v313 = vld [vmem:[%s0 + $0x8d8] sm:$0xff]
  %v314 = vld [vmem:[%s0 + $0x8e0] sm:$0xff]
  %v315 = vld [vmem:[%s0 + $0x8e8] sm:$0xff]
  %v316 = vld [vmem:[%s0 + $0x8f0] sm:$0xff]
  %v317 = vld [vmem:[%s0 + $0x8f8] sm:$0xff]
  %v318 = vld [vmem:[%s0 + $0x900] sm:$0xff]
  %v319 = vld [vmem:[%s0 + $0x908] sm:$0xff]
  %v320 = vld [vmem:[%s0 + $0x910] sm:$0xff]
  %v321 = vld [vmem:[%s0 + $0x918] sm:$0xff]
  %v322 = vld [vmem:[%s0 + $0x920] sm:$0xff]
  %v323 = vld [vmem:[%s0 + $0x928] sm:$0xff]
  %v324 = vld [vmem:[%s0 + $0x930] sm:$0xff]
  %v325 = vld [vmem:[%s0 + $0x938] sm:$0xff]
  %v326 = vld [vmem:[%s0 + $0x940] sm:$0xff]
  %v327 = vld [vmem:[%s0 + $0x948] sm:$0xff]
  %v328 = vld [vmem:[%s0 + $0x950] sm:$0xff]
  %v329 = vld [vmem:[%s0 + $0x958] sm:$0xff]
  %v330 = vld [vmem:[%s0 + $0x960] sm:$0xff]
  %v331 = vld [vmem:[%s0 + $0x968] sm:$0xff]
  %v332 = vld [vmem:[%s0 + $0x970] sm:$0xff]
  %v333 = vld [vmem:[%s0 + $0x978] sm:$0xff]
  %v334 = vld [vmem:[%s0 + $0x980] sm:$0xff]
  %v335 = vld [vmem:[%s0 + $0x988] sm:$0xff]
  %v336 = vld [vmem:[%s0 + $0x990] sm:$0xff]
  %v337 = vld [vmem:[%s0 + $0x998] sm:$0xff]
  %v338 = vld [vmem:[%s0 + $0x9a0] sm:$0xff]
  %v339 = vld [vmem:[%s0 + $0x9a8] sm:$0xff]
  %v340 = vld [vmem:[%s0 + $0x9b0] sm:$0xff]
  %v341 = vld [vmem:[%s0 + $0x9b8] sm:$0xff]
  %v342 = vld [vmem:[%s0 + $0x9c0] sm:$0xff]
  %v343 = vld [vmem:[%s0 + $0x9c8] sm:$0xff]
  %v344 = vld [vmem:[%s0 + $0x9d0] sm:$0xff]
  %v345 = vld [vmem:[%s0 + $0x9d8] sm:$0xff]
  %v346 = vld [vmem:[%s0 + $0x9e0] sm:$0xff]
  %v347 = vld [vmem:[%s0 + $0x9e8] sm:$0xff]
  %v348 = vld [vmem:[%s0 + $0x9f0] sm:$0xff]
  %v349 = vld [vmem:[%s0 + $0x9f8] sm:$0xff]
  %v350 = vld [vmem:[%s0 + $0xa00] sm:$0xff]
  %v351 = vld [vmem:[%s0 + $0xa08] sm:$0xff]
  %v352 = vld [vmem:[%s0 + $0xa10] sm:$0xff]
  %v353 = vld [vmem:[%s0 + $0xa18] sm:$0xff]
  %v354 = vld [vmem:[%s0 + $0xa20] sm:$0xff]
  %v355 = vld [vmem:[%s0 + $0xa28] sm:$0xff]
  %v356 = vld [vmem:[%s0 + $0xa30] sm:$0xff]
  %v357 = vld [vmem:[%s0 + $0xa38] sm:$0xff]
  %v358 = vld [vmem:[%s0 + $0xa40] sm:$0xff]
  %v359 = vld [vmem:[%s0 + $0xa48] sm:$0xff]
  %v360 = vld [vmem:[%s0 + $0xa50] sm:$0xff]
  %v361 = vld [vmem:[%s0 + $0xa58] sm:$0xff]
  %v362 = vld [vmem:[%s0 + $0xa60] sm:$0xff]
  %v363 = vld [vmem:[%s0 + $0xa68] sm:$0xff]
  %v364 = vld [vmem:[%s0 + $0xa70] sm:$0xff]
  %v365 = vld [vmem:[%s0 + $0xa78] sm:$0xff]
  %v366 = vld [vmem:[%s0 + $0xa80] sm:$0xff]
  %v367 = vld [vmem:[%s0 + $0xa88] sm:$0xff]
  %v368 = vld [vmem:[%s0 + $0xa90] sm:$0xff]
  %v369 = vld [vmem:[%s0 + $0xa98] sm:$0xff]
  %v370 = vld [vmem:[%s0 + $0xaa0] sm:$0xff]
  %v371 = vld [vmem:[%s0 + $0xaa8] sm:$0xff]
  %v372 = vld [vmem:[%s0 + $0xab0] sm:$0xff]
  %v373 = vld [vmem:[%s0 + $0xab8] sm:$0xff]
  %v374 = vld [vmem:[%s0 + $0xac0] sm:$0xff]
  %v375 = vld [vmem:[%s0 + $0xac8] sm:$0xff]
  %v376 = vld [vmem:[%s0 + $0xad0] sm:$0xff]
  %v377 = vld [vmem:[%s0 + $0xad8] sm:$0xff]
  %v378 = vld [vmem:[%s0 + $0xae0] sm:$0xff]
  %v379 = vld [vmem:[%s0 + $0xae8] sm:$0xff]
  %v380 = vld [vmem:[%s0 + $0xaf0] sm:$0xff]
  %v381 = vld [vmem:[%s0 + $0xaf8] sm:$0xff]
  %v382 = vld [vmem:[%s0 + $0xb00] sm:$0xff]
  %v383 = vld [vmem:[%s0 + $0xb08] sm:$0xff]
  %v384 = vld [vmem:[%s0 + $0xb10] sm:$0xff]
  %v385 = vld [vmem:[%s0 + $0xb18] sm:$0xff]
  %v386 = vld [vmem:[%s0 + $0xb20] sm:$0xff]
  %v387 = vld [vmem:[%s0 + $0xb28] sm:$0xff]
  %v388 = vld [vmem:[%s0 + $0xb30] sm:$0xff]
  %v389 = vld [vmem:[%s0 + $0xb38] sm:$0xff]
  %v390 = vld [vmem:[%s0 + $0xb40] sm:$0xff]
  %v391 = vld [vmem:[%s0 + $0xb48] sm:$0xff]
  %v392 = vld [vmem:[%s0 + $0xb50] sm:$0xff]
  %v393 = vld [vmem:[%s0 + $0xb58] sm:$0xff]
  %v394 = vld [vmem:[%s0 + $0xb60] sm:$0xff]
  %v395 = vld [vmem:[%s0 + $0xb68] sm:$0xff]
  %v396 = vld [vmem:[%s0 + $0xb70] sm:$0xff]
  %v397 = vld [vmem:[%s0 + $0xb78] sm:$0xff]
  %v398 = vld [vmem:[%s0 + $0xb80] sm:$0xff]
  %v399 = vld [vmem:[%s0 + $0xb88] sm:$0xff]
  %v400 = vld [vmem:[%s0 + $0xb90] sm:$0xff]
  %v401 = vld [vmem:[%s0 + $0xb98] sm:$0xff]
  %v402 = vld [vmem:[%s0 + $0xba0] sm:$0xff]
  %v403 = vld [vmem:[%s0 + $0xba8] sm:$0xff]
  %v404 = vld [vmem:[%s0 + $0xbb0] sm:$0xff]
  %v405 = vld [vmem:[%s0 + $0xbb8] sm:$0xff]
  %v406 = vld [vmem:[%s0 + $0xbc0] sm:$0xff]
  %v407 = vld [vmem:[%s0 + $0xbc8] sm:$0xff]
  %v408 = vld [vmem:[%s0 + $0xbd0] sm:$0xff]
  %v409 = vld [vmem:[%s0 + $0xbd8] sm:$0xff]
  %v410 = vld [vmem:[%s0 + $0xbe0] sm:$0xff]
  %v411 = vld [vmem:[%s0 + $0xbe8] sm:$0xff]
  %v412 = vld [vmem:[%s0 + $0xbf0] sm:$0xff]
  %v413 = vld [vmem:[%s0 + $0xbf8] sm:$0xff]
  %v414 = vld [vmem:[%s0 + $0xc00] sm:$0xff]
  %v415 = vld [vmem:[%s0 + $0xc08] sm:$0xff]
  %v416 = vld [vmem:[%s0 + $0xc10] sm:$0xff]
  %v417 = vld [vmem:[%s0 + $0xc18] sm:$0xff]
  %v418 = vld [vmem:[%s0 + $0xc20] sm:$0xff]
  %v419 = vld [vmem:[%s0 + $0xc28] sm:$0xff]
  %v420 = vld [vmem:[%s0 + $0xc30] sm:$0xff]
  %v421 = vld [vmem:[%s0 + $0xc38] sm:$0xff]
  %v422 = vld [vmem:[%s0 + $0xc40] sm:$0xff]
  %v423 = vld [vmem:[%s0 + $0xc48] sm:$0xff]
  %v424 = vld [vmem:[%s0 + $0xc50] sm:$0xff]
  %v425 = vld [vmem:[%s0 + $0xc58] sm:$0xff]
  %v426 = vld [vmem:[%s0 + $0xc60] sm:$0xff]
  %v427 = vld [vmem:[%s0 + $0xc68] sm:$0xff]
  %v428 = vld [vmem:[%s0 + $0xc70] sm:$0xff]
  %v429 = vld [vmem:[%s0 + $0xc78] sm:$0xff]
  %vm430 = vcmask 130048
  %v432 = vsel %vm430, %v17, 0
  %v435 = vsel %vm430, %v21, 0
  %v438 = vsel %vm430, %v25, 0
  %v441 = vsel %vm430, %v29, 0
  %443 = vmatprep.subr.mxu0 %v31
  %444 = vmatpush1.msra.mxu0 %v30
  %445 = vmatprep.subr.mxu0 %v39
  %446 = vmatpush1.msra.mxu0 %v38
  %447 = vmatprep.subr.mxu0 %v47
  %448 = vmatpush1.msra.mxu0 %v46
  %449 = vmatprep.subr.mxu0 %v55
  %450 = vmatpush1.msra.mxu0 %v54
  %451 = vmatprep.subr.mxu0 %v63
  %452 = vmatpush1.msra.mxu0 %v62
  %453 = vmatprep.subr.mxu0 %v71
  %454 = vmatpush1.msra.mxu0 %v70
  %455 = vmatprep.subr.mxu0 %v79
  %456 = vmatpush1.msra.mxu0 %v78
  %457 = vmatprep.subr.mxu0 %v87
  %458 = vmatpush1.msra.mxu0 %v86
  %459 = vmatprep.subr.mxu0 %v95
  %460 = vmatpush1.msra.mxu0 %v94
  %461 = vmatprep.subr.mxu0 %v103
  %462 = vmatpush1.msra.mxu0 %v102
  %463 = vmatprep.subr.mxu0 %v111
  %464 = vmatpush1.msra.mxu0 %v110
  %465 = vmatprep.subr.mxu0 %v119
  %466 = vmatpush1.msra.mxu0 %v118
  %467 = vmatprep.subr.mxu0 %v127
  %468 = vmatpush1.msra.mxu0 %v126
  %469 = vmatprep.subr.mxu0 %v135
  %470 = vmatpush1.msra.mxu0 %v134
  %471 = vmatprep.subr.mxu0 %v143
  %472 = vmatpush1.msra.mxu0 %v142
  %473 = vmatprep.subr.mxu0 %v151
  %474 = vmatpush1.msra.mxu0 %v150
  %475 = vmatprep.subr.mxu0 %v159
  %476 = vmatpush1.msra.mxu0 %v158
  %477 = vmatprep.subr.mxu0 %v167
  %478 = vmatpush1.msra.mxu0 %v166
  %479 = vmatprep.subr.mxu0 %v175
  %480 = vmatpush1.msra.mxu0 %v174
  %481 = vmatprep.subr.mxu0 %v183
  %482 = vmatpush1.msra.mxu0 %v182
  %483 = vmatprep.subr.mxu0 %v191
  %484 = vmatpush1.msra.mxu0 %v190
  %485 = vmatprep.subr.mxu0 %v199
  %486 = vmatpush1.msra.mxu0 %v198
  %487 = vmatprep.subr.mxu0 %v207
  %488 = vmatpush1.msra.mxu0 %v206
  %489 = vmatprep.subr.mxu0 %v215
  %490 = vmatpush1.msra.mxu0 %v214
  %491 = vmatprep.subr.mxu0 %v223
  %492 = vmatpush1.msra.mxu0 %v222
  %493 = vmatprep.subr.mxu0 %v231
  %494 = vmatpush1.msra.mxu0 %v230
  %495 = vmatprep.subr.mxu0 %v239
  %496 = vmatpush1.msra.mxu0 %v238
  %497 = vmatprep.subr.mxu0 %v247
  %498 = vmatpush1.msra.mxu0 %v246
  %499 = vmatprep.subr.mxu0 %v255
  %500 = vmatpush1.msra.mxu0 %v254
  %501 = vmatprep.subr.mxu0 %v263
  %502 = vmatpush1.msra.mxu0 %v262
  %503 = vmatprep.subr.mxu0 %v271
  %504 = vmatpush1.msra.mxu0 %v270
  %505 = vmatprep.subr.mxu0 %v279
  %506 = vmatpush1.msra.mxu0 %v278
  %507 = vmatprep.mubr.f32.mxu0 %v15
  %508 = vmatmul.mubr.f32.gmra.mrb[0].mxu0 %v14
  %v509 = vpop.f32.mrb[0].mxu0
  %v510 = vadd.f32 0.0, %v509
  %v511 = vpop.f32.mrb[0].mxu0
  %v512 = vadd.f32 0.0, %v511
  %513 = vmatprep.mubr.f32.mxu0 %v19
  %514 = vmatmul.mubr.f32.gmra.mrb[0].mxu0 %v18
  %v515 = vpop.f32.mrb[0].mxu0
  %v516 = vadd.f32 0.0, %v515
  %v517 = vpop.f32.mrb[0].mxu0
  %v518 = vadd.f32 0.0, %v517
  %519 = vmatprep.mubr.f32.mxu0 %v23
  %520 = vmatmul.mubr.f32.gmra.mrb[0].mxu0 %v22
  %v521 = vpop.f32.mrb[0].mxu0
  %v522 = vadd.f32 0.0, %v521
  %v523 = vpop.f32.mrb[0].mxu0
  %v524 = vadd.f32 0.0, %v523
  %525 = vmatprep.mubr.f32.mxu0 %v27
  %526 = vmatmul.mubr.f32.gmra.mrb[0].mxu0 %v26
  %v527 = vpop.f32.mrb[0].mxu0
  %v528 = vadd.f32 0.0, %v527
  %v529 = vpop.f32.mrb[0].mxu0
  %v530 = vadd.f32 0.0, %v529
  %531 = vdwg.mxu0
  %532 = vmatprep.subr.mxu0 %v287
  %533 = vmatpush1.msra.mxu0 %v286
  %534 = vmatprep.subr.mxu0 %v295
  %535 = vmatpush1.msra.mxu0 %v294
  %536 = vmatprep.subr.mxu0 %v303
  %537 = vmatpush1.msra.mxu0 %v302
  %538 = vmatprep.subr.mxu0 %v311
  %539 = vmatpush1.msra.mxu0 %v310
  %540 = vmatprep.subr.mxu0 %v319
  %541 = vmatpush1.msra.mxu0 %v318
  %542 = vmatprep.subr.mxu0 %v327
  %543 = vmatpush1.msra.mxu0 %v326
  %544 = vmatprep.subr.mxu0 %v335
  %545 = vmatpush1.msra.mxu0 %v334
  %546 = vmatprep.subr.mxu0 %v343
  %547 = vmatpush1.msra.mxu0 %v342
  %548 = vmatprep.subr.mxu0 %v351
  %549 = vmatpush1.msra.mxu0 %v350
  %550 = vmatprep.subr.mxu0 %v359
  %551 = vmatpush1.msra.mxu0 %v358
  %552 = vmatprep.subr.mxu0 %v367
  %553 = vmatpush1.msra.mxu0 %v366
  %554 = vmatprep.subr.mxu0 %v375
  %555 = vmatpush1.msra.mxu0 %v374
  %556 = vmatprep.subr.mxu0 %v383
  %557 = vmatpush1.msra.mxu0 %v382
  %558 = vmatprep.subr.mxu0 %v391
  %559 = vmatpush1.msra.mxu0 %v390
  %560 = vmatprep.subr.mxu0 %v399
  %561 = vmatpush1.msra.mxu0 %v398
  %562 = vmatprep.subr.mxu0 %v407
  %563 = vmatpush1.msra.mxu0 %v406
  %564 = vmatprep.subr.mxu0 %v415
  %565 = vmatpush1.msra.mxu0 %v414
  %566 = vmatprep.subr.mxu0 %v423
  %567 = vmatpush1.msra.mxu0 %v422
  %568 = vmatprep.subr.mxu0 0.0
  %569 = vmatpush1.msra.mxu0 0.0
  %570 = vmatprep.subr.mxu0 0.0
  %571 = vmatpush1.msra.mxu0 0.0
  %572 = vmatprep.subr.mxu0 0.0
  %573 = vmatpush1.msra.mxu0 0.0
  %574 = vmatprep.subr.mxu0 0.0
  %575 = vmatpush1.msra.mxu0 0.0
  %576 = vmatprep.subr.mxu0 0.0
  %577 = vmatpush1.msra.mxu0 0.0
  %578 = vmatprep.subr.mxu0 0.0
  %579 = vmatpush1.msra.mxu0 0.0
  %580 = vmatprep.subr.mxu0 0.0
  %581 = vmatpush1.msra.mxu0 0.0
  %582 = vmatprep.subr.mxu0 0.0
  %583 = vmatpush1.msra.mxu0 0.0
  %584 = vmatprep.subr.mxu0 0.0
  %585 = vmatpush1.msra.mxu0 0.0
  %586 = vmatprep.subr.mxu0 0.0
  %587 = vmatpush1.msra.mxu0 0.0
  %588 = vmatprep.subr.mxu0 0.0
  %589 = vmatpush1.msra.mxu0 0.0
  %590 = vmatprep.subr.mxu0 0.0
  %591 = vmatpush1.msra.mxu0 0.0
  %592 = vmatprep.subr.mxu0 0.0
  %593 = vmatpush1.msra.mxu0 0.0
  %594 = vmatprep.subr.mxu0 0.0
  %595 = vmatpush1.msra.mxu0 0.0
  %596 = vmatprep.mubr.f32.mxu0 %v432
  %597 = vmatmul.mubr.f32.gmra.mrb[0].mxu0 %v16
  %v598 = vpop.f32.mrb[0].mxu0
  %v599 = vadd.f32 %v510, %v598
  %v600 = vpop.f32.mrb[0].mxu0
  %v601 = vadd.f32 %v512, %v600
  %602 = vmatprep.mubr.f32.mxu0 %v435
  %603 = vmatmul.mubr.f32.gmra.mrb[0].mxu0 %v20
  %v604 = vpop.f32.mrb[0].mxu0
  %v605 = vadd.f32 %v516, %v604
  %v606 = vpop.f32.mrb[0].mxu0
  %v607 = vadd.f32 %v518, %v606
  %608 = vmatprep.mubr.f32.mxu0 %v438
  %609 = vmatmul.mubr.f32.gmra.mrb[0].mxu0 %v24
  %v610 = vpop.f32.mrb[0].mxu0
  %v611 = vadd.f32 %v522, %v610
  %v612 = vpop.f32.mrb[0].mxu0
  %v613 = vadd.f32 %v524, %v612
  %614 = vmatprep.mubr.f32.mxu0 %v441
  %615 = vmatmul.mubr.f32.gmra.mrb[0].mxu0 %v28
  %v616 = vpop.f32.mrb[0].mxu0
  %v617 = vadd.f32 %v528, %v616
  %v618 = vpop.f32.mrb[0].mxu0
  %v619 = vadd.f32 %v530, %v618
  %620 = vdwg.mxu0
  %621 = vmatprep.subr.mxu0 %v33
  %622 = vmatpush1.msra.mxu0 %v32
  %623 = vmatprep.subr.mxu0 %v41
  %624 = vmatpush1.msra.mxu0 %v40
  %625 = vmatprep.subr.mxu0 %v49
  %626 = vmatpush1.msra.mxu0 %v48
  %627 = vmatprep.subr.mxu0 %v57
  %628 = vmatpush1.msra.mxu0 %v56
  %629 = vmatprep.subr.mxu0 %v65
  %630 = vmatpush1.msra.mxu0 %v64
  %631 = vmatprep.subr.mxu0 %v73
  %632 = vmatpush1.msra.mxu0 %v72
  %633 = vmatprep.subr.mxu0 %v81
  %634 = vmatpush1.msra.mxu0 %v80
  %635 = vmatprep.subr.mxu0 %v89
  %636 = vmatpush1.msra.mxu0 %v88
  %637 = vmatprep.subr.mxu0 %v97
  %638 = vmatpush1.msra.mxu0 %v96
  %639 = vmatprep.subr.mxu0 %v105
  %640 = vmatpush1.msra.mxu0 %v104
  %641 = vmatprep.subr.mxu0 %v113
  %642 = vmatpush1.msra.mxu0 %v112
  %643 = vmatprep.subr.mxu0 %v121
  %644 = vmatpush1.msra.mxu0 %v120
  %645 = vmatprep.subr.mxu0 %v129
  %646 = vmatpush1.msra.mxu0 %v128
  %647 = vmatprep.subr.mxu0 %v137
  %648 = vmatpush1.msra.mxu0 %v136
  %649 = vmatprep.subr.mxu0 %v145
  %650 = vmatpush1.msra.mxu0 %v144
  %651 = vmatprep.subr.mxu0 %v153
  %652 = vmatpush1.msra.mxu0 %v152
  %653 = vmatprep.subr.mxu0 %v161
  %654 = vmatpush1.msra.mxu0 %v160
  %655 = vmatprep.subr.mxu0 %v169
  %656 = vmatpush1.msra.mxu0 %v168
  %657 = vmatprep.subr.mxu0 %v177
  %658 = vmatpush1.msra.mxu0 %v176
  %659 = vmatprep.subr.mxu0 %v185
  %660 = vmatpush1.msra.mxu0 %v184
  %661 = vmatprep.subr.mxu0 %v193
  %662 = vmatpush1.msra.mxu0 %v192
  %663 = vmatprep.subr.mxu0 %v201
  %664 = vmatpush1.msra.mxu0 %v200
  %665 = vmatprep.subr.mxu0 %v209
  %666 = vmatpush1.msra.mxu0 %v208
  %667 = vmatprep.subr.mxu0 %v217
  %668 = vmatpush1.msra.mxu0 %v216
  %669 = vmatprep.subr.mxu0 %v225
  %670 = vmatpush1.msra.mxu0 %v224
  %671 = vmatprep.subr.mxu0 %v233
  %672 = vmatpush1.msra.mxu0 %v232
  %673 = vmatprep.subr.mxu0 %v241
  %674 = vmatpush1.msra.mxu0 %v240
  %675 = vmatprep.subr.mxu0 %v249
  %676 = vmatpush1.msra.mxu0 %v248
  %677 = vmatprep.subr.mxu0 %v257
  %678 = vmatpush1.msra.mxu0 %v256
  %679 = vmatprep.subr.mxu0 %v265
  %680 = vmatpush1.msra.mxu0 %v264
  %681 = vmatprep.subr.mxu0 %v273
  %682 = vmatpush1.msra.mxu0 %v272
  %683 = vmatprep.subr.mxu0 %v281
  %684 = vmatpush1.msra.mxu0 %v280
  %685 = vmatprep.mubr.f32.mxu0 %v15
  %686 = vmatmul.mubr.f32.gmra.mrb[0].mxu0 %v14
  %v687 = vpop.f32.mrb[0].mxu0
  %v688 = vadd.f32 0.0, %v687
  %v689 = vpop.f32.mrb[0].mxu0
  %v690 = vadd.f32 0.0, %v689
  %691 = vmatprep.mubr.f32.mxu0 %v19
  %692 = vmatmul.mubr.f32.gmra.mrb[0].mxu0 %v18
  %v693 = vpop.f32.mrb[0].mxu0
  %v694 = vadd.f32 0.0, %v693
  %v695 = vpop.f32.mrb[0].mxu0
  %v696 = vadd.f32 0.0, %v695
  %697 = vmatprep.mubr.f32.mxu0 %v23
  %698 = vmatmul.mubr.f32.gmra.mrb[0].mxu0 %v22
  %v699 = vpop.f32.mrb[0].mxu0
  %v700 = vadd.f32 0.0, %v699
  %v701 = vpop.f32.mrb[0].mxu0
  %v702 = vadd.f32 0.0, %v701
  %703 = vmatprep.mubr.f32.mxu0 %v27
  %704 = vmatmul.mubr.f32.gmra.mrb[0].mxu0 %v26
  %v705 = vpop.f32.mrb[0].mxu0
  %v706 = vadd.f32 0.0, %v705
  %v707 = vpop.f32.mrb[0].mxu0
  %v708 = vadd.f32 0.0, %v707
  %709 = vdwg.mxu0
  %710 = vmatprep.subr.mxu0 %v289
  %711 = vmatpush1.msra.mxu0 %v288
  %712 = vmatprep.subr.mxu0 %v297
  %713 = vmatpush1.msra.mxu0 %v296
  %714 = vmatprep.subr.mxu0 %v305
  %715 = vmatpush1.msra.mxu0 %v304
  %716 = vmatprep.subr.mxu0 %v313
  %717 = vmatpush1.msra.mxu0 %v312
  %718 = vmatprep.subr.mxu0 %v321
  %719 = vmatpush1.msra.mxu0 %v320
  %720 = vmatprep.subr.mxu0 %v329
  %721 = vmatpush1.msra.mxu0 %v328
  %722 = vmatprep.subr.mxu0 %v337
  %723 = vmatpush1.msra.mxu0 %v336
  %724 = vmatprep.subr.mxu0 %v345
  %725 = vmatpush1.msra.mxu0 %v344
  %726 = vmatprep.subr.mxu0 %v353
  %727 = vmatpush1.msra.mxu0 %v352
  %728 = vmatprep.subr.mxu0 %v361
  %729 = vmatpush1.msra.mxu0 %v360
  %730 = vmatprep.subr.mxu0 %v369
  %731 = vmatpush1.msra.mxu0 %v368
  %732 = vmatprep.subr.mxu0 %v377
  %733 = vmatpush1.msra.mxu0 %v376
  %734 = vmatprep.subr.mxu0 %v385
  %735 = vmatpush1.msra.mxu0 %v384
  %736 = vmatprep.subr.mxu0 %v393
  %737 = vmatpush1.msra.mxu0 %v392
  %738 = vmatprep.subr.mxu0 %v401
  %739 = vmatpush1.msra.mxu0 %v400
  %740 = vmatprep.subr.mxu0 %v409
  %741 = vmatpush1.msra.mxu0 %v408
  %742 = vmatprep.subr.mxu0 %v417
  %743 = vmatpush1.msra.mxu0 %v416
  %744 = vmatprep.subr.mxu0 %v425
  %745 = vmatpush1.msra.mxu0 %v424
  %746 = vmatprep.subr.mxu0 0.0
  %747 = vmatpush1.msra.mxu0 0.0
  %748 = vmatprep.subr.mxu0 0.0
  %749 = vmatpush1.msra.mxu0 0.0
  %750 = vmatprep.subr.mxu0 0.0
  %751 = vmatpush1.msra.mxu0 0.0
  %752 = vmatprep.subr.mxu0 0.0
  %753 = vmatpush1.msra.mxu0 0.0
  %754 = vmatprep.subr.mxu0 0.0
  %755 = vmatpush1.msra.mxu0 0.0
  %756 = vmatprep.subr.mxu0 0.0
  %757 = vmatpush1.msra.mxu0 0.0
  %758 = vmatprep.subr.mxu0 0.0
  %759 = vmatpush1.msra.mxu0 0.0
  %760 = vmatprep.subr.mxu0 0.0
  %761 = vmatpush1.msra.mxu0 0.0
  %762 = vmatprep.subr.mxu0 0.0
  %763 = vmatpush1.msra.mxu0 0.0
  %764 = vmatprep.subr.mxu0 0.0
  %765 = vmatpush1.msra.mxu0 0.0
  %766 = vmatprep.subr.mxu0 0.0
  %767 = vmatpush1.msra.mxu0 0.0
  %768 = vmatprep.subr.mxu0 0.0
  %769 = vmatpush1.msra.mxu0 0.0
  %770 = vmatprep.subr.mxu0 0.0
  %771 = vmatpush1.msra.mxu0 0.0
  %772 = vmatprep.subr.mxu0 0.0
  %773 = vmatpush1.msra.mxu0 0.0
  %774 = vmatprep.mubr.f32.mxu0 %v432
  %775 = vmatmul.mubr.f32.gmra.mrb[0].mxu0 %v16
  %v776 = vpop.f32.mrb[0].mxu0
  %v777 = vadd.f32 %v688, %v776
  %v778 = vpop.f32.mrb[0].mxu0
  %v779 = vadd.f32 %v690, %v778
  %780 = vmatprep.mubr.f32.mxu0 %v435
  %781 = vmatmul.mubr.f32.gmra.mrb[0].mxu0 %v20
  %v782 = vpop.f32.mrb[0].mxu0
  %v783 = vadd.f32 %v694, %v782
  %v784 = vpop.f32.mrb[0].mxu0
  %v785 = vadd.f32 %v696, %v784
  %786 = vmatprep.mubr.f32.mxu0 %v438
  %787 = vmatmul.mubr.f32.gmra.mrb[0].mxu0 %v24
  %v788 = vpop.f32.mrb[0].mxu0
  %v789 = vadd.f32 %v700, %v788
  %v790 = vpop.f32.mrb[0].mxu0
  %v791 = vadd.f32 %v702, %v790
  %792 = vmatprep.mubr.f32.mxu0 %v441
  %793 = vmatmul.mubr.f32.gmra.mrb[0].mxu0 %v28
  %v794 = vpop.f32.mrb[0].mxu0
  %v795 = vadd.f32 %v706, %v794
  %v796 = vpop.f32.mrb[0].mxu0
  %v797 = vadd.f32 %v708, %v796
  %798 = vdwg.mxu0
  %799 = vmatprep.subr.mxu0 %v35
  %800 = vmatpush1.msra.mxu0 %v34
  %801 = vmatprep.subr.mxu0 %v43
  %802 = vmatpush1.msra.mxu0 %v42
  %803 = vmatprep.subr.mxu0 %v51
  %804 = vmatpush1.msra.mxu0 %v50
  %805 = vmatprep.subr.mxu0 %v59
  %806 = vmatpush1.msra.mxu0 %v58
  %807 = vmatprep.subr.mxu0 %v67
  %808 = vmatpush1.msra.mxu0 %v66
  %809 = vmatprep.subr.mxu0 %v75
  %810 = vmatpush1.msra.mxu0 %v74
  %811 = vmatprep.subr.mxu0 %v83
  %812 = vmatpush1.msra.mxu0 %v82
  %813 = vmatprep.subr.mxu0 %v91
  %814 = vmatpush1.msra.mxu0 %v90
  %815 = vmatprep.subr.mxu0 %v99
  %816 = vmatpush1.msra.mxu0 %v98
  %817 = vmatprep.subr.mxu0 %v107
  %818 = vmatpush1.msra.mxu0 %v106
  %819 = vmatprep.subr.mxu0 %v115
  %820 = vmatpush1.msra.mxu0 %v114
  %821 = vmatprep.subr.mxu0 %v123
  %822 = vmatpush1.msra.mxu0 %v122
  %823 = vmatprep.subr.mxu0 %v131
  %824 = vmatpush1.msra.mxu0 %v130
  %825 = vmatprep.subr.mxu0 %v139
  %826 = vmatpush1.msra.mxu0 %v138
  %827 = vmatprep.subr.mxu0 %v147
  %828 = vmatpush1.msra.mxu0 %v146
  %829 = vmatprep.subr.mxu0 %v155
  %830 = vmatpush1.msra.mxu0 %v154
  %831 = vmatprep.subr.mxu0 %v163
  %832 = vmatpush1.msra.mxu0 %v162
  %833 = vmatprep.subr.mxu0 %v171
  %834 = vmatpush1.msra.mxu0 %v170
  %835 = vmatprep.subr.mxu0 %v179
  %836 = vmatpush1.msra.mxu0 %v178
  %837 = vmatprep.subr.mxu0 %v187
  %838 = vmatpush1.msra.mxu0 %v186
  %839 = vmatprep.subr.mxu0 %v195
  %840 = vmatpush1.msra.mxu0 %v194
  %841 = vmatprep.subr.mxu0 %v203
  %842 = vmatpush1.msra.mxu0 %v202
  %843 = vmatprep.subr.mxu0 %v211
  %844 = vmatpush1.msra.mxu0 %v210
  %845 = vmatprep.subr.mxu0 %v219
  %846 = vmatpush1.msra.mxu0 %v218
  %847 = vmatprep.subr.mxu0 %v227
  %848 = vmatpush1.msra.mxu0 %v226
  %849 = vmatprep.subr.mxu0 %v235
  %850 = vmatpush1.msra.mxu0 %v234
  %851 = vmatprep.subr.mxu0 %v243
  %852 = vmatpush1.msra.mxu0 %v242
  %853 = vmatprep.subr.mxu0 %v251
  %854 = vmatpush1.msra.mxu0 %v250
  %855 = vmatprep.subr.mxu0 %v259
  %856 = vmatpush1.msra.mxu0 %v258
  %857 = vmatprep.subr.mxu0 %v267
  %858 = vmatpush1.msra.mxu0 %v266
  %859 = vmatprep.subr.mxu0 %v275
  %860 = vmatpush1.msra.mxu0 %v274
  %861 = vmatprep.subr.mxu0 %v283
  %862 = vmatpush1.msra.mxu0 %v282
  %863 = vmatprep.mubr.f32.mxu0 %v15
  %864 = vmatmul.mubr.f32.gmra.mrb[0].mxu0 %v14
  %v865 = vpop.f32.mrb[0].mxu0
  %v866 = vadd.f32 0.0, %v865
  %v867 = vpop.f32.mrb[0].mxu0
  %v868 = vadd.f32 0.0, %v867
  %869 = vmatprep.mubr.f32.mxu0 %v19
  %870 = vmatmul.mubr.f32.gmra.mrb[0].mxu0 %v18
  %v871 = vpop.f32.mrb[0].mxu0
  %v872 = vadd.f32 0.0, %v871
  %v873 = vpop.f32.mrb[0].mxu0
  %v874 = vadd.f32 0.0, %v873
  %875 = vmatprep.mubr.f32.mxu0 %v23
  %876 = vmatmul.mubr.f32.gmra.mrb[0].mxu0 %v22
  %v877 = vpop.f32.mrb[0].mxu0
  %v878 = vadd.f32 0.0, %v877
  %v879 = vpop.f32.mrb[0].mxu0
  %v880 = vadd.f32 0.0, %v879
  %881 = vmatprep.mubr.f32.mxu0 %v27
  %882 = vmatmul.mubr.f32.gmra.mrb[0].mxu0 %v26
  %v883 = vpop.f32.mrb[0].mxu0
  %v884 = vadd.f32 0.0, %v883
  %v885 = vpop.f32.mrb[0].mxu0
  %v886 = vadd.f32 0.0, %v885
  %887 = vdwg.mxu0
  %888 = vmatprep.subr.mxu0 %v291
  %889 = vmatpush1.msra.mxu0 %v290
  %890 = vmatprep.subr.mxu0 %v299
  %891 = vmatpush1.msra.mxu0 %v298
  %892 = vmatprep.subr.mxu0 %v307
  %893 = vmatpush1.msra.mxu0 %v306
  %894 = vmatprep.subr.mxu0 %v315
  %895 = vmatpush1.msra.mxu0 %v314
  %896 = vmatprep.subr.mxu0 %v323
  %897 = vmatpush1.msra.mxu0 %v322
  %898 = vmatprep.subr.mxu0 %v331
  %899 = vmatpush1.msra.mxu0 %v330
  %900 = vmatprep.subr.mxu0 %v339
  %901 = vmatpush1.msra.mxu0 %v338
  %902 = vmatprep.subr.mxu0 %v347
  %903 = vmatpush1.msra.mxu0 %v346
  %904 = vmatprep.subr.mxu0 %v355
  %905 = vmatpush1.msra.mxu0 %v354
  %906 = vmatprep.subr.mxu0 %v363
  %907 = vmatpush1.msra.mxu0 %v362
  %908 = vmatprep.subr.mxu0 %v371
  %909 = vmatpush1.msra.mxu0 %v370
  %910 = vmatprep.subr.mxu0 %v379
  %911 = vmatpush1.msra.mxu0 %v378
  %912 = vmatprep.subr.mxu0 %v387
  %913 = vmatpush1.msra.mxu0 %v386
  %914 = vmatprep.subr.mxu0 %v395
  %915 = vmatpush1.msra.mxu0 %v394
  %916 = vmatprep.subr.mxu0 %v403
  %917 = vmatpush1.msra.mxu0 %v402
  %918 = vmatprep.subr.mxu0 %v411
  %919 = vmatpush1.msra.mxu0 %v410
  %920 = vmatprep.subr.mxu0 %v419
  %921 = vmatpush1.msra.mxu0 %v418
  %922 = vmatprep.subr.mxu0 %v427
  %923 = vmatpush1.msra.mxu0 %v426
  %924 = vmatprep.subr.mxu0 0.0
  %925 = vmatpush1.msra.mxu0 0.0
  %926 = vmatprep.subr.mxu0 0.0
  %927 = vmatpush1.msra.mxu0 0.0
  %928 = vmatprep.subr.mxu0 0.0
  %929 = vmatpush1.msra.mxu0 0.0
  %930 = vmatprep.subr.mxu0 0.0
  %931 = vmatpush1.msra.mxu0 0.0
  %932 = vmatprep.subr.mxu0 0.0
  %933 = vmatpush1.msra.mxu0 0.0
  %934 = vmatprep.subr.mxu0 0.0
  %935 = vmatpush1.msra.mxu0 0.0
  %936 = vmatprep.subr.mxu0 0.0
  %937 = vmatpush1.msra.mxu0 0.0
  %938 = vmatprep.subr.mxu0 0.0
  %939 = vmatpush1.msra.mxu0 0.0
  %940 = vmatprep.subr.mxu0 0.0
  %941 = vmatpush1.msra.mxu0 0.0
  %942 = vmatprep.subr.mxu0 0.0
  %943 = vmatpush1.msra.mxu0 0.0
  %944 = vmatprep.subr.mxu0 0.0
  %945 = vmatpush1.msra.mxu0 0.0
  %946 = vmatprep.subr.mxu0 0.0
  %947 = vmatpush1.msra.mxu0 0.0
  %948 = vmatprep.subr.mxu0 0.0
  %949 = vmatpush1.msra.mxu0 0.0
  %950 = vmatprep.subr.mxu0 0.0
  %951 = vmatpush1.msra.mxu0 0.0
  %952 = vmatprep.mubr.f32.mxu0 %v432
  %953 = vmatmul.mubr.f32.gmra.mrb[0].mxu0 %v16
  %v954 = vpop.f32.mrb[0].mxu0
  %v955 = vadd.f32 %v866, %v954
  %v956 = vpop.f32.mrb[0].mxu0
  %v957 = vadd.f32 %v868, %v956
  %958 = vmatprep.mubr.f32.mxu0 %v435
  %959 = vmatmul.mubr.f32.gmra.mrb[0].mxu0 %v20
  %v960 = vpop.f32.mrb[0].mxu0
  %v961 = vadd.f32 %v872, %v960
  %v962 = vpop.f32.mrb[0].mxu0
  %v963 = vadd.f32 %v874, %v962
  %964 = vmatprep.mubr.f32.mxu0 %v438
  %965 = vmatmul.mubr.f32.gmra.mrb[0].mxu0 %v24
  %v966 = vpop.f32.mrb[0].mxu0
  %v967 = vadd.f32 %v878, %v966
  %v968 = vpop.f32.mrb[0].mxu0
  %v969 = vadd.f32 %v880, %v968
  %970 = vmatprep.mubr.f32.mxu0 %v441
  %971 = vmatmul.mubr.f32.gmra.mrb[0].mxu0 %v28
  %v972 = vpop.f32.mrb[0].mxu0
  %v973 = vadd.f32 %v884, %v972
  %v974 = vpop.f32.mrb[0].mxu0
  %v975 = vadd.f32 %v886, %v974
  %976 = vdwg.mxu0
  %977 = vmatprep.subr.mxu0 %v37
  %978 = vmatpush1.msra.mxu0 %v36
  %979 = vmatprep.subr.mxu0 %v45
  %980 = vmatpush1.msra.mxu0 %v44
  %981 = vmatprep.subr.mxu0 %v53
  %982 = vmatpush1.msra.mxu0 %v52
  %983 = vmatprep.subr.mxu0 %v61
  %984 = vmatpush1.msra.mxu0 %v60
  %985 = vmatprep.subr.mxu0 %v69
  %986 = vmatpush1.msra.mxu0 %v68
  %987 = vmatprep.subr.mxu0 %v77
  %988 = vmatpush1.msra.mxu0 %v76
  %989 = vmatprep.subr.mxu0 %v85
  %990 = vmatpush1.msra.mxu0 %v84
  %991 = vmatprep.subr.mxu0 %v93
  %992 = vmatpush1.msra.mxu0 %v92
  %993 = vmatprep.subr.mxu0 %v101
  %994 = vmatpush1.msra.mxu0 %v100
  %995 = vmatprep.subr.mxu0 %v109
  %996 = vmatpush1.msra.mxu0 %v108
  %997 = vmatprep.subr.mxu0 %v117
  %998 = vmatpush1.msra.mxu0 %v116
  %999 = vmatprep.subr.mxu0 %v125
  %1000 = vmatpush1.msra.mxu0 %v124
  %1001 = vmatprep.subr.mxu0 %v133
  %1002 = vmatpush1.msra.mxu0 %v132
  %1003 = vmatprep.subr.mxu0 %v141
  %1004 = vmatpush1.msra.mxu0 %v140
  %1005 = vmatprep.subr.mxu0 %v149
  %1006 = vmatpush1.msra.mxu0 %v148
  %1007 = vmatprep.subr.mxu0 %v157
  %1008 = vmatpush1.msra.mxu0 %v156
  %1009 = vmatprep.subr.mxu0 %v165
  %1010 = vmatpush1.msra.mxu0 %v164
  %1011 = vmatprep.subr.mxu0 %v173
  %1012 = vmatpush1.msra.mxu0 %v172
  %1013 = vmatprep.subr.mxu0 %v181
  %1014 = vmatpush1.msra.mxu0 %v180
  %1015 = vmatprep.subr.mxu0 %v189
  %1016 = vmatpush1.msra.mxu0 %v188
  %1017 = vmatprep.subr.mxu0 %v197
  %1018 = vmatpush1.msra.mxu0 %v196
  %1019 = vmatprep.subr.mxu0 %v205
  %1020 = vmatpush1.msra.mxu0 %v204
  %1021 = vmatprep.subr.mxu0 %v213
  %1022 = vmatpush1.msra.mxu0 %v212
  %1023 = vmatprep.subr.mxu0 %v221
  %1024 = vmatpush1.msra.mxu0 %v220
  %1025 = vmatprep.subr.mxu0 %v229
  %1026 = vmatpush1.msra.mxu0 %v228
  %1027 = vmatprep.subr.mxu0 %v237
  %1028 = vmatpush1.msra.mxu0 %v236
  %1029 = vmatprep.subr.mxu0 %v245
  %1030 = vmatpush1.msra.mxu0 %v244
  %1031 = vmatprep.subr.mxu0 %v253
  %1032 = vmatpush1.msra.mxu0 %v252
  %1033 = vmatprep.subr.mxu0 %v261
  %1034 = vmatpush1.msra.mxu0 %v260
  %1035 = vmatprep.subr.mxu0 %v269
  %1036 = vmatpush1.msra.mxu0 %v268
  %1037 = vmatprep.subr.mxu0 %v277
  %1038 = vmatpush1.msra.mxu0 %v276
  %1039 = vmatprep.subr.mxu0 %v285
  %1040 = vmatpush1.msra.mxu0 %v284
  %1041 = vmatprep.mubr.f32.mxu0 %v15
  %1042 = vmatmul.mubr.f32.gmra.mrb[0].mxu0 %v14
  %v1043 = vpop.f32.mrb[0].mxu0
  %v1044 = vadd.f32 0.0, %v1043
  %v1045 = vpop.f32.mrb[0].mxu0
  %v1046 = vadd.f32 0.0, %v1045
  %1047 = vmatprep.mubr.f32.mxu0 %v19
  %1048 = vmatmul.mubr.f32.gmra.mrb[0].mxu0 %v18
  %v1049 = vpop.f32.mrb[0].mxu0
  %v1050 = vadd.f32 0.0, %v1049
  %v1051 = vpop.f32.mrb[0].mxu0
  %v1052 = vadd.f32 0.0, %v1051
  %1053 = vmatprep.mubr.f32.mxu0 %v23
  %1054 = vmatmul.mubr.f32.gmra.mrb[0].mxu0 %v22
  %v1055 = vpop.f32.mrb[0].mxu0
  %v1056 = vadd.f32 0.0, %v1055
  %v1057 = vpop.f32.mrb[0].mxu0
  %v1058 = vadd.f32 0.0, %v1057
  %1059 = vmatprep.mubr.f32.mxu0 %v27
  %1060 = vmatmul.mubr.f32.gmra.mrb[0].mxu0 %v26
  %v1061 = vpop.f32.mrb[0].mxu0
  %v1062 = vadd.f32 0.0, %v1061
  %v1063 = vpop.f32.mrb[0].mxu0
  %v1064 = vadd.f32 0.0, %v1063
  %1065 = vdwg.mxu0
  %1066 = vmatprep.subr.mxu0 %v293
  %1067 = vmatpush1.msra.mxu0 %v292
  %1068 = vmatprep.subr.mxu0 %v301
  %1069 = vmatpush1.msra.mxu0 %v300
  %1070 = vmatprep.subr.mxu0 %v309
  %1071 = vmatpush1.msra.mxu0 %v308
  %1072 = vmatprep.subr.mxu0 %v317
  %1073 = vmatpush1.msra.mxu0 %v316
  %1074 = vmatprep.subr.mxu0 %v325
  %1075 = vmatpush1.msra.mxu0 %v324
  %1076 = vmatprep.subr.mxu0 %v333
  %1077 = vmatpush1.msra.mxu0 %v332
  %1078 = vmatprep.subr.mxu0 %v341
  %1079 = vmatpush1.msra.mxu0 %v340
  %1080 = vmatprep.subr.mxu0 %v349
  %1081 = vmatpush1.msra.mxu0 %v348
  %1082 = vmatprep.subr.mxu0 %v357
  %1083 = vmatpush1.msra.mxu0 %v356
  %1084 = vmatprep.subr.mxu0 %v365
  %1085 = vmatpush1.msra.mxu0 %v364
  %1086 = vmatprep.subr.mxu0 %v373
  %1087 = vmatpush1.msra.mxu0 %v372
  %1088 = vmatprep.subr.mxu0 %v381
  %1089 = vmatpush1.msra.mxu0 %v380
  %1090 = vmatprep.subr.mxu0 %v389
  %1091 = vmatpush1.msra.mxu0 %v388
  %1092 = vmatprep.subr.mxu0 %v397
  %1093 = vmatpush1.msra.mxu0 %v396
  %1094 = vmatprep.subr.mxu0 %v405
  %1095 = vmatpush1.msra.mxu0 %v404
  %1096 = vmatprep.subr.mxu0 %v413
  %1097 = vmatpush1.msra.mxu0 %v412
  %1098 = vmatprep.subr.mxu0 %v421
  %1099 = vmatpush1.msra.mxu0 %v420
  %1100 = vmatprep.subr.mxu0 %v429
  %1101 = vmatpush1.msra.mxu0 %v428
  %1102 = vmatprep.subr.mxu0 0.0
  %1103 = vmatpush1.msra.mxu0 0.0
  %1104 = vmatprep.subr.mxu0 0.0
  %1105 = vmatpush1.msra.mxu0 0.0
  %1106 = vmatprep.subr.mxu0 0.0
  %1107 = vmatpush1.msra.mxu0 0.0
  %1108 = vmatprep.subr.mxu0 0.0
  %1109 = vmatpush1.msra.mxu0 0.0
  %1110 = vmatprep.subr.mxu0 0.0
  %1111 = vmatpush1.msra.mxu0 0.0
  %1112 = vmatprep.subr.mxu0 0.0
  %1113 = vmatpush1.msra.mxu0 0.0
  %1114 = vmatprep.subr.mxu0 0.0
  %1115 = vmatpush1.msra.mxu0 0.0
  %1116 = vmatprep.subr.mxu0 0.0
  %1117 = vmatpush1.msra.mxu0 0.0
  %1118 = vmatprep.subr.mxu0 0.0
  %1119 = vmatpush1.msra.mxu0 0.0
  %1120 = vmatprep.subr.mxu0 0.0
  %1121 = vmatpush1.msra.mxu0 0.0
  %1122 = vmatprep.subr.mxu0 0.0
  %1123 = vmatpush1.msra.mxu0 0.0
  %1124 = vmatprep.subr.mxu0 0.0
  %1125 = vmatpush1.msra.mxu0 0.0
  %1126 = vmatprep.subr.mxu0 0.0
  %1127 = vmatpush1.msra.mxu0 0.0
  %1128 = vmatprep.subr.mxu0 0.0
  %1129 = vmatpush1.msra.mxu0 0.0
  %1130 = vmatprep.mubr.f32.mxu0 %v432
  %1131 = vmatmul.mubr.f32.gmra.mrb[0].mxu0 %v16
  %v1132 = vpop.f32.mrb[0].mxu0
  %v1133 = vadd.f32 %v1044, %v1132
  %v1134 = vpop.f32.mrb[0].mxu0
  %v1135 = vadd.f32 %v1046, %v1134
  %1136 = vmatprep.mubr.f32.mxu0 %v435
  %1137 = vmatmul.mubr.f32.gmra.mrb[0].mxu0 %v20
  %v1138 = vpop.f32.mrb[0].mxu0
  %v1139 = vadd.f32 %v1050, %v1138
  %v1140 = vpop.f32.mrb[0].mxu0
  %v1141 = vadd.f32 %v1052, %v1140
  %1142 = vmatprep.mubr.f32.mxu0 %v438
  %1143 = vmatmul.mubr.f32.gmra.mrb[0].mxu0 %v24
  %v1144 = vpop.f32.mrb[0].mxu0
  %v1145 = vadd.f32 %v1056, %v1144
  %v1146 = vpop.f32.mrb[0].mxu0
  %v1147 = vadd.f32 %v1058, %v1146
  %1148 = vmatprep.mubr.f32.mxu0 %v441
  %1149 = vmatmul.mubr.f32.gmra.mrb[0].mxu0 %v28
  %v1150 = vpop.f32.mrb[0].mxu0
  %v1151 = vadd.f32 %v1062, %v1150
  %v1152 = vpop.f32.mrb[0].mxu0
  %v1153 = vadd.f32 %v1064, %v1152
  %1154 = vdwg.mxu0
  %v1155 = vmax.f32 %v599, %v777
  %v1156 = vmax.f32 %v601, %v779
  %v1157 = vmax.f32 %v605, %v783
  %v1158 = vmax.f32 %v607, %v785
  %v1159 = vmax.f32 %v611, %v789
  %v1160 = vmax.f32 %v613, %v791
  %v1161 = vmax.f32 %v617, %v795
  %v1162 = vmax.f32 %v619, %v797
  %v1163 = vmax.f32 %v955, %v1133
  %v1164 = vmax.f32 %v957, %v1135
  %v1165 = vmax.f32 %v961, %v1139
  %v1166 = vmax.f32 %v963, %v1141
  %v1167 = vmax.f32 %v967, %v1145
  %v1168 = vmax.f32 %v969, %v1147
  %v1169 = vmax.f32 %v973, %v1151
  %v1170 = vmax.f32 %v975, %v1153
  %v1171 = vmax.f32 %v1155, %v1163
  %v1172 = vmax.f32 %v1156, %v1164
  %v1173 = vmax.f32 %v1157, %v1165
  %v1174 = vmax.f32 %v1158, %v1166
  %v1175 = vmax.f32 %v1159, %v1167
  %v1176 = vmax.f32 %v1160, %v1168
  %v1177 = vmax.f32 %v1161, %v1169
  %v1178 = vmax.f32 %v1162, %v1170
  %v1179 = vld [vmem:[%s2] sm:$0xff]
  %v1180 = vld [vmem:[%s2 + $0x8] sm:$0xff]
  %v1181 = vld [vmem:[%s2 + $0x10] sm:$0xff]
  %v1182 = vld [vmem:[%s2 + $0x18] sm:$0xff]
  %1184 = vset.pattern.permute.xlu0 0
  %1185 = vperm.xlu0 %1184, %v1179
  %v1186 = vpop.permute.xlu0 %1185
  %1189 = vset.pattern.permute.xlu0 0
  %1190 = vperm.xlu0 %1189, %v1180
  %v1191 = vpop.permute.xlu0 %1190
  %1194 = vset.pattern.permute.xlu0 0
  %1195 = vperm.xlu0 %1194, %v1181
  %v1196 = vpop.permute.xlu0 %1195
  %1199 = vset.pattern.permute.xlu0 0
  %1200 = vperm.xlu0 %1199, %v1182
  %v1201 = vpop.permute.xlu0 %1200
  %v1203 = vadd.f32 %v1171, %v1186
  %v1204 = vadd.f32 %v1172, %v1186
  %v1205 = vadd.f32 %v1173, %v1191
  %v1206 = vadd.f32 %v1174, %v1191
  %v1207 = vadd.f32 %v1175, %v1196
  %v1208 = vadd.f32 %v1176, %v1196
  %v1209 = vadd.f32 %v1177, %v1201
  %v1210 = vadd.f32 %v1178, %v1201
  %v1211 = vmax.f32 %v1203, 0.0
  %v1212 = vmax.f32 %v1204, 0.0
  %v1213 = vmax.f32 %v1205, 0.0
  %v1214 = vmax.f32 %v1206, 0.0
  %v1215 = vmax.f32 %v1207, 0.0
  %v1216 = vmax.f32 %v1208, 0.0
  %v1217 = vmax.f32 %v1209, 0.0
  %v1218 = vmax.f32 %v1210, 0.0
  %1219 = vst [vmem:[%s3] sm:$0xff] %v1211
  %1220 = vst [vmem:[%s3 + $0x8] sm:$0xff] %v1212
  %1221 = vst [vmem:[%s3 + $0x10] sm:$0xff] %v1213
  %1222 = vst [vmem:[%s3 + $0x18] sm:$0xff] %v1214
  %1223 = vst [vmem:[%s3 + $0x20] sm:$0xff] %v1215
  %1224 = vst [vmem:[%s3 + $0x28] sm:$0xff] %v1216
  %1225 = vst [vmem:[%s3 + $0x30] sm:$0xff] %v1217
  %1226 = vst [vmem:[%s3 + $0x38] sm:$0xff] %v1218
  // Predicated region
  $region14: #{mini_model_forward.4} parent=0 // pred_check
    _
  $region15: #{mini_model_forward.4} parent=0 // pred_check_branch
    %1228 = sbr.rel (0) target = $region17
  $region16: #{mini_model_forward.4} parent=0 // pred_region
    _
  $region17: #{mini_model_forward.4} parent=0 // pred_fallthru
    _
  // Predicated region
  $region18: #{mini_model_forward.4} parent=0 // pred_check
    _
  $region19: #{mini_model_forward.4} parent=0 // pred_check_branch
    %1230 = sbr.rel (0) target = $region21
  $region20: #{mini_model_forward.4} parent=0 // pred_region
    _
  $region21: #{mini_model_forward.4} parent=0 // pred_fallthru
    _

// kernel: mini_model_forward.5
$region0: #{mini_model_forward.5}
  #allocation0 [shape = 'u32[]', space=smem, size = 0x4, offset = 0x4, fixed_abs, tag = 'smem constant byte address 0x4 - core index']
  #allocation1 [shape = 'u32[144,128]{1,0:T(1,128)}', space=vmem, size = 0x12000, scoped, tag = 'internal scratch']
  %s0 = inlined_call_operand.vmem [shape: bf16[2,2592], index: 0, kind: input, shape index: {}]
  %s1 = inlined_call_operand.vmem [shape: bf16[2592,1024], index: 1, kind: input, shape index: {}]
  %s2 = inlined_call_operand.vmem [shape: f32[1,1024], index: 2, kind: input, shape index: {}]
  %s3 = inlined_call_operand.vmem [shape: f32[1024,14], index: 3, kind: input, shape index: {}]
  %s4 = inlined_call_operand.vmem [shape: f32[1,14], index: 4, kind: input, shape index: {}]
  %s5 = inlined_call_operand.hbm [shape: f32[2,14], index: 5, kind: output, shape index: {}]
  %s6 = sld [smem:[#allocation0]]
  $region30: #{mini_model_forward.5} parent=0
    _
  %s8 = ssub.s32 1, %s6
  %s9 = scalar_select 0, %s8, %s6
  $region1: #{mini_model_forward.5} parent=0
    #allocation2 [shape = 'u8[1024]{0}', space=vmem, size = 0x400, scoped, tag = 'output window, operand 0, single buffered']
    #allocation3 [shape = 's32[1]{0}', space=sflag, size = 0x4, scoped, tag = 'scoped memory for mini_model_forward.5']
    %10 = vsyncpa [#allocation3], 0
    // Predicated region
    $region2: #{mini_model_forward.5} parent=1 // pred_check
      _
    $region3: #{mini_model_forward.5} parent=1 // pred_check_branch
      %12 = sbr.rel (0) target = $region5
    $region4: #{mini_model_forward.5} parent=1 // pred_region
      _
    $region5: #{mini_model_forward.5} parent=1 // pred_fallthru
      _
    // Predicated region
    $region6: #{mini_model_forward.5} parent=1 // pred_check
      _
    $region7: #{mini_model_forward.5} parent=1 // pred_check_branch
      %14 = sbr.rel (0) target = $region9
    $region8: #{mini_model_forward.5} parent=1 // pred_region
      _
    $region9: #{mini_model_forward.5} parent=1 // pred_fallthru
      _
    // Predicated region
    $region10: #{mini_model_forward.5} parent=1 // pred_check
      _
    $region11: #{mini_model_forward.5} parent=1 // pred_check_branch
      %16 = sbr.rel (0) target = $region13
    $region12: #{mini_model_forward.5} parent=1 // pred_region
      _
    $region13: #{mini_model_forward.5} parent=1 // pred_fallthru
      _
    // Predicated region
    $region14: #{mini_model_forward.5} parent=1 // pred_check
      _
    $region15: #{mini_model_forward.5} parent=1 // pred_check_branch
      %18 = sbr.rel (0) target = $region17
    $region16: #{mini_model_forward.5} parent=1 // pred_region
      _
    $region17: #{mini_model_forward.5} parent=1 // pred_fallthru
      _
    // Predicated region
    $region18: #{mini_model_forward.5} parent=1 // pred_check
      _
    $region19: #{mini_model_forward.5} parent=1 // pred_check_branch
      %20 = sbr.rel (0) target = $region21
    $region20: #{mini_model_forward.5} parent=1 // pred_region
      _
    $region21: #{mini_model_forward.5} parent=1 // pred_fallthru
      _
    %v22 = vld [vmem:[%s0] sm:$0xff]
    %v23 = vld [vmem:[%s0 + $0x8] sm:$0xff]
    %v24 = vld [vmem:[%s0 + $0x10] sm:$0x1f]
    %v25 = vld [vmem:[%s1] sm:$0xff]
    %v26 = vld [vmem:[%s1 + $0x8] sm:$0xff]
    %v27 = vld [vmem:[%s1 + $0x10] sm:$0xff]
    %v28 = vld [vmem:[%s1 + $0x18] sm:$0xff]
    %v29 = vld [vmem:[%s1 + $0x20] sm:$0xff]
    %v30 = vld [vmem:[%s1 + $0x28] sm:$0xff]
    %v31 = vld [vmem:[%s1 + $0x30] sm:$0xff]
    %v32 = vld [vmem:[%s1 + $0x38] sm:$0xff]
    %v33 = vld [vmem:[%s1 + $0x40] sm:$0xff]
    %v34 = vld [vmem:[%s1 + $0x48] sm:$0xff]
    %v35 = vld [vmem:[%s1 + $0x50] sm:$0xff]
    %v36 = vld [vmem:[%s1 + $0x58] sm:$0xff]
    %v37 = vld [vmem:[%s1 + $0x60] sm:$0xff]
    %v38 = vld [vmem:[%s1 + $0x68] sm:$0xff]
    %v39 = vld [vmem:[%s1 + $0x70] sm:$0xff]
    %v40 = vld [vmem:[%s1 + $0x78] sm:$0xff]
    %v41 = vld [vmem:[%s1 + $0x80] sm:$0xff]
    %v42 = vld [vmem:[%s1 + $0x88] sm:$0xff]
    %v43 = vld [vmem:[%s1 + $0x90] sm:$0xff]
    %v44 = vld [vmem:[%s1 + $0x98] sm:$0xff]
    %v45 = vld [vmem:[%s1 + $0xa0] sm:$0xff]
    %v46 = vld [vmem:[%s1 + $0xa8] sm:$0xff]
    %v47 = vld [vmem:[%s1 + $0xb0] sm:$0xff]
    %v48 = vld [vmem:[%s1 + $0xb8] sm:$0xff]
    %v49 = vld [vmem:[%s1 + $0xc0] sm:$0xff]
    %v50 = vld [vmem:[%s1 + $0xc8] sm:$0xff]
    %v51 = vld [vmem:[%s1 + $0xd0] sm:$0xff]
    %v52 = vld [vmem:[%s1 + $0xd8] sm:$0xff]
    %v53 = vld [vmem:[%s1 + $0xe0] sm:$0xff]
    %v54 = vld [vmem:[%s1 + $0xe8] sm:$0xff]
    %v55 = vld [vmem:[%s1 + $0xf0] sm:$0xff]
    %v56 = vld [vmem:[%s1 + $0xf8] sm:$0xff]
    %v57 = vld [vmem:[%s1 + $0x100] sm:$0xff]
    %v58 = vld [vmem:[%s1 + $0x108] sm:$0xff]
    %v59 = vld [vmem:[%s1 + $0x110] sm:$0xff]
    %v60 = vld [vmem:[%s1 + $0x118] sm:$0xff]
    %v61 = vld [vmem:[%s1 + $0x120] sm:$0xff]
    %v62 = vld [vmem:[%s1 + $0x128] sm:$0xff]
    %v63 = vld [vmem:[%s1 + $0x130] sm:$0xff]
    %v64 = vld [vmem:[%s1 + $0x138] sm:$0xff]
    %v65 = vld [vmem:[%s1 + $0x140] sm:$0xff]
    %v66 = vld [vmem:[%s1 + $0x148] sm:$0xff]
    %v67 = vld [vmem:[%s1 + $0x150] sm:$0xff]
    %v68 = vld [vmem:[%s1 + $0x158] sm:$0xff]
    %v69 = vld [vmem:[%s1 + $0x160] sm:$0xff]
    %v70 = vld [vmem:[%s1 + $0x168] sm:$0xff]
    %v71 = vld [vmem:[%s1 + $0x170] sm:$0xff]
    %v72 = vld [vmem:[%s1 + $0x178] sm:$0xff]
    %v73 = vld [vmem:[%s1 + $0x180] sm:$0xff]
    %v74 = vld [vmem:[%s1 + $0x188] sm:$0xff]
    %v75 = vld [vmem:[%s1 + $0x190] sm:$0xff]
    %v76 = vld [vmem:[%s1 + $0x198] sm:$0xff]
    %v77 = vld [vmem:[%s1 + $0x1a0] sm:$0xff]
    %v78 = vld [vmem:[%s1 + $0x1a8] sm:$0xff]
    %v79 = vld [vmem:[%s1 + $0x1b0] sm:$0xff]
    %v80 = vld [vmem:[%s1 + $0x1b8] sm:$0xff]
    %v81 = vld [vmem:[%s1 + $0x1c0] sm:$0xff]
    %v82 = vld [vmem:[%s1 + $0x1c8] sm:$0xff]
    %v83 = vld [vmem:[%s1 + $0x1d0] sm:$0xff]
    %v84 = vld [vmem:[%s1 + $0x1d8] sm:$0xff]
    %v85 = vld [vmem:[%s1 + $0x1e0] sm:$0xff]
    %v86 = vld [vmem:[%s1 + $0x1e8] sm:$0xff]
    %v87 = vld [vmem:[%s1 + $0x1f0] sm:$0xff]
    %v88 = vld [vmem:[%s1 + $0x1f8] sm:$0xff]
    %v89 = vld [vmem:[%s1 + $0x200] sm:$0xff]
    %v90 = vld [vmem:[%s1 + $0x208] sm:$0xff]
    %v91 = vld [vmem:[%s1 + $0x210] sm:$0xff]
    %v92 = vld [vmem:[%s1 + $0x218] sm:$0xff]
    %v93 = vld [vmem:[%s1 + $0x220] sm:$0xff]
    %v94 = vld [vmem:[%s1 + $0x228] sm:$0xff]
    %v95 = vld [vmem:[%s1 + $0x230] sm:$0xff]
    %v96 = vld [vmem:[%s1 + $0x238] sm:$0xff]
    %v97 = vld [vmem:[%s1 + $0x240] sm:$0xff]
    %v98 = vld [vmem:[%s1 + $0x248] sm:$0xff]
    %v99 = vld [vmem:[%s1 + $0x250] sm:$0xff]
    %v100 = vld [vmem:[%s1 + $0x258] sm:$0xff]
    %v101 = vld [vmem:[%s1 + $0x260] sm:$0xff]
    %v102 = vld [vmem:[%s1 + $0x268] sm:$0xff]
    %v103 = vld [vmem:[%s1 + $0x270] sm:$0xff]
    %v104 = vld [vmem:[%s1 + $0x278] sm:$0xff]
    %v105 = vld [vmem:[%s1 + $0x280] sm:$0xff]
    %v106 = vld [vmem:[%s1 + $0x288] sm:$0xff]
    %v107 = vld [vmem:[%s1 + $0x290] sm:$0xff]
    %v108 = vld [vmem:[%s1 + $0x298] sm:$0xff]
    %v109 = vld [vmem:[%s1 + $0x2a0] sm:$0xff]
    %v110 = vld [vmem:[%s1 + $0x2a8] sm:$0xff]
    %v111 = vld [vmem:[%s1 + $0x2b0] sm:$0xff]
    %v112 = vld [vmem:[%s1 + $0x2b8] sm:$0xff]
    %v113 = vld [vmem:[%s1 + $0x2c0] sm:$0xff]
    %v114 = vld [vmem:[%s1 + $0x2c8] sm:$0xff]
    %v115 = vld [vmem:[%s1 + $0x2d0] sm:$0xff]
    %v116 = vld [vmem:[%s1 + $0x2d8] sm:$0xff]
    %v117 = vld [vmem:[%s1 + $0x2e0] sm:$0xff]
    %v118 = vld [vmem:[%s1 + $0x2e8] sm:$0xff]
    %v119 = vld [vmem:[%s1 + $0x2f0] sm:$0xff]
    %v120 = vld [vmem:[%s1 + $0x2f8] sm:$0xff]
    %v121 = vld [vmem:[%s1 + $0x300] sm:$0xff]
    %v122 = vld [vmem:[%s1 + $0x308] sm:$0xff]
    %v123 = vld [vmem:[%s1 + $0x310] sm:$0xff]
    %v124 = vld [vmem:[%s1 + $0x318] sm:$0xff]
    %v125 = vld [vmem:[%s1 + $0x320] sm:$0xff]
    %v126 = vld [vmem:[%s1 + $0x328] sm:$0xff]
    %v127 = vld [vmem:[%s1 + $0x330] sm:$0xff]
    %v128 = vld [vmem:[%s1 + $0x338] sm:$0xff]
    %v129 = vld [vmem:[%s1 + $0x340] sm:$0xff]
    %v130 = vld [vmem:[%s1 + $0x348] sm:$0xff]
    %v131 = vld [vmem:[%s1 + $0x350] sm:$0xff]
    %v132 = vld [vmem:[%s1 + $0x358] sm:$0xff]
    %v133 = vld [vmem:[%s1 + $0x360] sm:$0xff]
    %v134 = vld [vmem:[%s1 + $0x368] sm:$0xff]
    %v135 = vld [vmem:[%s1 + $0x370] sm:$0xff]
    %v136 = vld [vmem:[%s1 + $0x378] sm:$0xff]
    %v137 = vld [vmem:[%s1 + $0x380] sm:$0xff]
    %v138 = vld [vmem:[%s1 + $0x388] sm:$0xff]
    %v139 = vld [vmem:[%s1 + $0x390] sm:$0xff]
    %v140 = vld [vmem:[%s1 + $0x398] sm:$0xff]
    %v141 = vld [vmem:[%s1 + $0x3a0] sm:$0xff]
    %v142 = vld [vmem:[%s1 + $0x3a8] sm:$0xff]
    %v143 = vld [vmem:[%s1 + $0x3b0] sm:$0xff]
    %v144 = vld [vmem:[%s1 + $0x3b8] sm:$0xff]
    %v145 = vld [vmem:[%s1 + $0x3c0] sm:$0xff]
    %v146 = vld [vmem:[%s1 + $0x3c8] sm:$0xff]
    %v147 = vld [vmem:[%s1 + $0x3d0] sm:$0xff]
    %v148 = vld [vmem:[%s1 + $0x3d8] sm:$0xff]
    %v149 = vld [vmem:[%s1 + $0x3e0] sm:$0xff]
    %v150 = vld [vmem:[%s1 + $0x3e8] sm:$0xff]
    %v151 = vld [vmem:[%s1 + $0x3f0] sm:$0xff]
    %v152 = vld [vmem:[%s1 + $0x3f8] sm:$0xff]
    %v153 = vld [vmem:[%s1 + $0x400] sm:$0xff]
    %v154 = vld [vmem:[%s1 + $0x408] sm:$0xff]
    %v155 = vld [vmem:[%s1 + $0x410] sm:$0xff]
    %v156 = vld [vmem:[%s1 + $0x418] sm:$0xff]
    %v157 = vld [vmem:[%s1 + $0x420] sm:$0xff]
    %v158 = vld [vmem:[%s1 + $0x428] sm:$0xff]
    %v159 = vld [vmem:[%s1 + $0x430] sm:$0xff]
    %v160 = vld [vmem:[%s1 + $0x438] sm:$0xff]
    %v161 = vld [vmem:[%s1 + $0x440] sm:$0xff]
    %v162 = vld [vmem:[%s1 + $0x448] sm:$0xff]
    %v163 = vld [vmem:[%s1 + $0x450] sm:$0xff]
    %v164 = vld [vmem:[%s1 + $0x458] sm:$0xff]
    %v165 = vld [vmem:[%s1 + $0x460] sm:$0xff]
    %v166 = vld [vmem:[%s1 + $0x468] sm:$0xff]
    %v167 = vld [vmem:[%s1 + $0x470] sm:$0xff]
    %v168 = vld [vmem:[%s1 + $0x478] sm:$0xff]
    %v169 = vld [vmem:[%s1 + $0x480] sm:$0xff]
    %v170 = vld [vmem:[%s1 + $0x488] sm:$0xff]
    %v171 = vld [vmem:[%s1 + $0x490] sm:$0xff]
    %v172 = vld [vmem:[%s1 + $0x498] sm:$0xff]
    %v173 = vld [vmem:[%s1 + $0x4a0] sm:$0xff]
    %v174 = vld [vmem:[%s1 + $0x4a8] sm:$0xff]
    %v175 = vld [vmem:[%s1 + $0x4b0] sm:$0xff]
    %v176 = vld [vmem:[%s1 + $0x4b8] sm:$0xff]
    %v177 = vld [vmem:[%s1 + $0x4c0] sm:$0xff]
    %v178 = vld [vmem:[%s1 + $0x4c8] sm:$0xff]
    %v179 = vld [vmem:[%s1 + $0x4d0] sm:$0xff]
    %v180 = vld [vmem:[%s1 + $0x4d8] sm:$0xff]
    %v181 = vld [vmem:[%s1 + $0x4e0] sm:$0xff]
    %v182 = vld [vmem:[%s1 + $0x4e8] sm:$0xff]
    %v183 = vld [vmem:[%s1 + $0x4f0] sm:$0xff]
    %v184 = vld [vmem:[%s1 + $0x4f8] sm:$0xff]
    %v185 = vld [vmem:[%s1 + $0x500] sm:$0xff]
    %v186 = vld [vmem:[%s1 + $0x508] sm:$0xff]
    %v187 = vld [vmem:[%s1 + $0x510] sm:$0xff]
    %v188 = vld [vmem:[%s1 + $0x518] sm:$0xff]
    %v189 = vld [vmem:[%s1 + $0x520] sm:$0xff]
    %v190 = vld [vmem:[%s1 + $0x528] sm:$0xff]
    %v191 = vld [vmem:[%s1 + $0x530] sm:$0xff]
    %v192 = vld [vmem:[%s1 + $0x538] sm:$0xff]
    %v193 = vld [vmem:[%s1 + $0x540] sm:$0xff]
    %v194 = vld [vmem:[%s1 + $0x548] sm:$0xff]
    %v195 = vld [vmem:[%s1 + $0x550] sm:$0xff]
    %v196 = vld [vmem:[%s1 + $0x558] sm:$0xff]
    %v197 = vld [vmem:[%s1 + $0x560] sm:$0xff]
    %v198 = vld [vmem:[%s1 + $0x568] sm:$0xff]
    %v199 = vld [vmem:[%s1 + $0x570] sm:$0xff]
    %v200 = vld [vmem:[%s1 + $0x578] sm:$0xff]
    %v201 = vld [vmem:[%s1 + $0x580] sm:$0xff]
    %v202 = vld [vmem:[%s1 + $0x588] sm:$0xff]
    %v203 = vld [vmem:[%s1 + $0x590] sm:$0xff]
    %v204 = vld [vmem:[%s1 + $0x598] sm:$0xff]
    %v205 = vld [vmem:[%s1 + $0x5a0] sm:$0xff]
    %v206 = vld [vmem:[%s1 + $0x5a8] sm:$0xff]
    %v207 = vld [vmem:[%s1 + $0x5b0] sm:$0xff]
    %v208 = vld [vmem:[%s1 + $0x5b8] sm:$0xff]
    %v209 = vld [vmem:[%s1 + $0x5c0] sm:$0xff]
    %v210 = vld [vmem:[%s1 + $0x5c8] sm:$0xff]
    %v211 = vld [vmem:[%s1 + $0x5d0] sm:$0xff]
    %v212 = vld [vmem:[%s1 + $0x5d8] sm:$0xff]
    %v213 = vld [vmem:[%s1 + $0x5e0] sm:$0xff]
    %v214 = vld [vmem:[%s1 + $0x5e8] sm:$0xff]
    %v215 = vld [vmem:[%s1 + $0x5f0] sm:$0xff]
    %v216 = vld [vmem:[%s1 + $0x5f8] sm:$0xff]
    %v217 = vld [vmem:[%s1 + $0x600] sm:$0xff]
    %v218 = vld [vmem:[%s1 + $0x608] sm:$0xff]
    %v219 = vld [vmem:[%s1 + $0x610] sm:$0xff]
    %v220 = vld [vmem:[%s1 + $0x618] sm:$0xff]
    %v221 = vld [vmem:[%s1 + $0x620] sm:$0xff]
    %v222 = vld [vmem:[%s1 + $0x628] sm:$0xff]
    %v223 = vld [vmem:[%s1 + $0x630] sm:$0xff]
    %v224 = vld [vmem:[%s1 + $0x638] sm:$0xff]
    %v225 = vld [vmem:[%s1 + $0x640] sm:$0xff]
    %v226 = vld [vmem:[%s1 + $0x648] sm:$0xff]
    %v227 = vld [vmem:[%s1 + $0x650] sm:$0xff]
    %v228 = vld [vmem:[%s1 + $0x658] sm:$0xff]
    %v229 = vld [vmem:[%s1 + $0x660] sm:$0xff]
    %v230 = vld [vmem:[%s1 + $0x668] sm:$0xff]
    %v231 = vld [vmem:[%s1 + $0x670] sm:$0xff]
    %v232 = vld [vmem:[%s1 + $0x678] sm:$0xff]
    %v233 = vld [vmem:[%s1 + $0x680] sm:$0xff]
    %v234 = vld [vmem:[%s1 + $0x688] sm:$0xff]
    %v235 = vld [vmem:[%s1 + $0x690] sm:$0xff]
    %v236 = vld [vmem:[%s1 + $0x698] sm:$0xff]
    %v237 = vld [vmem:[%s1 + $0x6a0] sm:$0xff]
    %v238 = vld [vmem:[%s1 + $0x6a8] sm:$0xff]
    %v239 = vld [vmem:[%s1 + $0x6b0] sm:$0xff]
    %v240 = vld [vmem:[%s1 + $0x6b8] sm:$0xff]
    %v241 = vld [vmem:[%s1 + $0x6c0] sm:$0xff]
    %v242 = vld [vmem:[%s1 + $0x6c8] sm:$0xff]
    %v243 = vld [vmem:[%s1 + $0x6d0] sm:$0xff]
    %v244 = vld [vmem:[%s1 + $0x6d8] sm:$0xff]
    %v245 = vld [vmem:[%s1 + $0x6e0] sm:$0xff]
    %v246 = vld [vmem:[%s1 + $0x6e8] sm:$0xff]
    %v247 = vld [vmem:[%s1 + $0x6f0] sm:$0xff]
    %v248 = vld [vmem:[%s1 + $0x6f8] sm:$0xff]
    %v249 = vld [vmem:[%s1 + $0x700] sm:$0xff]
    %v250 = vld [vmem:[%s1 + $0x708] sm:$0xff]
    %v251 = vld [vmem:[%s1 + $0x710] sm:$0xff]
    %v252 = vld [vmem:[%s1 + $0x718] sm:$0xff]
    %v253 = vld [vmem:[%s1 + $0x720] sm:$0xff]
    %v254 = vld [vmem:[%s1 + $0x728] sm:$0xff]
    %v255 = vld [vmem:[%s1 + $0x730] sm:$0xff]
    %v256 = vld [vmem:[%s1 + $0x738] sm:$0xff]
    %v257 = vld [vmem:[%s1 + $0x740] sm:$0xff]
    %v258 = vld [vmem:[%s1 + $0x748] sm:$0xff]
    %v259 = vld [vmem:[%s1 + $0x750] sm:$0xff]
    %v260 = vld [vmem:[%s1 + $0x758] sm:$0xff]
    %v261 = vld [vmem:[%s1 + $0x760] sm:$0xff]
    %v262 = vld [vmem:[%s1 + $0x768] sm:$0xff]
    %v263 = vld [vmem:[%s1 + $0x770] sm:$0xff]
    %v264 = vld [vmem:[%s1 + $0x778] sm:$0xff]
    %v265 = vld [vmem:[%s1 + $0x780] sm:$0xff]
    %v266 = vld [vmem:[%s1 + $0x788] sm:$0xff]
    %v267 = vld [vmem:[%s1 + $0x790] sm:$0xff]
    %v268 = vld [vmem:[%s1 + $0x798] sm:$0xff]
    %v269 = vld [vmem:[%s1 + $0x7a0] sm:$0xff]
    %v270 = vld [vmem:[%s1 + $0x7a8] sm:$0xff]
    %v271 = vld [vmem:[%s1 + $0x7b0] sm:$0xff]
    %v272 = vld [vmem:[%s1 + $0x7b8] sm:$0xff]
    %v273 = vld [vmem:[%s1 + $0x7c0] sm:$0xff]
    %v274 = vld [vmem:[%s1 + $0x7c8] sm:$0xff]
    %v275 = vld [vmem:[%s1 + $0x7d0] sm:$0xff]
    %v276 = vld [vmem:[%s1 + $0x7d8] sm:$0xff]
    %v277 = vld [vmem:[%s1 + $0x7e0] sm:$0xff]
    %v278 = vld [vmem:[%s1 + $0x7e8] sm:$0xff]
    %v279 = vld [vmem:[%s1 + $0x7f0] sm:$0xff]
    %v280 = vld [vmem:[%s1 + $0x7f8] sm:$0xff]
    %v281 = vld [vmem:[%s1 + $0x800] sm:$0xff]
    %v282 = vld [vmem:[%s1 + $0x808] sm:$0xff]
    %v283 = vld [vmem:[%s1 + $0x810] sm:$0xff]
    %v284 = vld [vmem:[%s1 + $0x818] sm:$0xff]
    %v285 = vld [vmem:[%s1 + $0x820] sm:$0xff]
    %v286 = vld [vmem:[%s1 + $0x828] sm:$0xff]
    %v287 = vld [vmem:[%s1 + $0x830] sm:$0xff]
    %v288 = vld [vmem:[%s1 + $0x838] sm:$0xff]
    %v289 = vld [vmem:[%s1 + $0x840] sm:$0xff]
    %v290 = vld [vmem:[%s1 + $0x848] sm:$0xff]
    %v291 = vld [vmem:[%s1 + $0x850] sm:$0xff]
    %v292 = vld [vmem:[%s1 + $0x858] sm:$0xff]
    %v293 = vld [vmem:[%s1 + $0x860] sm:$0xff]
    %v294 = vld [vmem:[%s1 + $0x868] sm:$0xff]
    %v295 = vld [vmem:[%s1 + $0x870] sm:$0xff]
    %v296 = vld [vmem:[%s1 + $0x878] sm:$0xff]
    %v297 = vld [vmem:[%s1 + $0x880] sm:$0xff]
    %v298 = vld [vmem:[%s1 + $0x888] sm:$0xff]
    %v299 = vld [vmem:[%s1 + $0x890] sm:$0xff]
    %v300 = vld [vmem:[%s1 + $0x898] sm:$0xff]
    %v301 = vld [vmem:[%s1 + $0x8a0] sm:$0xff]
    %v302 = vld [vmem:[%s1 + $0x8a8] sm:$0xff]
    %v303 = vld [vmem:[%s1 + $0x8b0] sm:$0xff]
    %v304 = vld [vmem:[%s1 + $0x8b8] sm:$0xff]
    %v305 = vld [vmem:[%s1 + $0x8c0] sm:$0xff]
    %v306 = vld [vmem:[%s1 + $0x8c8] sm:$0xff]
    %v307 = vld [vmem:[%s1 + $0x8d0] sm:$0xff]
    %v308 = vld [vmem:[%s1 + $0x8d8] sm:$0xff]
    %v309 = vld [vmem:[%s1 + $0x8e0] sm:$0xff]
    %v310 = vld [vmem:[%s1 + $0x8e8] sm:$0xff]
    %v311 = vld [vmem:[%s1 + $0x8f0] sm:$0xff]
    %v312 = vld [vmem:[%s1 + $0x8f8] sm:$0xff]
    %v313 = vld [vmem:[%s1 + $0x900] sm:$0xff]
    %v314 = vld [vmem:[%s1 + $0x908] sm:$0xff]
    %v315 = vld [vmem:[%s1 + $0x910] sm:$0xff]
    %v316 = vld [vmem:[%s1 + $0x918] sm:$0xff]
    %v317 = vld [vmem:[%s1 + $0x920] sm:$0xff]
    %v318 = vld [vmem:[%s1 + $0x928] sm:$0xff]
    %v319 = vld [vmem:[%s1 + $0x930] sm:$0xff]
    %v320 = vld [vmem:[%s1 + $0x938] sm:$0xff]
    %v321 = vld [vmem:[%s1 + $0x940] sm:$0xff]
    %v322 = vld [vmem:[%s1 + $0x948] sm:$0xff]
    %v323 = vld [vmem:[%s1 + $0x950] sm:$0xff]
    %v324 = vld [vmem:[%s1 + $0x958] sm:$0xff]
    %v325 = vld [vmem:[%s1 + $0x960] sm:$0xff]
    %v326 = vld [vmem:[%s1 + $0x968] sm:$0xff]
    %v327 = vld [vmem:[%s1 + $0x970] sm:$0xff]
    %v328 = vld [vmem:[%s1 + $0x978] sm:$0xff]
    %v329 = vld [vmem:[%s1 + $0x980] sm:$0xff]
    %v330 = vld [vmem:[%s1 + $0x988] sm:$0xff]
    %v331 = vld [vmem:[%s1 + $0x990] sm:$0xff]
    %v332 = vld [vmem:[%s1 + $0x998] sm:$0xff]
    %v333 = vld [vmem:[%s1 + $0x9a0] sm:$0xff]
    %v334 = vld [vmem:[%s1 + $0x9a8] sm:$0xff]
    %v335 = vld [vmem:[%s1 + $0x9b0] sm:$0xff]
    %v336 = vld [vmem:[%s1 + $0x9b8] sm:$0xff]
    %v337 = vld [vmem:[%s1 + $0x9c0] sm:$0xff]
    %v338 = vld [vmem:[%s1 + $0x9c8] sm:$0xff]
    %v339 = vld [vmem:[%s1 + $0x9d0] sm:$0xff]
    %v340 = vld [vmem:[%s1 + $0x9d8] sm:$0xff]
    %v341 = vld [vmem:[%s1 + $0x9e0] sm:$0xff]
    %v342 = vld [vmem:[%s1 + $0x9e8] sm:$0xff]
    %v343 = vld [vmem:[%s1 + $0x9f0] sm:$0xff]
    %v344 = vld [vmem:[%s1 + $0x9f8] sm:$0xff]
    %v345 = vld [vmem:[%s1 + $0xa00] sm:$0xff]
    %v346 = vld [vmem:[%s1 + $0xa08] sm:$0xff]
    %v347 = vld [vmem:[%s1 + $0xa10] sm:$0xff]
    %v348 = vld [vmem:[%s1 + $0xa18] sm:$0xff]
    %v349 = vld [vmem:[%s1 + $0xa20] sm:$0xff]
    %v350 = vld [vmem:[%s1 + $0xa28] sm:$0xff]
    %v351 = vld [vmem:[%s1 + $0xa30] sm:$0xff]
    %v352 = vld [vmem:[%s1 + $0xa38] sm:$0xff]
    %v353 = vld [vmem:[%s1 + $0xa40] sm:$0xff]
    %v354 = vld [vmem:[%s1 + $0xa48] sm:$0xff]
    %v355 = vld [vmem:[%s1 + $0xa50] sm:$0xff]
    %v356 = vld [vmem:[%s1 + $0xa58] sm:$0xff]
    %v357 = vld [vmem:[%s1 + $0xa60] sm:$0xff]
    %v358 = vld [vmem:[%s1 + $0xa68] sm:$0xff]
    %v359 = vld [vmem:[%s1 + $0xa70] sm:$0xff]
    %v360 = vld [vmem:[%s1 + $0xa78] sm:$0xff]
    %v361 = vld [vmem:[%s1 + $0xa80] sm:$0xff]
    %v362 = vld [vmem:[%s1 + $0xa88] sm:$0xff]
    %v363 = vld [vmem:[%s1 + $0xa90] sm:$0xff]
    %v364 = vld [vmem:[%s1 + $0xa98] sm:$0xff]
    %v365 = vld [vmem:[%s1 + $0xaa0] sm:$0xff]
    %v366 = vld [vmem:[%s1 + $0xaa8] sm:$0xff]
    %v367 = vld [vmem:[%s1 + $0xab0] sm:$0xff]
    %v368 = vld [vmem:[%s1 + $0xab8] sm:$0xff]
    %v369 = vld [vmem:[%s1 + $0xac0] sm:$0xff]
    %v370 = vld [vmem:[%s1 + $0xac8] sm:$0xff]
    %v371 = vld [vmem:[%s1 + $0xad0] sm:$0xff]
    %v372 = vld [vmem:[%s1 + $0xad8] sm:$0xff]
    %v373 = vld [vmem:[%s1 + $0xae0] sm:$0xff]
    %v374 = vld [vmem:[%s1 + $0xae8] sm:$0xff]
    %v375 = vld [vmem:[%s1 + $0xaf0] sm:$0xff]
    %v376 = vld [vmem:[%s1 + $0xaf8] sm:$0xff]
    %v377 = vld [vmem:[%s1 + $0xb00] sm:$0xff]
    %v378 = vld [vmem:[%s1 + $0xb08] sm:$0xff]
    %v379 = vld [vmem:[%s1 + $0xb10] sm:$0xff]
    %v380 = vld [vmem:[%s1 + $0xb18] sm:$0xff]
    %v381 = vld [vmem:[%s1 + $0xb20] sm:$0xff]
    %v382 = vld [vmem:[%s1 + $0xb28] sm:$0xff]
    %v383 = vld [vmem:[%s1 + $0xb30] sm:$0xff]
    %v384 = vld [vmem:[%s1 + $0xb38] sm:$0xff]
    %v385 = vld [vmem:[%s1 + $0xb40] sm:$0xff]
    %v386 = vld [vmem:[%s1 + $0xb48] sm:$0xff]
    %v387 = vld [vmem:[%s1 + $0xb50] sm:$0xff]
    %v388 = vld [vmem:[%s1 + $0xb58] sm:$0xff]
    %v389 = vld [vmem:[%s1 + $0xb60] sm:$0xff]
    %v390 = vld [vmem:[%s1 + $0xb68] sm:$0xff]
    %v391 = vld [vmem:[%s1 + $0xb70] sm:$0xff]
    %v392 = vld [vmem:[%s1 + $0xb78] sm:$0xff]
    %v393 = vld [vmem:[%s1 + $0xb80] sm:$0xff]
    %v394 = vld [vmem:[%s1 + $0xb88] sm:$0xff]
    %v395 = vld [vmem:[%s1 + $0xb90] sm:$0xff]
    %v396 = vld [vmem:[%s1 + $0xb98] sm:$0xff]
    %v397 = vld [vmem:[%s1 + $0xba0] sm:$0xff]
    %v398 = vld [vmem:[%s1 + $0xba8] sm:$0xff]
    %v399 = vld [vmem:[%s1 + $0xbb0] sm:$0xff]
    %v400 = vld [vmem:[%s1 + $0xbb8] sm:$0xff]
    %v401 = vld [vmem:[%s1 + $0xbc0] sm:$0xff]
    %v402 = vld [vmem:[%s1 + $0xbc8] sm:$0xff]
    %v403 = vld [vmem:[%s1 + $0xbd0] sm:$0xff]
    %v404 = vld [vmem:[%s1 + $0xbd8] sm:$0xff]
    %v405 = vld [vmem:[%s1 + $0xbe0] sm:$0xff]
    %v406 = vld [vmem:[%s1 + $0xbe8] sm:$0xff]
    %v407 = vld [vmem:[%s1 + $0xbf0] sm:$0xff]
    %v408 = vld [vmem:[%s1 + $0xbf8] sm:$0xff]
    %v409 = vld [vmem:[%s1 + $0xc00] sm:$0xff]
    %v410 = vld [vmem:[%s1 + $0xc08] sm:$0xff]
    %v411 = vld [vmem:[%s1 + $0xc10] sm:$0xff]
    %v412 = vld [vmem:[%s1 + $0xc18] sm:$0xff]
    %v413 = vld [vmem:[%s1 + $0xc20] sm:$0xff]
    %v414 = vld [vmem:[%s1 + $0xc28] sm:$0xff]
    %v415 = vld [vmem:[%s1 + $0xc30] sm:$0xff]
    %v416 = vld [vmem:[%s1 + $0xc38] sm:$0xff]
    %v417 = vld [vmem:[%s1 + $0xc40] sm:$0xff]
    %v418 = vld [vmem:[%s1 + $0xc48] sm:$0xff]
    %v419 = vld [vmem:[%s1 + $0xc50] sm:$0xff]
    %v420 = vld [vmem:[%s1 + $0xc58] sm:$0xff]
    %v421 = vld [vmem:[%s1 + $0xc60] sm:$0xff]
    %v422 = vld [vmem:[%s1 + $0xc68] sm:$0xff]
    %v423 = vld [vmem:[%s1 + $0xc70] sm:$0xff]
    %v424 = vld [vmem:[%s1 + $0xc78] sm:$0xff]
    %v425 = vld [vmem:[%s1 + $0xc80] sm:$0xff]
    %v426 = vld [vmem:[%s1 + $0xc88] sm:$0xff]
    %v427 = vld [vmem:[%s1 + $0xc90] sm:$0xff]
    %v428 = vld [vmem:[%s1 + $0xc98] sm:$0xff]
    %v429 = vld [vmem:[%s1 + $0xca0] sm:$0xff]
    %v430 = vld [vmem:[%s1 + $0xca8] sm:$0xff]
    %v431 = vld [vmem:[%s1 + $0xcb0] sm:$0xff]
    %v432 = vld [vmem:[%s1 + $0xcb8] sm:$0xff]
    %v433 = vld [vmem:[%s1 + $0xcc0] sm:$0xff]
    %v434 = vld [vmem:[%s1 + $0xcc8] sm:$0xff]
    %v435 = vld [vmem:[%s1 + $0xcd0] sm:$0xff]
    %v436 = vld [vmem:[%s1 + $0xcd8] sm:$0xff]
    %v437 = vld [vmem:[%s1 + $0xce0] sm:$0xff]
    %v438 = vld [vmem:[%s1 + $0xce8] sm:$0xff]
    %v439 = vld [vmem:[%s1 + $0xcf0] sm:$0xff]
    %v440 = vld [vmem:[%s1 + $0xcf8] sm:$0xff]
    %v441 = vld [vmem:[%s1 + $0xd00] sm:$0xff]
    %v442 = vld [vmem:[%s1 + $0xd08] sm:$0xff]
    %v443 = vld [vmem:[%s1 + $0xd10] sm:$0xff]
    %v444 = vld [vmem:[%s1 + $0xd18] sm:$0xff]
    %v445 = vld [vmem:[%s1 + $0xd20] sm:$0xff]
    %v446 = vld [vmem:[%s1 + $0xd28] sm:$0xff]
    %v447 = vld [vmem:[%s1 + $0xd30] sm:$0xff]
    %v448 = vld [vmem:[%s1 + $0xd38] sm:$0xff]
    %v449 = vld [vmem:[%s1 + $0xd40] sm:$0xff]
    %v450 = vld [vmem:[%s1 + $0xd48] sm:$0xff]
    %v451 = vld [vmem:[%s1 + $0xd50] sm:$0xff]
    %v452 = vld [vmem:[%s1 + $0xd58] sm:$0xff]
    %v453 = vld [vmem:[%s1 + $0xd60] sm:$0xff]
    %v454 = vld [vmem:[%s1 + $0xd68] sm:$0xff]
    %v455 = vld [vmem:[%s1 + $0xd70] sm:$0xff]
    %v456 = vld [vmem:[%s1 + $0xd78] sm:$0xff]
    %v457 = vld [vmem:[%s1 + $0xd80] sm:$0xff]
    %v458 = vld [vmem:[%s1 + $0xd88] sm:$0xff]
    %v459 = vld [vmem:[%s1 + $0xd90] sm:$0xff]
    %v460 = vld [vmem:[%s1 + $0xd98] sm:$0xff]
    %v461 = vld [vmem:[%s1 + $0xda0] sm:$0xff]
    %v462 = vld [vmem:[%s1 + $0xda8] sm:$0xff]
    %v463 = vld [vmem:[%s1 + $0xdb0] sm:$0xff]
    %v464 = vld [vmem:[%s1 + $0xdb8] sm:$0xff]
    %v465 = vld [vmem:[%s1 + $0xdc0] sm:$0xff]
    %v466 = vld [vmem:[%s1 + $0xdc8] sm:$0xff]
    %v467 = vld [vmem:[%s1 + $0xdd0] sm:$0xff]
    %v468 = vld [vmem:[%s1 + $0xdd8] sm:$0xff]
    %v469 = vld [vmem:[%s1 + $0xde0] sm:$0xff]
    %v470 = vld [vmem:[%s1 + $0xde8] sm:$0xff]
    %v471 = vld [vmem:[%s1 + $0xdf0] sm:$0xff]
    %v472 = vld [vmem:[%s1 + $0xdf8] sm:$0xff]
    %v473 = vld [vmem:[%s1 + $0xe00] sm:$0xff]
    %v474 = vld [vmem:[%s1 + $0xe08] sm:$0xff]
    %v475 = vld [vmem:[%s1 + $0xe10] sm:$0xff]
    %v476 = vld [vmem:[%s1 + $0xe18] sm:$0xff]
    %v477 = vld [vmem:[%s1 + $0xe20] sm:$0xff]
    %v478 = vld [vmem:[%s1 + $0xe28] sm:$0xff]
    %v479 = vld [vmem:[%s1 + $0xe30] sm:$0xff]
    %v480 = vld [vmem:[%s1 + $0xe38] sm:$0xff]
    %v481 = vld [vmem:[%s1 + $0xe40] sm:$0xff]
    %v482 = vld [vmem:[%s1 + $0xe48] sm:$0xff]
    %v483 = vld [vmem:[%s1 + $0xe50] sm:$0xff]
    %v484 = vld [vmem:[%s1 + $0xe58] sm:$0xff]
    %v485 = vld [vmem:[%s1 + $0xe60] sm:$0xff]
    %v486 = vld [vmem:[%s1 + $0xe68] sm:$0xff]
    %v487 = vld [vmem:[%s1 + $0xe70] sm:$0xff]
    %v488 = vld [vmem:[%s1 + $0xe78] sm:$0xff]
    %v489 = vld [vmem:[%s1 + $0xe80] sm:$0xff]
    %v490 = vld [vmem:[%s1 + $0xe88] sm:$0xff]
    %v491 = vld [vmem:[%s1 + $0xe90] sm:$0xff]
    %v492 = vld [vmem:[%s1 + $0xe98] sm:$0xff]
    %v493 = vld [vmem:[%s1 + $0xea0] sm:$0xff]
    %v494 = vld [vmem:[%s1 + $0xea8] sm:$0xff]
    %v495 = vld [vmem:[%s1 + $0xeb0] sm:$0xff]
    %v496 = vld [vmem:[%s1 + $0xeb8] sm:$0xff]
    %v497 = vld [vmem:[%s1 + $0xec0] sm:$0xff]
    %v498 = vld [vmem:[%s1 + $0xec8] sm:$0xff]
    %v499 = vld [vmem:[%s1 + $0xed0] sm:$0xff]
    %v500 = vld [vmem:[%s1 + $0xed8] sm:$0xff]
    %v501 = vld [vmem:[%s1 + $0xee0] sm:$0xff]
    %v502 = vld [vmem:[%s1 + $0xee8] sm:$0xff]
    %v503 = vld [vmem:[%s1 + $0xef0] sm:$0xff]
    %v504 = vld [vmem:[%s1 + $0xef8] sm:$0xff]
    %v505 = vld [vmem:[%s1 + $0xf00] sm:$0xff]
    %v506 = vld [vmem:[%s1 + $0xf08] sm:$0xff]
    %v507 = vld [vmem:[%s1 + $0xf10] sm:$0xff]
    %v508 = vld [vmem:[%s1 + $0xf18] sm:$0xff]
    %v509 = vld [vmem:[%s1 + $0xf20] sm:$0xff]
    %v510 = vld [vmem:[%s1 + $0xf28] sm:$0xff]
    %v511 = vld [vmem:[%s1 + $0xf30] sm:$0xff]
    %v512 = vld [vmem:[%s1 + $0xf38] sm:$0xff]
    %v513 = vld [vmem:[%s1 + $0xf40] sm:$0xff]
    %v514 = vld [vmem:[%s1 + $0xf48] sm:$0xff]
    %v515 = vld [vmem:[%s1 + $0xf50] sm:$0xff]
    %v516 = vld [vmem:[%s1 + $0xf58] sm:$0xff]
    %v517 = vld [vmem:[%s1 + $0xf60] sm:$0xff]
    %v518 = vld [vmem:[%s1 + $0xf68] sm:$0xff]
    %v519 = vld [vmem:[%s1 + $0xf70] sm:$0xff]
    %v520 = vld [vmem:[%s1 + $0xf78] sm:$0xff]
    %v521 = vld [vmem:[%s1 + $0xf80] sm:$0xff]
    %v522 = vld [vmem:[%s1 + $0xf88] sm:$0xff]
    %v523 = vld [vmem:[%s1 + $0xf90] sm:$0xff]
    %v524 = vld [vmem:[%s1 + $0xf98] sm:$0xff]
    %v525 = vld [vmem:[%s1 + $0xfa0] sm:$0xff]
    %v526 = vld [vmem:[%s1 + $0xfa8] sm:$0xff]
    %v527 = vld [vmem:[%s1 + $0xfb0] sm:$0xff]
    %v528 = vld [vmem:[%s1 + $0xfb8] sm:$0xff]
    %v529 = vld [vmem:[%s1 + $0xfc0] sm:$0xff]
    %v530 = vld [vmem:[%s1 + $0xfc8] sm:$0xff]
    %v531 = vld [vmem:[%s1 + $0xfd0] sm:$0xff]
    %v532 = vld [vmem:[%s1 + $0xfd8] sm:$0xff]
    %v533 = vld [vmem:[%s1 + $0xfe0] sm:$0xff]
    %v534 = vld [vmem:[%s1 + $0xfe8] sm:$0xff]
    %v535 = vld [vmem:[%s1 + $0xff0] sm:$0xff]
    %v536 = vld [vmem:[%s1 + $0xff8] sm:$0xff]
    %v537 = vld [vmem:[%s1 + $0x1000] sm:$0xff]
    %v538 = vld [vmem:[%s1 + $0x1008] sm:$0xff]
    %v539 = vld [vmem:[%s1 + $0x1010] sm:$0xff]
    %v540 = vld [vmem:[%s1 + $0x1018] sm:$0xff]
    %v541 = vld [vmem:[%s1 + $0x1020] sm:$0xff]
    %v542 = vld [vmem:[%s1 + $0x1028] sm:$0xff]
    %v543 = vld [vmem:[%s1 + $0x1030] sm:$0xff]
    %v544 = vld [vmem:[%s1 + $0x1038] sm:$0xff]
    %v545 = vld [vmem:[%s1 + $0x1040] sm:$0xff]
    %v546 = vld [vmem:[%s1 + $0x1048] sm:$0xff]
    %v547 = vld [vmem:[%s1 + $0x1050] sm:$0xff]
    %v548 = vld [vmem:[%s1 + $0x1058] sm:$0xff]
    %v549 = vld [vmem:[%s1 + $0x1060] sm:$0xff]
    %v550 = vld [vmem:[%s1 + $0x1068] sm:$0xff]
    %v551 = vld [vmem:[%s1 + $0x1070] sm:$0xff]
    %v552 = vld [vmem:[%s1 + $0x1078] sm:$0xff]
    %v553 = vld [vmem:[%s1 + $0x1080] sm:$0xff]
    %v554 = vld [vmem:[%s1 + $0x1088] sm:$0xff]
    %v555 = vld [vmem:[%s1 + $0x1090] sm:$0xff]
    %v556 = vld [vmem:[%s1 + $0x1098] sm:$0xff]
    %v557 = vld [vmem:[%s1 + $0x10a0] sm:$0xff]
    %v558 = vld [vmem:[%s1 + $0x10a8] sm:$0xff]
    %v559 = vld [vmem:[%s1 + $0x10b0] sm:$0xff]
    %v560 = vld [vmem:[%s1 + $0x10b8] sm:$0xff]
    %v561 = vld [vmem:[%s1 + $0x10c0] sm:$0xff]
    %v562 = vld [vmem:[%s1 + $0x10c8] sm:$0xff]
    %v563 = vld [vmem:[%s1 + $0x10d0] sm:$0xff]
    %v564 = vld [vmem:[%s1 + $0x10d8] sm:$0xff]
    %v565 = vld [vmem:[%s1 + $0x10e0] sm:$0xff]
    %v566 = vld [vmem:[%s1 + $0x10e8] sm:$0xff]
    %v567 = vld [vmem:[%s1 + $0x10f0] sm:$0xff]
    %v568 = vld [vmem:[%s1 + $0x10f8] sm:$0xff]
    %v569 = vld [vmem:[%s1 + $0x1100] sm:$0xff]
    %v570 = vld [vmem:[%s1 + $0x1108] sm:$0xff]
    %v571 = vld [vmem:[%s1 + $0x1110] sm:$0xff]
    %v572 = vld [vmem:[%s1 + $0x1118] sm:$0xff]
    %v573 = vld [vmem:[%s1 + $0x1120] sm:$0xff]
    %v574 = vld [vmem:[%s1 + $0x1128] sm:$0xff]
    %v575 = vld [vmem:[%s1 + $0x1130] sm:$0xff]
    %v576 = vld [vmem:[%s1 + $0x1138] sm:$0xff]
    %v577 = vld [vmem:[%s1 + $0x1140] sm:$0xff]
    %v578 = vld [vmem:[%s1 + $0x1148] sm:$0xff]
    %v579 = vld [vmem:[%s1 + $0x1150] sm:$0xff]
    %v580 = vld [vmem:[%s1 + $0x1158] sm:$0xff]
    %v581 = vld [vmem:[%s1 + $0x1160] sm:$0xff]
    %v582 = vld [vmem:[%s1 + $0x1168] sm:$0xff]
    %v583 = vld [vmem:[%s1 + $0x1170] sm:$0xff]
    %v584 = vld [vmem:[%s1 + $0x1178] sm:$0xff]
    %v585 = vld [vmem:[%s1 + $0x1180] sm:$0xff]
    %v586 = vld [vmem:[%s1 + $0x1188] sm:$0xff]
    %v587 = vld [vmem:[%s1 + $0x1190] sm:$0xff]
    %v588 = vld [vmem:[%s1 + $0x1198] sm:$0xff]
    %v589 = vld [vmem:[%s1 + $0x11a0] sm:$0xff]
    %v590 = vld [vmem:[%s1 + $0x11a8] sm:$0xff]
    %v591 = vld [vmem:[%s1 + $0x11b0] sm:$0xff]
    %v592 = vld [vmem:[%s1 + $0x11b8] sm:$0xff]
    %v593 = vld [vmem:[%s1 + $0x11c0] sm:$0xff]
    %v594 = vld [vmem:[%s1 + $0x11c8] sm:$0xff]
    %v595 = vld [vmem:[%s1 + $0x11d0] sm:$0xff]
    %v596 = vld [vmem:[%s1 + $0x11d8] sm:$0xff]
    %v597 = vld [vmem:[%s1 + $0x11e0] sm:$0xff]
    %v598 = vld [vmem:[%s1 + $0x11e8] sm:$0xff]
    %v599 = vld [vmem:[%s1 + $0x11f0] sm:$0xff]
    %v600 = vld [vmem:[%s1 + $0x11f8] sm:$0xff]
    %v601 = vld [vmem:[%s1 + $0x1200] sm:$0xff]
    %v602 = vld [vmem:[%s1 + $0x1208] sm:$0xff]
    %v603 = vld [vmem:[%s1 + $0x1210] sm:$0xff]
    %v604 = vld [vmem:[%s1 + $0x1218] sm:$0xff]
    %v605 = vld [vmem:[%s1 + $0x1220] sm:$0xff]
    %v606 = vld [vmem:[%s1 + $0x1228] sm:$0xff]
    %v607 = vld [vmem:[%s1 + $0x1230] sm:$0xff]
    %v608 = vld [vmem:[%s1 + $0x1238] sm:$0xff]
    %v609 = vld [vmem:[%s1 + $0x1240] sm:$0xff]
    %v610 = vld [vmem:[%s1 + $0x1248] sm:$0xff]
    %v611 = vld [vmem:[%s1 + $0x1250] sm:$0xff]
    %v612 = vld [vmem:[%s1 + $0x1258] sm:$0xff]
    %v613 = vld [vmem:[%s1 + $0x1260] sm:$0xff]
    %v614 = vld [vmem:[%s1 + $0x1268] sm:$0xff]
    %v615 = vld [vmem:[%s1 + $0x1270] sm:$0xff]
    %v616 = vld [vmem:[%s1 + $0x1278] sm:$0xff]
    %v617 = vld [vmem:[%s1 + $0x1280] sm:$0xff]
    %v618 = vld [vmem:[%s1 + $0x1288] sm:$0xff]
    %v619 = vld [vmem:[%s1 + $0x1290] sm:$0xff]
    %v620 = vld [vmem:[%s1 + $0x1298] sm:$0xff]
    %v621 = vld [vmem:[%s1 + $0x12a0] sm:$0xff]
    %v622 = vld [vmem:[%s1 + $0x12a8] sm:$0xff]
    %v623 = vld [vmem:[%s1 + $0x12b0] sm:$0xff]
    %v624 = vld [vmem:[%s1 + $0x12b8] sm:$0xff]
    %v625 = vld [vmem:[%s1 + $0x12c0] sm:$0xff]
    %v626 = vld [vmem:[%s1 + $0x12c8] sm:$0xff]
    %v627 = vld [vmem:[%s1 + $0x12d0] sm:$0xff]
    %v628 = vld [vmem:[%s1 + $0x12d8] sm:$0xff]
    %v629 = vld [vmem:[%s1 + $0x12e0] sm:$0xff]
    %v630 = vld [vmem:[%s1 + $0x12e8] sm:$0xff]
    %v631 = vld [vmem:[%s1 + $0x12f0] sm:$0xff]
    %v632 = vld [vmem:[%s1 + $0x12f8] sm:$0xff]
    %v633 = vld [vmem:[%s1 + $0x1300] sm:$0xff]
    %v634 = vld [vmem:[%s1 + $0x1308] sm:$0xff]
    %v635 = vld [vmem:[%s1 + $0x1310] sm:$0xff]
    %v636 = vld [vmem:[%s1 + $0x1318] sm:$0xff]
    %v637 = vld [vmem:[%s1 + $0x1320] sm:$0xff]
    %v638 = vld [vmem:[%s1 + $0x1328] sm:$0xff]
    %v639 = vld [vmem:[%s1 + $0x1330] sm:$0xff]
    %v640 = vld [vmem:[%s1 + $0x1338] sm:$0xff]
    %v641 = vld [vmem:[%s1 + $0x1340] sm:$0xff]
    %v642 = vld [vmem:[%s1 + $0x1348] sm:$0xff]
    %v643 = vld [vmem:[%s1 + $0x1350] sm:$0xff]
    %v644 = vld [vmem:[%s1 + $0x1358] sm:$0xff]
    %v645 = vld [vmem:[%s1 + $0x1360] sm:$0xff]
    %v646 = vld [vmem:[%s1 + $0x1368] sm:$0xff]
    %v647 = vld [vmem:[%s1 + $0x1370] sm:$0xff]
    %v648 = vld [vmem:[%s1 + $0x1378] sm:$0xff]
    %v649 = vld [vmem:[%s1 + $0x1380] sm:$0xff]
    %v650 = vld [vmem:[%s1 + $0x1388] sm:$0xff]
    %v651 = vld [vmem:[%s1 + $0x1390] sm:$0xff]
    %v652 = vld [vmem:[%s1 + $0x1398] sm:$0xff]
    %v653 = vld [vmem:[%s1 + $0x13a0] sm:$0xff]
    %v654 = vld [vmem:[%s1 + $0x13a8] sm:$0xff]
    %v655 = vld [vmem:[%s1 + $0x13b0] sm:$0xff]
    %v656 = vld [vmem:[%s1 + $0x13b8] sm:$0xff]
    %v657 = vld [vmem:[%s1 + $0x13c0] sm:$0xff]
    %v658 = vld [vmem:[%s1 + $0x13c8] sm:$0xff]
    %v659 = vld [vmem:[%s1 + $0x13d0] sm:$0xff]
    %v660 = vld [vmem:[%s1 + $0x13d8] sm:$0xff]
    %v661 = vld [vmem:[%s1 + $0x13e0] sm:$0xff]
    %v662 = vld [vmem:[%s1 + $0x13e8] sm:$0xff]
    %v663 = vld [vmem:[%s1 + $0x13f0] sm:$0xff]
    %v664 = vld [vmem:[%s1 + $0x13f8] sm:$0xff]
    %v665 = vld [vmem:[%s1 + $0x1400] sm:$0xff]
    %v666 = vld [vmem:[%s1 + $0x1408] sm:$0xff]
    %v667 = vld [vmem:[%s1 + $0x1410] sm:$0xff]
    %v668 = vld [vmem:[%s1 + $0x1418] sm:$0xff]
    %v669 = vld [vmem:[%s1 + $0x1420] sm:$0xff]
    %v670 = vld [vmem:[%s1 + $0x1428] sm:$0xff]
    %v671 = vld [vmem:[%s1 + $0x1430] sm:$0xff]
    %v672 = vld [vmem:[%s1 + $0x1438] sm:$0xff]
    %v673 = vld [vmem:[%s1 + $0x1440] sm:$0xff]
    %v674 = vld [vmem:[%s1 + $0x1448] sm:$0xff]
    %v675 = vld [vmem:[%s1 + $0x1450] sm:$0xff]
    %v676 = vld [vmem:[%s1 + $0x1458] sm:$0xff]
    %v677 = vld [vmem:[%s1 + $0x1460] sm:$0xff]
    %v678 = vld [vmem:[%s1 + $0x1468] sm:$0xff]
    %v679 = vld [vmem:[%s1 + $0x1470] sm:$0xff]
    %v680 = vld [vmem:[%s1 + $0x1478] sm:$0xff]
    %v681 = vld [vmem:[%s1 + $0x1480] sm:$0xff]
    %v682 = vld [vmem:[%s1 + $0x1488] sm:$0xff]
    %v683 = vld [vmem:[%s1 + $0x1490] sm:$0xff]
    %v684 = vld [vmem:[%s1 + $0x1498] sm:$0xff]
    %v685 = vld [vmem:[%s1 + $0x14a0] sm:$0xff]
    %v686 = vld [vmem:[%s1 + $0x14a8] sm:$0xff]
    %v687 = vld [vmem:[%s1 + $0x14b0] sm:$0xff]
    %v688 = vld [vmem:[%s1 + $0x14b8] sm:$0xff]
    %v689 = vld [vmem:[%s1 + $0x14c0] sm:$0xff]
    %v690 = vld [vmem:[%s1 + $0x14c8] sm:$0xff]
    %v691 = vld [vmem:[%s1 + $0x14d0] sm:$0xff]
    %v692 = vld [vmem:[%s1 + $0x14d8] sm:$0xff]
    %v693 = vld [vmem:[%s1 + $0x14e0] sm:$0xff]
    %v694 = vld [vmem:[%s1 + $0x14e8] sm:$0xff]
    %v695 = vld [vmem:[%s1 + $0x14f0] sm:$0xff]
    %v696 = vld [vmem:[%s1 + $0x14f8] sm:$0xff]
    %v697 = vld [vmem:[%s1 + $0x1500] sm:$0xff]
    %v698 = vld [vmem:[%s1 + $0x1508] sm:$0xff]
    %v699 = vld [vmem:[%s1 + $0x1510] sm:$0xff]
    %v700 = vld [vmem:[%s1 + $0x1518] sm:$0xff]
    %v701 = vld [vmem:[%s1 + $0x1520] sm:$0xff]
    %v702 = vld [vmem:[%s1 + $0x1528] sm:$0xff]
    %v703 = vld [vmem:[%s1 + $0x1530] sm:$0xff]
    %v704 = vld [vmem:[%s1 + $0x1538] sm:$0xff]
    %v705 = vld [vmem:[%s1 + $0x1540] sm:$0xff]
    %v706 = vld [vmem:[%s1 + $0x1548] sm:$0xff]
    %v707 = vld [vmem:[%s1 + $0x1550] sm:$0xff]
    %v708 = vld [vmem:[%s1 + $0x1558] sm:$0xff]
    %v709 = vld [vmem:[%s1 + $0x1560] sm:$0xff]
    %v710 = vld [vmem:[%s1 + $0x1568] sm:$0xff]
    %v711 = vld [vmem:[%s1 + $0x1570] sm:$0xff]
    %v712 = vld [vmem:[%s1 + $0x1578] sm:$0xff]
    %v713 = vld [vmem:[%s1 + $0x1580] sm:$0xff]
    %v714 = vld [vmem:[%s1 + $0x1588] sm:$0xff]
    %v715 = vld [vmem:[%s1 + $0x1590] sm:$0xff]
    %v716 = vld [vmem:[%s1 + $0x1598] sm:$0xff]
    %v717 = vld [vmem:[%s1 + $0x15a0] sm:$0xff]
    %v718 = vld [vmem:[%s1 + $0x15a8] sm:$0xff]
    %v719 = vld [vmem:[%s1 + $0x15b0] sm:$0xff]
    %v720 = vld [vmem:[%s1 + $0x15b8] sm:$0xff]
    %v721 = vld [vmem:[%s1 + $0x15c0] sm:$0xff]
    %v722 = vld [vmem:[%s1 + $0x15c8] sm:$0xff]
    %v723 = vld [vmem:[%s1 + $0x15d0] sm:$0xff]
    %v724 = vld [vmem:[%s1 + $0x15d8] sm:$0xff]
    %v725 = vld [vmem:[%s1 + $0x15e0] sm:$0xff]
    %v726 = vld [vmem:[%s1 + $0x15e8] sm:$0xff]
    %v727 = vld [vmem:[%s1 + $0x15f0] sm:$0xff]
    %v728 = vld [vmem:[%s1 + $0x15f8] sm:$0xff]
    %v729 = vld [vmem:[%s1 + $0x1600] sm:$0xff]
    %v730 = vld [vmem:[%s1 + $0x1608] sm:$0xff]
    %v731 = vld [vmem:[%s1 + $0x1610] sm:$0xff]
    %v732 = vld [vmem:[%s1 + $0x1618] sm:$0xff]
    %v733 = vld [vmem:[%s1 + $0x1620] sm:$0xff]
    %v734 = vld [vmem:[%s1 + $0x1628] sm:$0xff]
    %v735 = vld [vmem:[%s1 + $0x1630] sm:$0xff]
    %v736 = vld [vmem:[%s1 + $0x1638] sm:$0xff]
    %v737 = vld [vmem:[%s1 + $0x1640] sm:$0xff]
    %v738 = vld [vmem:[%s1 + $0x1648] sm:$0xff]
    %v739 = vld [vmem:[%s1 + $0x1650] sm:$0xff]
    %v740 = vld [vmem:[%s1 + $0x1658] sm:$0xff]
    %v741 = vld [vmem:[%s1 + $0x1660] sm:$0xff]
    %v742 = vld [vmem:[%s1 + $0x1668] sm:$0xff]
    %v743 = vld [vmem:[%s1 + $0x1670] sm:$0xff]
    %v744 = vld [vmem:[%s1 + $0x1678] sm:$0xff]
    %v745 = vld [vmem:[%s1 + $0x1680] sm:$0xff]
    %v746 = vld [vmem:[%s1 + $0x1688] sm:$0xff]
    %v747 = vld [vmem:[%s1 + $0x1690] sm:$0xff]
    %v748 = vld [vmem:[%s1 + $0x1698] sm:$0xff]
    %v749 = vld [vmem:[%s1 + $0x16a0] sm:$0xff]
    %v750 = vld [vmem:[%s1 + $0x16a8] sm:$0xff]
    %v751 = vld [vmem:[%s1 + $0x16b0] sm:$0xff]
    %v752 = vld [vmem:[%s1 + $0x16b8] sm:$0xff]
    %v753 = vld [vmem:[%s1 + $0x16c0] sm:$0xff]
    %v754 = vld [vmem:[%s1 + $0x16c8] sm:$0xff]
    %v755 = vld [vmem:[%s1 + $0x16d0] sm:$0xff]
    %v756 = vld [vmem:[%s1 + $0x16d8] sm:$0xff]
    %v757 = vld [vmem:[%s1 + $0x16e0] sm:$0xff]
    %v758 = vld [vmem:[%s1 + $0x16e8] sm:$0xff]
    %v759 = vld [vmem:[%s1 + $0x16f0] sm:$0xff]
    %v760 = vld [vmem:[%s1 + $0x16f8] sm:$0xff]
    %v761 = vld [vmem:[%s1 + $0x1700] sm:$0xff]
    %v762 = vld [vmem:[%s1 + $0x1708] sm:$0xff]
    %v763 = vld [vmem:[%s1 + $0x1710] sm:$0xff]
    %v764 = vld [vmem:[%s1 + $0x1718] sm:$0xff]
    %v765 = vld [vmem:[%s1 + $0x1720] sm:$0xff]
    %v766 = vld [vmem:[%s1 + $0x1728] sm:$0xff]
    %v767 = vld [vmem:[%s1 + $0x1730] sm:$0xff]
    %v768 = vld [vmem:[%s1 + $0x1738] sm:$0xff]
    %v769 = vld [vmem:[%s1 + $0x1740] sm:$0xff]
    %v770 = vld [vmem:[%s1 + $0x1748] sm:$0xff]
    %v771 = vld [vmem:[%s1 + $0x1750] sm:$0xff]
    %v772 = vld [vmem:[%s1 + $0x1758] sm:$0xff]
    %v773 = vld [vmem:[%s1 + $0x1760] sm:$0xff]
    %v774 = vld [vmem:[%s1 + $0x1768] sm:$0xff]
    %v775 = vld [vmem:[%s1 + $0x1770] sm:$0xff]
    %v776 = vld [vmem:[%s1 + $0x1778] sm:$0xff]
    %v777 = vld [vmem:[%s1 + $0x1780] sm:$0xff]
    %v778 = vld [vmem:[%s1 + $0x1788] sm:$0xff]
    %v779 = vld [vmem:[%s1 + $0x1790] sm:$0xff]
    %v780 = vld [vmem:[%s1 + $0x1798] sm:$0xff]
    %v781 = vld [vmem:[%s1 + $0x17a0] sm:$0xff]
    %v782 = vld [vmem:[%s1 + $0x17a8] sm:$0xff]
    %v783 = vld [vmem:[%s1 + $0x17b0] sm:$0xff]
    %v784 = vld [vmem:[%s1 + $0x17b8] sm:$0xff]
    %v785 = vld [vmem:[%s1 + $0x17c0] sm:$0xff]
    %v786 = vld [vmem:[%s1 + $0x17c8] sm:$0xff]
    %v787 = vld [vmem:[%s1 + $0x17d0] sm:$0xff]
    %v788 = vld [vmem:[%s1 + $0x17d8] sm:$0xff]
    %v789 = vld [vmem:[%s1 + $0x17e0] sm:$0xff]
    %v790 = vld [vmem:[%s1 + $0x17e8] sm:$0xff]
    %v791 = vld [vmem:[%s1 + $0x17f0] sm:$0xff]
    %v792 = vld [vmem:[%s1 + $0x17f8] sm:$0xff]
    %v793 = vld [vmem:[%s1 + $0x1800] sm:$0xff]
    %v794 = vld [vmem:[%s1 + $0x1808] sm:$0xff]
    %v795 = vld [vmem:[%s1 + $0x1810] sm:$0xff]
    %v796 = vld [vmem:[%s1 + $0x1818] sm:$0xff]
    %v797 = vld [vmem:[%s1 + $0x1820] sm:$0xff]
    %v798 = vld [vmem:[%s1 + $0x1828] sm:$0xff]
    %v799 = vld [vmem:[%s1 + $0x1830] sm:$0xff]
    %v800 = vld [vmem:[%s1 + $0x1838] sm:$0xff]
    %v801 = vld [vmem:[%s1 + $0x1840] sm:$0xff]
    %v802 = vld [vmem:[%s1 + $0x1848] sm:$0xff]
    %v803 = vld [vmem:[%s1 + $0x1850] sm:$0xff]
    %v804 = vld [vmem:[%s1 + $0x1858] sm:$0xff]
    %v805 = vld [vmem:[%s1 + $0x1860] sm:$0xff]
    %v806 = vld [vmem:[%s1 + $0x1868] sm:$0xff]
    %v807 = vld [vmem:[%s1 + $0x1870] sm:$0xff]
    %v808 = vld [vmem:[%s1 + $0x1878] sm:$0xff]
    %v809 = vld [vmem:[%s1 + $0x1880] sm:$0xff]
    %v810 = vld [vmem:[%s1 + $0x1888] sm:$0xff]
    %v811 = vld [vmem:[%s1 + $0x1890] sm:$0xff]
    %v812 = vld [vmem:[%s1 + $0x1898] sm:$0xff]
    %v813 = vld [vmem:[%s1 + $0x18a0] sm:$0xff]
    %v814 = vld [vmem:[%s1 + $0x18a8] sm:$0xff]
    %v815 = vld [vmem:[%s1 + $0x18b0] sm:$0xff]
    %v816 = vld [vmem:[%s1 + $0x18b8] sm:$0xff]
    %v817 = vld [vmem:[%s1 + $0x18c0] sm:$0xff]
    %v818 = vld [vmem:[%s1 + $0x18c8] sm:$0xff]
    %v819 = vld [vmem:[%s1 + $0x18d0] sm:$0xff]
    %v820 = vld [vmem:[%s1 + $0x18d8] sm:$0xff]
    %v821 = vld [vmem:[%s1 + $0x18e0] sm:$0xff]
    %v822 = vld [vmem:[%s1 + $0x18e8] sm:$0xff]
    %v823 = vld [vmem:[%s1 + $0x18f0] sm:$0xff]
    %v824 = vld [vmem:[%s1 + $0x18f8] sm:$0xff]
    %v825 = vld [vmem:[%s1 + $0x1900] sm:$0xff]
    %v826 = vld [vmem:[%s1 + $0x1908] sm:$0xff]
    %v827 = vld [vmem:[%s1 + $0x1910] sm:$0xff]
    %v828 = vld [vmem:[%s1 + $0x1918] sm:$0xff]
    %v829 = vld [vmem:[%s1 + $0x1920] sm:$0xff]
    %v830 = vld [vmem:[%s1 + $0x1928] sm:$0xff]
    %v831 = vld [vmem:[%s1 + $0x1930] sm:$0xff]
    %v832 = vld [vmem:[%s1 + $0x1938] sm:$0xff]
    %v833 = vld [vmem:[%s1 + $0x1940] sm:$0xff]
    %v834 = vld [vmem:[%s1 + $0x1948] sm:$0xff]
    %v835 = vld [vmem:[%s1 + $0x1950] sm:$0xff]
    %v836 = vld [vmem:[%s1 + $0x1958] sm:$0xff]
    %v837 = vld [vmem:[%s1 + $0x1960] sm:$0xff]
    %v838 = vld [vmem:[%s1 + $0x1968] sm:$0xff]
    %v839 = vld [vmem:[%s1 + $0x1970] sm:$0xff]
    %v840 = vld [vmem:[%s1 + $0x1978] sm:$0xff]
    %v841 = vld [vmem:[%s1 + $0x1980] sm:$0xff]
    %v842 = vld [vmem:[%s1 + $0x1988] sm:$0xff]
    %v843 = vld [vmem:[%s1 + $0x1990] sm:$0xff]
    %v844 = vld [vmem:[%s1 + $0x1998] sm:$0xff]
    %v845 = vld [vmem:[%s1 + $0x19a0] sm:$0xff]
    %v846 = vld [vmem:[%s1 + $0x19a8] sm:$0xff]
    %v847 = vld [vmem:[%s1 + $0x19b0] sm:$0xff]
    %v848 = vld [vmem:[%s1 + $0x19b8] sm:$0xff]
    %v849 = vld [vmem:[%s1 + $0x19c0] sm:$0xff]
    %v850 = vld [vmem:[%s1 + $0x19c8] sm:$0xff]
    %v851 = vld [vmem:[%s1 + $0x19d0] sm:$0xff]
    %v852 = vld [vmem:[%s1 + $0x19d8] sm:$0xff]
    %v853 = vld [vmem:[%s1 + $0x19e0] sm:$0xff]
    %v854 = vld [vmem:[%s1 + $0x19e8] sm:$0xff]
    %v855 = vld [vmem:[%s1 + $0x19f0] sm:$0xff]
    %v856 = vld [vmem:[%s1 + $0x19f8] sm:$0xff]
    %v857 = vld [vmem:[%s1 + $0x1a00] sm:$0xff]
    %v858 = vld [vmem:[%s1 + $0x1a08] sm:$0xff]
    %v859 = vld [vmem:[%s1 + $0x1a10] sm:$0xff]
    %v860 = vld [vmem:[%s1 + $0x1a18] sm:$0xff]
    %v861 = vld [vmem:[%s1 + $0x1a20] sm:$0xff]
    %v862 = vld [vmem:[%s1 + $0x1a28] sm:$0xff]
    %v863 = vld [vmem:[%s1 + $0x1a30] sm:$0xff]
    %v864 = vld [vmem:[%s1 + $0x1a38] sm:$0xff]
    %v865 = vld [vmem:[%s1 + $0x1a40] sm:$0xff]
    %v866 = vld [vmem:[%s1 + $0x1a48] sm:$0xff]
    %v867 = vld [vmem:[%s1 + $0x1a50] sm:$0xff]
    %v868 = vld [vmem:[%s1 + $0x1a58] sm:$0xff]
    %v869 = vld [vmem:[%s1 + $0x1a60] sm:$0xff]
    %v870 = vld [vmem:[%s1 + $0x1a68] sm:$0xff]
    %v871 = vld [vmem:[%s1 + $0x1a70] sm:$0xff]
    %v872 = vld [vmem:[%s1 + $0x1a78] sm:$0xff]
    %v873 = vld [vmem:[%s1 + $0x1a80] sm:$0xff]
    %v874 = vld [vmem:[%s1 + $0x1a88] sm:$0xff]
    %v875 = vld [vmem:[%s1 + $0x1a90] sm:$0xff]
    %v876 = vld [vmem:[%s1 + $0x1a98] sm:$0xff]
    %v877 = vld [vmem:[%s1 + $0x1aa0] sm:$0xff]
    %v878 = vld [vmem:[%s1 + $0x1aa8] sm:$0xff]
    %v879 = vld [vmem:[%s1 + $0x1ab0] sm:$0xff]
    %v880 = vld [vmem:[%s1 + $0x1ab8] sm:$0xff]
    %v881 = vld [vmem:[%s1 + $0x1ac0] sm:$0xff]
    %v882 = vld [vmem:[%s1 + $0x1ac8] sm:$0xff]
    %v883 = vld [vmem:[%s1 + $0x1ad0] sm:$0xff]
    %v884 = vld [vmem:[%s1 + $0x1ad8] sm:$0xff]
    %v885 = vld [vmem:[%s1 + $0x1ae0] sm:$0xff]
    %v886 = vld [vmem:[%s1 + $0x1ae8] sm:$0xff]
    %v887 = vld [vmem:[%s1 + $0x1af0] sm:$0xff]
    %v888 = vld [vmem:[%s1 + $0x1af8] sm:$0xff]
    %v889 = vld [vmem:[%s1 + $0x1b00] sm:$0xff]
    %v890 = vld [vmem:[%s1 + $0x1b08] sm:$0xff]
    %v891 = vld [vmem:[%s1 + $0x1b10] sm:$0xff]
    %v892 = vld [vmem:[%s1 + $0x1b18] sm:$0xff]
    %v893 = vld [vmem:[%s1 + $0x1b20] sm:$0xff]
    %v894 = vld [vmem:[%s1 + $0x1b28] sm:$0xff]
    %v895 = vld [vmem:[%s1 + $0x1b30] sm:$0xff]
    %v896 = vld [vmem:[%s1 + $0x1b38] sm:$0xff]
    %v897 = vld [vmem:[%s1 + $0x1b40] sm:$0xff]
    %v898 = vld [vmem:[%s1 + $0x1b48] sm:$0xff]
    %v899 = vld [vmem:[%s1 + $0x1b50] sm:$0xff]
    %v900 = vld [vmem:[%s1 + $0x1b58] sm:$0xff]
    %v901 = vld [vmem:[%s1 + $0x1b60] sm:$0xff]
    %v902 = vld [vmem:[%s1 + $0x1b68] sm:$0xff]
    %v903 = vld [vmem:[%s1 + $0x1b70] sm:$0xff]
    %v904 = vld [vmem:[%s1 + $0x1b78] sm:$0xff]
    %v905 = vld [vmem:[%s1 + $0x1b80] sm:$0xff]
    %v906 = vld [vmem:[%s1 + $0x1b88] sm:$0xff]
    %v907 = vld [vmem:[%s1 + $0x1b90] sm:$0xff]
    %v908 = vld [vmem:[%s1 + $0x1b98] sm:$0xff]
    %v909 = vld [vmem:[%s1 + $0x1ba0] sm:$0xff]
    %v910 = vld [vmem:[%s1 + $0x1ba8] sm:$0xff]
    %v911 = vld [vmem:[%s1 + $0x1bb0] sm:$0xff]
    %v912 = vld [vmem:[%s1 + $0x1bb8] sm:$0xff]
    %v913 = vld [vmem:[%s1 + $0x1bc0] sm:$0xff]
    %v914 = vld [vmem:[%s1 + $0x1bc8] sm:$0xff]
    %v915 = vld [vmem:[%s1 + $0x1bd0] sm:$0xff]
    %v916 = vld [vmem:[%s1 + $0x1bd8] sm:$0xff]
    %v917 = vld [vmem:[%s1 + $0x1be0] sm:$0xff]
    %v918 = vld [vmem:[%s1 + $0x1be8] sm:$0xff]
    %v919 = vld [vmem:[%s1 + $0x1bf0] sm:$0xff]
    %v920 = vld [vmem:[%s1 + $0x1bf8] sm:$0xff]
    %v921 = vld [vmem:[%s1 + $0x1c00] sm:$0xff]
    %v922 = vld [vmem:[%s1 + $0x1c08] sm:$0xff]
    %v923 = vld [vmem:[%s1 + $0x1c10] sm:$0xff]
    %v924 = vld [vmem:[%s1 + $0x1c18] sm:$0xff]
    %v925 = vld [vmem:[%s1 + $0x1c20] sm:$0xff]
    %v926 = vld [vmem:[%s1 + $0x1c28] sm:$0xff]
    %v927 = vld [vmem:[%s1 + $0x1c30] sm:$0xff]
    %v928 = vld [vmem:[%s1 + $0x1c38] sm:$0xff]
    %v929 = vld [vmem:[%s1 + $0x1c40] sm:$0xff]
    %v930 = vld [vmem:[%s1 + $0x1c48] sm:$0xff]
    %v931 = vld [vmem:[%s1 + $0x1c50] sm:$0xff]
    %v932 = vld [vmem:[%s1 + $0x1c58] sm:$0xff]
    %v933 = vld [vmem:[%s1 + $0x1c60] sm:$0xff]
    %v934 = vld [vmem:[%s1 + $0x1c68] sm:$0xff]
    %v935 = vld [vmem:[%s1 + $0x1c70] sm:$0xff]
    %v936 = vld [vmem:[%s1 + $0x1c78] sm:$0xff]
    %v937 = vld [vmem:[%s1 + $0x1c80] sm:$0xff]
    %v938 = vld [vmem:[%s1 + $0x1c88] sm:$0xff]
    %v939 = vld [vmem:[%s1 + $0x1c90] sm:$0xff]
    %v940 = vld [vmem:[%s1 + $0x1c98] sm:$0xff]
    %v941 = vld [vmem:[%s1 + $0x1ca0] sm:$0xff]
    %v942 = vld [vmem:[%s1 + $0x1ca8] sm:$0xff]
    %v943 = vld [vmem:[%s1 + $0x1cb0] sm:$0xff]
    %v944 = vld [vmem:[%s1 + $0x1cb8] sm:$0xff]
    %v945 = vld [vmem:[%s1 + $0x1cc0] sm:$0xff]
    %v946 = vld [vmem:[%s1 + $0x1cc8] sm:$0xff]
    %v947 = vld [vmem:[%s1 + $0x1cd0] sm:$0xff]
    %v948 = vld [vmem:[%s1 + $0x1cd8] sm:$0xff]
    %v949 = vld [vmem:[%s1 + $0x1ce0] sm:$0xff]
    %v950 = vld [vmem:[%s1 + $0x1ce8] sm:$0xff]
    %v951 = vld [vmem:[%s1 + $0x1cf0] sm:$0xff]
    %v952 = vld [vmem:[%s1 + $0x1cf8] sm:$0xff]
    %v953 = vld [vmem:[%s1 + $0x1d00] sm:$0xff]
    %v954 = vld [vmem:[%s1 + $0x1d08] sm:$0xff]
    %v955 = vld [vmem:[%s1 + $0x1d10] sm:$0xff]
    %v956 = vld [vmem:[%s1 + $0x1d18] sm:$0xff]
    %v957 = vld [vmem:[%s1 + $0x1d20] sm:$0xff]
    %v958 = vld [vmem:[%s1 + $0x1d28] sm:$0xff]
    %v959 = vld [vmem:[%s1 + $0x1d30] sm:$0xff]
    %v960 = vld [vmem:[%s1 + $0x1d38] sm:$0xff]
    %v961 = vld [vmem:[%s1 + $0x1d40] sm:$0xff]
    %v962 = vld [vmem:[%s1 + $0x1d48] sm:$0xff]
    %v963 = vld [vmem:[%s1 + $0x1d50] sm:$0xff]
    %v964 = vld [vmem:[%s1 + $0x1d58] sm:$0xff]
    %v965 = vld [vmem:[%s1 + $0x1d60] sm:$0xff]
    %v966 = vld [vmem:[%s1 + $0x1d68] sm:$0xff]
    %v967 = vld [vmem:[%s1 + $0x1d70] sm:$0xff]
    %v968 = vld [vmem:[%s1 + $0x1d78] sm:$0xff]
    %v969 = vld [vmem:[%s1 + $0x1d80] sm:$0xff]
    %v970 = vld [vmem:[%s1 + $0x1d88] sm:$0xff]
    %v971 = vld [vmem:[%s1 + $0x1d90] sm:$0xff]
    %v972 = vld [vmem:[%s1 + $0x1d98] sm:$0xff]
    %v973 = vld [vmem:[%s1 + $0x1da0] sm:$0xff]
    %v974 = vld [vmem:[%s1 + $0x1da8] sm:$0xff]
    %v975 = vld [vmem:[%s1 + $0x1db0] sm:$0xff]
    %v976 = vld [vmem:[%s1 + $0x1db8] sm:$0xff]
    %v977 = vld [vmem:[%s1 + $0x1dc0] sm:$0xff]
    %v978 = vld [vmem:[%s1 + $0x1dc8] sm:$0xff]
    %v979 = vld [vmem:[%s1 + $0x1dd0] sm:$0xff]
    %v980 = vld [vmem:[%s1 + $0x1dd8] sm:$0xff]
    %v981 = vld [vmem:[%s1 + $0x1de0] sm:$0xff]
    %v982 = vld [vmem:[%s1 + $0x1de8] sm:$0xff]
    %v983 = vld [vmem:[%s1 + $0x1df0] sm:$0xff]
    %v984 = vld [vmem:[%s1 + $0x1df8] sm:$0xff]
    %v985 = vld [vmem:[%s1 + $0x1e00] sm:$0xff]
    %v986 = vld [vmem:[%s1 + $0x1e08] sm:$0xff]
    %v987 = vld [vmem:[%s1 + $0x1e10] sm:$0xff]
    %v988 = vld [vmem:[%s1 + $0x1e18] sm:$0xff]
    %v989 = vld [vmem:[%s1 + $0x1e20] sm:$0xff]
    %v990 = vld [vmem:[%s1 + $0x1e28] sm:$0xff]
    %v991 = vld [vmem:[%s1 + $0x1e30] sm:$0xff]
    %v992 = vld [vmem:[%s1 + $0x1e38] sm:$0xff]
    %v993 = vld [vmem:[%s1 + $0x1e40] sm:$0xff]
    %v994 = vld [vmem:[%s1 + $0x1e48] sm:$0xff]
    %v995 = vld [vmem:[%s1 + $0x1e50] sm:$0xff]
    %v996 = vld [vmem:[%s1 + $0x1e58] sm:$0xff]
    %v997 = vld [vmem:[%s1 + $0x1e60] sm:$0xff]
    %v998 = vld [vmem:[%s1 + $0x1e68] sm:$0xff]
    %v999 = vld [vmem:[%s1 + $0x1e70] sm:$0xff]
    %v1000 = vld [vmem:[%s1 + $0x1e78] sm:$0xff]
    %v1001 = vld [vmem:[%s1 + $0x1e80] sm:$0xff]
    %v1002 = vld [vmem:[%s1 + $0x1e88] sm:$0xff]
    %v1003 = vld [vmem:[%s1 + $0x1e90] sm:$0xff]
    %v1004 = vld [vmem:[%s1 + $0x1e98] sm:$0xff]
    %v1005 = vld [vmem:[%s1 + $0x1ea0] sm:$0xff]
    %v1006 = vld [vmem:[%s1 + $0x1ea8] sm:$0xff]
    %v1007 = vld [vmem:[%s1 + $0x1eb0] sm:$0xff]
    %v1008 = vld [vmem:[%s1 + $0x1eb8] sm:$0xff]
    %v1009 = vld [vmem:[%s1 + $0x1ec0] sm:$0xff]
    %v1010 = vld [vmem:[%s1 + $0x1ec8] sm:$0xff]
    %v1011 = vld [vmem:[%s1 + $0x1ed0] sm:$0xff]
    %v1012 = vld [vmem:[%s1 + $0x1ed8] sm:$0xff]
    %v1013 = vld [vmem:[%s1 + $0x1ee0] sm:$0xff]
    %v1014 = vld [vmem:[%s1 + $0x1ee8] sm:$0xff]
    %v1015 = vld [vmem:[%s1 + $0x1ef0] sm:$0xff]
    %v1016 = vld [vmem:[%s1 + $0x1ef8] sm:$0xff]
    %v1017 = vld [vmem:[%s1 + $0x1f00] sm:$0xff]
    %v1018 = vld [vmem:[%s1 + $0x1f08] sm:$0xff]
    %v1019 = vld [vmem:[%s1 + $0x1f10] sm:$0xff]
    %v1020 = vld [vmem:[%s1 + $0x1f18] sm:$0xff]
    %v1021 = vld [vmem:[%s1 + $0x1f20] sm:$0xff]
    %v1022 = vld [vmem:[%s1 + $0x1f28] sm:$0xff]
    %v1023 = vld [vmem:[%s1 + $0x1f30] sm:$0xff]
    %v1024 = vld [vmem:[%s1 + $0x1f38] sm:$0xff]
    %v1025 = vld [vmem:[%s1 + $0x1f40] sm:$0xff]
    %v1026 = vld [vmem:[%s1 + $0x1f48] sm:$0xff]
    %v1027 = vld [vmem:[%s1 + $0x1f50] sm:$0xff]
    %v1028 = vld [vmem:[%s1 + $0x1f58] sm:$0xff]
    %v1029 = vld [vmem:[%s1 + $0x1f60] sm:$0xff]
    %v1030 = vld [vmem:[%s1 + $0x1f68] sm:$0xff]
    %v1031 = vld [vmem:[%s1 + $0x1f70] sm:$0xff]
    %v1032 = vld [vmem:[%s1 + $0x1f78] sm:$0xff]
    %v1033 = vld [vmem:[%s1 + $0x1f80] sm:$0xff]
    %v1034 = vld [vmem:[%s1 + $0x1f88] sm:$0xff]
    %v1035 = vld [vmem:[%s1 + $0x1f90] sm:$0xff]
    %v1036 = vld [vmem:[%s1 + $0x1f98] sm:$0xff]
    %v1037 = vld [vmem:[%s1 + $0x1fa0] sm:$0xff]
    %v1038 = vld [vmem:[%s1 + $0x1fa8] sm:$0xff]
    %v1039 = vld [vmem:[%s1 + $0x1fb0] sm:$0xff]
    %v1040 = vld [vmem:[%s1 + $0x1fb8] sm:$0xff]
    %v1041 = vld [vmem:[%s1 + $0x1fc0] sm:$0xff]
    %v1042 = vld [vmem:[%s1 + $0x1fc8] sm:$0xff]
    %v1043 = vld [vmem:[%s1 + $0x1fd0] sm:$0xff]
    %v1044 = vld [vmem:[%s1 + $0x1fd8] sm:$0xff]
    %v1045 = vld [vmem:[%s1 + $0x1fe0] sm:$0xff]
    %v1046 = vld [vmem:[%s1 + $0x1fe8] sm:$0xff]
    %v1047 = vld [vmem:[%s1 + $0x1ff0] sm:$0xff]
    %v1048 = vld [vmem:[%s1 + $0x1ff8] sm:$0xff]
    %v1049 = vld [vmem:[%s1 + $0x2000] sm:$0xff]
    %v1050 = vld [vmem:[%s1 + $0x2008] sm:$0xff]
    %v1051 = vld [vmem:[%s1 + $0x2010] sm:$0xff]
    %v1052 = vld [vmem:[%s1 + $0x2018] sm:$0xff]
    %v1053 = vld [vmem:[%s1 + $0x2020] sm:$0xff]
    %v1054 = vld [vmem:[%s1 + $0x2028] sm:$0xff]
    %v1055 = vld [vmem:[%s1 + $0x2030] sm:$0xff]
    %v1056 = vld [vmem:[%s1 + $0x2038] sm:$0xff]
    %v1057 = vld [vmem:[%s1 + $0x2040] sm:$0xff]
    %v1058 = vld [vmem:[%s1 + $0x2048] sm:$0xff]
    %v1059 = vld [vmem:[%s1 + $0x2050] sm:$0xff]
    %v1060 = vld [vmem:[%s1 + $0x2058] sm:$0xff]
    %v1061 = vld [vmem:[%s1 + $0x2060] sm:$0xff]
    %v1062 = vld [vmem:[%s1 + $0x2068] sm:$0xff]
    %v1063 = vld [vmem:[%s1 + $0x2070] sm:$0xff]
    %v1064 = vld [vmem:[%s1 + $0x2078] sm:$0xff]
    %v1065 = vld [vmem:[%s1 + $0x2080] sm:$0xff]
    %v1066 = vld [vmem:[%s1 + $0x2088] sm:$0xff]
    %v1067 = vld [vmem:[%s1 + $0x2090] sm:$0xff]
    %v1068 = vld [vmem:[%s1 + $0x2098] sm:$0xff]
    %v1069 = vld [vmem:[%s1 + $0x20a0] sm:$0xff]
    %v1070 = vld [vmem:[%s1 + $0x20a8] sm:$0xff]
    %v1071 = vld [vmem:[%s1 + $0x20b0] sm:$0xff]
    %v1072 = vld [vmem:[%s1 + $0x20b8] sm:$0xff]
    %v1073 = vld [vmem:[%s1 + $0x20c0] sm:$0xff]
    %v1074 = vld [vmem:[%s1 + $0x20c8] sm:$0xff]
    %v1075 = vld [vmem:[%s1 + $0x20d0] sm:$0xff]
    %v1076 = vld [vmem:[%s1 + $0x20d8] sm:$0xff]
    %v1077 = vld [vmem:[%s1 + $0x20e0] sm:$0xff]
    %v1078 = vld [vmem:[%s1 + $0x20e8] sm:$0xff]
    %v1079 = vld [vmem:[%s1 + $0x20f0] sm:$0xff]
    %v1080 = vld [vmem:[%s1 + $0x20f8] sm:$0xff]
    %v1081 = vld [vmem:[%s1 + $0x2100] sm:$0xff]
    %v1082 = vld [vmem:[%s1 + $0x2108] sm:$0xff]
    %v1083 = vld [vmem:[%s1 + $0x2110] sm:$0xff]
    %v1084 = vld [vmem:[%s1 + $0x2118] sm:$0xff]
    %v1085 = vld [vmem:[%s1 + $0x2120] sm:$0xff]
    %v1086 = vld [vmem:[%s1 + $0x2128] sm:$0xff]
    %v1087 = vld [vmem:[%s1 + $0x2130] sm:$0xff]
    %v1088 = vld [vmem:[%s1 + $0x2138] sm:$0xff]
    %v1089 = vld [vmem:[%s1 + $0x2140] sm:$0xff]
    %v1090 = vld [vmem:[%s1 + $0x2148] sm:$0xff]
    %v1091 = vld [vmem:[%s1 + $0x2150] sm:$0xff]
    %v1092 = vld [vmem:[%s1 + $0x2158] sm:$0xff]
    %v1093 = vld [vmem:[%s1 + $0x2160] sm:$0xff]
    %v1094 = vld [vmem:[%s1 + $0x2168] sm:$0xff]
    %v1095 = vld [vmem:[%s1 + $0x2170] sm:$0xff]
    %v1096 = vld [vmem:[%s1 + $0x2178] sm:$0xff]
    %v1097 = vld [vmem:[%s1 + $0x2180] sm:$0xff]
    %v1098 = vld [vmem:[%s1 + $0x2188] sm:$0xff]
    %v1099 = vld [vmem:[%s1 + $0x2190] sm:$0xff]
    %v1100 = vld [vmem:[%s1 + $0x2198] sm:$0xff]
    %v1101 = vld [vmem:[%s1 + $0x21a0] sm:$0xff]
    %v1102 = vld [vmem:[%s1 + $0x21a8] sm:$0xff]
    %v1103 = vld [vmem:[%s1 + $0x21b0] sm:$0xff]
    %v1104 = vld [vmem:[%s1 + $0x21b8] sm:$0xff]
    %v1105 = vld [vmem:[%s1 + $0x21c0] sm:$0xff]
    %v1106 = vld [vmem:[%s1 + $0x21c8] sm:$0xff]
    %v1107 = vld [vmem:[%s1 + $0x21d0] sm:$0xff]
    %v1108 = vld [vmem:[%s1 + $0x21d8] sm:$0xff]
    %v1109 = vld [vmem:[%s1 + $0x21e0] sm:$0xff]
    %v1110 = vld [vmem:[%s1 + $0x21e8] sm:$0xff]
    %v1111 = vld [vmem:[%s1 + $0x21f0] sm:$0xff]
    %v1112 = vld [vmem:[%s1 + $0x21f8] sm:$0xff]
    %v1113 = vld [vmem:[%s1 + $0x2200] sm:$0xff]
    %v1114 = vld [vmem:[%s1 + $0x2208] sm:$0xff]
    %v1115 = vld [vmem:[%s1 + $0x2210] sm:$0xff]
    %v1116 = vld [vmem:[%s1 + $0x2218] sm:$0xff]
    %v1117 = vld [vmem:[%s1 + $0x2220] sm:$0xff]
    %v1118 = vld [vmem:[%s1 + $0x2228] sm:$0xff]
    %v1119 = vld [vmem:[%s1 + $0x2230] sm:$0xff]
    %v1120 = vld [vmem:[%s1 + $0x2238] sm:$0xff]
    %v1121 = vld [vmem:[%s1 + $0x2240] sm:$0xff]
    %v1122 = vld [vmem:[%s1 + $0x2248] sm:$0xff]
    %v1123 = vld [vmem:[%s1 + $0x2250] sm:$0xff]
    %v1124 = vld [vmem:[%s1 + $0x2258] sm:$0xff]
    %v1125 = vld [vmem:[%s1 + $0x2260] sm:$0xff]
    %v1126 = vld [vmem:[%s1 + $0x2268] sm:$0xff]
    %v1127 = vld [vmem:[%s1 + $0x2270] sm:$0xff]
    %v1128 = vld [vmem:[%s1 + $0x2278] sm:$0xff]
    %v1129 = vld [vmem:[%s1 + $0x2280] sm:$0xff]
    %v1130 = vld [vmem:[%s1 + $0x2288] sm:$0xff]
    %v1131 = vld [vmem:[%s1 + $0x2290] sm:$0xff]
    %v1132 = vld [vmem:[%s1 + $0x2298] sm:$0xff]
    %v1133 = vld [vmem:[%s1 + $0x22a0] sm:$0xff]
    %v1134 = vld [vmem:[%s1 + $0x22a8] sm:$0xff]
    %v1135 = vld [vmem:[%s1 + $0x22b0] sm:$0xff]
    %v1136 = vld [vmem:[%s1 + $0x22b8] sm:$0xff]
    %v1137 = vld [vmem:[%s1 + $0x22c0] sm:$0xff]
    %v1138 = vld [vmem:[%s1 + $0x22c8] sm:$0xff]
    %v1139 = vld [vmem:[%s1 + $0x22d0] sm:$0xff]
    %v1140 = vld [vmem:[%s1 + $0x22d8] sm:$0xff]
    %v1141 = vld [vmem:[%s1 + $0x22e0] sm:$0xff]
    %v1142 = vld [vmem:[%s1 + $0x22e8] sm:$0xff]
    %v1143 = vld [vmem:[%s1 + $0x22f0] sm:$0xff]
    %v1144 = vld [vmem:[%s1 + $0x22f8] sm:$0xff]
    %v1145 = vld [vmem:[%s1 + $0x2300] sm:$0xff]
    %v1146 = vld [vmem:[%s1 + $0x2308] sm:$0xff]
    %v1147 = vld [vmem:[%s1 + $0x2310] sm:$0xff]
    %v1148 = vld [vmem:[%s1 + $0x2318] sm:$0xff]
    %v1149 = vld [vmem:[%s1 + $0x2320] sm:$0xff]
    %v1150 = vld [vmem:[%s1 + $0x2328] sm:$0xff]
    %v1151 = vld [vmem:[%s1 + $0x2330] sm:$0xff]
    %v1152 = vld [vmem:[%s1 + $0x2338] sm:$0xff]
    %v1153 = vld [vmem:[%s1 + $0x2340] sm:$0xff]
    %v1154 = vld [vmem:[%s1 + $0x2348] sm:$0xff]
    %v1155 = vld [vmem:[%s1 + $0x2350] sm:$0xff]
    %v1156 = vld [vmem:[%s1 + $0x2358] sm:$0xff]
    %v1157 = vld [vmem:[%s1 + $0x2360] sm:$0xff]
    %v1158 = vld [vmem:[%s1 + $0x2368] sm:$0xff]
    %v1159 = vld [vmem:[%s1 + $0x2370] sm:$0xff]
    %v1160 = vld [vmem:[%s1 + $0x2378] sm:$0xff]
    %v1161 = vld [vmem:[%s1 + $0x2380] sm:$0xff]
    %v1162 = vld [vmem:[%s1 + $0x2388] sm:$0xff]
    %v1163 = vld [vmem:[%s1 + $0x2390] sm:$0xff]
    %v1164 = vld [vmem:[%s1 + $0x2398] sm:$0xff]
    %v1165 = vld [vmem:[%s1 + $0x23a0] sm:$0xff]
    %v1166 = vld [vmem:[%s1 + $0x23a8] sm:$0xff]
    %v1167 = vld [vmem:[%s1 + $0x23b0] sm:$0xff]
    %v1168 = vld [vmem:[%s1 + $0x23b8] sm:$0xff]
    %v1169 = vld [vmem:[%s1 + $0x23c0] sm:$0xff]
    %v1170 = vld [vmem:[%s1 + $0x23c8] sm:$0xff]
    %v1171 = vld [vmem:[%s1 + $0x23d0] sm:$0xff]
    %v1172 = vld [vmem:[%s1 + $0x23d8] sm:$0xff]
    %v1173 = vld [vmem:[%s1 + $0x23e0] sm:$0xff]
    %v1174 = vld [vmem:[%s1 + $0x23e8] sm:$0xff]
    %v1175 = vld [vmem:[%s1 + $0x23f0] sm:$0xff]
    %v1176 = vld [vmem:[%s1 + $0x23f8] sm:$0xff]
    %v1177 = vld [vmem:[%s1 + $0x2400] sm:$0xff]
    %v1178 = vld [vmem:[%s1 + $0x2408] sm:$0xff]
    %v1179 = vld [vmem:[%s1 + $0x2410] sm:$0xff]
    %v1180 = vld [vmem:[%s1 + $0x2418] sm:$0xff]
    %v1181 = vld [vmem:[%s1 + $0x2420] sm:$0xff]
    %v1182 = vld [vmem:[%s1 + $0x2428] sm:$0xff]
    %v1183 = vld [vmem:[%s1 + $0x2430] sm:$0xff]
    %v1184 = vld [vmem:[%s1 + $0x2438] sm:$0xff]
    %v1185 = vld [vmem:[%s1 + $0x2440] sm:$0xff]
    %v1186 = vld [vmem:[%s1 + $0x2448] sm:$0xff]
    %v1187 = vld [vmem:[%s1 + $0x2450] sm:$0xff]
    %v1188 = vld [vmem:[%s1 + $0x2458] sm:$0xff]
    %v1189 = vld [vmem:[%s1 + $0x2460] sm:$0xff]
    %v1190 = vld [vmem:[%s1 + $0x2468] sm:$0xff]
    %v1191 = vld [vmem:[%s1 + $0x2470] sm:$0xff]
    %v1192 = vld [vmem:[%s1 + $0x2478] sm:$0xff]
    %v1193 = vld [vmem:[%s1 + $0x2480] sm:$0xff]
    %v1194 = vld [vmem:[%s1 + $0x2488] sm:$0xff]
    %v1195 = vld [vmem:[%s1 + $0x2490] sm:$0xff]
    %v1196 = vld [vmem:[%s1 + $0x2498] sm:$0xff]
    %v1197 = vld [vmem:[%s1 + $0x24a0] sm:$0xff]
    %v1198 = vld [vmem:[%s1 + $0x24a8] sm:$0xff]
    %v1199 = vld [vmem:[%s1 + $0x24b0] sm:$0xff]
    %v1200 = vld [vmem:[%s1 + $0x24b8] sm:$0xff]
    %v1201 = vld [vmem:[%s1 + $0x24c0] sm:$0xff]
    %v1202 = vld [vmem:[%s1 + $0x24c8] sm:$0xff]
    %v1203 = vld [vmem:[%s1 + $0x24d0] sm:$0xff]
    %v1204 = vld [vmem:[%s1 + $0x24d8] sm:$0xff]
    %v1205 = vld [vmem:[%s1 + $0x24e0] sm:$0xff]
    %v1206 = vld [vmem:[%s1 + $0x24e8] sm:$0xff]
    %v1207 = vld [vmem:[%s1 + $0x24f0] sm:$0xff]
    %v1208 = vld [vmem:[%s1 + $0x24f8] sm:$0xff]
    %v1209 = vld [vmem:[%s1 + $0x2500] sm:$0xff]
    %v1210 = vld [vmem:[%s1 + $0x2508] sm:$0xff]
    %v1211 = vld [vmem:[%s1 + $0x2510] sm:$0xff]
    %v1212 = vld [vmem:[%s1 + $0x2518] sm:$0xff]
    %v1213 = vld [vmem:[%s1 + $0x2520] sm:$0xff]
    %v1214 = vld [vmem:[%s1 + $0x2528] sm:$0xff]
    %v1215 = vld [vmem:[%s1 + $0x2530] sm:$0xff]
    %v1216 = vld [vmem:[%s1 + $0x2538] sm:$0xff]
    %v1217 = vld [vmem:[%s1 + $0x2540] sm:$0xff]
    %v1218 = vld [vmem:[%s1 + $0x2548] sm:$0xff]
    %v1219 = vld [vmem:[%s1 + $0x2550] sm:$0xff]
    %v1220 = vld [vmem:[%s1 + $0x2558] sm:$0xff]
    %v1221 = vld [vmem:[%s1 + $0x2560] sm:$0xff]
    %v1222 = vld [vmem:[%s1 + $0x2568] sm:$0xff]
    %v1223 = vld [vmem:[%s1 + $0x2570] sm:$0xff]
    %v1224 = vld [vmem:[%s1 + $0x2578] sm:$0xff]
    %v1225 = vld [vmem:[%s1 + $0x2580] sm:$0xff]
    %v1226 = vld [vmem:[%s1 + $0x2588] sm:$0xff]
    %v1227 = vld [vmem:[%s1 + $0x2590] sm:$0xff]
    %v1228 = vld [vmem:[%s1 + $0x2598] sm:$0xff]
    %v1229 = vld [vmem:[%s1 + $0x25a0] sm:$0xff]
    %v1230 = vld [vmem:[%s1 + $0x25a8] sm:$0xff]
    %v1231 = vld [vmem:[%s1 + $0x25b0] sm:$0xff]
    %v1232 = vld [vmem:[%s1 + $0x25b8] sm:$0xff]
    %v1233 = vld [vmem:[%s1 + $0x25c0] sm:$0xff]
    %v1234 = vld [vmem:[%s1 + $0x25c8] sm:$0xff]
    %v1235 = vld [vmem:[%s1 + $0x25d0] sm:$0xff]
    %v1236 = vld [vmem:[%s1 + $0x25d8] sm:$0xff]
    %v1237 = vld [vmem:[%s1 + $0x25e0] sm:$0xff]
    %v1238 = vld [vmem:[%s1 + $0x25e8] sm:$0xff]
    %v1239 = vld [vmem:[%s1 + $0x25f0] sm:$0xff]
    %v1240 = vld [vmem:[%s1 + $0x25f8] sm:$0xff]
    %v1241 = vld [vmem:[%s1 + $0x2600] sm:$0xff]
    %v1242 = vld [vmem:[%s1 + $0x2608] sm:$0xff]
    %v1243 = vld [vmem:[%s1 + $0x2610] sm:$0xff]
    %v1244 = vld [vmem:[%s1 + $0x2618] sm:$0xff]
    %v1245 = vld [vmem:[%s1 + $0x2620] sm:$0xff]
    %v1246 = vld [vmem:[%s1 + $0x2628] sm:$0xff]
    %v1247 = vld [vmem:[%s1 + $0x2630] sm:$0xff]
    %v1248 = vld [vmem:[%s1 + $0x2638] sm:$0xff]
    %v1249 = vld [vmem:[%s1 + $0x2640] sm:$0xff]
    %v1250 = vld [vmem:[%s1 + $0x2648] sm:$0xff]
    %v1251 = vld [vmem:[%s1 + $0x2650] sm:$0xff]
    %v1252 = vld [vmem:[%s1 + $0x2658] sm:$0xff]
    %v1253 = vld [vmem:[%s1 + $0x2660] sm:$0xff]
    %v1254 = vld [vmem:[%s1 + $0x2668] sm:$0xff]
    %v1255 = vld [vmem:[%s1 + $0x2670] sm:$0xff]
    %v1256 = vld [vmem:[%s1 + $0x2678] sm:$0xff]
    %v1257 = vld [vmem:[%s1 + $0x2680] sm:$0xff]
    %v1258 = vld [vmem:[%s1 + $0x2688] sm:$0xff]
    %v1259 = vld [vmem:[%s1 + $0x2690] sm:$0xff]
    %v1260 = vld [vmem:[%s1 + $0x2698] sm:$0xff]
    %v1261 = vld [vmem:[%s1 + $0x26a0] sm:$0xff]
    %v1262 = vld [vmem:[%s1 + $0x26a8] sm:$0xff]
    %v1263 = vld [vmem:[%s1 + $0x26b0] sm:$0xff]
    %v1264 = vld [vmem:[%s1 + $0x26b8] sm:$0xff]
    %v1265 = vld [vmem:[%s1 + $0x26c0] sm:$0xff]
    %v1266 = vld [vmem:[%s1 + $0x26c8] sm:$0xff]
    %v1267 = vld [vmem:[%s1 + $0x26d0] sm:$0xff]
    %v1268 = vld [vmem:[%s1 + $0x26d8] sm:$0xff]
    %v1269 = vld [vmem:[%s1 + $0x26e0] sm:$0xff]
    %v1270 = vld [vmem:[%s1 + $0x26e8] sm:$0xff]
    %v1271 = vld [vmem:[%s1 + $0x26f0] sm:$0xff]
    %v1272 = vld [vmem:[%s1 + $0x26f8] sm:$0xff]
    %v1273 = vld [vmem:[%s1 + $0x2700] sm:$0xff]
    %v1274 = vld [vmem:[%s1 + $0x2708] sm:$0xff]
    %v1275 = vld [vmem:[%s1 + $0x2710] sm:$0xff]
    %v1276 = vld [vmem:[%s1 + $0x2718] sm:$0xff]
    %v1277 = vld [vmem:[%s1 + $0x2720] sm:$0xff]
    %v1278 = vld [vmem:[%s1 + $0x2728] sm:$0xff]
    %v1279 = vld [vmem:[%s1 + $0x2730] sm:$0xff]
    %v1280 = vld [vmem:[%s1 + $0x2738] sm:$0xff]
    %v1281 = vld [vmem:[%s1 + $0x2740] sm:$0xff]
    %v1282 = vld [vmem:[%s1 + $0x2748] sm:$0xff]
    %v1283 = vld [vmem:[%s1 + $0x2750] sm:$0xff]
    %v1284 = vld [vmem:[%s1 + $0x2758] sm:$0xff]
    %v1285 = vld [vmem:[%s1 + $0x2760] sm:$0xff]
    %v1286 = vld [vmem:[%s1 + $0x2768] sm:$0xff]
    %v1287 = vld [vmem:[%s1 + $0x2770] sm:$0xff]
    %v1288 = vld [vmem:[%s1 + $0x2778] sm:$0xff]
    %v1289 = vld [vmem:[%s1 + $0x2780] sm:$0xff]
    %v1290 = vld [vmem:[%s1 + $0x2788] sm:$0xff]
    %v1291 = vld [vmem:[%s1 + $0x2790] sm:$0xff]
    %v1292 = vld [vmem:[%s1 + $0x2798] sm:$0xff]
    %v1293 = vld [vmem:[%s1 + $0x27a0] sm:$0xff]
    %v1294 = vld [vmem:[%s1 + $0x27a8] sm:$0xff]
    %v1295 = vld [vmem:[%s1 + $0x27b0] sm:$0xff]
    %v1296 = vld [vmem:[%s1 + $0x27b8] sm:$0xff]
    %v1297 = vld [vmem:[%s1 + $0x27c0] sm:$0xff]
    %v1298 = vld [vmem:[%s1 + $0x27c8] sm:$0xff]
    %v1299 = vld [vmem:[%s1 + $0x27d0] sm:$0xff]
    %v1300 = vld [vmem:[%s1 + $0x27d8] sm:$0xff]
    %v1301 = vld [vmem:[%s1 + $0x27e0] sm:$0xff]
    %v1302 = vld [vmem:[%s1 + $0x27e8] sm:$0xff]
    %v1303 = vld [vmem:[%s1 + $0x27f0] sm:$0xff]
    %v1304 = vld [vmem:[%s1 + $0x27f8] sm:$0xff]
    %v1305 = vld [vmem:[%s1 + $0x2800] sm:$0xff]
    %v1306 = vld [vmem:[%s1 + $0x2808] sm:$0xff]
    %v1307 = vld [vmem:[%s1 + $0x2810] sm:$0xff]
    %v1308 = vld [vmem:[%s1 + $0x2818] sm:$0xff]
    %v1309 = vld [vmem:[%s1 + $0x2820] sm:$0xff]
    %v1310 = vld [vmem:[%s1 + $0x2828] sm:$0xff]
    %v1311 = vld [vmem:[%s1 + $0x2830] sm:$0xff]
    %v1312 = vld [vmem:[%s1 + $0x2838] sm:$0xff]
    %v1313 = vld [vmem:[%s1 + $0x2840] sm:$0xff]
    %v1314 = vld [vmem:[%s1 + $0x2848] sm:$0xff]
    %v1315 = vld [vmem:[%s1 + $0x2850] sm:$0xff]
    %v1316 = vld [vmem:[%s1 + $0x2858] sm:$0xff]
    %v1317 = vld [vmem:[%s1 + $0x2860] sm:$0xff]
    %v1318 = vld [vmem:[%s1 + $0x2868] sm:$0xff]
    %v1319 = vld [vmem:[%s1 + $0x2870] sm:$0xff]
    %v1320 = vld [vmem:[%s1 + $0x2878] sm:$0xff]
    %v1321 = vld [vmem:[%s2] sm:$0xff]
    %v1323 = vlaneseq
    %v1324 = vshrl.u32 %v1323, 7
    %v1325 = vsub.s32 0, %v1324
    %v1326 = vrot.slane %v1321, %v1325
    %v1327 = vlaneseq
    %v1328 = vshrl.u32 %v1327, 7
    %v1329 = vsub.s32 1, %v1328
    %v1330 = vrot.slane %v1321, %v1329
    %v1331 = vlaneseq
    %v1332 = vshrl.u32 %v1331, 7
    %v1333 = vsub.s32 2, %v1332
    %v1334 = vrot.slane %v1321, %v1333
    %v1335 = vlaneseq
    %v1336 = vshrl.u32 %v1335, 7
    %v1337 = vsub.s32 3, %v1336
    %v1338 = vrot.slane %v1321, %v1337
    %v1339 = vlaneseq
    %v1340 = vshrl.u32 %v1339, 7
    %v1341 = vsub.s32 4, %v1340
    %v1342 = vrot.slane %v1321, %v1341
    %v1343 = vlaneseq
    %v1344 = vshrl.u32 %v1343, 7
    %v1345 = vsub.s32 5, %v1344
    %v1346 = vrot.slane %v1321, %v1345
    %v1347 = vlaneseq
    %v1348 = vshrl.u32 %v1347, 7
    %v1349 = vsub.s32 6, %v1348
    %v1350 = vrot.slane %v1321, %v1349
    %v1351 = vlaneseq
    %v1352 = vshrl.u32 %v1351, 7
    %v1353 = vsub.s32 7, %v1352
    %v1354 = vrot.slane %v1321, %v1353
    %v1366 = vcombine.high %v22, %v22
    %v1368 = vunpack.c.l.s4 1966171168
    %v1369 = vunpack.c.0.s8 %v1368
    %v1370 = vlaneseq
    %v1371 = vshrl.u32 %v1370, 7
    %v1372 = vsub.s32 %v1369, %v1371
    %v1373 = vrot.slane %v22, %v1372
    %v1375 = vunpack.c.l.s4 1966171168
    %v1376 = vunpack.c.0.s8 %v1375
    %v1377 = vlaneseq
    %v1378 = vshrl.u32 %v1377, 7
    %v1379 = vsub.s32 %v1376, %v1378
    %v1380 = vrot.slane %v1366, %v1379
    %v1381 = vcombine.high %v1373, %v1373
    %v1382 = vcombine.high %v1380, %v1380
    %v1384 = vunpack.c.l.s4 1966171168
    %v1385 = vunpack.c.0.s8 %v1384
    %v1386 = vlaneseq
    %v1387 = vshrl.u32 %v1386, 7
    %v1388 = vsub.s32 %v1385, %v1387
    %v1389 = vrot.slane %v1373, %v1388
    %v1391 = vunpack.c.l.s4 1966171168
    %v1392 = vunpack.c.0.s8 %v1391
    %v1393 = vlaneseq
    %v1394 = vshrl.u32 %v1393, 7
    %v1395 = vsub.s32 %v1392, %v1394
    %v1396 = vrot.slane %v1380, %v1395
    %v1398 = vunpack.c.l.s4 1966171168
    %v1399 = vunpack.c.0.s8 %v1398
    %v1400 = vlaneseq
    %v1401 = vshrl.u32 %v1400, 7
    %v1402 = vsub.s32 %v1399, %v1401
    %v1403 = vrot.slane %v1381, %v1402
    %v1405 = vunpack.c.l.s4 1966171168
    %v1406 = vunpack.c.0.s8 %v1405
    %v1407 = vlaneseq
    %v1408 = vshrl.u32 %v1407, 7
    %v1409 = vsub.s32 %v1406, %v1408
    %v1410 = vrot.slane %v1382, %v1409
    %v1411 = vcombine.high %v1389, %v1389
    %v1412 = vcombine.high %v1396, %v1396
    %v1413 = vcombine.high %v1403, %v1403
    %v1414 = vcombine.high %v1410, %v1410
    %v1415 = vcombine.high %v23, %v23
    %v1417 = vunpack.c.l.s4 1966171168
    %v1418 = vunpack.c.0.s8 %v1417
    %v1419 = vlaneseq
    %v1420 = vshrl.u32 %v1419, 7
    %v1421 = vsub.s32 %v1418, %v1420
    %v1422 = vrot.slane %v23, %v1421
    %v1424 = vunpack.c.l.s4 1966171168
    %v1425 = vunpack.c.0.s8 %v1424
    %v1426 = vlaneseq
    %v1427 = vshrl.u32 %v1426, 7
    %v1428 = vsub.s32 %v1425, %v1427
    %v1429 = vrot.slane %v1415, %v1428
    %v1430 = vcombine.high %v1422, %v1422
    %v1431 = vcombine.high %v1429, %v1429
    %v1433 = vunpack.c.l.s4 1966171168
    %v1434 = vunpack.c.0.s8 %v1433
    %v1435 = vlaneseq
    %v1436 = vshrl.u32 %v1435, 7
    %v1437 = vsub.s32 %v1434, %v1436
    %v1438 = vrot.slane %v1422, %v1437
    %v1440 = vunpack.c.l.s4 1966171168
    %v1441 = vunpack.c.0.s8 %v1440
    %v1442 = vlaneseq
    %v1443 = vshrl.u32 %v1442, 7
    %v1444 = vsub.s32 %v1441, %v1443
    %v1445 = vrot.slane %v1429, %v1444
    %v1447 = vunpack.c.l.s4 1966171168
    %v1448 = vunpack.c.0.s8 %v1447
    %v1449 = vlaneseq
    %v1450 = vshrl.u32 %v1449, 7
    %v1451 = vsub.s32 %v1448, %v1450
    %v1452 = vrot.slane %v1430, %v1451
    %v1454 = vunpack.c.l.s4 1966171168
    %v1455 = vunpack.c.0.s8 %v1454
    %v1456 = vlaneseq
    %v1457 = vshrl.u32 %v1456, 7
    %v1458 = vsub.s32 %v1455, %v1457
    %v1459 = vrot.slane %v1431, %v1458
    %v1460 = vcombine.high %v1438, %v1438
    %v1461 = vcombine.high %v1445, %v1445
    %v1462 = vcombine.high %v1452, %v1452
    %v1463 = vcombine.high %v1459, %v1459
    %v1464 = vcombine.high %v24, %v24
    %v1466 = vunpack.c.l.s4 1966171168
    %v1467 = vunpack.c.0.s8 %v1466
    %v1468 = vlaneseq
    %v1469 = vshrl.u32 %v1468, 7
    %v1470 = vsub.s32 %v1467, %v1469
    %v1471 = vrot.slane %v24, %v1470
    %v1473 = vunpack.c.l.s4 1966171168
    %v1474 = vunpack.c.0.s8 %v1473
    %v1475 = vlaneseq
    %v1476 = vshrl.u32 %v1475, 7
    %v1477 = vsub.s32 %v1474, %v1476
    %v1478 = vrot.slane %v1464, %v1477
    %v1479 = vcombine.high %v1471, %v1471
    %v1481 = vunpack.c.l.s4 1966171168
    %v1482 = vunpack.c.0.s8 %v1481
    %v1483 = vlaneseq
    %v1484 = vshrl.u32 %v1483, 7
    %v1485 = vsub.s32 %v1482, %v1484
    %v1486 = vrot.slane %v1471, %v1485
    %v1488 = vunpack.c.l.s4 1966171168
    %v1489 = vunpack.c.0.s8 %v1488
    %v1490 = vlaneseq
    %v1491 = vshrl.u32 %v1490, 7
    %v1492 = vsub.s32 %v1489, %v1491
    %v1493 = vrot.slane %v1478, %v1492
    %v1495 = vunpack.c.l.s4 1966171168
    %v1496 = vunpack.c.0.s8 %v1495
    %v1497 = vlaneseq
    %v1498 = vshrl.u32 %v1497, 7
    %v1499 = vsub.s32 %v1496, %v1498
    %v1500 = vrot.slane %v1479, %v1499
    %v1501 = vcombine.high %v1486, %v1486
    %v1502 = vcombine.high %v1500, %v1500
    %v2819 = vunpack.c.l.b16 %v25
    %v2820 = vunpack.c.h.b16 %v25
    %v2821 = vunpack.c.l.b16 %v26
    %v2822 = vunpack.c.h.b16 %v26
    %v2823 = vunpack.c.l.b16 %v27
    %v2824 = vunpack.c.h.b16 %v27
    %v2825 = vunpack.c.l.b16 %v28
    %v2826 = vunpack.c.h.b16 %v28
    %v2827 = vunpack.c.l.b16 %v29
    %v2828 = vunpack.c.h.b16 %v29
    %v2829 = vunpack.c.l.b16 %v30
    %v2830 = vunpack.c.h.b16 %v30
    %v2831 = vunpack.c.l.b16 %v31
    %v2832 = vunpack.c.h.b16 %v31
    %v2833 = vunpack.c.l.b16 %v32
    %v2834 = vunpack.c.h.b16 %v32
    %v2835 = vunpack.c.l.b16 %v33
    %v2836 = vunpack.c.h.b16 %v33
    %v2837 = vunpack.c.l.b16 %v34
    %v2838 = vunpack.c.h.b16 %v34
    %v2839 = vunpack.c.l.b16 %v35
    %v2840 = vunpack.c.h.b16 %v35
    %v2841 = vunpack.c.l.b16 %v36
    %v2842 = vunpack.c.h.b16 %v36
    %v2843 = vunpack.c.l.b16 %v37
    %v2844 = vunpack.c.h.b16 %v37
    %v2845 = vunpack.c.l.b16 %v38
    %v2846 = vunpack.c.h.b16 %v38
    %v2847 = vunpack.c.l.b16 %v39
    %v2848 = vunpack.c.h.b16 %v39
    %v2849 = vunpack.c.l.b16 %v40
    %v2850 = vunpack.c.h.b16 %v40
    %v2851 = vunpack.c.l.b16 %v41
    %v2852 = vunpack.c.h.b16 %v41
    %v2853 = vunpack.c.l.b16 %v42
    %v2854 = vunpack.c.h.b16 %v42
    %v2855 = vunpack.c.l.b16 %v43
    %v2856 = vunpack.c.h.b16 %v43
    %v2857 = vunpack.c.l.b16 %v44
    %v2858 = vunpack.c.h.b16 %v44
    %v2859 = vunpack.c.l.b16 %v45
    %v2860 = vunpack.c.h.b16 %v45
    %v2861 = vunpack.c.l.b16 %v46
    %v2862 = vunpack.c.h.b16 %v46
    %v2863 = vunpack.c.l.b16 %v47
    %v2864 = vunpack.c.h.b16 %v47
    %v2865 = vunpack.c.l.b16 %v48
    %v2866 = vunpack.c.h.b16 %v48
    %v2867 = vunpack.c.l.b16 %v49
    %v2868 = vunpack.c.h.b16 %v49
    %v2869 = vunpack.c.l.b16 %v50
    %v2870 = vunpack.c.h.b16 %v50
    %v2871 = vunpack.c.l.b16 %v51
    %v2872 = vunpack.c.h.b16 %v51
    %v2873 = vunpack.c.l.b16 %v52
    %v2874 = vunpack.c.h.b16 %v52
    %v2875 = vunpack.c.l.b16 %v53
    %v2876 = vunpack.c.h.b16 %v53
    %v2877 = vunpack.c.l.b16 %v54
    %v2878 = vunpack.c.h.b16 %v54
    %v2879 = vunpack.c.l.b16 %v55
    %v2880 = vunpack.c.h.b16 %v55
    %v2881 = vunpack.c.l.b16 %v56
    %v2882 = vunpack.c.h.b16 %v56
    %v2883 = vunpack.c.l.b16 %v57
    %v2884 = vunpack.c.h.b16 %v57
    %v2885 = vunpack.c.l.b16 %v58
    %v2886 = vunpack.c.h.b16 %v58
    %v2887 = vunpack.c.l.b16 %v59
    %v2888 = vunpack.c.h.b16 %v59
    %v2889 = vunpack.c.l.b16 %v60
    %v2890 = vunpack.c.h.b16 %v60
    %v2891 = vunpack.c.l.b16 %v61
    %v2892 = vunpack.c.h.b16 %v61
    %v2893 = vunpack.c.l.b16 %v62
    %v2894 = vunpack.c.h.b16 %v62
    %v2895 = vunpack.c.l.b16 %v63
    %v2896 = vunpack.c.h.b16 %v63
    %v2897 = vunpack.c.l.b16 %v64
    %v2898 = vunpack.c.h.b16 %v64
    %v2899 = vunpack.c.l.b16 %v65
    %v2900 = vunpack.c.h.b16 %v65
    %v2901 = vunpack.c.l.b16 %v66
    %v2902 = vunpack.c.h.b16 %v66
    %v2903 = vunpack.c.l.b16 %v67
    %v2904 = vunpack.c.h.b16 %v67
    %v2905 = vunpack.c.l.b16 %v68
    %v2906 = vunpack.c.h.b16 %v68
    %v2907 = vunpack.c.l.b16 %v69
    %v2908 = vunpack.c.h.b16 %v69
    %v2909 = vunpack.c.l.b16 %v70
    %v2910 = vunpack.c.h.b16 %v70
    %v2911 = vunpack.c.l.b16 %v71
    %v2912 = vunpack.c.h.b16 %v71
    %v2913 = vunpack.c.l.b16 %v72
    %v2914 = vunpack.c.h.b16 %v72
    %v2915 = vunpack.c.l.b16 %v73
    %v2916 = vunpack.c.h.b16 %v73
    %v2917 = vunpack.c.l.b16 %v74
    %v2918 = vunpack.c.h.b16 %v74
    %v2919 = vunpack.c.l.b16 %v75
    %v2920 = vunpack.c.h.b16 %v75
    %v2921 = vunpack.c.l.b16 %v76
    %v2922 = vunpack.c.h.b16 %v76
    %v2923 = vunpack.c.l.b16 %v77
    %v2924 = vunpack.c.h.b16 %v77
    %v2925 = vunpack.c.l.b16 %v78
    %v2926 = vunpack.c.h.b16 %v78
    %v2927 = vunpack.c.l.b16 %v79
    %v2928 = vunpack.c.h.b16 %v79
    %v2929 = vunpack.c.l.b16 %v80
    %v2930 = vunpack.c.h.b16 %v80
    %v2931 = vunpack.c.l.b16 %v81
    %v2932 = vunpack.c.h.b16 %v81
    %v2933 = vunpack.c.l.b16 %v82
    %v2934 = vunpack.c.h.b16 %v82
    %v2935 = vunpack.c.l.b16 %v83
    %v2936 = vunpack.c.h.b16 %v83
    %v2937 = vunpack.c.l.b16 %v84
    %v2938 = vunpack.c.h.b16 %v84
    %v2939 = vunpack.c.l.b16 %v85
    %v2940 = vunpack.c.h.b16 %v85
    %v2941 = vunpack.c.l.b16 %v86
    %v2942 = vunpack.c.h.b16 %v86
    %v2943 = vunpack.c.l.b16 %v87
    %v2944 = vunpack.c.h.b16 %v87
    %v2945 = vunpack.c.l.b16 %v88
    %v2946 = vunpack.c.h.b16 %v88
    %v2947 = vunpack.c.l.b16 %v89
    %v2948 = vunpack.c.h.b16 %v89
    %v2949 = vunpack.c.l.b16 %v90
    %v2950 = vunpack.c.h.b16 %v90
    %v2951 = vunpack.c.l.b16 %v91
    %v2952 = vunpack.c.h.b16 %v91
    %v2953 = vunpack.c.l.b16 %v92
    %v2954 = vunpack.c.h.b16 %v92
    %v2955 = vunpack.c.l.b16 %v93
    %v2956 = vunpack.c.h.b16 %v93
    %v2957 = vunpack.c.l.b16 %v94
    %v2958 = vunpack.c.h.b16 %v94
    %v2959 = vunpack.c.l.b16 %v95
    %v2960 = vunpack.c.h.b16 %v95
    %v2961 = vunpack.c.l.b16 %v96
    %v2962 = vunpack.c.h.b16 %v96
    %v2963 = vunpack.c.l.b16 %v97
    %v2964 = vunpack.c.h.b16 %v97
    %v2965 = vunpack.c.l.b16 %v98
    %v2966 = vunpack.c.h.b16 %v98
    %v2967 = vunpack.c.l.b16 %v99
    %v2968 = vunpack.c.h.b16 %v99
    %v2969 = vunpack.c.l.b16 %v100
    %v2970 = vunpack.c.h.b16 %v100
    %v2971 = vunpack.c.l.b16 %v101
    %v2972 = vunpack.c.h.b16 %v101
    %v2973 = vunpack.c.l.b16 %v102
    %v2974 = vunpack.c.h.b16 %v102
    %v2975 = vunpack.c.l.b16 %v103
    %v2976 = vunpack.c.h.b16 %v103
    %v2977 = vunpack.c.l.b16 %v104
    %v2978 = vunpack.c.h.b16 %v104
    %v2979 = vunpack.c.l.b16 %v105
    %v2980 = vunpack.c.h.b16 %v105
    %v2981 = vunpack.c.l.b16 %v106
    %v2982 = vunpack.c.h.b16 %v106
    %v2983 = vunpack.c.l.b16 %v107
    %v2984 = vunpack.c.h.b16 %v107
    %v2985 = vunpack.c.l.b16 %v108
    %v2986 = vunpack.c.h.b16 %v108
    %v2987 = vunpack.c.l.b16 %v109
    %v2988 = vunpack.c.h.b16 %v109
    %v2989 = vunpack.c.l.b16 %v110
    %v2990 = vunpack.c.h.b16 %v110
    %v2991 = vunpack.c.l.b16 %v111
    %v2992 = vunpack.c.h.b16 %v111
    %v2993 = vunpack.c.l.b16 %v112
    %v2994 = vunpack.c.h.b16 %v112
    %v2995 = vunpack.c.l.b16 %v113
    %v2996 = vunpack.c.h.b16 %v113
    %v2997 = vunpack.c.l.b16 %v114
    %v2998 = vunpack.c.h.b16 %v114
    %v2999 = vunpack.c.l.b16 %v115
    %v3000 = vunpack.c.h.b16 %v115
    %v3001 = vunpack.c.l.b16 %v116
    %v3002 = vunpack.c.h.b16 %v116
    %v3003 = vunpack.c.l.b16 %v117
    %v3004 = vunpack.c.h.b16 %v117
    %v3005 = vunpack.c.l.b16 %v118
    %v3006 = vunpack.c.h.b16 %v118
    %v3007 = vunpack.c.l.b16 %v119
    %v3008 = vunpack.c.h.b16 %v119
    %v3009 = vunpack.c.l.b16 %v120
    %v3010 = vunpack.c.h.b16 %v120
    %v3011 = vunpack.c.l.b16 %v121
    %v3012 = vunpack.c.h.b16 %v121
    %v3013 = vunpack.c.l.b16 %v122
    %v3014 = vunpack.c.h.b16 %v122
    %v3015 = vunpack.c.l.b16 %v123
    %v3016 = vunpack.c.h.b16 %v123
    %v3017 = vunpack.c.l.b16 %v124
    %v3018 = vunpack.c.h.b16 %v124
    %v3019 = vunpack.c.l.b16 %v125
    %v3020 = vunpack.c.h.b16 %v125
    %v3021 = vunpack.c.l.b16 %v126
    %v3022 = vunpack.c.h.b16 %v126
    %v3023 = vunpack.c.l.b16 %v127
    %v3024 = vunpack.c.h.b16 %v127
    %v3025 = vunpack.c.l.b16 %v128
    %v3026 = vunpack.c.h.b16 %v128
    %v3027 = vunpack.c.l.b16 %v129
    %v3028 = vunpack.c.h.b16 %v129
    %v3029 = vunpack.c.l.b16 %v130
    %v3030 = vunpack.c.h.b16 %v130
    %v3031 = vunpack.c.l.b16 %v131
    %v3032 = vunpack.c.h.b16 %v131
    %v3033 = vunpack.c.l.b16 %v132
    %v3034 = vunpack.c.h.b16 %v132
    %v3035 = vunpack.c.l.b16 %v133
    %v3036 = vunpack.c.h.b16 %v133
    %v3037 = vunpack.c.l.b16 %v134
    %v3038 = vunpack.c.h.b16 %v134
    %v3039 = vunpack.c.l.b16 %v135
    %v3040 = vunpack.c.h.b16 %v135
    %v3041 = vunpack.c.l.b16 %v136
    %v3042 = vunpack.c.h.b16 %v136
    %v3043 = vunpack.c.l.b16 %v137
    %v3044 = vunpack.c.h.b16 %v137
    %v3045 = vunpack.c.l.b16 %v138
    %v3046 = vunpack.c.h.b16 %v138
    %v3047 = vunpack.c.l.b16 %v139
    %v3048 = vunpack.c.h.b16 %v139
    %v3049 = vunpack.c.l.b16 %v140
    %v3050 = vunpack.c.h.b16 %v140
    %v3051 = vunpack.c.l.b16 %v141
    %v3052 = vunpack.c.h.b16 %v141
    %v3053 = vunpack.c.l.b16 %v142
    %v3054 = vunpack.c.h.b16 %v142
    %v3055 = vunpack.c.l.b16 %v143
    %v3056 = vunpack.c.h.b16 %v143
    %v3057 = vunpack.c.l.b16 %v144
    %v3058 = vunpack.c.h.b16 %v144
    %v3059 = vunpack.c.l.b16 %v145
    %v3060 = vunpack.c.h.b16 %v145
    %v3061 = vunpack.c.l.b16 %v146
    %v3062 = vunpack.c.h.b16 %v146
    %v3063 = vunpack.c.l.b16 %v147
    %v3064 = vunpack.c.h.b16 %v147
    %v3065 = vunpack.c.l.b16 %v148
    %v3066 = vunpack.c.h.b16 %v148
    %v3067 = vunpack.c.l.b16 %v149
    %v3068 = vunpack.c.h.b16 %v149
    %v3069 = vunpack.c.l.b16 %v150
    %v3070 = vunpack.c.h.b16 %v150
    %v3071 = vunpack.c.l.b16 %v151
    %v3072 = vunpack.c.h.b16 %v151
    %v3073 = vunpack.c.l.b16 %v152
    %v3074 = vunpack.c.h.b16 %v152
    %v3075 = vunpack.c.l.b16 %v153
    %v3076 = vunpack.c.h.b16 %v153
    %v3077 = vunpack.c.l.b16 %v154
    %v3078 = vunpack.c.h.b16 %v154
    %v3079 = vunpack.c.l.b16 %v155
    %v3080 = vunpack.c.h.b16 %v155
    %v3081 = vunpack.c.l.b16 %v156
    %v3082 = vunpack.c.h.b16 %v156
    %v3083 = vunpack.c.l.b16 %v157
    %v3084 = vunpack.c.h.b16 %v157
    %v3085 = vunpack.c.l.b16 %v158
    %v3086 = vunpack.c.h.b16 %v158
    %v3087 = vunpack.c.l.b16 %v159
    %v3088 = vunpack.c.h.b16 %v159
    %v3089 = vunpack.c.l.b16 %v160
    %v3090 = vunpack.c.h.b16 %v160
    %v3091 = vunpack.c.l.b16 %v161
    %v3092 = vunpack.c.h.b16 %v161
    %v3093 = vunpack.c.l.b16 %v162
    %v3094 = vunpack.c.h.b16 %v162
    %v3095 = vunpack.c.l.b16 %v163
    %v3096 = vunpack.c.h.b16 %v163
    %v3097 = vunpack.c.l.b16 %v164
    %v3098 = vunpack.c.h.b16 %v164
    %v3099 = vunpack.c.l.b16 %v165
    %v3100 = vunpack.c.h.b16 %v165
    %v3101 = vunpack.c.l.b16 %v166
    %v3102 = vunpack.c.h.b16 %v166
    %v3103 = vunpack.c.l.b16 %v167
    %v3104 = vunpack.c.h.b16 %v167
    %v3105 = vunpack.c.l.b16 %v168
    %v3106 = vunpack.c.h.b16 %v168
    %v3107 = vunpack.c.l.b16 %v169
    %v3108 = vunpack.c.h.b16 %v169
    %v3109 = vunpack.c.l.b16 %v170
    %v3110 = vunpack.c.h.b16 %v170
    %v3111 = vunpack.c.l.b16 %v171
    %v3112 = vunpack.c.h.b16 %v171
    %v3113 = vunpack.c.l.b16 %v172
    %v3114 = vunpack.c.h.b16 %v172
    %v3115 = vunpack.c.l.b16 %v173
    %v3116 = vunpack.c.h.b16 %v173
    %v3117 = vunpack.c.l.b16 %v174
    %v3118 = vunpack.c.h.b16 %v174
    %v3119 = vunpack.c.l.b16 %v175
    %v3120 = vunpack.c.h.b16 %v175
    %v3121 = vunpack.c.l.b16 %v176
    %v3122 = vunpack.c.h.b16 %v176
    %v3123 = vunpack.c.l.b16 %v177
    %v3124 = vunpack.c.h.b16 %v177
    %v3125 = vunpack.c.l.b16 %v178
    %v3126 = vunpack.c.h.b16 %v178
    %v3127 = vunpack.c.l.b16 %v179
    %v3128 = vunpack.c.h.b16 %v179
    %v3129 = vunpack.c.l.b16 %v180
    %v3130 = vunpack.c.h.b16 %v180
    %v3131 = vunpack.c.l.b16 %v181
    %v3132 = vunpack.c.h.b16 %v181
    %v3133 = vunpack.c.l.b16 %v182
    %v3134 = vunpack.c.h.b16 %v182
    %v3135 = vunpack.c.l.b16 %v183
    %v3136 = vunpack.c.h.b16 %v183
    %v3137 = vunpack.c.l.b16 %v184
    %v3138 = vunpack.c.h.b16 %v184
    %v3139 = vunpack.c.l.b16 %v185
    %v3140 = vunpack.c.h.b16 %v185
    %v3141 = vunpack.c.l.b16 %v186
    %v3142 = vunpack.c.h.b16 %v186
    %v3143 = vunpack.c.l.b16 %v187
    %v3144 = vunpack.c.h.b16 %v187
    %v3145 = vunpack.c.l.b16 %v188
    %v3146 = vunpack.c.h.b16 %v188
    %v3147 = vunpack.c.l.b16 %v189
    %v3148 = vunpack.c.h.b16 %v189
    %v3149 = vunpack.c.l.b16 %v190
    %v3150 = vunpack.c.h.b16 %v190
    %v3151 = vunpack.c.l.b16 %v191
    %v3152 = vunpack.c.h.b16 %v191
    %v3153 = vunpack.c.l.b16 %v192
    %v3154 = vunpack.c.h.b16 %v192
    %v3155 = vunpack.c.l.b16 %v193
    %v3156 = vunpack.c.h.b16 %v193
    %v3157 = vunpack.c.l.b16 %v194
    %v3158 = vunpack.c.h.b16 %v194
    %v3159 = vunpack.c.l.b16 %v195
    %v3160 = vunpack.c.h.b16 %v195
    %v3161 = vunpack.c.l.b16 %v196
    %v3162 = vunpack.c.h.b16 %v196
    %v3163 = vunpack.c.l.b16 %v197
    %v3164 = vunpack.c.h.b16 %v197
    %v3165 = vunpack.c.l.b16 %v198
    %v3166 = vunpack.c.h.b16 %v198
    %v3167 = vunpack.c.l.b16 %v199
    %v3168 = vunpack.c.h.b16 %v199
    %v3169 = vunpack.c.l.b16 %v200
    %v3170 = vunpack.c.h.b16 %v200
    %v3171 = vunpack.c.l.b16 %v201
    %v3172 = vunpack.c.h.b16 %v201
    %v3173 = vunpack.c.l.b16 %v202
    %v3174 = vunpack.c.h.b16 %v202
    %v3175 = vunpack.c.l.b16 %v203
    %v3176 = vunpack.c.h.b16 %v203
    %v3177 = vunpack.c.l.b16 %v204
    %v3178 = vunpack.c.h.b16 %v204
    %v3179 = vunpack.c.l.b16 %v205
    %v3180 = vunpack.c.h.b16 %v205
    %v3181 = vunpack.c.l.b16 %v206
    %v3182 = vunpack.c.h.b16 %v206
    %v3183 = vunpack.c.l.b16 %v207
    %v3184 = vunpack.c.h.b16 %v207
    %v3185 = vunpack.c.l.b16 %v208
    %v3186 = vunpack.c.h.b16 %v208
    %v3187 = vunpack.c.l.b16 %v209
    %v3188 = vunpack.c.h.b16 %v209
    %v3189 = vunpack.c.l.b16 %v210
    %v3190 = vunpack.c.h.b16 %v210
    %v3191 = vunpack.c.l.b16 %v211
    %v3192 = vunpack.c.h.b16 %v211
    %v3193 = vunpack.c.l.b16 %v212
    %v3194 = vunpack.c.h.b16 %v212
    %v3195 = vunpack.c.l.b16 %v213
    %v3196 = vunpack.c.h.b16 %v213
    %v3197 = vunpack.c.l.b16 %v214
    %v3198 = vunpack.c.h.b16 %v214
    %v3199 = vunpack.c.l.b16 %v215
    %v3200 = vunpack.c.h.b16 %v215
    %v3201 = vunpack.c.l.b16 %v216
    %v3202 = vunpack.c.h.b16 %v216
    %v3203 = vunpack.c.l.b16 %v217
    %v3204 = vunpack.c.h.b16 %v217
    %v3205 = vunpack.c.l.b16 %v218
    %v3206 = vunpack.c.h.b16 %v218
    %v3207 = vunpack.c.l.b16 %v219
    %v3208 = vunpack.c.h.b16 %v219
    %v3209 = vunpack.c.l.b16 %v220
    %v3210 = vunpack.c.h.b16 %v220
    %v3211 = vunpack.c.l.b16 %v221
    %v3212 = vunpack.c.h.b16 %v221
    %v3213 = vunpack.c.l.b16 %v222
    %v3214 = vunpack.c.h.b16 %v222
    %v3215 = vunpack.c.l.b16 %v223
    %v3216 = vunpack.c.h.b16 %v223
    %v3217 = vunpack.c.l.b16 %v224
    %v3218 = vunpack.c.h.b16 %v224
    %v3219 = vunpack.c.l.b16 %v225
    %v3220 = vunpack.c.h.b16 %v225
    %v3221 = vunpack.c.l.b16 %v226
    %v3222 = vunpack.c.h.b16 %v226
    %v3223 = vunpack.c.l.b16 %v227
    %v3224 = vunpack.c.h.b16 %v227
    %v3225 = vunpack.c.l.b16 %v228
    %v3226 = vunpack.c.h.b16 %v228
    %v3227 = vunpack.c.l.b16 %v229
    %v3228 = vunpack.c.h.b16 %v229
    %v3229 = vunpack.c.l.b16 %v230
    %v3230 = vunpack.c.h.b16 %v230
    %v3231 = vunpack.c.l.b16 %v231
    %v3232 = vunpack.c.h.b16 %v231
    %v3233 = vunpack.c.l.b16 %v232
    %v3234 = vunpack.c.h.b16 %v232
    %v3235 = vunpack.c.l.b16 %v233
    %v3236 = vunpack.c.h.b16 %v233
    %v3237 = vunpack.c.l.b16 %v234
    %v3238 = vunpack.c.h.b16 %v234
    %v3239 = vunpack.c.l.b16 %v235
    %v3240 = vunpack.c.h.b16 %v235
    %v3241 = vunpack.c.l.b16 %v236
    %v3242 = vunpack.c.h.b16 %v236
    %v3243 = vunpack.c.l.b16 %v237
    %v3244 = vunpack.c.h.b16 %v237
    %v3245 = vunpack.c.l.b16 %v238
    %v3246 = vunpack.c.h.b16 %v238
    %v3247 = vunpack.c.l.b16 %v239
    %v3248 = vunpack.c.h.b16 %v239
    %v3249 = vunpack.c.l.b16 %v240
    %v3250 = vunpack.c.h.b16 %v240
    %v3251 = vunpack.c.l.b16 %v241
    %v3252 = vunpack.c.h.b16 %v241
    %v3253 = vunpack.c.l.b16 %v242
    %v3254 = vunpack.c.h.b16 %v242
    %v3255 = vunpack.c.l.b16 %v243
    %v3256 = vunpack.c.h.b16 %v243
    %v3257 = vunpack.c.l.b16 %v244
    %v3258 = vunpack.c.h.b16 %v244
    %v3259 = vunpack.c.l.b16 %v245
    %v3260 = vunpack.c.h.b16 %v245
    %v3261 = vunpack.c.l.b16 %v246
    %v3262 = vunpack.c.h.b16 %v246
    %v3263 = vunpack.c.l.b16 %v247
    %v3264 = vunpack.c.h.b16 %v247
    %v3265 = vunpack.c.l.b16 %v248
    %v3266 = vunpack.c.h.b16 %v248
    %v3267 = vunpack.c.l.b16 %v249
    %v3268 = vunpack.c.h.b16 %v249
    %v3269 = vunpack.c.l.b16 %v250
    %v3270 = vunpack.c.h.b16 %v250
    %v3271 = vunpack.c.l.b16 %v251
    %v3272 = vunpack.c.h.b16 %v251
    %v3273 = vunpack.c.l.b16 %v252
    %v3274 = vunpack.c.h.b16 %v252
    %v3275 = vunpack.c.l.b16 %v253
    %v3276 = vunpack.c.h.b16 %v253
    %v3277 = vunpack.c.l.b16 %v254
    %v3278 = vunpack.c.h.b16 %v254
    %v3279 = vunpack.c.l.b16 %v255
    %v3280 = vunpack.c.h.b16 %v255
    %v3281 = vunpack.c.l.b16 %v256
    %v3282 = vunpack.c.h.b16 %v256
    %v3283 = vunpack.c.l.b16 %v257
    %v3284 = vunpack.c.h.b16 %v257
    %v3285 = vunpack.c.l.b16 %v258
    %v3286 = vunpack.c.h.b16 %v258
    %v3287 = vunpack.c.l.b16 %v259
    %v3288 = vunpack.c.h.b16 %v259
    %v3289 = vunpack.c.l.b16 %v260
    %v3290 = vunpack.c.h.b16 %v260
    %v3291 = vunpack.c.l.b16 %v261
    %v3292 = vunpack.c.h.b16 %v261
    %v3293 = vunpack.c.l.b16 %v262
    %v3294 = vunpack.c.h.b16 %v262
    %v3295 = vunpack.c.l.b16 %v263
    %v3296 = vunpack.c.h.b16 %v263
    %v3297 = vunpack.c.l.b16 %v264
    %v3298 = vunpack.c.h.b16 %v264
    %v3299 = vunpack.c.l.b16 %v265
    %v3300 = vunpack.c.h.b16 %v265
    %v3301 = vunpack.c.l.b16 %v266
    %v3302 = vunpack.c.h.b16 %v266
    %v3303 = vunpack.c.l.b16 %v267
    %v3304 = vunpack.c.h.b16 %v267
    %v3305 = vunpack.c.l.b16 %v268
    %v3306 = vunpack.c.h.b16 %v268
    %v3307 = vunpack.c.l.b16 %v269
    %v3308 = vunpack.c.h.b16 %v269
    %v3309 = vunpack.c.l.b16 %v270
    %v3310 = vunpack.c.h.b16 %v270
    %v3311 = vunpack.c.l.b16 %v271
    %v3312 = vunpack.c.h.b16 %v271
    %v3313 = vunpack.c.l.b16 %v272
    %v3314 = vunpack.c.h.b16 %v272
    %v3315 = vunpack.c.l.b16 %v273
    %v3316 = vunpack.c.h.b16 %v273
    %v3317 = vunpack.c.l.b16 %v274
    %v3318 = vunpack.c.h.b16 %v274
    %v3319 = vunpack.c.l.b16 %v275
    %v3320 = vunpack.c.h.b16 %v275
    %v3321 = vunpack.c.l.b16 %v276
    %v3322 = vunpack.c.h.b16 %v276
    %v3323 = vunpack.c.l.b16 %v277
    %v3324 = vunpack.c.h.b16 %v277
    %v3325 = vunpack.c.l.b16 %v278
    %v3326 = vunpack.c.h.b16 %v278
    %v3327 = vunpack.c.l.b16 %v279
    %v3328 = vunpack.c.h.b16 %v279
    %v3329 = vunpack.c.l.b16 %v280
    %v3330 = vunpack.c.h.b16 %v280
    %v3331 = vunpack.c.l.b16 %v281
    %v3332 = vunpack.c.h.b16 %v281
    %v3333 = vunpack.c.l.b16 %v282
    %v3334 = vunpack.c.h.b16 %v282
    %v3335 = vunpack.c.l.b16 %v283
    %v3336 = vunpack.c.h.b16 %v283
    %v3337 = vunpack.c.l.b16 %v284
    %v3338 = vunpack.c.h.b16 %v284
    %v3339 = vunpack.c.l.b16 %v285
    %v3340 = vunpack.c.h.b16 %v285
    %v3341 = vunpack.c.l.b16 %v286
    %v3342 = vunpack.c.h.b16 %v286
    %v3343 = vunpack.c.l.b16 %v287
    %v3344 = vunpack.c.h.b16 %v287
    %v3345 = vunpack.c.l.b16 %v288
    %v3346 = vunpack.c.h.b16 %v288
    %v3347 = vunpack.c.l.b16 %v289
    %v3348 = vunpack.c.h.b16 %v289
    %v3349 = vunpack.c.l.b16 %v290
    %v3350 = vunpack.c.h.b16 %v290
    %v3351 = vunpack.c.l.b16 %v291
    %v3352 = vunpack.c.h.b16 %v291
    %v3353 = vunpack.c.l.b16 %v292
    %v3354 = vunpack.c.h.b16 %v292
    %v3355 = vunpack.c.l.b16 %v293
    %v3356 = vunpack.c.h.b16 %v293
    %v3357 = vunpack.c.l.b16 %v294
    %v3358 = vunpack.c.h.b16 %v294
    %v3359 = vunpack.c.l.b16 %v295
    %v3360 = vunpack.c.h.b16 %v295
    %v3361 = vunpack.c.l.b16 %v296
    %v3362 = vunpack.c.h.b16 %v296
    %v3363 = vunpack.c.l.b16 %v297
    %v3364 = vunpack.c.h.b16 %v297
    %v3365 = vunpack.c.l.b16 %v298
    %v3366 = vunpack.c.h.b16 %v298
    %v3367 = vunpack.c.l.b16 %v299
    %v3368 = vunpack.c.h.b16 %v299
    %v3369 = vunpack.c.l.b16 %v300
    %v3370 = vunpack.c.h.b16 %v300
    %v3371 = vunpack.c.l.b16 %v301
    %v3372 = vunpack.c.h.b16 %v301
    %v3373 = vunpack.c.l.b16 %v302
    %v3374 = vunpack.c.h.b16 %v302
    %v3375 = vunpack.c.l.b16 %v303
    %v3376 = vunpack.c.h.b16 %v303
    %v3377 = vunpack.c.l.b16 %v304
    %v3378 = vunpack.c.h.b16 %v304
    %v3379 = vunpack.c.l.b16 %v305
    %v3380 = vunpack.c.h.b16 %v305
    %v3381 = vunpack.c.l.b16 %v306
    %v3382 = vunpack.c.h.b16 %v306
    %v3383 = vunpack.c.l.b16 %v307
    %v3384 = vunpack.c.h.b16 %v307
    %v3385 = vunpack.c.l.b16 %v308
    %v3386 = vunpack.c.h.b16 %v308
    %v3387 = vunpack.c.l.b16 %v309
    %v3388 = vunpack.c.h.b16 %v309
    %v3389 = vunpack.c.l.b16 %v310
    %v3390 = vunpack.c.h.b16 %v310
    %v3391 = vunpack.c.l.b16 %v311
    %v3392 = vunpack.c.h.b16 %v311
    %v3393 = vunpack.c.l.b16 %v312
    %v3394 = vunpack.c.h.b16 %v312
    %v3395 = vunpack.c.l.b16 %v313
    %v3396 = vunpack.c.h.b16 %v313
    %v3397 = vunpack.c.l.b16 %v314
    %v3398 = vunpack.c.h.b16 %v314
    %v3399 = vunpack.c.l.b16 %v315
    %v3400 = vunpack.c.h.b16 %v315
    %v3401 = vunpack.c.l.b16 %v316
    %v3402 = vunpack.c.h.b16 %v316
    %v3403 = vunpack.c.l.b16 %v317
    %v3404 = vunpack.c.h.b16 %v317
    %v3405 = vunpack.c.l.b16 %v318
    %v3406 = vunpack.c.h.b16 %v318
    %v3407 = vunpack.c.l.b16 %v319
    %v3408 = vunpack.c.h.b16 %v319
    %v3409 = vunpack.c.l.b16 %v320
    %v3410 = vunpack.c.h.b16 %v320
    %v3411 = vunpack.c.l.b16 %v321
    %v3412 = vunpack.c.h.b16 %v321
    %v3413 = vunpack.c.l.b16 %v322
    %v3414 = vunpack.c.h.b16 %v322
    %v3415 = vunpack.c.l.b16 %v323
    %v3416 = vunpack.c.h.b16 %v323
    %v3417 = vunpack.c.l.b16 %v324
    %v3418 = vunpack.c.h.b16 %v324
    %v3419 = vunpack.c.l.b16 %v325
    %v3420 = vunpack.c.h.b16 %v325
    %v3421 = vunpack.c.l.b16 %v326
    %v3422 = vunpack.c.h.b16 %v326
    %v3423 = vunpack.c.l.b16 %v327
    %v3424 = vunpack.c.h.b16 %v327
    %v3425 = vunpack.c.l.b16 %v328
    %v3426 = vunpack.c.h.b16 %v328
    %v3427 = vunpack.c.l.b16 %v329
    %v3428 = vunpack.c.h.b16 %v329
    %v3429 = vunpack.c.l.b16 %v330
    %v3430 = vunpack.c.h.b16 %v330
    %v3431 = vunpack.c.l.b16 %v331
    %v3432 = vunpack.c.h.b16 %v331
    %v3433 = vunpack.c.l.b16 %v332
    %v3434 = vunpack.c.h.b16 %v332
    %v3435 = vunpack.c.l.b16 %v333
    %v3436 = vunpack.c.h.b16 %v333
    %v3437 = vunpack.c.l.b16 %v334
    %v3438 = vunpack.c.h.b16 %v334
    %v3439 = vunpack.c.l.b16 %v335
    %v3440 = vunpack.c.h.b16 %v335
    %v3441 = vunpack.c.l.b16 %v336
    %v3442 = vunpack.c.h.b16 %v336
    %v3443 = vunpack.c.l.b16 %v337
    %v3444 = vunpack.c.h.b16 %v337
    %v3445 = vunpack.c.l.b16 %v338
    %v3446 = vunpack.c.h.b16 %v338
    %v3447 = vunpack.c.l.b16 %v339
    %v3448 = vunpack.c.h.b16 %v339
    %v3449 = vunpack.c.l.b16 %v340
    %v3450 = vunpack.c.h.b16 %v340
    %v3451 = vunpack.c.l.b16 %v341
    %v3452 = vunpack.c.h.b16 %v341
    %v3453 = vunpack.c.l.b16 %v342
    %v3454 = vunpack.c.h.b16 %v342
    %v3455 = vunpack.c.l.b16 %v343
    %v3456 = vunpack.c.h.b16 %v343
    %v3457 = vunpack.c.l.b16 %v344
    %v3458 = vunpack.c.h.b16 %v344
    %v3459 = vunpack.c.l.b16 %v345
    %v3460 = vunpack.c.h.b16 %v345
    %v3461 = vunpack.c.l.b16 %v346
    %v3462 = vunpack.c.h.b16 %v346
    %v3463 = vunpack.c.l.b16 %v347
    %v3464 = vunpack.c.h.b16 %v347
    %v3465 = vunpack.c.l.b16 %v348
    %v3466 = vunpack.c.h.b16 %v348
    %v3467 = vunpack.c.l.b16 %v349
    %v3468 = vunpack.c.h.b16 %v349
    %v3469 = vunpack.c.l.b16 %v350
    %v3470 = vunpack.c.h.b16 %v350
    %v3471 = vunpack.c.l.b16 %v351
    %v3472 = vunpack.c.h.b16 %v351
    %v3473 = vunpack.c.l.b16 %v352
    %v3474 = vunpack.c.h.b16 %v352
    %v3475 = vunpack.c.l.b16 %v353
    %v3476 = vunpack.c.h.b16 %v353
    %v3477 = vunpack.c.l.b16 %v354
    %v3478 = vunpack.c.h.b16 %v354
    %v3479 = vunpack.c.l.b16 %v355
    %v3480 = vunpack.c.h.b16 %v355
    %v3481 = vunpack.c.l.b16 %v356
    %v3482 = vunpack.c.h.b16 %v356
    %v3483 = vunpack.c.l.b16 %v357
    %v3484 = vunpack.c.h.b16 %v357
    %v3485 = vunpack.c.l.b16 %v358
    %v3486 = vunpack.c.h.b16 %v358
    %v3487 = vunpack.c.l.b16 %v359
    %v3488 = vunpack.c.h.b16 %v359
    %v3489 = vunpack.c.l.b16 %v360
    %v3490 = vunpack.c.h.b16 %v360
    %v3491 = vunpack.c.l.b16 %v361
    %v3492 = vunpack.c.h.b16 %v361
    %v3493 = vunpack.c.l.b16 %v362
    %v3494 = vunpack.c.h.b16 %v362
    %v3495 = vunpack.c.l.b16 %v363
    %v3496 = vunpack.c.h.b16 %v363
    %v3497 = vunpack.c.l.b16 %v364
    %v3498 = vunpack.c.h.b16 %v364
    %v3499 = vunpack.c.l.b16 %v365
    %v3500 = vunpack.c.h.b16 %v365
    %v3501 = vunpack.c.l.b16 %v366
    %v3502 = vunpack.c.h.b16 %v366
    %v3503 = vunpack.c.l.b16 %v367
    %v3504 = vunpack.c.h.b16 %v367
    %v3505 = vunpack.c.l.b16 %v368
    %v3506 = vunpack.c.h.b16 %v368
    %v3507 = vunpack.c.l.b16 %v369
    %v3508 = vunpack.c.h.b16 %v369
    %v3509 = vunpack.c.l.b16 %v370
    %v3510 = vunpack.c.h.b16 %v370
    %v3511 = vunpack.c.l.b16 %v371
    %v3512 = vunpack.c.h.b16 %v371
    %v3513 = vunpack.c.l.b16 %v372
    %v3514 = vunpack.c.h.b16 %v372
    %v3515 = vunpack.c.l.b16 %v373
    %v3516 = vunpack.c.h.b16 %v373
    %v3517 = vunpack.c.l.b16 %v374
    %v3518 = vunpack.c.h.b16 %v374
    %v3519 = vunpack.c.l.b16 %v375
    %v3520 = vunpack.c.h.b16 %v375
    %v3521 = vunpack.c.l.b16 %v376
    %v3522 = vunpack.c.h.b16 %v376
    %v3523 = vunpack.c.l.b16 %v377
    %v3524 = vunpack.c.h.b16 %v377
    %v3525 = vunpack.c.l.b16 %v378
    %v3526 = vunpack.c.h.b16 %v378
    %v3527 = vunpack.c.l.b16 %v379
    %v3528 = vunpack.c.h.b16 %v379
    %v3529 = vunpack.c.l.b16 %v380
    %v3530 = vunpack.c.h.b16 %v380
    %v3531 = vunpack.c.l.b16 %v381
    %v3532 = vunpack.c.h.b16 %v381
    %v3533 = vunpack.c.l.b16 %v382
    %v3534 = vunpack.c.h.b16 %v382
    %v3535 = vunpack.c.l.b16 %v383
    %v3536 = vunpack.c.h.b16 %v383
    %v3537 = vunpack.c.l.b16 %v384
    %v3538 = vunpack.c.h.b16 %v384
    %v3539 = vunpack.c.l.b16 %v385
    %v3540 = vunpack.c.h.b16 %v385
    %v3541 = vunpack.c.l.b16 %v386
    %v3542 = vunpack.c.h.b16 %v386
    %v3543 = vunpack.c.l.b16 %v387
    %v3544 = vunpack.c.h.b16 %v387
    %v3545 = vunpack.c.l.b16 %v388
    %v3546 = vunpack.c.h.b16 %v388
    %v3547 = vunpack.c.l.b16 %v389
    %v3548 = vunpack.c.h.b16 %v389
    %v3549 = vunpack.c.l.b16 %v390
    %v3550 = vunpack.c.h.b16 %v390
    %v3551 = vunpack.c.l.b16 %v391
    %v3552 = vunpack.c.h.b16 %v391
    %v3553 = vunpack.c.l.b16 %v392
    %v3554 = vunpack.c.h.b16 %v392
    %v3555 = vunpack.c.l.b16 %v393
    %v3556 = vunpack.c.h.b16 %v393
    %v3557 = vunpack.c.l.b16 %v394
    %v3558 = vunpack.c.h.b16 %v394
    %v3559 = vunpack.c.l.b16 %v395
    %v3560 = vunpack.c.h.b16 %v395
    %v3561 = vunpack.c.l.b16 %v396
    %v3562 = vunpack.c.h.b16 %v396
    %v3563 = vunpack.c.l.b16 %v397
    %v3564 = vunpack.c.h.b16 %v397
    %v3565 = vunpack.c.l.b16 %v398
    %v3566 = vunpack.c.h.b16 %v398
    %v3567 = vunpack.c.l.b16 %v399
    %v3568 = vunpack.c.h.b16 %v399
    %v3569 = vunpack.c.l.b16 %v400
    %v3570 = vunpack.c.h.b16 %v400
    %v3571 = vunpack.c.l.b16 %v401
    %v3572 = vunpack.c.h.b16 %v401
    %v3573 = vunpack.c.l.b16 %v402
    %v3574 = vunpack.c.h.b16 %v402
    %v3575 = vunpack.c.l.b16 %v403
    %v3576 = vunpack.c.h.b16 %v403
    %v3577 = vunpack.c.l.b16 %v404
    %v3578 = vunpack.c.h.b16 %v404
    %v3579 = vunpack.c.l.b16 %v405
    %v3580 = vunpack.c.h.b16 %v405
    %v3581 = vunpack.c.l.b16 %v406
    %v3582 = vunpack.c.h.b16 %v406
    %v3583 = vunpack.c.l.b16 %v407
    %v3584 = vunpack.c.h.b16 %v407
    %v3585 = vunpack.c.l.b16 %v408
    %v3586 = vunpack.c.h.b16 %v408
    %v3587 = vunpack.c.l.b16 %v409
    %v3588 = vunpack.c.h.b16 %v409
    %v3589 = vunpack.c.l.b16 %v410
    %v3590 = vunpack.c.h.b16 %v410
    %v3591 = vunpack.c.l.b16 %v411
    %v3592 = vunpack.c.h.b16 %v411
    %v3593 = vunpack.c.l.b16 %v412
    %v3594 = vunpack.c.h.b16 %v412
    %v3595 = vunpack.c.l.b16 %v413
    %v3596 = vunpack.c.h.b16 %v413
    %v3597 = vunpack.c.l.b16 %v414
    %v3598 = vunpack.c.h.b16 %v414
    %v3599 = vunpack.c.l.b16 %v415
    %v3600 = vunpack.c.h.b16 %v415
    %v3601 = vunpack.c.l.b16 %v416
    %v3602 = vunpack.c.h.b16 %v416
    %v3603 = vunpack.c.l.b16 %v417
    %v3604 = vunpack.c.h.b16 %v417
    %v3605 = vunpack.c.l.b16 %v418
    %v3606 = vunpack.c.h.b16 %v418
    %v3607 = vunpack.c.l.b16 %v419
    %v3608 = vunpack.c.h.b16 %v419
    %v3609 = vunpack.c.l.b16 %v420
    %v3610 = vunpack.c.h.b16 %v420
    %v3611 = vunpack.c.l.b16 %v421
    %v3612 = vunpack.c.h.b16 %v421
    %v3613 = vunpack.c.l.b16 %v422
    %v3614 = vunpack.c.h.b16 %v422
    %v3615 = vunpack.c.l.b16 %v423
    %v3616 = vunpack.c.h.b16 %v423
    %v3617 = vunpack.c.l.b16 %v424
    %v3618 = vunpack.c.h.b16 %v424
    %v3619 = vunpack.c.l.b16 %v425
    %v3620 = vunpack.c.h.b16 %v425
    %v3621 = vunpack.c.l.b16 %v426
    %v3622 = vunpack.c.h.b16 %v426
    %v3623 = vunpack.c.l.b16 %v427
    %v3624 = vunpack.c.h.b16 %v427
    %v3625 = vunpack.c.l.b16 %v428
    %v3626 = vunpack.c.h.b16 %v428
    %v3627 = vunpack.c.l.b16 %v429
    %v3628 = vunpack.c.h.b16 %v429
    %v3629 = vunpack.c.l.b16 %v430
    %v3630 = vunpack.c.h.b16 %v430
    %v3631 = vunpack.c.l.b16 %v431
    %v3632 = vunpack.c.h.b16 %v431
    %v3633 = vunpack.c.l.b16 %v432
    %v3634 = vunpack.c.h.b16 %v432
    %v3635 = vunpack.c.l.b16 %v433
    %v3636 = vunpack.c.h.b16 %v433
    %v3637 = vunpack.c.l.b16 %v434
    %v3638 = vunpack.c.h.b16 %v434
    %v3639 = vunpack.c.l.b16 %v435
    %v3640 = vunpack.c.h.b16 %v435
    %v3641 = vunpack.c.l.b16 %v436
    %v3642 = vunpack.c.h.b16 %v436
    %v3643 = vunpack.c.l.b16 %v437
    %v3644 = vunpack.c.h.b16 %v437
    %v3645 = vunpack.c.l.b16 %v438
    %v3646 = vunpack.c.h.b16 %v438
    %v3647 = vunpack.c.l.b16 %v439
    %v3648 = vunpack.c.h.b16 %v439
    %v3649 = vunpack.c.l.b16 %v440
    %v3650 = vunpack.c.h.b16 %v440
    %v3651 = vunpack.c.l.b16 %v441
    %v3652 = vunpack.c.h.b16 %v441
    %v3653 = vunpack.c.l.b16 %v442
    %v3654 = vunpack.c.h.b16 %v442
    %v3655 = vunpack.c.l.b16 %v443
    %v3656 = vunpack.c.h.b16 %v443
    %v3657 = vunpack.c.l.b16 %v444
    %v3658 = vunpack.c.h.b16 %v444
    %v3659 = vunpack.c.l.b16 %v445
    %v3660 = vunpack.c.h.b16 %v445
    %v3661 = vunpack.c.l.b16 %v446
    %v3662 = vunpack.c.h.b16 %v446
    %v3663 = vunpack.c.l.b16 %v447
    %v3664 = vunpack.c.h.b16 %v447
    %v3665 = vunpack.c.l.b16 %v448
    %v3666 = vunpack.c.h.b16 %v448
    %v3667 = vunpack.c.l.b16 %v449
    %v3668 = vunpack.c.h.b16 %v449
    %v3669 = vunpack.c.l.b16 %v450
    %v3670 = vunpack.c.h.b16 %v450
    %v3671 = vunpack.c.l.b16 %v451
    %v3672 = vunpack.c.h.b16 %v451
    %v3673 = vunpack.c.l.b16 %v452
    %v3674 = vunpack.c.h.b16 %v452
    %v3675 = vunpack.c.l.b16 %v453
    %v3676 = vunpack.c.h.b16 %v453
    %v3677 = vunpack.c.l.b16 %v454
    %v3678 = vunpack.c.h.b16 %v454
    %v3679 = vunpack.c.l.b16 %v455
    %v3680 = vunpack.c.h.b16 %v455
    %v3681 = vunpack.c.l.b16 %v456
    %v3682 = vunpack.c.h.b16 %v456
    %v3683 = vunpack.c.l.b16 %v457
    %v3684 = vunpack.c.h.b16 %v457
    %v3685 = vunpack.c.l.b16 %v458
    %v3686 = vunpack.c.h.b16 %v458
    %v3687 = vunpack.c.l.b16 %v459
    %v3688 = vunpack.c.h.b16 %v459
    %v3689 = vunpack.c.l.b16 %v460
    %v3690 = vunpack.c.h.b16 %v460
    %v3691 = vunpack.c.l.b16 %v461
    %v3692 = vunpack.c.h.b16 %v461
    %v3693 = vunpack.c.l.b16 %v462
    %v3694 = vunpack.c.h.b16 %v462
    %v3695 = vunpack.c.l.b16 %v463
    %v3696 = vunpack.c.h.b16 %v463
    %v3697 = vunpack.c.l.b16 %v464
    %v3698 = vunpack.c.h.b16 %v464
    %v3699 = vunpack.c.l.b16 %v465
    %v3700 = vunpack.c.h.b16 %v465
    %v3701 = vunpack.c.l.b16 %v466
    %v3702 = vunpack.c.h.b16 %v466
    %v3703 = vunpack.c.l.b16 %v467
    %v3704 = vunpack.c.h.b16 %v467
    %v3705 = vunpack.c.l.b16 %v468
    %v3706 = vunpack.c.h.b16 %v468
    %v3707 = vunpack.c.l.b16 %v469
    %v3708 = vunpack.c.h.b16 %v469
    %v3709 = vunpack.c.l.b16 %v470
    %v3710 = vunpack.c.h.b16 %v470
    %v3711 = vunpack.c.l.b16 %v471
    %v3712 = vunpack.c.h.b16 %v471
    %v3713 = vunpack.c.l.b16 %v472
    %v3714 = vunpack.c.h.b16 %v472
    %v3715 = vunpack.c.l.b16 %v473
    %v3716 = vunpack.c.h.b16 %v473
    %v3717 = vunpack.c.l.b16 %v474
    %v3718 = vunpack.c.h.b16 %v474
    %v3719 = vunpack.c.l.b16 %v475
    %v3720 = vunpack.c.h.b16 %v475
    %v3721 = vunpack.c.l.b16 %v476
    %v3722 = vunpack.c.h.b16 %v476
    %v3723 = vunpack.c.l.b16 %v477
    %v3724 = vunpack.c.h.b16 %v477
    %v3725 = vunpack.c.l.b16 %v478
    %v3726 = vunpack.c.h.b16 %v478
    %v3727 = vunpack.c.l.b16 %v479
    %v3728 = vunpack.c.h.b16 %v479
    %v3729 = vunpack.c.l.b16 %v480
    %v3730 = vunpack.c.h.b16 %v480
    %v3731 = vunpack.c.l.b16 %v481
    %v3732 = vunpack.c.h.b16 %v481
    %v3733 = vunpack.c.l.b16 %v482
    %v3734 = vunpack.c.h.b16 %v482
    %v3735 = vunpack.c.l.b16 %v483
    %v3736 = vunpack.c.h.b16 %v483
    %v3737 = vunpack.c.l.b16 %v484
    %v3738 = vunpack.c.h.b16 %v484
    %v3739 = vunpack.c.l.b16 %v485
    %v3740 = vunpack.c.h.b16 %v485
    %v3741 = vunpack.c.l.b16 %v486
    %v3742 = vunpack.c.h.b16 %v486
    %v3743 = vunpack.c.l.b16 %v487
    %v3744 = vunpack.c.h.b16 %v487
    %v3745 = vunpack.c.l.b16 %v488
    %v3746 = vunpack.c.h.b16 %v488
    %v3747 = vunpack.c.l.b16 %v489
    %v3748 = vunpack.c.h.b16 %v489
    %v3749 = vunpack.c.l.b16 %v490
    %v3750 = vunpack.c.h.b16 %v490
    %v3751 = vunpack.c.l.b16 %v491
    %v3752 = vunpack.c.h.b16 %v491
    %v3753 = vunpack.c.l.b16 %v492
    %v3754 = vunpack.c.h.b16 %v492
    %v3755 = vunpack.c.l.b16 %v493
    %v3756 = vunpack.c.h.b16 %v493
    %v3757 = vunpack.c.l.b16 %v494
    %v3758 = vunpack.c.h.b16 %v494
    %v3759 = vunpack.c.l.b16 %v495
    %v3760 = vunpack.c.h.b16 %v495
    %v3761 = vunpack.c.l.b16 %v496
    %v3762 = vunpack.c.h.b16 %v496
    %v3763 = vunpack.c.l.b16 %v497
    %v3764 = vunpack.c.h.b16 %v497
    %v3765 = vunpack.c.l.b16 %v498
    %v3766 = vunpack.c.h.b16 %v498
    %v3767 = vunpack.c.l.b16 %v499
    %v3768 = vunpack.c.h.b16 %v499
    %v3769 = vunpack.c.l.b16 %v500
    %v3770 = vunpack.c.h.b16 %v500
    %v3771 = vunpack.c.l.b16 %v501
    %v3772 = vunpack.c.h.b16 %v501
    %v3773 = vunpack.c.l.b16 %v502
    %v3774 = vunpack.c.h.b16 %v502
    %v3775 = vunpack.c.l.b16 %v503
    %v3776 = vunpack.c.h.b16 %v503
    %v3777 = vunpack.c.l.b16 %v504
    %v3778 = vunpack.c.h.b16 %v504
    %v3779 = vunpack.c.l.b16 %v505
    %v3780 = vunpack.c.h.b16 %v505
    %v3781 = vunpack.c.l.b16 %v506
    %v3782 = vunpack.c.h.b16 %v506
    %v3783 = vunpack.c.l.b16 %v507
    %v3784 = vunpack.c.h.b16 %v507
    %v3785 = vunpack.c.l.b16 %v508
    %v3786 = vunpack.c.h.b16 %v508
    %v3787 = vunpack.c.l.b16 %v509
    %v3788 = vunpack.c.h.b16 %v509
    %v3789 = vunpack.c.l.b16 %v510
    %v3790 = vunpack.c.h.b16 %v510
    %v3791 = vunpack.c.l.b16 %v511
    %v3792 = vunpack.c.h.b16 %v511
    %v3793 = vunpack.c.l.b16 %v512
    %v3794 = vunpack.c.h.b16 %v512
    %v3795 = vunpack.c.l.b16 %v513
    %v3796 = vunpack.c.h.b16 %v513
    %v3797 = vunpack.c.l.b16 %v514
    %v3798 = vunpack.c.h.b16 %v514
    %v3799 = vunpack.c.l.b16 %v515
    %v3800 = vunpack.c.h.b16 %v515
    %v3801 = vunpack.c.l.b16 %v516
    %v3802 = vunpack.c.h.b16 %v516
    %v3803 = vunpack.c.l.b16 %v517
    %v3804 = vunpack.c.h.b16 %v517
    %v3805 = vunpack.c.l.b16 %v518
    %v3806 = vunpack.c.h.b16 %v518
    %v3807 = vunpack.c.l.b16 %v519
    %v3808 = vunpack.c.h.b16 %v519
    %v3809 = vunpack.c.l.b16 %v520
    %v3810 = vunpack.c.h.b16 %v520
    %v3811 = vunpack.c.l.b16 %v521
    %v3812 = vunpack.c.h.b16 %v521
    %v3813 = vunpack.c.l.b16 %v522
    %v3814 = vunpack.c.h.b16 %v522
    %v3815 = vunpack.c.l.b16 %v523
    %v3816 = vunpack.c.h.b16 %v523
    %v3817 = vunpack.c.l.b16 %v524
    %v3818 = vunpack.c.h.b16 %v524
    %v3819 = vunpack.c.l.b16 %v525
    %v3820 = vunpack.c.h.b16 %v525
    %v3821 = vunpack.c.l.b16 %v526
    %v3822 = vunpack.c.h.b16 %v526
    %v3823 = vunpack.c.l.b16 %v527
    %v3824 = vunpack.c.h.b16 %v527
    %v3825 = vunpack.c.l.b16 %v528
    %v3826 = vunpack.c.h.b16 %v528
    %v3827 = vunpack.c.l.b16 %v529
    %v3828 = vunpack.c.h.b16 %v529
    %v3829 = vunpack.c.l.b16 %v530
    %v3830 = vunpack.c.h.b16 %v530
    %v3831 = vunpack.c.l.b16 %v531
    %v3832 = vunpack.c.h.b16 %v531
    %v3833 = vunpack.c.l.b16 %v532
    %v3834 = vunpack.c.h.b16 %v532
    %v3835 = vunpack.c.l.b16 %v533
    %v3836 = vunpack.c.h.b16 %v533
    %v3837 = vunpack.c.l.b16 %v534
    %v3838 = vunpack.c.h.b16 %v534
    %v3839 = vunpack.c.l.b16 %v535
    %v3840 = vunpack.c.h.b16 %v535
    %v3841 = vunpack.c.l.b16 %v536
    %v3842 = vunpack.c.h.b16 %v536
    %v3843 = vunpack.c.l.b16 %v537
    %v3844 = vunpack.c.h.b16 %v537
    %v3845 = vunpack.c.l.b16 %v538
    %v3846 = vunpack.c.h.b16 %v538
    %v3847 = vunpack.c.l.b16 %v539
    %v3848 = vunpack.c.h.b16 %v539
    %v3849 = vunpack.c.l.b16 %v540
    %v3850 = vunpack.c.h.b16 %v540
    %v3851 = vunpack.c.l.b16 %v541
    %v3852 = vunpack.c.h.b16 %v541
    %v3853 = vunpack.c.l.b16 %v542
    %v3854 = vunpack.c.h.b16 %v542
    %v3855 = vunpack.c.l.b16 %v543
    %v3856 = vunpack.c.h.b16 %v543
    %v3857 = vunpack.c.l.b16 %v544
    %v3858 = vunpack.c.h.b16 %v544
    %v3859 = vunpack.c.l.b16 %v545
    %v3860 = vunpack.c.h.b16 %v545
    %v3861 = vunpack.c.l.b16 %v546
    %v3862 = vunpack.c.h.b16 %v546
    %v3863 = vunpack.c.l.b16 %v547
    %v3864 = vunpack.c.h.b16 %v547
    %v3865 = vunpack.c.l.b16 %v548
    %v3866 = vunpack.c.h.b16 %v548
    %v3867 = vunpack.c.l.b16 %v549
    %v3868 = vunpack.c.h.b16 %v549
    %v3869 = vunpack.c.l.b16 %v550
    %v3870 = vunpack.c.h.b16 %v550
    %v3871 = vunpack.c.l.b16 %v551
    %v3872 = vunpack.c.h.b16 %v551
    %v3873 = vunpack.c.l.b16 %v552
    %v3874 = vunpack.c.h.b16 %v552
    %v3875 = vunpack.c.l.b16 %v553
    %v3876 = vunpack.c.h.b16 %v553
    %v3877 = vunpack.c.l.b16 %v554
    %v3878 = vunpack.c.h.b16 %v554
    %v3879 = vunpack.c.l.b16 %v555
    %v3880 = vunpack.c.h.b16 %v555
    %v3881 = vunpack.c.l.b16 %v556
    %v3882 = vunpack.c.h.b16 %v556
    %v3883 = vunpack.c.l.b16 %v557
    %v3884 = vunpack.c.h.b16 %v557
    %v3885 = vunpack.c.l.b16 %v558
    %v3886 = vunpack.c.h.b16 %v558
    %v3887 = vunpack.c.l.b16 %v559
    %v3888 = vunpack.c.h.b16 %v559
    %v3889 = vunpack.c.l.b16 %v560
    %v3890 = vunpack.c.h.b16 %v560
    %v3891 = vunpack.c.l.b16 %v561
    %v3892 = vunpack.c.h.b16 %v561
    %v3893 = vunpack.c.l.b16 %v562
    %v3894 = vunpack.c.h.b16 %v562
    %v3895 = vunpack.c.l.b16 %v563
    %v3896 = vunpack.c.h.b16 %v563
    %v3897 = vunpack.c.l.b16 %v564
    %v3898 = vunpack.c.h.b16 %v564
    %v3899 = vunpack.c.l.b16 %v565
    %v3900 = vunpack.c.h.b16 %v565
    %v3901 = vunpack.c.l.b16 %v566
    %v3902 = vunpack.c.h.b16 %v566
    %v3903 = vunpack.c.l.b16 %v567
    %v3904 = vunpack.c.h.b16 %v567
    %v3905 = vunpack.c.l.b16 %v568
    %v3906 = vunpack.c.h.b16 %v568
    %v3907 = vunpack.c.l.b16 %v569
    %v3908 = vunpack.c.h.b16 %v569
    %v3909 = vunpack.c.l.b16 %v570
    %v3910 = vunpack.c.h.b16 %v570
    %v3911 = vunpack.c.l.b16 %v571
    %v3912 = vunpack.c.h.b16 %v571
    %v3913 = vunpack.c.l.b16 %v572
    %v3914 = vunpack.c.h.b16 %v572
    %v3915 = vunpack.c.l.b16 %v573
    %v3916 = vunpack.c.h.b16 %v573
    %v3917 = vunpack.c.l.b16 %v574
    %v3918 = vunpack.c.h.b16 %v574
    %v3919 = vunpack.c.l.b16 %v575
    %v3920 = vunpack.c.h.b16 %v575
    %v3921 = vunpack.c.l.b16 %v576
    %v3922 = vunpack.c.h.b16 %v576
    %v3923 = vunpack.c.l.b16 %v577
    %v3924 = vunpack.c.h.b16 %v577
    %v3925 = vunpack.c.l.b16 %v578
    %v3926 = vunpack.c.h.b16 %v578
    %v3927 = vunpack.c.l.b16 %v579
    %v3928 = vunpack.c.h.b16 %v579
    %v3929 = vunpack.c.l.b16 %v580
    %v3930 = vunpack.c.h.b16 %v580
    %v3931 = vunpack.c.l.b16 %v581
    %v3932 = vunpack.c.h.b16 %v581
    %v3933 = vunpack.c.l.b16 %v582
    %v3934 = vunpack.c.h.b16 %v582
    %v3935 = vunpack.c.l.b16 %v583
    %v3936 = vunpack.c.h.b16 %v583
    %v3937 = vunpack.c.l.b16 %v584
    %v3938 = vunpack.c.h.b16 %v584
    %v3939 = vunpack.c.l.b16 %v585
    %v3940 = vunpack.c.h.b16 %v585
    %v3941 = vunpack.c.l.b16 %v586
    %v3942 = vunpack.c.h.b16 %v586
    %v3943 = vunpack.c.l.b16 %v587
    %v3944 = vunpack.c.h.b16 %v587
    %v3945 = vunpack.c.l.b16 %v588
    %v3946 = vunpack.c.h.b16 %v588
    %v3947 = vunpack.c.l.b16 %v589
    %v3948 = vunpack.c.h.b16 %v589
    %v3949 = vunpack.c.l.b16 %v590
    %v3950 = vunpack.c.h.b16 %v590
    %v3951 = vunpack.c.l.b16 %v591
    %v3952 = vunpack.c.h.b16 %v591
    %v3953 = vunpack.c.l.b16 %v592
    %v3954 = vunpack.c.h.b16 %v592
    %v3955 = vunpack.c.l.b16 %v593
    %v3956 = vunpack.c.h.b16 %v593
    %v3957 = vunpack.c.l.b16 %v594
    %v3958 = vunpack.c.h.b16 %v594
    %v3959 = vunpack.c.l.b16 %v595
    %v3960 = vunpack.c.h.b16 %v595
    %v3961 = vunpack.c.l.b16 %v596
    %v3962 = vunpack.c.h.b16 %v596
    %v3963 = vunpack.c.l.b16 %v597
    %v3964 = vunpack.c.h.b16 %v597
    %v3965 = vunpack.c.l.b16 %v598
    %v3966 = vunpack.c.h.b16 %v598
    %v3967 = vunpack.c.l.b16 %v599
    %v3968 = vunpack.c.h.b16 %v599
    %v3969 = vunpack.c.l.b16 %v600
    %v3970 = vunpack.c.h.b16 %v600
    %v3971 = vunpack.c.l.b16 %v601
    %v3972 = vunpack.c.h.b16 %v601
    %v3973 = vunpack.c.l.b16 %v602
    %v3974 = vunpack.c.h.b16 %v602
    %v3975 = vunpack.c.l.b16 %v603
    %v3976 = vunpack.c.h.b16 %v603
    %v3977 = vunpack.c.l.b16 %v604
    %v3978 = vunpack.c.h.b16 %v604
    %v3979 = vunpack.c.l.b16 %v605
    %v3980 = vunpack.c.h.b16 %v605
    %v3981 = vunpack.c.l.b16 %v606
    %v3982 = vunpack.c.h.b16 %v606
    %v3983 = vunpack.c.l.b16 %v607
    %v3984 = vunpack.c.h.b16 %v607
    %v3985 = vunpack.c.l.b16 %v608
    %v3986 = vunpack.c.h.b16 %v608
    %v3987 = vunpack.c.l.b16 %v609
    %v3988 = vunpack.c.h.b16 %v609
    %v3989 = vunpack.c.l.b16 %v610
    %v3990 = vunpack.c.h.b16 %v610
    %v3991 = vunpack.c.l.b16 %v611
    %v3992 = vunpack.c.h.b16 %v611
    %v3993 = vunpack.c.l.b16 %v612
    %v3994 = vunpack.c.h.b16 %v612
    %v3995 = vunpack.c.l.b16 %v613
    %v3996 = vunpack.c.h.b16 %v613
    %v3997 = vunpack.c.l.b16 %v614
    %v3998 = vunpack.c.h.b16 %v614
    %v3999 = vunpack.c.l.b16 %v615
    %v4000 = vunpack.c.h.b16 %v615
    %v4001 = vunpack.c.l.b16 %v616
    %v4002 = vunpack.c.h.b16 %v616
    %v4003 = vunpack.c.l.b16 %v617
    %v4004 = vunpack.c.h.b16 %v617
    %v4005 = vunpack.c.l.b16 %v618
    %v4006 = vunpack.c.h.b16 %v618
    %v4007 = vunpack.c.l.b16 %v619
    %v4008 = vunpack.c.h.b16 %v619
    %v4009 = vunpack.c.l.b16 %v620
    %v4010 = vunpack.c.h.b16 %v620
    %v4011 = vunpack.c.l.b16 %v621
    %v4012 = vunpack.c.h.b16 %v621
    %v4013 = vunpack.c.l.b16 %v622
    %v4014 = vunpack.c.h.b16 %v622
    %v4015 = vunpack.c.l.b16 %v623
    %v4016 = vunpack.c.h.b16 %v623
    %v4017 = vunpack.c.l.b16 %v624
    %v4018 = vunpack.c.h.b16 %v624
    %v4019 = vunpack.c.l.b16 %v625
    %v4020 = vunpack.c.h.b16 %v625
    %v4021 = vunpack.c.l.b16 %v626
    %v4022 = vunpack.c.h.b16 %v626
    %v4023 = vunpack.c.l.b16 %v627
    %v4024 = vunpack.c.h.b16 %v627
    %v4025 = vunpack.c.l.b16 %v628
    %v4026 = vunpack.c.h.b16 %v628
    %v4027 = vunpack.c.l.b16 %v629
    %v4028 = vunpack.c.h.b16 %v629
    %v4029 = vunpack.c.l.b16 %v630
    %v4030 = vunpack.c.h.b16 %v630
    %v4031 = vunpack.c.l.b16 %v631
    %v4032 = vunpack.c.h.b16 %v631
    %v4033 = vunpack.c.l.b16 %v632
    %v4034 = vunpack.c.h.b16 %v632
    %v4035 = vunpack.c.l.b16 %v633
    %v4036 = vunpack.c.h.b16 %v633
    %v4037 = vunpack.c.l.b16 %v634
    %v4038 = vunpack.c.h.b16 %v634
    %v4039 = vunpack.c.l.b16 %v635
    %v4040 = vunpack.c.h.b16 %v635
    %v4041 = vunpack.c.l.b16 %v636
    %v4042 = vunpack.c.h.b16 %v636
    %v4043 = vunpack.c.l.b16 %v637
    %v4044 = vunpack.c.h.b16 %v637
    %v4045 = vunpack.c.l.b16 %v638
    %v4046 = vunpack.c.h.b16 %v638
    %v4047 = vunpack.c.l.b16 %v639
    %v4048 = vunpack.c.h.b16 %v639
    %v4049 = vunpack.c.l.b16 %v640
    %v4050 = vunpack.c.h.b16 %v640
    %v4051 = vunpack.c.l.b16 %v641
    %v4052 = vunpack.c.h.b16 %v641
    %v4053 = vunpack.c.l.b16 %v642
    %v4054 = vunpack.c.h.b16 %v642
    %v4055 = vunpack.c.l.b16 %v643
    %v4056 = vunpack.c.h.b16 %v643
    %v4057 = vunpack.c.l.b16 %v644
    %v4058 = vunpack.c.h.b16 %v644
    %v4059 = vunpack.c.l.b16 %v645
    %v4060 = vunpack.c.h.b16 %v645
    %v4061 = vunpack.c.l.b16 %v646
    %v4062 = vunpack.c.h.b16 %v646
    %v4063 = vunpack.c.l.b16 %v647
    %v4064 = vunpack.c.h.b16 %v647
    %v4065 = vunpack.c.l.b16 %v648
    %v4066 = vunpack.c.h.b16 %v648
    %v4067 = vunpack.c.l.b16 %v649
    %v4068 = vunpack.c.h.b16 %v649
    %v4069 = vunpack.c.l.b16 %v650
    %v4070 = vunpack.c.h.b16 %v650
    %v4071 = vunpack.c.l.b16 %v651
    %v4072 = vunpack.c.h.b16 %v651
    %v4073 = vunpack.c.l.b16 %v652
    %v4074 = vunpack.c.h.b16 %v652
    %v4075 = vunpack.c.l.b16 %v653
    %v4076 = vunpack.c.h.b16 %v653
    %v4077 = vunpack.c.l.b16 %v654
    %v4078 = vunpack.c.h.b16 %v654
    %v4079 = vunpack.c.l.b16 %v655
    %v4080 = vunpack.c.h.b16 %v655
    %v4081 = vunpack.c.l.b16 %v656
    %v4082 = vunpack.c.h.b16 %v656
    %v4083 = vunpack.c.l.b16 %v657
    %v4084 = vunpack.c.h.b16 %v657
    %v4085 = vunpack.c.l.b16 %v658
    %v4086 = vunpack.c.h.b16 %v658
    %v4087 = vunpack.c.l.b16 %v659
    %v4088 = vunpack.c.h.b16 %v659
    %v4089 = vunpack.c.l.b16 %v660
    %v4090 = vunpack.c.h.b16 %v660
    %v4091 = vunpack.c.l.b16 %v661
    %v4092 = vunpack.c.h.b16 %v661
    %v4093 = vunpack.c.l.b16 %v662
    %v4094 = vunpack.c.h.b16 %v662
    %v4095 = vunpack.c.l.b16 %v663
    %v4096 = vunpack.c.h.b16 %v663
    %v4097 = vunpack.c.l.b16 %v664
    %v4098 = vunpack.c.h.b16 %v664
    %v4099 = vunpack.c.l.b16 %v665
    %v4100 = vunpack.c.h.b16 %v665
    %v4101 = vunpack.c.l.b16 %v666
    %v4102 = vunpack.c.h.b16 %v666
    %v4103 = vunpack.c.l.b16 %v667
    %v4104 = vunpack.c.h.b16 %v667
    %v4105 = vunpack.c.l.b16 %v668
    %v4106 = vunpack.c.h.b16 %v668
    %v4107 = vunpack.c.l.b16 %v669
    %v4108 = vunpack.c.h.b16 %v669
    %v4109 = vunpack.c.l.b16 %v670
    %v4110 = vunpack.c.h.b16 %v670
    %v4111 = vunpack.c.l.b16 %v671
    %v4112 = vunpack.c.h.b16 %v671
    %v4113 = vunpack.c.l.b16 %v672
    %v4114 = vunpack.c.h.b16 %v672
    %v4115 = vunpack.c.l.b16 %v673
    %v4116 = vunpack.c.h.b16 %v673
    %v4117 = vunpack.c.l.b16 %v674
    %v4118 = vunpack.c.h.b16 %v674
    %v4119 = vunpack.c.l.b16 %v675
    %v4120 = vunpack.c.h.b16 %v675
    %v4121 = vunpack.c.l.b16 %v676
    %v4122 = vunpack.c.h.b16 %v676
    %v4123 = vunpack.c.l.b16 %v677
    %v4124 = vunpack.c.h.b16 %v677
    %v4125 = vunpack.c.l.b16 %v678
    %v4126 = vunpack.c.h.b16 %v678
    %v4127 = vunpack.c.l.b16 %v679
    %v4128 = vunpack.c.h.b16 %v679
    %v4129 = vunpack.c.l.b16 %v680
    %v4130 = vunpack.c.h.b16 %v680
    %v4131 = vunpack.c.l.b16 %v681
    %v4132 = vunpack.c.h.b16 %v681
    %v4133 = vunpack.c.l.b16 %v682
    %v4134 = vunpack.c.h.b16 %v682
    %v4135 = vunpack.c.l.b16 %v683
    %v4136 = vunpack.c.h.b16 %v683
    %v4137 = vunpack.c.l.b16 %v684
    %v4138 = vunpack.c.h.b16 %v684
    %v4139 = vunpack.c.l.b16 %v685
    %v4140 = vunpack.c.h.b16 %v685
    %v4141 = vunpack.c.l.b16 %v686
    %v4142 = vunpack.c.h.b16 %v686
    %v4143 = vunpack.c.l.b16 %v687
    %v4144 = vunpack.c.h.b16 %v687
    %v4145 = vunpack.c.l.b16 %v688
    %v4146 = vunpack.c.h.b16 %v688
    %v4147 = vunpack.c.l.b16 %v689
    %v4148 = vunpack.c.h.b16 %v689
    %v4149 = vunpack.c.l.b16 %v690
    %v4150 = vunpack.c.h.b16 %v690
    %v4151 = vunpack.c.l.b16 %v691
    %v4152 = vunpack.c.h.b16 %v691
    %v4153 = vunpack.c.l.b16 %v692
    %v4154 = vunpack.c.h.b16 %v692
    %v4155 = vunpack.c.l.b16 %v693
    %v4156 = vunpack.c.h.b16 %v693
    %v4157 = vunpack.c.l.b16 %v694
    %v4158 = vunpack.c.h.b16 %v694
    %v4159 = vunpack.c.l.b16 %v695
    %v4160 = vunpack.c.h.b16 %v695
    %v4161 = vunpack.c.l.b16 %v696
    %v4162 = vunpack.c.h.b16 %v696
    %v4163 = vunpack.c.l.b16 %v697
    %v4164 = vunpack.c.h.b16 %v697
    %v4165 = vunpack.c.l.b16 %v698
    %v4166 = vunpack.c.h.b16 %v698
    %v4167 = vunpack.c.l.b16 %v699
    %v4168 = vunpack.c.h.b16 %v699
    %v4169 = vunpack.c.l.b16 %v700
    %v4170 = vunpack.c.h.b16 %v700
    %v4171 = vunpack.c.l.b16 %v701
    %v4172 = vunpack.c.h.b16 %v701
    %v4173 = vunpack.c.l.b16 %v702
    %v4174 = vunpack.c.h.b16 %v702
    %v4175 = vunpack.c.l.b16 %v703
    %v4176 = vunpack.c.h.b16 %v703
    %v4177 = vunpack.c.l.b16 %v704
    %v4178 = vunpack.c.h.b16 %v704
    %v4179 = vunpack.c.l.b16 %v705
    %v4180 = vunpack.c.h.b16 %v705
    %v4181 = vunpack.c.l.b16 %v706
    %v4182 = vunpack.c.h.b16 %v706
    %v4183 = vunpack.c.l.b16 %v707
    %v4184 = vunpack.c.h.b16 %v707
    %v4185 = vunpack.c.l.b16 %v708
    %v4186 = vunpack.c.h.b16 %v708
    %v4187 = vunpack.c.l.b16 %v709
    %v4188 = vunpack.c.h.b16 %v709
    %v4189 = vunpack.c.l.b16 %v710
    %v4190 = vunpack.c.h.b16 %v710
    %v4191 = vunpack.c.l.b16 %v711
    %v4192 = vunpack.c.h.b16 %v711
    %v4193 = vunpack.c.l.b16 %v712
    %v4194 = vunpack.c.h.b16 %v712
    %v4195 = vunpack.c.l.b16 %v713
    %v4196 = vunpack.c.h.b16 %v713
    %v4197 = vunpack.c.l.b16 %v714
    %v4198 = vunpack.c.h.b16 %v714
    %v4199 = vunpack.c.l.b16 %v715
    %v4200 = vunpack.c.h.b16 %v715
    %v4201 = vunpack.c.l.b16 %v716
    %v4202 = vunpack.c.h.b16 %v716
    %v4203 = vunpack.c.l.b16 %v717
    %v4204 = vunpack.c.h.b16 %v717
    %v4205 = vunpack.c.l.b16 %v718
    %v4206 = vunpack.c.h.b16 %v718
    %v4207 = vunpack.c.l.b16 %v719
    %v4208 = vunpack.c.h.b16 %v719
    %v4209 = vunpack.c.l.b16 %v720
    %v4210 = vunpack.c.h.b16 %v720
    %v4211 = vunpack.c.l.b16 %v721
    %v4212 = vunpack.c.h.b16 %v721
    %v4213 = vunpack.c.l.b16 %v722
    %v4214 = vunpack.c.h.b16 %v722
    %v4215 = vunpack.c.l.b16 %v723
    %v4216 = vunpack.c.h.b16 %v723
    %v4217 = vunpack.c.l.b16 %v724
    %v4218 = vunpack.c.h.b16 %v724
    %v4219 = vunpack.c.l.b16 %v725
    %v4220 = vunpack.c.h.b16 %v725
    %v4221 = vunpack.c.l.b16 %v726
    %v4222 = vunpack.c.h.b16 %v726
    %v4223 = vunpack.c.l.b16 %v727
    %v4224 = vunpack.c.h.b16 %v727
    %v4225 = vunpack.c.l.b16 %v728
    %v4226 = vunpack.c.h.b16 %v728
    %v4227 = vunpack.c.l.b16 %v729
    %v4228 = vunpack.c.h.b16 %v729
    %v4229 = vunpack.c.l.b16 %v730
    %v4230 = vunpack.c.h.b16 %v730
    %v4231 = vunpack.c.l.b16 %v731
    %v4232 = vunpack.c.h.b16 %v731
    %v4233 = vunpack.c.l.b16 %v732
    %v4234 = vunpack.c.h.b16 %v732
    %v4235 = vunpack.c.l.b16 %v733
    %v4236 = vunpack.c.h.b16 %v733
    %v4237 = vunpack.c.l.b16 %v734
    %v4238 = vunpack.c.h.b16 %v734
    %v4239 = vunpack.c.l.b16 %v735
    %v4240 = vunpack.c.h.b16 %v735
    %v4241 = vunpack.c.l.b16 %v736
    %v4242 = vunpack.c.h.b16 %v736
    %v4243 = vunpack.c.l.b16 %v737
    %v4244 = vunpack.c.h.b16 %v737
    %v4245 = vunpack.c.l.b16 %v738
    %v4246 = vunpack.c.h.b16 %v738
    %v4247 = vunpack.c.l.b16 %v739
    %v4248 = vunpack.c.h.b16 %v739
    %v4249 = vunpack.c.l.b16 %v740
    %v4250 = vunpack.c.h.b16 %v740
    %v4251 = vunpack.c.l.b16 %v741
    %v4252 = vunpack.c.h.b16 %v741
    %v4253 = vunpack.c.l.b16 %v742
    %v4254 = vunpack.c.h.b16 %v742
    %v4255 = vunpack.c.l.b16 %v743
    %v4256 = vunpack.c.h.b16 %v743
    %v4257 = vunpack.c.l.b16 %v744
    %v4258 = vunpack.c.h.b16 %v744
    %v4259 = vunpack.c.l.b16 %v745
    %v4260 = vunpack.c.h.b16 %v745
    %v4261 = vunpack.c.l.b16 %v746
    %v4262 = vunpack.c.h.b16 %v746
    %v4263 = vunpack.c.l.b16 %v747
    %v4264 = vunpack.c.h.b16 %v747
    %v4265 = vunpack.c.l.b16 %v748
    %v4266 = vunpack.c.h.b16 %v748
    %v4267 = vunpack.c.l.b16 %v749
    %v4268 = vunpack.c.h.b16 %v749
    %v4269 = vunpack.c.l.b16 %v750
    %v4270 = vunpack.c.h.b16 %v750
    %v4271 = vunpack.c.l.b16 %v751
    %v4272 = vunpack.c.h.b16 %v751
    %v4273 = vunpack.c.l.b16 %v752
    %v4274 = vunpack.c.h.b16 %v752
    %v4275 = vunpack.c.l.b16 %v753
    %v4276 = vunpack.c.h.b16 %v753
    %v4277 = vunpack.c.l.b16 %v754
    %v4278 = vunpack.c.h.b16 %v754
    %v4279 = vunpack.c.l.b16 %v755
    %v4280 = vunpack.c.h.b16 %v755
    %v4281 = vunpack.c.l.b16 %v756
    %v4282 = vunpack.c.h.b16 %v756
    %v4283 = vunpack.c.l.b16 %v757
    %v4284 = vunpack.c.h.b16 %v757
    %v4285 = vunpack.c.l.b16 %v758
    %v4286 = vunpack.c.h.b16 %v758
    %v4287 = vunpack.c.l.b16 %v759
    %v4288 = vunpack.c.h.b16 %v759
    %v4289 = vunpack.c.l.b16 %v760
    %v4290 = vunpack.c.h.b16 %v760
    %v4291 = vunpack.c.l.b16 %v761
    %v4292 = vunpack.c.h.b16 %v761
    %v4293 = vunpack.c.l.b16 %v762
    %v4294 = vunpack.c.h.b16 %v762
    %v4295 = vunpack.c.l.b16 %v763
    %v4296 = vunpack.c.h.b16 %v763
    %v4297 = vunpack.c.l.b16 %v764
    %v4298 = vunpack.c.h.b16 %v764
    %v4299 = vunpack.c.l.b16 %v765
    %v4300 = vunpack.c.h.b16 %v765
    %v4301 = vunpack.c.l.b16 %v766
    %v4302 = vunpack.c.h.b16 %v766
    %v4303 = vunpack.c.l.b16 %v767
    %v4304 = vunpack.c.h.b16 %v767
    %v4305 = vunpack.c.l.b16 %v768
    %v4306 = vunpack.c.h.b16 %v768
    %v4307 = vunpack.c.l.b16 %v769
    %v4308 = vunpack.c.h.b16 %v769
    %v4309 = vunpack.c.l.b16 %v770
    %v4310 = vunpack.c.h.b16 %v770
    %v4311 = vunpack.c.l.b16 %v771
    %v4312 = vunpack.c.h.b16 %v771
    %v4313 = vunpack.c.l.b16 %v772
    %v4314 = vunpack.c.h.b16 %v772
    %v4315 = vunpack.c.l.b16 %v773
    %v4316 = vunpack.c.h.b16 %v773
    %v4317 = vunpack.c.l.b16 %v774
    %v4318 = vunpack.c.h.b16 %v774
    %v4319 = vunpack.c.l.b16 %v775
    %v4320 = vunpack.c.h.b16 %v775
    %v4321 = vunpack.c.l.b16 %v776
    %v4322 = vunpack.c.h.b16 %v776
    %v4323 = vunpack.c.l.b16 %v777
    %v4324 = vunpack.c.h.b16 %v777
    %v4325 = vunpack.c.l.b16 %v778
    %v4326 = vunpack.c.h.b16 %v778
    %v4327 = vunpack.c.l.b16 %v779
    %v4328 = vunpack.c.h.b16 %v779
    %v4329 = vunpack.c.l.b16 %v780
    %v4330 = vunpack.c.h.b16 %v780
    %v4331 = vunpack.c.l.b16 %v781
    %v4332 = vunpack.c.h.b16 %v781
    %v4333 = vunpack.c.l.b16 %v782
    %v4334 = vunpack.c.h.b16 %v782
    %v4335 = vunpack.c.l.b16 %v783
    %v4336 = vunpack.c.h.b16 %v783
    %v4337 = vunpack.c.l.b16 %v784
    %v4338 = vunpack.c.h.b16 %v784
    %v4339 = vunpack.c.l.b16 %v785
    %v4340 = vunpack.c.h.b16 %v785
    %v4341 = vunpack.c.l.b16 %v786
    %v4342 = vunpack.c.h.b16 %v786
    %v4343 = vunpack.c.l.b16 %v787
    %v4344 = vunpack.c.h.b16 %v787
    %v4345 = vunpack.c.l.b16 %v788
    %v4346 = vunpack.c.h.b16 %v788
    %v4347 = vunpack.c.l.b16 %v789
    %v4348 = vunpack.c.h.b16 %v789
    %v4349 = vunpack.c.l.b16 %v790
    %v4350 = vunpack.c.h.b16 %v790
    %v4351 = vunpack.c.l.b16 %v791
    %v4352 = vunpack.c.h.b16 %v791
    %v4353 = vunpack.c.l.b16 %v792
    %v4354 = vunpack.c.h.b16 %v792
    %v4355 = vunpack.c.l.b16 %v793
    %v4356 = vunpack.c.h.b16 %v793
    %v4357 = vunpack.c.l.b16 %v794
    %v4358 = vunpack.c.h.b16 %v794
    %v4359 = vunpack.c.l.b16 %v795
    %v4360 = vunpack.c.h.b16 %v795
    %v4361 = vunpack.c.l.b16 %v796
    %v4362 = vunpack.c.h.b16 %v796
    %v4363 = vunpack.c.l.b16 %v797
    %v4364 = vunpack.c.h.b16 %v797
    %v4365 = vunpack.c.l.b16 %v798
    %v4366 = vunpack.c.h.b16 %v798
    %v4367 = vunpack.c.l.b16 %v799
    %v4368 = vunpack.c.h.b16 %v799
    %v4369 = vunpack.c.l.b16 %v800
    %v4370 = vunpack.c.h.b16 %v800
    %v4371 = vunpack.c.l.b16 %v801
    %v4372 = vunpack.c.h.b16 %v801
    %v4373 = vunpack.c.l.b16 %v802
    %v4374 = vunpack.c.h.b16 %v802
    %v4375 = vunpack.c.l.b16 %v803
    %v4376 = vunpack.c.h.b16 %v803
    %v4377 = vunpack.c.l.b16 %v804
    %v4378 = vunpack.c.h.b16 %v804
    %v4379 = vunpack.c.l.b16 %v805
    %v4380 = vunpack.c.h.b16 %v805
    %v4381 = vunpack.c.l.b16 %v806
    %v4382 = vunpack.c.h.b16 %v806
    %v4383 = vunpack.c.l.b16 %v807
    %v4384 = vunpack.c.h.b16 %v807
    %v4385 = vunpack.c.l.b16 %v808
    %v4386 = vunpack.c.h.b16 %v808
    %v4387 = vunpack.c.l.b16 %v809
    %v4388 = vunpack.c.h.b16 %v809
    %v4389 = vunpack.c.l.b16 %v810
    %v4390 = vunpack.c.h.b16 %v810
    %v4391 = vunpack.c.l.b16 %v811
    %v4392 = vunpack.c.h.b16 %v811
    %v4393 = vunpack.c.l.b16 %v812
    %v4394 = vunpack.c.h.b16 %v812
    %v4395 = vunpack.c.l.b16 %v813
    %v4396 = vunpack.c.h.b16 %v813
    %v4397 = vunpack.c.l.b16 %v814
    %v4398 = vunpack.c.h.b16 %v814
    %v4399 = vunpack.c.l.b16 %v815
    %v4400 = vunpack.c.h.b16 %v815
    %v4401 = vunpack.c.l.b16 %v816
    %v4402 = vunpack.c.h.b16 %v816
    %v4403 = vunpack.c.l.b16 %v817
    %v4404 = vunpack.c.h.b16 %v817
    %v4405 = vunpack.c.l.b16 %v818
    %v4406 = vunpack.c.h.b16 %v818
    %v4407 = vunpack.c.l.b16 %v819
    %v4408 = vunpack.c.h.b16 %v819
    %v4409 = vunpack.c.l.b16 %v820
    %v4410 = vunpack.c.h.b16 %v820
    %v4411 = vunpack.c.l.b16 %v821
    %v4412 = vunpack.c.h.b16 %v821
    %v4413 = vunpack.c.l.b16 %v822
    %v4414 = vunpack.c.h.b16 %v822
    %v4415 = vunpack.c.l.b16 %v823
    %v4416 = vunpack.c.h.b16 %v823
    %v4417 = vunpack.c.l.b16 %v824
    %v4418 = vunpack.c.h.b16 %v824
    %v4419 = vunpack.c.l.b16 %v825
    %v4420 = vunpack.c.h.b16 %v825
    %v4421 = vunpack.c.l.b16 %v826
    %v4422 = vunpack.c.h.b16 %v826
    %v4423 = vunpack.c.l.b16 %v827
    %v4424 = vunpack.c.h.b16 %v827
    %v4425 = vunpack.c.l.b16 %v828
    %v4426 = vunpack.c.h.b16 %v828
    %v4427 = vunpack.c.l.b16 %v829
    %v4428 = vunpack.c.h.b16 %v829
    %v4429 = vunpack.c.l.b16 %v830
    %v4430 = vunpack.c.h.b16 %v830
    %v4431 = vunpack.c.l.b16 %v831
    %v4432 = vunpack.c.h.b16 %v831
    %v4433 = vunpack.c.l.b16 %v832
    %v4434 = vunpack.c.h.b16 %v832
    %v4435 = vunpack.c.l.b16 %v833
    %v4436 = vunpack.c.h.b16 %v833
    %v4437 = vunpack.c.l.b16 %v834
    %v4438 = vunpack.c.h.b16 %v834
    %v4439 = vunpack.c.l.b16 %v835
    %v4440 = vunpack.c.h.b16 %v835
    %v4441 = vunpack.c.l.b16 %v836
    %v4442 = vunpack.c.h.b16 %v836
    %v4443 = vunpack.c.l.b16 %v837
    %v4444 = vunpack.c.h.b16 %v837
    %v4445 = vunpack.c.l.b16 %v838
    %v4446 = vunpack.c.h.b16 %v838
    %v4447 = vunpack.c.l.b16 %v839
    %v4448 = vunpack.c.h.b16 %v839
    %v4449 = vunpack.c.l.b16 %v840
    %v4450 = vunpack.c.h.b16 %v840
    %v4451 = vunpack.c.l.b16 %v841
    %v4452 = vunpack.c.h.b16 %v841
    %v4453 = vunpack.c.l.b16 %v842
    %v4454 = vunpack.c.h.b16 %v842
    %v4455 = vunpack.c.l.b16 %v843
    %v4456 = vunpack.c.h.b16 %v843
    %v4457 = vunpack.c.l.b16 %v844
    %v4458 = vunpack.c.h.b16 %v844
    %v4459 = vunpack.c.l.b16 %v845
    %v4460 = vunpack.c.h.b16 %v845
    %v4461 = vunpack.c.l.b16 %v846
    %v4462 = vunpack.c.h.b16 %v846
    %v4463 = vunpack.c.l.b16 %v847
    %v4464 = vunpack.c.h.b16 %v847
    %v4465 = vunpack.c.l.b16 %v848
    %v4466 = vunpack.c.h.b16 %v848
    %v4467 = vunpack.c.l.b16 %v849
    %v4468 = vunpack.c.h.b16 %v849
    %v4469 = vunpack.c.l.b16 %v850
    %v4470 = vunpack.c.h.b16 %v850
    %v4471 = vunpack.c.l.b16 %v851
    %v4472 = vunpack.c.h.b16 %v851
    %v4473 = vunpack.c.l.b16 %v852
    %v4474 = vunpack.c.h.b16 %v852
    %v4475 = vunpack.c.l.b16 %v853
    %v4476 = vunpack.c.h.b16 %v853
    %v4477 = vunpack.c.l.b16 %v854
    %v4478 = vunpack.c.h.b16 %v854
    %v4479 = vunpack.c.l.b16 %v855
    %v4480 = vunpack.c.h.b16 %v855
    %v4481 = vunpack.c.l.b16 %v856
    %v4482 = vunpack.c.h.b16 %v856
    %v4483 = vunpack.c.l.b16 %v857
    %v4484 = vunpack.c.h.b16 %v857
    %v4485 = vunpack.c.l.b16 %v858
    %v4486 = vunpack.c.h.b16 %v858
    %v4487 = vunpack.c.l.b16 %v859
    %v4488 = vunpack.c.h.b16 %v859
    %v4489 = vunpack.c.l.b16 %v860
    %v4490 = vunpack.c.h.b16 %v860
    %v4491 = vunpack.c.l.b16 %v861
    %v4492 = vunpack.c.h.b16 %v861
    %v4493 = vunpack.c.l.b16 %v862
    %v4494 = vunpack.c.h.b16 %v862
    %v4495 = vunpack.c.l.b16 %v863
    %v4496 = vunpack.c.h.b16 %v863
    %v4497 = vunpack.c.l.b16 %v864
    %v4498 = vunpack.c.h.b16 %v864
    %v4499 = vunpack.c.l.b16 %v865
    %v4500 = vunpack.c.h.b16 %v865
    %v4501 = vunpack.c.l.b16 %v866
    %v4502 = vunpack.c.h.b16 %v866
    %v4503 = vunpack.c.l.b16 %v867
    %v4504 = vunpack.c.h.b16 %v867
    %v4505 = vunpack.c.l.b16 %v868
    %v4506 = vunpack.c.h.b16 %v868
    %v4507 = vunpack.c.l.b16 %v869
    %v4508 = vunpack.c.h.b16 %v869
    %v4509 = vunpack.c.l.b16 %v870
    %v4510 = vunpack.c.h.b16 %v870
    %v4511 = vunpack.c.l.b16 %v871
    %v4512 = vunpack.c.h.b16 %v871
    %v4513 = vunpack.c.l.b16 %v872
    %v4514 = vunpack.c.h.b16 %v872
    %v4515 = vunpack.c.l.b16 %v873
    %v4516 = vunpack.c.h.b16 %v873
    %v4517 = vunpack.c.l.b16 %v874
    %v4518 = vunpack.c.h.b16 %v874
    %v4519 = vunpack.c.l.b16 %v875
    %v4520 = vunpack.c.h.b16 %v875
    %v4521 = vunpack.c.l.b16 %v876
    %v4522 = vunpack.c.h.b16 %v876
    %v4523 = vunpack.c.l.b16 %v877
    %v4524 = vunpack.c.h.b16 %v877
    %v4525 = vunpack.c.l.b16 %v878
    %v4526 = vunpack.c.h.b16 %v878
    %v4527 = vunpack.c.l.b16 %v879
    %v4528 = vunpack.c.h.b16 %v879
    %v4529 = vunpack.c.l.b16 %v880
    %v4530 = vunpack.c.h.b16 %v880
    %v4531 = vunpack.c.l.b16 %v881
    %v4532 = vunpack.c.h.b16 %v881
    %v4533 = vunpack.c.l.b16 %v882
    %v4534 = vunpack.c.h.b16 %v882
    %v4535 = vunpack.c.l.b16 %v883
    %v4536 = vunpack.c.h.b16 %v883
    %v4537 = vunpack.c.l.b16 %v884
    %v4538 = vunpack.c.h.b16 %v884
    %v4539 = vunpack.c.l.b16 %v885
    %v4540 = vunpack.c.h.b16 %v885
    %v4541 = vunpack.c.l.b16 %v886
    %v4542 = vunpack.c.h.b16 %v886
    %v4543 = vunpack.c.l.b16 %v887
    %v4544 = vunpack.c.h.b16 %v887
    %v4545 = vunpack.c.l.b16 %v888
    %v4546 = vunpack.c.h.b16 %v888
    %v4547 = vunpack.c.l.b16 %v889
    %v4548 = vunpack.c.h.b16 %v889
    %v4549 = vunpack.c.l.b16 %v890
    %v4550 = vunpack.c.h.b16 %v890
    %v4551 = vunpack.c.l.b16 %v891
    %v4552 = vunpack.c.h.b16 %v891
    %v4553 = vunpack.c.l.b16 %v892
    %v4554 = vunpack.c.h.b16 %v892
    %v4555 = vunpack.c.l.b16 %v893
    %v4556 = vunpack.c.h.b16 %v893
    %v4557 = vunpack.c.l.b16 %v894
    %v4558 = vunpack.c.h.b16 %v894
    %v4559 = vunpack.c.l.b16 %v895
    %v4560 = vunpack.c.h.b16 %v895
    %v4561 = vunpack.c.l.b16 %v896
    %v4562 = vunpack.c.h.b16 %v896
    %v4563 = vunpack.c.l.b16 %v897
    %v4564 = vunpack.c.h.b16 %v897
    %v4565 = vunpack.c.l.b16 %v898
    %v4566 = vunpack.c.h.b16 %v898
    %v4567 = vunpack.c.l.b16 %v899
    %v4568 = vunpack.c.h.b16 %v899
    %v4569 = vunpack.c.l.b16 %v900
    %v4570 = vunpack.c.h.b16 %v900
    %v4571 = vunpack.c.l.b16 %v901
    %v4572 = vunpack.c.h.b16 %v901
    %v4573 = vunpack.c.l.b16 %v902
    %v4574 = vunpack.c.h.b16 %v902
    %v4575 = vunpack.c.l.b16 %v903
    %v4576 = vunpack.c.h.b16 %v903
    %v4577 = vunpack.c.l.b16 %v904
    %v4578 = vunpack.c.h.b16 %v904
    %v4579 = vunpack.c.l.b16 %v905
    %v4580 = vunpack.c.h.b16 %v905
    %v4581 = vunpack.c.l.b16 %v906
    %v4582 = vunpack.c.h.b16 %v906
    %v4583 = vunpack.c.l.b16 %v907
    %v4584 = vunpack.c.h.b16 %v907
    %v4585 = vunpack.c.l.b16 %v908
    %v4586 = vunpack.c.h.b16 %v908
    %v4587 = vunpack.c.l.b16 %v909
    %v4588 = vunpack.c.h.b16 %v909
    %v4589 = vunpack.c.l.b16 %v910
    %v4590 = vunpack.c.h.b16 %v910
    %v4591 = vunpack.c.l.b16 %v911
    %v4592 = vunpack.c.h.b16 %v911
    %v4593 = vunpack.c.l.b16 %v912
    %v4594 = vunpack.c.h.b16 %v912
    %v4595 = vunpack.c.l.b16 %v913
    %v4596 = vunpack.c.h.b16 %v913
    %v4597 = vunpack.c.l.b16 %v914
    %v4598 = vunpack.c.h.b16 %v914
    %v4599 = vunpack.c.l.b16 %v915
    %v4600 = vunpack.c.h.b16 %v915
    %v4601 = vunpack.c.l.b16 %v916
    %v4602 = vunpack.c.h.b16 %v916
    %v4603 = vunpack.c.l.b16 %v917
    %v4604 = vunpack.c.h.b16 %v917
    %v4605 = vunpack.c.l.b16 %v918
    %v4606 = vunpack.c.h.b16 %v918
    %v4607 = vunpack.c.l.b16 %v919
    %v4608 = vunpack.c.h.b16 %v919
    %v4609 = vunpack.c.l.b16 %v920
    %v4610 = vunpack.c.h.b16 %v920
    %v4611 = vunpack.c.l.b16 %v921
    %v4612 = vunpack.c.h.b16 %v921
    %v4613 = vunpack.c.l.b16 %v922
    %v4614 = vunpack.c.h.b16 %v922
    %v4615 = vunpack.c.l.b16 %v923
    %v4616 = vunpack.c.h.b16 %v923
    %v4617 = vunpack.c.l.b16 %v924
    %v4618 = vunpack.c.h.b16 %v924
    %v4619 = vunpack.c.l.b16 %v925
    %v4620 = vunpack.c.h.b16 %v925
    %v4621 = vunpack.c.l.b16 %v926
    %v4622 = vunpack.c.h.b16 %v926
    %v4623 = vunpack.c.l.b16 %v927
    %v4624 = vunpack.c.h.b16 %v927
    %v4625 = vunpack.c.l.b16 %v928
    %v4626 = vunpack.c.h.b16 %v928
    %v4627 = vunpack.c.l.b16 %v929
    %v4628 = vunpack.c.h.b16 %v929
    %v4629 = vunpack.c.l.b16 %v930
    %v4630 = vunpack.c.h.b16 %v930
    %v4631 = vunpack.c.l.b16 %v931
    %v4632 = vunpack.c.h.b16 %v931
    %v4633 = vunpack.c.l.b16 %v932
    %v4634 = vunpack.c.h.b16 %v932
    %v4635 = vunpack.c.l.b16 %v933
    %v4636 = vunpack.c.h.b16 %v933
    %v4637 = vunpack.c.l.b16 %v934
    %v4638 = vunpack.c.h.b16 %v934
    %v4639 = vunpack.c.l.b16 %v935
    %v4640 = vunpack.c.h.b16 %v935
    %v4641 = vunpack.c.l.b16 %v936
    %v4642 = vunpack.c.h.b16 %v936
    %v4643 = vunpack.c.l.b16 %v937
    %v4644 = vunpack.c.h.b16 %v937
    %v4645 = vunpack.c.l.b16 %v938
    %v4646 = vunpack.c.h.b16 %v938
    %v4647 = vunpack.c.l.b16 %v939
    %v4648 = vunpack.c.h.b16 %v939
    %v4649 = vunpack.c.l.b16 %v940
    %v4650 = vunpack.c.h.b16 %v940
    %v4651 = vunpack.c.l.b16 %v941
    %v4652 = vunpack.c.h.b16 %v941
    %v4653 = vunpack.c.l.b16 %v942
    %v4654 = vunpack.c.h.b16 %v942
    %v4655 = vunpack.c.l.b16 %v943
    %v4656 = vunpack.c.h.b16 %v943
    %v4657 = vunpack.c.l.b16 %v944
    %v4658 = vunpack.c.h.b16 %v944
    %v4659 = vunpack.c.l.b16 %v945
    %v4660 = vunpack.c.h.b16 %v945
    %v4661 = vunpack.c.l.b16 %v946
    %v4662 = vunpack.c.h.b16 %v946
    %v4663 = vunpack.c.l.b16 %v947
    %v4664 = vunpack.c.h.b16 %v947
    %v4665 = vunpack.c.l.b16 %v948
    %v4666 = vunpack.c.h.b16 %v948
    %v4667 = vunpack.c.l.b16 %v949
    %v4668 = vunpack.c.h.b16 %v949
    %v4669 = vunpack.c.l.b16 %v950
    %v4670 = vunpack.c.h.b16 %v950
    %v4671 = vunpack.c.l.b16 %v951
    %v4672 = vunpack.c.h.b16 %v951
    %v4673 = vunpack.c.l.b16 %v952
    %v4674 = vunpack.c.h.b16 %v952
    %v4675 = vunpack.c.l.b16 %v953
    %v4676 = vunpack.c.h.b16 %v953
    %v4677 = vunpack.c.l.b16 %v954
    %v4678 = vunpack.c.h.b16 %v954
    %v4679 = vunpack.c.l.b16 %v955
    %v4680 = vunpack.c.h.b16 %v955
    %v4681 = vunpack.c.l.b16 %v956
    %v4682 = vunpack.c.h.b16 %v956
    %v4683 = vunpack.c.l.b16 %v957
    %v4684 = vunpack.c.h.b16 %v957
    %v4685 = vunpack.c.l.b16 %v958
    %v4686 = vunpack.c.h.b16 %v958
    %v4687 = vunpack.c.l.b16 %v959
    %v4688 = vunpack.c.h.b16 %v959
    %v4689 = vunpack.c.l.b16 %v960
    %v4690 = vunpack.c.h.b16 %v960
    %v4691 = vunpack.c.l.b16 %v961
    %v4692 = vunpack.c.h.b16 %v961
    %v4693 = vunpack.c.l.b16 %v962
    %v4694 = vunpack.c.h.b16 %v962
    %v4695 = vunpack.c.l.b16 %v963
    %v4696 = vunpack.c.h.b16 %v963
    %v4697 = vunpack.c.l.b16 %v964
    %v4698 = vunpack.c.h.b16 %v964
    %v4699 = vunpack.c.l.b16 %v965
    %v4700 = vunpack.c.h.b16 %v965
    %v4701 = vunpack.c.l.b16 %v966
    %v4702 = vunpack.c.h.b16 %v966
    %v4703 = vunpack.c.l.b16 %v967
    %v4704 = vunpack.c.h.b16 %v967
    %v4705 = vunpack.c.l.b16 %v968
    %v4706 = vunpack.c.h.b16 %v968
    %v4707 = vunpack.c.l.b16 %v969
    %v4708 = vunpack.c.h.b16 %v969
    %v4709 = vunpack.c.l.b16 %v970
    %v4710 = vunpack.c.h.b16 %v970
    %v4711 = vunpack.c.l.b16 %v971
    %v4712 = vunpack.c.h.b16 %v971
    %v4713 = vunpack.c.l.b16 %v972
    %v4714 = vunpack.c.h.b16 %v972
    %v4715 = vunpack.c.l.b16 %v973
    %v4716 = vunpack.c.h.b16 %v973
    %v4717 = vunpack.c.l.b16 %v974
    %v4718 = vunpack.c.h.b16 %v974
    %v4719 = vunpack.c.l.b16 %v975
    %v4720 = vunpack.c.h.b16 %v975
    %v4721 = vunpack.c.l.b16 %v976
    %v4722 = vunpack.c.h.b16 %v976
    %v4723 = vunpack.c.l.b16 %v977
    %v4724 = vunpack.c.h.b16 %v977
    %v4725 = vunpack.c.l.b16 %v978
    %v4726 = vunpack.c.h.b16 %v978
    %v4727 = vunpack.c.l.b16 %v979
    %v4728 = vunpack.c.h.b16 %v979
    %v4729 = vunpack.c.l.b16 %v980
    %v4730 = vunpack.c.h.b16 %v980
    %v4731 = vunpack.c.l.b16 %v981
    %v4732 = vunpack.c.h.b16 %v981
    %v4733 = vunpack.c.l.b16 %v982
    %v4734 = vunpack.c.h.b16 %v982
    %v4735 = vunpack.c.l.b16 %v983
    %v4736 = vunpack.c.h.b16 %v983
    %v4737 = vunpack.c.l.b16 %v984
    %v4738 = vunpack.c.h.b16 %v984
    %v4739 = vunpack.c.l.b16 %v985
    %v4740 = vunpack.c.h.b16 %v985
    %v4741 = vunpack.c.l.b16 %v986
    %v4742 = vunpack.c.h.b16 %v986
    %v4743 = vunpack.c.l.b16 %v987
    %v4744 = vunpack.c.h.b16 %v987
    %v4745 = vunpack.c.l.b16 %v988
    %v4746 = vunpack.c.h.b16 %v988
    %v4747 = vunpack.c.l.b16 %v989
    %v4748 = vunpack.c.h.b16 %v989
    %v4749 = vunpack.c.l.b16 %v990
    %v4750 = vunpack.c.h.b16 %v990
    %v4751 = vunpack.c.l.b16 %v991
    %v4752 = vunpack.c.h.b16 %v991
    %v4753 = vunpack.c.l.b16 %v992
    %v4754 = vunpack.c.h.b16 %v992
    %v4755 = vunpack.c.l.b16 %v993
    %v4756 = vunpack.c.h.b16 %v993
    %v4757 = vunpack.c.l.b16 %v994
    %v4758 = vunpack.c.h.b16 %v994
    %v4759 = vunpack.c.l.b16 %v995
    %v4760 = vunpack.c.h.b16 %v995
    %v4761 = vunpack.c.l.b16 %v996
    %v4762 = vunpack.c.h.b16 %v996
    %v4763 = vunpack.c.l.b16 %v997
    %v4764 = vunpack.c.h.b16 %v997
    %v4765 = vunpack.c.l.b16 %v998
    %v4766 = vunpack.c.h.b16 %v998
    %v4767 = vunpack.c.l.b16 %v999
    %v4768 = vunpack.c.h.b16 %v999
    %v4769 = vunpack.c.l.b16 %v1000
    %v4770 = vunpack.c.h.b16 %v1000
    %v4771 = vunpack.c.l.b16 %v1001
    %v4772 = vunpack.c.h.b16 %v1001
    %v4773 = vunpack.c.l.b16 %v1002
    %v4774 = vunpack.c.h.b16 %v1002
    %v4775 = vunpack.c.l.b16 %v1003
    %v4776 = vunpack.c.h.b16 %v1003
    %v4777 = vunpack.c.l.b16 %v1004
    %v4778 = vunpack.c.h.b16 %v1004
    %v4779 = vunpack.c.l.b16 %v1005
    %v4780 = vunpack.c.h.b16 %v1005
    %v4781 = vunpack.c.l.b16 %v1006
    %v4782 = vunpack.c.h.b16 %v1006
    %v4783 = vunpack.c.l.b16 %v1007
    %v4784 = vunpack.c.h.b16 %v1007
    %v4785 = vunpack.c.l.b16 %v1008
    %v4786 = vunpack.c.h.b16 %v1008
    %v4787 = vunpack.c.l.b16 %v1009
    %v4788 = vunpack.c.h.b16 %v1009
    %v4789 = vunpack.c.l.b16 %v1010
    %v4790 = vunpack.c.h.b16 %v1010
    %v4791 = vunpack.c.l.b16 %v1011
    %v4792 = vunpack.c.h.b16 %v1011
    %v4793 = vunpack.c.l.b16 %v1012
    %v4794 = vunpack.c.h.b16 %v1012
    %v4795 = vunpack.c.l.b16 %v1013
    %v4796 = vunpack.c.h.b16 %v1013
    %v4797 = vunpack.c.l.b16 %v1014
    %v4798 = vunpack.c.h.b16 %v1014
    %v4799 = vunpack.c.l.b16 %v1015
    %v4800 = vunpack.c.h.b16 %v1015
    %v4801 = vunpack.c.l.b16 %v1016
    %v4802 = vunpack.c.h.b16 %v1016
    %v4803 = vunpack.c.l.b16 %v1017
    %v4804 = vunpack.c.h.b16 %v1017
    %v4805 = vunpack.c.l.b16 %v1018
    %v4806 = vunpack.c.h.b16 %v1018
    %v4807 = vunpack.c.l.b16 %v1019
    %v4808 = vunpack.c.h.b16 %v1019
    %v4809 = vunpack.c.l.b16 %v1020
    %v4810 = vunpack.c.h.b16 %v1020
    %v4811 = vunpack.c.l.b16 %v1021
    %v4812 = vunpack.c.h.b16 %v1021
    %v4813 = vunpack.c.l.b16 %v1022
    %v4814 = vunpack.c.h.b16 %v1022
    %v4815 = vunpack.c.l.b16 %v1023
    %v4816 = vunpack.c.h.b16 %v1023
    %v4817 = vunpack.c.l.b16 %v1024
    %v4818 = vunpack.c.h.b16 %v1024
    %v4819 = vunpack.c.l.b16 %v1025
    %v4820 = vunpack.c.h.b16 %v1025
    %v4821 = vunpack.c.l.b16 %v1026
    %v4822 = vunpack.c.h.b16 %v1026
    %v4823 = vunpack.c.l.b16 %v1027
    %v4824 = vunpack.c.h.b16 %v1027
    %v4825 = vunpack.c.l.b16 %v1028
    %v4826 = vunpack.c.h.b16 %v1028
    %v4827 = vunpack.c.l.b16 %v1029
    %v4828 = vunpack.c.h.b16 %v1029
    %v4829 = vunpack.c.l.b16 %v1030
    %v4830 = vunpack.c.h.b16 %v1030
    %v4831 = vunpack.c.l.b16 %v1031
    %v4832 = vunpack.c.h.b16 %v1031
    %v4833 = vunpack.c.l.b16 %v1032
    %v4834 = vunpack.c.h.b16 %v1032
    %v4835 = vunpack.c.l.b16 %v1033
    %v4836 = vunpack.c.h.b16 %v1033
    %v4837 = vunpack.c.l.b16 %v1034
    %v4838 = vunpack.c.h.b16 %v1034
    %v4839 = vunpack.c.l.b16 %v1035
    %v4840 = vunpack.c.h.b16 %v1035
    %v4841 = vunpack.c.l.b16 %v1036
    %v4842 = vunpack.c.h.b16 %v1036
    %v4843 = vunpack.c.l.b16 %v1037
    %v4844 = vunpack.c.h.b16 %v1037
    %v4845 = vunpack.c.l.b16 %v1038
    %v4846 = vunpack.c.h.b16 %v1038
    %v4847 = vunpack.c.l.b16 %v1039
    %v4848 = vunpack.c.h.b16 %v1039
    %v4849 = vunpack.c.l.b16 %v1040
    %v4850 = vunpack.c.h.b16 %v1040
    %v4851 = vunpack.c.l.b16 %v1041
    %v4852 = vunpack.c.h.b16 %v1041
    %v4853 = vunpack.c.l.b16 %v1042
    %v4854 = vunpack.c.h.b16 %v1042
    %v4855 = vunpack.c.l.b16 %v1043
    %v4856 = vunpack.c.h.b16 %v1043
    %v4857 = vunpack.c.l.b16 %v1044
    %v4858 = vunpack.c.h.b16 %v1044
    %v4859 = vunpack.c.l.b16 %v1045
    %v4860 = vunpack.c.h.b16 %v1045
    %v4861 = vunpack.c.l.b16 %v1046
    %v4862 = vunpack.c.h.b16 %v1046
    %v4863 = vunpack.c.l.b16 %v1047
    %v4864 = vunpack.c.h.b16 %v1047
    %v4865 = vunpack.c.l.b16 %v1048
    %v4866 = vunpack.c.h.b16 %v1048
    %v4867 = vunpack.c.l.b16 %v1049
    %v4868 = vunpack.c.h.b16 %v1049
    %v4869 = vunpack.c.l.b16 %v1050
    %v4870 = vunpack.c.h.b16 %v1050
    %v4871 = vunpack.c.l.b16 %v1051
    %v4872 = vunpack.c.h.b16 %v1051
    %v4873 = vunpack.c.l.b16 %v1052
    %v4874 = vunpack.c.h.b16 %v1052
    %v4875 = vunpack.c.l.b16 %v1053
    %v4876 = vunpack.c.h.b16 %v1053
    %v4877 = vunpack.c.l.b16 %v1054
    %v4878 = vunpack.c.h.b16 %v1054
    %v4879 = vunpack.c.l.b16 %v1055
    %v4880 = vunpack.c.h.b16 %v1055
    %v4881 = vunpack.c.l.b16 %v1056
    %v4882 = vunpack.c.h.b16 %v1056
    %v4883 = vunpack.c.l.b16 %v1057
    %v4884 = vunpack.c.h.b16 %v1057
    %v4885 = vunpack.c.l.b16 %v1058
    %v4886 = vunpack.c.h.b16 %v1058
    %v4887 = vunpack.c.l.b16 %v1059
    %v4888 = vunpack.c.h.b16 %v1059
    %v4889 = vunpack.c.l.b16 %v1060
    %v4890 = vunpack.c.h.b16 %v1060
    %v4891 = vunpack.c.l.b16 %v1061
    %v4892 = vunpack.c.h.b16 %v1061
    %v4893 = vunpack.c.l.b16 %v1062
    %v4894 = vunpack.c.h.b16 %v1062
    %v4895 = vunpack.c.l.b16 %v1063
    %v4896 = vunpack.c.h.b16 %v1063
    %v4897 = vunpack.c.l.b16 %v1064
    %v4898 = vunpack.c.h.b16 %v1064
    %v4899 = vunpack.c.l.b16 %v1065
    %v4900 = vunpack.c.h.b16 %v1065
    %v4901 = vunpack.c.l.b16 %v1066
    %v4902 = vunpack.c.h.b16 %v1066
    %v4903 = vunpack.c.l.b16 %v1067
    %v4904 = vunpack.c.h.b16 %v1067
    %v4905 = vunpack.c.l.b16 %v1068
    %v4906 = vunpack.c.h.b16 %v1068
    %v4907 = vunpack.c.l.b16 %v1069
    %v4908 = vunpack.c.h.b16 %v1069
    %v4909 = vunpack.c.l.b16 %v1070
    %v4910 = vunpack.c.h.b16 %v1070
    %v4911 = vunpack.c.l.b16 %v1071
    %v4912 = vunpack.c.h.b16 %v1071
    %v4913 = vunpack.c.l.b16 %v1072
    %v4914 = vunpack.c.h.b16 %v1072
    %v4915 = vunpack.c.l.b16 %v1073
    %v4916 = vunpack.c.h.b16 %v1073
    %v4917 = vunpack.c.l.b16 %v1074
    %v4918 = vunpack.c.h.b16 %v1074
    %v4919 = vunpack.c.l.b16 %v1075
    %v4920 = vunpack.c.h.b16 %v1075
    %v4921 = vunpack.c.l.b16 %v1076
    %v4922 = vunpack.c.h.b16 %v1076
    %v4923 = vunpack.c.l.b16 %v1077
    %v4924 = vunpack.c.h.b16 %v1077
    %v4925 = vunpack.c.l.b16 %v1078
    %v4926 = vunpack.c.h.b16 %v1078
    %v4927 = vunpack.c.l.b16 %v1079
    %v4928 = vunpack.c.h.b16 %v1079
    %v4929 = vunpack.c.l.b16 %v1080
    %v4930 = vunpack.c.h.b16 %v1080
    %v4931 = vunpack.c.l.b16 %v1081
    %v4932 = vunpack.c.h.b16 %v1081
    %v4933 = vunpack.c.l.b16 %v1082
    %v4934 = vunpack.c.h.b16 %v1082
    %v4935 = vunpack.c.l.b16 %v1083
    %v4936 = vunpack.c.h.b16 %v1083
    %v4937 = vunpack.c.l.b16 %v1084
    %v4938 = vunpack.c.h.b16 %v1084
    %v4939 = vunpack.c.l.b16 %v1085
    %v4940 = vunpack.c.h.b16 %v1085
    %v4941 = vunpack.c.l.b16 %v1086
    %v4942 = vunpack.c.h.b16 %v1086
    %v4943 = vunpack.c.l.b16 %v1087
    %v4944 = vunpack.c.h.b16 %v1087
    %v4945 = vunpack.c.l.b16 %v1088
    %v4946 = vunpack.c.h.b16 %v1088
    %v4947 = vunpack.c.l.b16 %v1089
    %v4948 = vunpack.c.h.b16 %v1089
    %v4949 = vunpack.c.l.b16 %v1090
    %v4950 = vunpack.c.h.b16 %v1090
    %v4951 = vunpack.c.l.b16 %v1091
    %v4952 = vunpack.c.h.b16 %v1091
    %v4953 = vunpack.c.l.b16 %v1092
    %v4954 = vunpack.c.h.b16 %v1092
    %v4955 = vunpack.c.l.b16 %v1093
    %v4956 = vunpack.c.h.b16 %v1093
    %v4957 = vunpack.c.l.b16 %v1094
    %v4958 = vunpack.c.h.b16 %v1094
    %v4959 = vunpack.c.l.b16 %v1095
    %v4960 = vunpack.c.h.b16 %v1095
    %v4961 = vunpack.c.l.b16 %v1096
    %v4962 = vunpack.c.h.b16 %v1096
    %v4963 = vunpack.c.l.b16 %v1097
    %v4964 = vunpack.c.h.b16 %v1097
    %v4965 = vunpack.c.l.b16 %v1098
    %v4966 = vunpack.c.h.b16 %v1098
    %v4967 = vunpack.c.l.b16 %v1099
    %v4968 = vunpack.c.h.b16 %v1099
    %v4969 = vunpack.c.l.b16 %v1100
    %v4970 = vunpack.c.h.b16 %v1100
    %v4971 = vunpack.c.l.b16 %v1101
    %v4972 = vunpack.c.h.b16 %v1101
    %v4973 = vunpack.c.l.b16 %v1102
    %v4974 = vunpack.c.h.b16 %v1102
    %v4975 = vunpack.c.l.b16 %v1103
    %v4976 = vunpack.c.h.b16 %v1103
    %v4977 = vunpack.c.l.b16 %v1104
    %v4978 = vunpack.c.h.b16 %v1104
    %v4979 = vunpack.c.l.b16 %v1105
    %v4980 = vunpack.c.h.b16 %v1105
    %v4981 = vunpack.c.l.b16 %v1106
    %v4982 = vunpack.c.h.b16 %v1106
    %v4983 = vunpack.c.l.b16 %v1107
    %v4984 = vunpack.c.h.b16 %v1107
    %v4985 = vunpack.c.l.b16 %v1108
    %v4986 = vunpack.c.h.b16 %v1108
    %v4987 = vunpack.c.l.b16 %v1109
    %v4988 = vunpack.c.h.b16 %v1109
    %v4989 = vunpack.c.l.b16 %v1110
    %v4990 = vunpack.c.h.b16 %v1110
    %v4991 = vunpack.c.l.b16 %v1111
    %v4992 = vunpack.c.h.b16 %v1111
    %v4993 = vunpack.c.l.b16 %v1112
    %v4994 = vunpack.c.h.b16 %v1112
    %v4995 = vunpack.c.l.b16 %v1113
    %v4996 = vunpack.c.h.b16 %v1113
    %v4997 = vunpack.c.l.b16 %v1114
    %v4998 = vunpack.c.h.b16 %v1114
    %v4999 = vunpack.c.l.b16 %v1115
    %v5000 = vunpack.c.h.b16 %v1115
    %v5001 = vunpack.c.l.b16 %v1116
    %v5002 = vunpack.c.h.b16 %v1116
    %v5003 = vunpack.c.l.b16 %v1117
    %v5004 = vunpack.c.h.b16 %v1117
    %v5005 = vunpack.c.l.b16 %v1118
    %v5006 = vunpack.c.h.b16 %v1118
    %v5007 = vunpack.c.l.b16 %v1119
    %v5008 = vunpack.c.h.b16 %v1119
    %v5009 = vunpack.c.l.b16 %v1120
    %v5010 = vunpack.c.h.b16 %v1120
    %v5011 = vunpack.c.l.b16 %v1121
    %v5012 = vunpack.c.h.b16 %v1121
    %v5013 = vunpack.c.l.b16 %v1122
    %v5014 = vunpack.c.h.b16 %v1122
    %v5015 = vunpack.c.l.b16 %v1123
    %v5016 = vunpack.c.h.b16 %v1123
    %v5017 = vunpack.c.l.b16 %v1124
    %v5018 = vunpack.c.h.b16 %v1124
    %v5019 = vunpack.c.l.b16 %v1125
    %v5020 = vunpack.c.h.b16 %v1125
    %v5021 = vunpack.c.l.b16 %v1126
    %v5022 = vunpack.c.h.b16 %v1126
    %v5023 = vunpack.c.l.b16 %v1127
    %v5024 = vunpack.c.h.b16 %v1127
    %v5025 = vunpack.c.l.b16 %v1128
    %v5026 = vunpack.c.h.b16 %v1128
    %v5027 = vunpack.c.l.b16 %v1129
    %v5028 = vunpack.c.h.b16 %v1129
    %v5029 = vunpack.c.l.b16 %v1130
    %v5030 = vunpack.c.h.b16 %v1130
    %v5031 = vunpack.c.l.b16 %v1131
    %v5032 = vunpack.c.h.b16 %v1131
    %v5033 = vunpack.c.l.b16 %v1132
    %v5034 = vunpack.c.h.b16 %v1132
    %v5035 = vunpack.c.l.b16 %v1133
    %v5036 = vunpack.c.h.b16 %v1133
    %v5037 = vunpack.c.l.b16 %v1134
    %v5038 = vunpack.c.h.b16 %v1134
    %v5039 = vunpack.c.l.b16 %v1135
    %v5040 = vunpack.c.h.b16 %v1135
    %v5041 = vunpack.c.l.b16 %v1136
    %v5042 = vunpack.c.h.b16 %v1136
    %v5043 = vunpack.c.l.b16 %v1137
    %v5044 = vunpack.c.h.b16 %v1137
    %v5045 = vunpack.c.l.b16 %v1138
    %v5046 = vunpack.c.h.b16 %v1138
    %v5047 = vunpack.c.l.b16 %v1139
    %v5048 = vunpack.c.h.b16 %v1139
    %v5049 = vunpack.c.l.b16 %v1140
    %v5050 = vunpack.c.h.b16 %v1140
    %v5051 = vunpack.c.l.b16 %v1141
    %v5052 = vunpack.c.h.b16 %v1141
    %v5053 = vunpack.c.l.b16 %v1142
    %v5054 = vunpack.c.h.b16 %v1142
    %v5055 = vunpack.c.l.b16 %v1143
    %v5056 = vunpack.c.h.b16 %v1143
    %v5057 = vunpack.c.l.b16 %v1144
    %v5058 = vunpack.c.h.b16 %v1144
    %v5059 = vunpack.c.l.b16 %v1145
    %v5060 = vunpack.c.h.b16 %v1145
    %v5061 = vunpack.c.l.b16 %v1146
    %v5062 = vunpack.c.h.b16 %v1146
    %v5063 = vunpack.c.l.b16 %v1147
    %v5064 = vunpack.c.h.b16 %v1147
    %v5065 = vunpack.c.l.b16 %v1148
    %v5066 = vunpack.c.h.b16 %v1148
    %v5067 = vunpack.c.l.b16 %v1149
    %v5068 = vunpack.c.h.b16 %v1149
    %v5069 = vunpack.c.l.b16 %v1150
    %v5070 = vunpack.c.h.b16 %v1150
    %v5071 = vunpack.c.l.b16 %v1151
    %v5072 = vunpack.c.h.b16 %v1151
    %v5073 = vunpack.c.l.b16 %v1152
    %v5074 = vunpack.c.h.b16 %v1152
    %v5075 = vunpack.c.l.b16 %v1153
    %v5076 = vunpack.c.h.b16 %v1153
    %v5077 = vunpack.c.l.b16 %v1154
    %v5078 = vunpack.c.h.b16 %v1154
    %v5079 = vunpack.c.l.b16 %v1155
    %v5080 = vunpack.c.h.b16 %v1155
    %v5081 = vunpack.c.l.b16 %v1156
    %v5082 = vunpack.c.h.b16 %v1156
    %v5083 = vunpack.c.l.b16 %v1157
    %v5084 = vunpack.c.h.b16 %v1157
    %v5085 = vunpack.c.l.b16 %v1158
    %v5086 = vunpack.c.h.b16 %v1158
    %v5087 = vunpack.c.l.b16 %v1159
    %v5088 = vunpack.c.h.b16 %v1159
    %v5089 = vunpack.c.l.b16 %v1160
    %v5090 = vunpack.c.h.b16 %v1160
    %v5091 = vunpack.c.l.b16 %v1161
    %v5092 = vunpack.c.h.b16 %v1161
    %v5093 = vunpack.c.l.b16 %v1162
    %v5094 = vunpack.c.h.b16 %v1162
    %v5095 = vunpack.c.l.b16 %v1163
    %v5096 = vunpack.c.h.b16 %v1163
    %v5097 = vunpack.c.l.b16 %v1164
    %v5098 = vunpack.c.h.b16 %v1164
    %v5099 = vunpack.c.l.b16 %v1165
    %v5100 = vunpack.c.h.b16 %v1165
    %v5101 = vunpack.c.l.b16 %v1166
    %v5102 = vunpack.c.h.b16 %v1166
    %v5103 = vunpack.c.l.b16 %v1167
    %v5104 = vunpack.c.h.b16 %v1167
    %v5105 = vunpack.c.l.b16 %v1168
    %v5106 = vunpack.c.h.b16 %v1168
    %v5107 = vunpack.c.l.b16 %v1169
    %v5108 = vunpack.c.h.b16 %v1169
    %v5109 = vunpack.c.l.b16 %v1170
    %v5110 = vunpack.c.h.b16 %v1170
    %v5111 = vunpack.c.l.b16 %v1171
    %v5112 = vunpack.c.h.b16 %v1171
    %v5113 = vunpack.c.l.b16 %v1172
    %v5114 = vunpack.c.h.b16 %v1172
    %v5115 = vunpack.c.l.b16 %v1173
    %v5116 = vunpack.c.h.b16 %v1173
    %v5117 = vunpack.c.l.b16 %v1174
    %v5118 = vunpack.c.h.b16 %v1174
    %v5119 = vunpack.c.l.b16 %v1175
    %v5120 = vunpack.c.h.b16 %v1175
    %v5121 = vunpack.c.l.b16 %v1176
    %v5122 = vunpack.c.h.b16 %v1176
    %v5123 = vunpack.c.l.b16 %v1177
    %v5124 = vunpack.c.h.b16 %v1177
    %v5125 = vunpack.c.l.b16 %v1178
    %v5126 = vunpack.c.h.b16 %v1178
    %v5127 = vunpack.c.l.b16 %v1179
    %v5128 = vunpack.c.h.b16 %v1179
    %v5129 = vunpack.c.l.b16 %v1180
    %v5130 = vunpack.c.h.b16 %v1180
    %v5131 = vunpack.c.l.b16 %v1181
    %v5132 = vunpack.c.h.b16 %v1181
    %v5133 = vunpack.c.l.b16 %v1182
    %v5134 = vunpack.c.h.b16 %v1182
    %v5135 = vunpack.c.l.b16 %v1183
    %v5136 = vunpack.c.h.b16 %v1183
    %v5137 = vunpack.c.l.b16 %v1184
    %v5138 = vunpack.c.h.b16 %v1184
    %v5139 = vunpack.c.l.b16 %v1185
    %v5140 = vunpack.c.h.b16 %v1185
    %v5141 = vunpack.c.l.b16 %v1186
    %v5142 = vunpack.c.h.b16 %v1186
    %v5143 = vunpack.c.l.b16 %v1187
    %v5144 = vunpack.c.h.b16 %v1187
    %v5145 = vunpack.c.l.b16 %v1188
    %v5146 = vunpack.c.h.b16 %v1188
    %v5147 = vunpack.c.l.b16 %v1189
    %v5148 = vunpack.c.h.b16 %v1189
    %v5149 = vunpack.c.l.b16 %v1190
    %v5150 = vunpack.c.h.b16 %v1190
    %v5151 = vunpack.c.l.b16 %v1191
    %v5152 = vunpack.c.h.b16 %v1191
    %v5153 = vunpack.c.l.b16 %v1192
    %v5154 = vunpack.c.h.b16 %v1192
    %v5155 = vunpack.c.l.b16 %v1193
    %v5156 = vunpack.c.h.b16 %v1193
    %v5157 = vunpack.c.l.b16 %v1194
    %v5158 = vunpack.c.h.b16 %v1194
    %v5159 = vunpack.c.l.b16 %v1195
    %v5160 = vunpack.c.h.b16 %v1195
    %v5161 = vunpack.c.l.b16 %v1196
    %v5162 = vunpack.c.h.b16 %v1196
    %v5163 = vunpack.c.l.b16 %v1197
    %v5164 = vunpack.c.h.b16 %v1197
    %v5165 = vunpack.c.l.b16 %v1198
    %v5166 = vunpack.c.h.b16 %v1198
    %v5167 = vunpack.c.l.b16 %v1199
    %v5168 = vunpack.c.h.b16 %v1199
    %v5169 = vunpack.c.l.b16 %v1200
    %v5170 = vunpack.c.h.b16 %v1200
    %v5171 = vunpack.c.l.b16 %v1201
    %v5172 = vunpack.c.h.b16 %v1201
    %v5173 = vunpack.c.l.b16 %v1202
    %v5174 = vunpack.c.h.b16 %v1202
    %v5175 = vunpack.c.l.b16 %v1203
    %v5176 = vunpack.c.h.b16 %v1203
    %v5177 = vunpack.c.l.b16 %v1204
    %v5178 = vunpack.c.h.b16 %v1204
    %v5179 = vunpack.c.l.b16 %v1205
    %v5180 = vunpack.c.h.b16 %v1205
    %v5181 = vunpack.c.l.b16 %v1206
    %v5182 = vunpack.c.h.b16 %v1206
    %v5183 = vunpack.c.l.b16 %v1207
    %v5184 = vunpack.c.h.b16 %v1207
    %v5185 = vunpack.c.l.b16 %v1208
    %v5186 = vunpack.c.h.b16 %v1208
    %v5187 = vunpack.c.l.b16 %v1209
    %v5188 = vunpack.c.h.b16 %v1209
    %v5189 = vunpack.c.l.b16 %v1210
    %v5190 = vunpack.c.h.b16 %v1210
    %v5191 = vunpack.c.l.b16 %v1211
    %v5192 = vunpack.c.h.b16 %v1211
    %v5193 = vunpack.c.l.b16 %v1212
    %v5194 = vunpack.c.h.b16 %v1212
    %v5195 = vunpack.c.l.b16 %v1213
    %v5196 = vunpack.c.h.b16 %v1213
    %v5197 = vunpack.c.l.b16 %v1214
    %v5198 = vunpack.c.h.b16 %v1214
    %v5199 = vunpack.c.l.b16 %v1215
    %v5200 = vunpack.c.h.b16 %v1215
    %v5201 = vunpack.c.l.b16 %v1216
    %v5202 = vunpack.c.h.b16 %v1216
    %v5203 = vunpack.c.l.b16 %v1217
    %v5204 = vunpack.c.h.b16 %v1217
    %v5205 = vunpack.c.l.b16 %v1218
    %v5206 = vunpack.c.h.b16 %v1218
    %v5207 = vunpack.c.l.b16 %v1219
    %v5208 = vunpack.c.h.b16 %v1219
    %v5209 = vunpack.c.l.b16 %v1220
    %v5210 = vunpack.c.h.b16 %v1220
    %v5211 = vunpack.c.l.b16 %v1221
    %v5212 = vunpack.c.h.b16 %v1221
    %v5213 = vunpack.c.l.b16 %v1222
    %v5214 = vunpack.c.h.b16 %v1222
    %v5215 = vunpack.c.l.b16 %v1223
    %v5216 = vunpack.c.h.b16 %v1223
    %v5217 = vunpack.c.l.b16 %v1224
    %v5218 = vunpack.c.h.b16 %v1224
    %v5219 = vunpack.c.l.b16 %v1225
    %v5220 = vunpack.c.h.b16 %v1225
    %v5221 = vunpack.c.l.b16 %v1226
    %v5222 = vunpack.c.h.b16 %v1226
    %v5223 = vunpack.c.l.b16 %v1227
    %v5224 = vunpack.c.h.b16 %v1227
    %v5225 = vunpack.c.l.b16 %v1228
    %v5226 = vunpack.c.h.b16 %v1228
    %v5227 = vunpack.c.l.b16 %v1229
    %v5228 = vunpack.c.h.b16 %v1229
    %v5229 = vunpack.c.l.b16 %v1230
    %v5230 = vunpack.c.h.b16 %v1230
    %v5231 = vunpack.c.l.b16 %v1231
    %v5232 = vunpack.c.h.b16 %v1231
    %v5233 = vunpack.c.l.b16 %v1232
    %v5234 = vunpack.c.h.b16 %v1232
    %v5235 = vunpack.c.l.b16 %v1233
    %v5236 = vunpack.c.h.b16 %v1233
    %v5237 = vunpack.c.l.b16 %v1234
    %v5238 = vunpack.c.h.b16 %v1234
    %v5239 = vunpack.c.l.b16 %v1235
    %v5240 = vunpack.c.h.b16 %v1235
    %v5241 = vunpack.c.l.b16 %v1236
    %v5242 = vunpack.c.h.b16 %v1236
    %v5243 = vunpack.c.l.b16 %v1237
    %v5244 = vunpack.c.h.b16 %v1237
    %v5245 = vunpack.c.l.b16 %v1238
    %v5246 = vunpack.c.h.b16 %v1238
    %v5247 = vunpack.c.l.b16 %v1239
    %v5248 = vunpack.c.h.b16 %v1239
    %v5249 = vunpack.c.l.b16 %v1240
    %v5250 = vunpack.c.h.b16 %v1240
    %v5251 = vunpack.c.l.b16 %v1241
    %v5252 = vunpack.c.h.b16 %v1241
    %v5253 = vunpack.c.l.b16 %v1242
    %v5254 = vunpack.c.h.b16 %v1242
    %v5255 = vunpack.c.l.b16 %v1243
    %v5256 = vunpack.c.h.b16 %v1243
    %v5257 = vunpack.c.l.b16 %v1244
    %v5258 = vunpack.c.h.b16 %v1244
    %v5259 = vunpack.c.l.b16 %v1245
    %v5260 = vunpack.c.h.b16 %v1245
    %v5261 = vunpack.c.l.b16 %v1246
    %v5262 = vunpack.c.h.b16 %v1246
    %v5263 = vunpack.c.l.b16 %v1247
    %v5264 = vunpack.c.h.b16 %v1247
    %v5265 = vunpack.c.l.b16 %v1248
    %v5266 = vunpack.c.h.b16 %v1248
    %v5267 = vunpack.c.l.b16 %v1249
    %v5268 = vunpack.c.h.b16 %v1249
    %v5269 = vunpack.c.l.b16 %v1250
    %v5270 = vunpack.c.h.b16 %v1250
    %v5271 = vunpack.c.l.b16 %v1251
    %v5272 = vunpack.c.h.b16 %v1251
    %v5273 = vunpack.c.l.b16 %v1252
    %v5274 = vunpack.c.h.b16 %v1252
    %v5275 = vunpack.c.l.b16 %v1253
    %v5276 = vunpack.c.h.b16 %v1253
    %v5277 = vunpack.c.l.b16 %v1254
    %v5278 = vunpack.c.h.b16 %v1254
    %v5279 = vunpack.c.l.b16 %v1255
    %v5280 = vunpack.c.h.b16 %v1255
    %v5281 = vunpack.c.l.b16 %v1256
    %v5282 = vunpack.c.h.b16 %v1256
    %v5283 = vunpack.c.l.b16 %v1257
    %v5284 = vunpack.c.h.b16 %v1257
    %v5285 = vunpack.c.l.b16 %v1258
    %v5286 = vunpack.c.h.b16 %v1258
    %v5287 = vunpack.c.l.b16 %v1259
    %v5288 = vunpack.c.h.b16 %v1259
    %v5289 = vunpack.c.l.b16 %v1260
    %v5290 = vunpack.c.h.b16 %v1260
    %v5291 = vunpack.c.l.b16 %v1261
    %v5292 = vunpack.c.h.b16 %v1261
    %v5293 = vunpack.c.l.b16 %v1262
    %v5294 = vunpack.c.h.b16 %v1262
    %v5295 = vunpack.c.l.b16 %v1263
    %v5296 = vunpack.c.h.b16 %v1263
    %v5297 = vunpack.c.l.b16 %v1264
    %v5298 = vunpack.c.h.b16 %v1264
    %v5299 = vunpack.c.l.b16 %v1265
    %v5300 = vunpack.c.h.b16 %v1265
    %v5301 = vunpack.c.l.b16 %v1266
    %v5302 = vunpack.c.h.b16 %v1266
    %v5303 = vunpack.c.l.b16 %v1267
    %v5304 = vunpack.c.h.b16 %v1267
    %v5305 = vunpack.c.l.b16 %v1268
    %v5306 = vunpack.c.h.b16 %v1268
    %v5307 = vunpack.c.l.b16 %v1269
    %v5308 = vunpack.c.h.b16 %v1269
    %v5309 = vunpack.c.l.b16 %v1270
    %v5310 = vunpack.c.h.b16 %v1270
    %v5311 = vunpack.c.l.b16 %v1271
    %v5312 = vunpack.c.h.b16 %v1271
    %v5313 = vunpack.c.l.b16 %v1272
    %v5314 = vunpack.c.h.b16 %v1272
    %v5315 = vunpack.c.l.b16 %v1273
    %v5316 = vunpack.c.h.b16 %v1273
    %v5317 = vunpack.c.l.b16 %v1274
    %v5318 = vunpack.c.h.b16 %v1274
    %v5319 = vunpack.c.l.b16 %v1275
    %v5320 = vunpack.c.h.b16 %v1275
    %v5321 = vunpack.c.l.b16 %v1276
    %v5322 = vunpack.c.h.b16 %v1276
    %v5323 = vunpack.c.l.b16 %v1277
    %v5324 = vunpack.c.h.b16 %v1277
    %v5325 = vunpack.c.l.b16 %v1278
    %v5326 = vunpack.c.h.b16 %v1278
    %v5327 = vunpack.c.l.b16 %v1279
    %v5328 = vunpack.c.h.b16 %v1279
    %v5329 = vunpack.c.l.b16 %v1280
    %v5330 = vunpack.c.h.b16 %v1280
    %v5331 = vunpack.c.l.b16 %v1281
    %v5332 = vunpack.c.h.b16 %v1281
    %v5333 = vunpack.c.l.b16 %v1282
    %v5334 = vunpack.c.h.b16 %v1282
    %v5335 = vunpack.c.l.b16 %v1283
    %v5336 = vunpack.c.h.b16 %v1283
    %v5337 = vunpack.c.l.b16 %v1284
    %v5338 = vunpack.c.h.b16 %v1284
    %v5339 = vunpack.c.l.b16 %v1285
    %v5340 = vunpack.c.h.b16 %v1285
    %v5341 = vunpack.c.l.b16 %v1286
    %v5342 = vunpack.c.h.b16 %v1286
    %v5343 = vunpack.c.l.b16 %v1287
    %v5344 = vunpack.c.h.b16 %v1287
    %v5345 = vunpack.c.l.b16 %v1288
    %v5346 = vunpack.c.h.b16 %v1288
    %v5347 = vunpack.c.l.b16 %v1289
    %v5348 = vunpack.c.h.b16 %v1289
    %v5349 = vunpack.c.l.b16 %v1290
    %v5350 = vunpack.c.h.b16 %v1290
    %v5351 = vunpack.c.l.b16 %v1291
    %v5352 = vunpack.c.h.b16 %v1291
    %v5353 = vunpack.c.l.b16 %v1292
    %v5354 = vunpack.c.h.b16 %v1292
    %v5355 = vunpack.c.l.b16 %v1293
    %v5356 = vunpack.c.h.b16 %v1293
    %v5357 = vunpack.c.l.b16 %v1294
    %v5358 = vunpack.c.h.b16 %v1294
    %v5359 = vunpack.c.l.b16 %v1295
    %v5360 = vunpack.c.h.b16 %v1295
    %v5361 = vunpack.c.l.b16 %v1296
    %v5362 = vunpack.c.h.b16 %v1296
    %v5363 = vunpack.c.l.b16 %v1297
    %v5364 = vunpack.c.h.b16 %v1297
    %v5365 = vunpack.c.l.b16 %v1298
    %v5366 = vunpack.c.h.b16 %v1298
    %v5367 = vunpack.c.l.b16 %v1299
    %v5368 = vunpack.c.h.b16 %v1299
    %v5369 = vunpack.c.l.b16 %v1300
    %v5370 = vunpack.c.h.b16 %v1300
    %v5371 = vunpack.c.l.b16 %v1301
    %v5372 = vunpack.c.h.b16 %v1301
    %v5373 = vunpack.c.l.b16 %v1302
    %v5374 = vunpack.c.h.b16 %v1302
    %v5375 = vunpack.c.l.b16 %v1303
    %v5376 = vunpack.c.h.b16 %v1303
    %v5377 = vunpack.c.l.b16 %v1304
    %v5378 = vunpack.c.h.b16 %v1304
    %v5379 = vunpack.c.l.b16 %v1305
    %v5380 = vunpack.c.h.b16 %v1305
    %v5381 = vunpack.c.l.b16 %v1306
    %v5382 = vunpack.c.h.b16 %v1306
    %v5383 = vunpack.c.l.b16 %v1307
    %v5384 = vunpack.c.h.b16 %v1307
    %v5385 = vunpack.c.l.b16 %v1308
    %v5386 = vunpack.c.h.b16 %v1308
    %v5387 = vunpack.c.l.b16 %v1309
    %v5388 = vunpack.c.h.b16 %v1309
    %v5389 = vunpack.c.l.b16 %v1310
    %v5390 = vunpack.c.h.b16 %v1310
    %v5391 = vunpack.c.l.b16 %v1311
    %v5392 = vunpack.c.h.b16 %v1311
    %v5393 = vunpack.c.l.b16 %v1312
    %v5394 = vunpack.c.h.b16 %v1312
    %v5395 = vunpack.c.l.b16 %v1313
    %v5396 = vunpack.c.h.b16 %v1313
    %v5397 = vunpack.c.l.b16 %v1314
    %v5398 = vunpack.c.h.b16 %v1314
    %v5399 = vunpack.c.l.b16 %v1315
    %v5400 = vunpack.c.h.b16 %v1315
    %v5401 = vunpack.c.l.b16 %v1316
    %v5402 = vunpack.c.h.b16 %v1316
    %v5403 = vunpack.c.l.b16 %v1317
    %v5404 = vunpack.c.h.b16 %v1317
    %v5405 = vunpack.c.l.b16 %v1318
    %v5406 = vunpack.c.h.b16 %v1318
    %v5407 = vunpack.c.l.b16 %v1319
    %v5408 = vunpack.c.h.b16 %v1319
    %v5409 = vunpack.c.l.b16 %v1320
    %v5410 = vunpack.c.h.b16 %v1320
    %v5411 = vpack.c.b16 %v2827, %v2819
    %v5412 = vpack.c.b16 %v2828, %v2820
    %v5413 = vpack.c.b16 %v2829, %v2821
    %v5414 = vpack.c.b16 %v2830, %v2822
    %v5415 = vpack.c.b16 %v2831, %v2823
    %v5416 = vpack.c.b16 %v2832, %v2824
    %v5417 = vpack.c.b16 %v2833, %v2825
    %v5418 = vpack.c.b16 %v2834, %v2826
    %v5419 = vpack.c.b16 %v2843, %v2835
    %v5420 = vpack.c.b16 %v2844, %v2836
    %v5421 = vpack.c.b16 %v2845, %v2837
    %v5422 = vpack.c.b16 %v2846, %v2838
    %v5423 = vpack.c.b16 %v2847, %v2839
    %v5424 = vpack.c.b16 %v2848, %v2840
    %v5425 = vpack.c.b16 %v2849, %v2841
    %v5426 = vpack.c.b16 %v2850, %v2842
    %v5427 = vpack.c.b16 %v2859, %v2851
    %v5428 = vpack.c.b16 %v2860, %v2852
    %v5429 = vpack.c.b16 %v2861, %v2853
    %v5430 = vpack.c.b16 %v2862, %v2854
    %v5431 = vpack.c.b16 %v2863, %v2855
    %v5432 = vpack.c.b16 %v2864, %v2856
    %v5433 = vpack.c.b16 %v2865, %v2857
    %v5434 = vpack.c.b16 %v2866, %v2858
    %v5435 = vpack.c.b16 %v2875, %v2867
    %v5436 = vpack.c.b16 %v2876, %v2868
    %v5437 = vpack.c.b16 %v2877, %v2869
    %v5438 = vpack.c.b16 %v2878, %v2870
    %v5439 = vpack.c.b16 %v2879, %v2871
    %v5440 = vpack.c.b16 %v2880, %v2872
    %v5441 = vpack.c.b16 %v2881, %v2873
    %v5442 = vpack.c.b16 %v2882, %v2874
    %v5443 = vpack.c.b16 %v2891, %v2883
    %v5444 = vpack.c.b16 %v2892, %v2884
    %v5445 = vpack.c.b16 %v2893, %v2885
    %v5446 = vpack.c.b16 %v2894, %v2886
    %v5447 = vpack.c.b16 %v2895, %v2887
    %v5448 = vpack.c.b16 %v2896, %v2888
    %v5449 = vpack.c.b16 %v2897, %v2889
    %v5450 = vpack.c.b16 %v2898, %v2890
    %v5451 = vpack.c.b16 %v2907, %v2899
    %v5452 = vpack.c.b16 %v2908, %v2900
    %v5453 = vpack.c.b16 %v2909, %v2901
    %v5454 = vpack.c.b16 %v2910, %v2902
    %v5455 = vpack.c.b16 %v2911, %v2903
    %v5456 = vpack.c.b16 %v2912, %v2904
    %v5457 = vpack.c.b16 %v2913, %v2905
    %v5458 = vpack.c.b16 %v2914, %v2906
    %v5459 = vpack.c.b16 %v2923, %v2915
    %v5460 = vpack.c.b16 %v2924, %v2916
    %v5461 = vpack.c.b16 %v2925, %v2917
    %v5462 = vpack.c.b16 %v2926, %v2918
    %v5463 = vpack.c.b16 %v2927, %v2919
    %v5464 = vpack.c.b16 %v2928, %v2920
    %v5465 = vpack.c.b16 %v2929, %v2921
    %v5466 = vpack.c.b16 %v2930, %v2922
    %v5467 = vpack.c.b16 %v2939, %v2931
    %v5468 = vpack.c.b16 %v2940, %v2932
    %v5469 = vpack.c.b16 %v2941, %v2933
    %v5470 = vpack.c.b16 %v2942, %v2934
    %v5471 = vpack.c.b16 %v2943, %v2935
    %v5472 = vpack.c.b16 %v2944, %v2936
    %v5473 = vpack.c.b16 %v2945, %v2937
    %v5474 = vpack.c.b16 %v2946, %v2938
    %v5475 = vpack.c.b16 %v2955, %v2947
    %v5476 = vpack.c.b16 %v2956, %v2948
    %v5477 = vpack.c.b16 %v2957, %v2949
    %v5478 = vpack.c.b16 %v2958, %v2950
    %v5479 = vpack.c.b16 %v2959, %v2951
    %v5480 = vpack.c.b16 %v2960, %v2952
    %v5481 = vpack.c.b16 %v2961, %v2953
    %v5482 = vpack.c.b16 %v2962, %v2954
    %v5483 = vpack.c.b16 %v2971, %v2963
    %v5484 = vpack.c.b16 %v2972, %v2964
    %v5485 = vpack.c.b16 %v2973, %v2965
    %v5486 = vpack.c.b16 %v2974, %v2966
    %v5487 = vpack.c.b16 %v2975, %v2967
    %v5488 = vpack.c.b16 %v2976, %v2968
    %v5489 = vpack.c.b16 %v2977, %v2969
    %v5490 = vpack.c.b16 %v2978, %v2970
    %v5491 = vpack.c.b16 %v2987, %v2979
    %v5492 = vpack.c.b16 %v2988, %v2980
    %v5493 = vpack.c.b16 %v2989, %v2981
    %v5494 = vpack.c.b16 %v2990, %v2982
    %v5495 = vpack.c.b16 %v2991, %v2983
    %v5496 = vpack.c.b16 %v2992, %v2984
    %v5497 = vpack.c.b16 %v2993, %v2985
    %v5498 = vpack.c.b16 %v2994, %v2986
    %v5499 = vpack.c.b16 %v3003, %v2995
    %v5500 = vpack.c.b16 %v3004, %v2996
    %v5501 = vpack.c.b16 %v3005, %v2997
    %v5502 = vpack.c.b16 %v3006, %v2998
    %v5503 = vpack.c.b16 %v3007, %v2999
    %v5504 = vpack.c.b16 %v3008, %v3000
    %v5505 = vpack.c.b16 %v3009, %v3001
    %v5506 = vpack.c.b16 %v3010, %v3002
    %v5507 = vpack.c.b16 %v3019, %v3011
    %v5508 = vpack.c.b16 %v3020, %v3012
    %v5509 = vpack.c.b16 %v3021, %v3013
    %v5510 = vpack.c.b16 %v3022, %v3014
    %v5511 = vpack.c.b16 %v3023, %v3015
    %v5512 = vpack.c.b16 %v3024, %v3016
    %v5513 = vpack.c.b16 %v3025, %v3017
    %v5514 = vpack.c.b16 %v3026, %v3018
    %v5515 = vpack.c.b16 %v3035, %v3027
    %v5516 = vpack.c.b16 %v3036, %v3028
    %v5517 = vpack.c.b16 %v3037, %v3029
    %v5518 = vpack.c.b16 %v3038, %v3030
    %v5519 = vpack.c.b16 %v3039, %v3031
    %v5520 = vpack.c.b16 %v3040, %v3032
    %v5521 = vpack.c.b16 %v3041, %v3033
    %v5522 = vpack.c.b16 %v3042, %v3034
    %v5523 = vpack.c.b16 %v3051, %v3043
    %v5524 = vpack.c.b16 %v3052, %v3044
    %v5525 = vpack.c.b16 %v3053, %v3045
    %v5526 = vpack.c.b16 %v3054, %v3046
    %v5527 = vpack.c.b16 %v3055, %v3047
    %v5528 = vpack.c.b16 %v3056, %v3048
    %v5529 = vpack.c.b16 %v3057, %v3049
    %v5530 = vpack.c.b16 %v3058, %v3050
    %v5531 = vpack.c.b16 %v3067, %v3059
    %v5532 = vpack.c.b16 %v3068, %v3060
    %v5533 = vpack.c.b16 %v3069, %v3061
    %v5534 = vpack.c.b16 %v3070, %v3062
    %v5535 = vpack.c.b16 %v3071, %v3063
    %v5536 = vpack.c.b16 %v3072, %v3064
    %v5537 = vpack.c.b16 %v3073, %v3065
    %v5538 = vpack.c.b16 %v3074, %v3066
    %v5539 = vpack.c.b16 %v3083, %v3075
    %v5540 = vpack.c.b16 %v3084, %v3076
    %v5541 = vpack.c.b16 %v3085, %v3077
    %v5542 = vpack.c.b16 %v3086, %v3078
    %v5543 = vpack.c.b16 %v3087, %v3079
    %v5544 = vpack.c.b16 %v3088, %v3080
    %v5545 = vpack.c.b16 %v3089, %v3081
    %v5546 = vpack.c.b16 %v3090, %v3082
    %v5547 = vpack.c.b16 %v3099, %v3091
    %v5548 = vpack.c.b16 %v3100, %v3092
    %v5549 = vpack.c.b16 %v3101, %v3093
    %v5550 = vpack.c.b16 %v3102, %v3094
    %v5551 = vpack.c.b16 %v3103, %v3095
    %v5552 = vpack.c.b16 %v3104, %v3096
    %v5553 = vpack.c.b16 %v3105, %v3097
    %v5554 = vpack.c.b16 %v3106, %v3098
    %v5555 = vpack.c.b16 %v3115, %v3107
    %v5556 = vpack.c.b16 %v3116, %v3108
    %v5557 = vpack.c.b16 %v3117, %v3109
    %v5558 = vpack.c.b16 %v3118, %v3110
    %v5559 = vpack.c.b16 %v3119, %v3111
    %v5560 = vpack.c.b16 %v3120, %v3112
    %v5561 = vpack.c.b16 %v3121, %v3113
    %v5562 = vpack.c.b16 %v3122, %v3114
    %v5563 = vpack.c.b16 %v3131, %v3123
    %v5564 = vpack.c.b16 %v3132, %v3124
    %v5565 = vpack.c.b16 %v3133, %v3125
    %v5566 = vpack.c.b16 %v3134, %v3126
    %v5567 = vpack.c.b16 %v3135, %v3127
    %v5568 = vpack.c.b16 %v3136, %v3128
    %v5569 = vpack.c.b16 %v3137, %v3129
    %v5570 = vpack.c.b16 %v3138, %v3130
    %v5571 = vpack.c.b16 %v3147, %v3139
    %v5572 = vpack.c.b16 %v3148, %v3140
    %v5573 = vpack.c.b16 %v3149, %v3141
    %v5574 = vpack.c.b16 %v3150, %v3142
    %v5575 = vpack.c.b16 %v3151, %v3143
    %v5576 = vpack.c.b16 %v3152, %v3144
    %v5577 = vpack.c.b16 %v3153, %v3145
    %v5578 = vpack.c.b16 %v3154, %v3146
    %v5579 = vpack.c.b16 %v3163, %v3155
    %v5580 = vpack.c.b16 %v3164, %v3156
    %v5581 = vpack.c.b16 %v3165, %v3157
    %v5582 = vpack.c.b16 %v3166, %v3158
    %v5583 = vpack.c.b16 %v3167, %v3159
    %v5584 = vpack.c.b16 %v3168, %v3160
    %v5585 = vpack.c.b16 %v3169, %v3161
    %v5586 = vpack.c.b16 %v3170, %v3162
    %v5587 = vpack.c.b16 %v3179, %v3171
    %v5588 = vpack.c.b16 %v3180, %v3172
    %v5589 = vpack.c.b16 %v3181, %v3173
    %v5590 = vpack.c.b16 %v3182, %v3174
    %v5591 = vpack.c.b16 %v3183, %v3175
    %v5592 = vpack.c.b16 %v3184, %v3176
    %v5593 = vpack.c.b16 %v3185, %v3177
    %v5594 = vpack.c.b16 %v3186, %v3178
    %v5595 = vpack.c.b16 %v3195, %v3187
    %v5596 = vpack.c.b16 %v3196, %v3188
    %v5597 = vpack.c.b16 %v3197, %v3189
    %v5598 = vpack.c.b16 %v3198, %v3190
    %v5599 = vpack.c.b16 %v3199, %v3191
    %v5600 = vpack.c.b16 %v3200, %v3192
    %v5601 = vpack.c.b16 %v3201, %v3193
    %v5602 = vpack.c.b16 %v3202, %v3194
    %v5603 = vpack.c.b16 %v3211, %v3203
    %v5604 = vpack.c.b16 %v3212, %v3204
    %v5605 = vpack.c.b16 %v3213, %v3205
    %v5606 = vpack.c.b16 %v3214, %v3206
    %v5607 = vpack.c.b16 %v3215, %v3207
    %v5608 = vpack.c.b16 %v3216, %v3208
    %v5609 = vpack.c.b16 %v3217, %v3209
    %v5610 = vpack.c.b16 %v3218, %v3210
    %v5611 = vpack.c.b16 %v3227, %v3219
    %v5612 = vpack.c.b16 %v3228, %v3220
    %v5613 = vpack.c.b16 %v3229, %v3221
    %v5614 = vpack.c.b16 %v3230, %v3222
    %v5615 = vpack.c.b16 %v3231, %v3223
    %v5616 = vpack.c.b16 %v3232, %v3224
    %v5617 = vpack.c.b16 %v3233, %v3225
    %v5618 = vpack.c.b16 %v3234, %v3226
    %v5619 = vpack.c.b16 %v3243, %v3235
    %v5620 = vpack.c.b16 %v3244, %v3236
    %v5621 = vpack.c.b16 %v3245, %v3237
    %v5622 = vpack.c.b16 %v3246, %v3238
    %v5623 = vpack.c.b16 %v3247, %v3239
    %v5624 = vpack.c.b16 %v3248, %v3240
    %v5625 = vpack.c.b16 %v3249, %v3241
    %v5626 = vpack.c.b16 %v3250, %v3242
    %v5627 = vpack.c.b16 %v3259, %v3251
    %v5628 = vpack.c.b16 %v3260, %v3252
    %v5629 = vpack.c.b16 %v3261, %v3253
    %v5630 = vpack.c.b16 %v3262, %v3254
    %v5631 = vpack.c.b16 %v3263, %v3255
    %v5632 = vpack.c.b16 %v3264, %v3256
    %v5633 = vpack.c.b16 %v3265, %v3257
    %v5634 = vpack.c.b16 %v3266, %v3258
    %v5635 = vpack.c.b16 %v3275, %v3267
    %v5636 = vpack.c.b16 %v3276, %v3268
    %v5637 = vpack.c.b16 %v3277, %v3269
    %v5638 = vpack.c.b16 %v3278, %v3270
    %v5639 = vpack.c.b16 %v3279, %v3271
    %v5640 = vpack.c.b16 %v3280, %v3272
    %v5641 = vpack.c.b16 %v3281, %v3273
    %v5642 = vpack.c.b16 %v3282, %v3274
    %v5643 = vpack.c.b16 %v3291, %v3283
    %v5644 = vpack.c.b16 %v3292, %v3284
    %v5645 = vpack.c.b16 %v3293, %v3285
    %v5646 = vpack.c.b16 %v3294, %v3286
    %v5647 = vpack.c.b16 %v3295, %v3287
    %v5648 = vpack.c.b16 %v3296, %v3288
    %v5649 = vpack.c.b16 %v3297, %v3289
    %v5650 = vpack.c.b16 %v3298, %v3290
    %v5651 = vpack.c.b16 %v3307, %v3299
    %v5652 = vpack.c.b16 %v3308, %v3300
    %v5653 = vpack.c.b16 %v3309, %v3301
    %v5654 = vpack.c.b16 %v3310, %v3302
    %v5655 = vpack.c.b16 %v3311, %v3303
    %v5656 = vpack.c.b16 %v3312, %v3304
    %v5657 = vpack.c.b16 %v3313, %v3305
    %v5658 = vpack.c.b16 %v3314, %v3306
    %v5659 = vpack.c.b16 %v3323, %v3315
    %v5660 = vpack.c.b16 %v3324, %v3316
    %v5661 = vpack.c.b16 %v3325, %v3317
    %v5662 = vpack.c.b16 %v3326, %v3318
    %v5663 = vpack.c.b16 %v3327, %v3319
    %v5664 = vpack.c.b16 %v3328, %v3320
    %v5665 = vpack.c.b16 %v3329, %v3321
    %v5666 = vpack.c.b16 %v3330, %v3322
    %v5667 = vpack.c.b16 %v3339, %v3331
    %v5668 = vpack.c.b16 %v3340, %v3332
    %v5669 = vpack.c.b16 %v3341, %v3333
    %v5670 = vpack.c.b16 %v3342, %v3334
    %v5671 = vpack.c.b16 %v3343, %v3335
    %v5672 = vpack.c.b16 %v3344, %v3336
    %v5673 = vpack.c.b16 %v3345, %v3337
    %v5674 = vpack.c.b16 %v3346, %v3338
    %v5675 = vpack.c.b16 %v3355, %v3347
    %v5676 = vpack.c.b16 %v3356, %v3348
    %v5677 = vpack.c.b16 %v3357, %v3349
    %v5678 = vpack.c.b16 %v3358, %v3350
    %v5679 = vpack.c.b16 %v3359, %v3351
    %v5680 = vpack.c.b16 %v3360, %v3352
    %v5681 = vpack.c.b16 %v3361, %v3353
    %v5682 = vpack.c.b16 %v3362, %v3354
    %v5683 = vpack.c.b16 %v3371, %v3363
    %v5684 = vpack.c.b16 %v3372, %v3364
    %v5685 = vpack.c.b16 %v3373, %v3365
    %v5686 = vpack.c.b16 %v3374, %v3366
    %v5687 = vpack.c.b16 %v3375, %v3367
    %v5688 = vpack.c.b16 %v3376, %v3368
    %v5689 = vpack.c.b16 %v3377, %v3369
    %v5690 = vpack.c.b16 %v3378, %v3370
    %v5691 = vpack.c.b16 %v3387, %v3379
    %v5692 = vpack.c.b16 %v3388, %v3380
    %v5693 = vpack.c.b16 %v3389, %v3381
    %v5694 = vpack.c.b16 %v3390, %v3382
    %v5695 = vpack.c.b16 %v3391, %v3383
    %v5696 = vpack.c.b16 %v3392, %v3384
    %v5697 = vpack.c.b16 %v3393, %v3385
    %v5698 = vpack.c.b16 %v3394, %v3386
    %v5699 = vpack.c.b16 %v3403, %v3395
    %v5700 = vpack.c.b16 %v3404, %v3396
    %v5701 = vpack.c.b16 %v3405, %v3397
    %v5702 = vpack.c.b16 %v3406, %v3398
    %v5703 = vpack.c.b16 %v3407, %v3399
    %v5704 = vpack.c.b16 %v3408, %v3400
    %v5705 = vpack.c.b16 %v3409, %v3401
    %v5706 = vpack.c.b16 %v3410, %v3402
    %v5707 = vpack.c.b16 %v3419, %v3411
    %v5708 = vpack.c.b16 %v3420, %v3412
    %v5709 = vpack.c.b16 %v3421, %v3413
    %v5710 = vpack.c.b16 %v3422, %v3414
    %v5711 = vpack.c.b16 %v3423, %v3415
    %v5712 = vpack.c.b16 %v3424, %v3416
    %v5713 = vpack.c.b16 %v3425, %v3417
    %v5714 = vpack.c.b16 %v3426, %v3418
    %v5715 = vpack.c.b16 %v3435, %v3427
    %v5716 = vpack.c.b16 %v3436, %v3428
    %v5717 = vpack.c.b16 %v3437, %v3429
    %v5718 = vpack.c.b16 %v3438, %v3430
    %v5719 = vpack.c.b16 %v3439, %v3431
    %v5720 = vpack.c.b16 %v3440, %v3432
    %v5721 = vpack.c.b16 %v3441, %v3433
    %v5722 = vpack.c.b16 %v3442, %v3434
    %v5723 = vpack.c.b16 %v3451, %v3443
    %v5724 = vpack.c.b16 %v3452, %v3444
    %v5725 = vpack.c.b16 %v3453, %v3445
    %v5726 = vpack.c.b16 %v3454, %v3446
    %v5727 = vpack.c.b16 %v3455, %v3447
    %v5728 = vpack.c.b16 %v3456, %v3448
    %v5729 = vpack.c.b16 %v3457, %v3449
    %v5730 = vpack.c.b16 %v3458, %v3450
    %v5731 = vpack.c.b16 %v3467, %v3459
    %v5732 = vpack.c.b16 %v3468, %v3460
    %v5733 = vpack.c.b16 %v3469, %v3461
    %v5734 = vpack.c.b16 %v3470, %v3462
    %v5735 = vpack.c.b16 %v3471, %v3463
    %v5736 = vpack.c.b16 %v3472, %v3464
    %v5737 = vpack.c.b16 %v3473, %v3465
    %v5738 = vpack.c.b16 %v3474, %v3466
    %v5739 = vpack.c.b16 %v3483, %v3475
    %v5740 = vpack.c.b16 %v3484, %v3476
    %v5741 = vpack.c.b16 %v3485, %v3477
    %v5742 = vpack.c.b16 %v3486, %v3478
    %v5743 = vpack.c.b16 %v3487, %v3479
    %v5744 = vpack.c.b16 %v3488, %v3480
    %v5745 = vpack.c.b16 %v3489, %v3481
    %v5746 = vpack.c.b16 %v3490, %v3482
    %v5747 = vpack.c.b16 %v3499, %v3491
    %v5748 = vpack.c.b16 %v3500, %v3492
    %v5749 = vpack.c.b16 %v3501, %v3493
    %v5750 = vpack.c.b16 %v3502, %v3494
    %v5751 = vpack.c.b16 %v3503, %v3495
    %v5752 = vpack.c.b16 %v3504, %v3496
    %v5753 = vpack.c.b16 %v3505, %v3497
    %v5754 = vpack.c.b16 %v3506, %v3498
    %v5755 = vpack.c.b16 %v3515, %v3507
    %v5756 = vpack.c.b16 %v3516, %v3508
    %v5757 = vpack.c.b16 %v3517, %v3509
    %v5758 = vpack.c.b16 %v3518, %v3510
    %v5759 = vpack.c.b16 %v3519, %v3511
    %v5760 = vpack.c.b16 %v3520, %v3512
    %v5761 = vpack.c.b16 %v3521, %v3513
    %v5762 = vpack.c.b16 %v3522, %v3514
    %v5763 = vpack.c.b16 %v3531, %v3523
    %v5764 = vpack.c.b16 %v3532, %v3524
    %v5765 = vpack.c.b16 %v3533, %v3525
    %v5766 = vpack.c.b16 %v3534, %v3526
    %v5767 = vpack.c.b16 %v3535, %v3527
    %v5768 = vpack.c.b16 %v3536, %v3528
    %v5769 = vpack.c.b16 %v3537, %v3529
    %v5770 = vpack.c.b16 %v3538, %v3530
    %v5771 = vpack.c.b16 %v3547, %v3539
    %v5772 = vpack.c.b16 %v3548, %v3540
    %v5773 = vpack.c.b16 %v3549, %v3541
    %v5774 = vpack.c.b16 %v3550, %v3542
    %v5775 = vpack.c.b16 %v3551, %v3543
    %v5776 = vpack.c.b16 %v3552, %v3544
    %v5777 = vpack.c.b16 %v3553, %v3545
    %v5778 = vpack.c.b16 %v3554, %v3546
    %v5779 = vpack.c.b16 %v3563, %v3555
    %v5780 = vpack.c.b16 %v3564, %v3556
    %v5781 = vpack.c.b16 %v3565, %v3557
    %v5782 = vpack.c.b16 %v3566, %v3558
    %v5783 = vpack.c.b16 %v3567, %v3559
    %v5784 = vpack.c.b16 %v3568, %v3560
    %v5785 = vpack.c.b16 %v3569, %v3561
    %v5786 = vpack.c.b16 %v3570, %v3562
    %v5787 = vpack.c.b16 %v3579, %v3571
    %v5788 = vpack.c.b16 %v3580, %v3572
    %v5789 = vpack.c.b16 %v3581, %v3573
    %v5790 = vpack.c.b16 %v3582, %v3574
    %v5791 = vpack.c.b16 %v3583, %v3575
    %v5792 = vpack.c.b16 %v3584, %v3576
    %v5793 = vpack.c.b16 %v3585, %v3577
    %v5794 = vpack.c.b16 %v3586, %v3578
    %v5795 = vpack.c.b16 %v3595, %v3587
    %v5796 = vpack.c.b16 %v3596, %v3588
    %v5797 = vpack.c.b16 %v3597, %v3589
    %v5798 = vpack.c.b16 %v3598, %v3590
    %v5799 = vpack.c.b16 %v3599, %v3591
    %v5800 = vpack.c.b16 %v3600, %v3592
    %v5801 = vpack.c.b16 %v3601, %v3593
    %v5802 = vpack.c.b16 %v3602, %v3594
    %v5803 = vpack.c.b16 %v3611, %v3603
    %v5804 = vpack.c.b16 %v3612, %v3604
    %v5805 = vpack.c.b16 %v3613, %v3605
    %v5806 = vpack.c.b16 %v3614, %v3606
    %v5807 = vpack.c.b16 %v3615, %v3607
    %v5808 = vpack.c.b16 %v3616, %v3608
    %v5809 = vpack.c.b16 %v3617, %v3609
    %v5810 = vpack.c.b16 %v3618, %v3610
    %v5811 = vpack.c.b16 %v3627, %v3619
    %v5812 = vpack.c.b16 %v3628, %v3620
    %v5813 = vpack.c.b16 %v3629, %v3621
    %v5814 = vpack.c.b16 %v3630, %v3622
    %v5815 = vpack.c.b16 %v3631, %v3623
    %v5816 = vpack.c.b16 %v3632, %v3624
    %v5817 = vpack.c.b16 %v3633, %v3625
    %v5818 = vpack.c.b16 %v3634, %v3626
    %v5819 = vpack.c.b16 %v3643, %v3635
    %v5820 = vpack.c.b16 %v3644, %v3636
    %v5821 = vpack.c.b16 %v3645, %v3637
    %v5822 = vpack.c.b16 %v3646, %v3638
    %v5823 = vpack.c.b16 %v3647, %v3639
    %v5824 = vpack.c.b16 %v3648, %v3640
    %v5825 = vpack.c.b16 %v3649, %v3641
    %v5826 = vpack.c.b16 %v3650, %v3642
    %v5827 = vpack.c.b16 %v3659, %v3651
    %v5828 = vpack.c.b16 %v3660, %v3652
    %v5829 = vpack.c.b16 %v3661, %v3653
    %v5830 = vpack.c.b16 %v3662, %v3654
    %v5831 = vpack.c.b16 %v3663, %v3655
    %v5832 = vpack.c.b16 %v3664, %v3656
    %v5833 = vpack.c.b16 %v3665, %v3657
    %v5834 = vpack.c.b16 %v3666, %v3658
    %v5835 = vpack.c.b16 %v3675, %v3667
    %v5836 = vpack.c.b16 %v3676, %v3668
    %v5837 = vpack.c.b16 %v3677, %v3669
    %v5838 = vpack.c.b16 %v3678, %v3670
    %v5839 = vpack.c.b16 %v3679, %v3671
    %v5840 = vpack.c.b16 %v3680, %v3672
    %v5841 = vpack.c.b16 %v3681, %v3673
    %v5842 = vpack.c.b16 %v3682, %v3674
    %v5843 = vpack.c.b16 %v3691, %v3683
    %v5844 = vpack.c.b16 %v3692, %v3684
    %v5845 = vpack.c.b16 %v3693, %v3685
    %v5846 = vpack.c.b16 %v3694, %v3686
    %v5847 = vpack.c.b16 %v3695, %v3687
    %v5848 = vpack.c.b16 %v3696, %v3688
    %v5849 = vpack.c.b16 %v3697, %v3689
    %v5850 = vpack.c.b16 %v3698, %v3690
    %v5851 = vpack.c.b16 %v3707, %v3699
    %v5852 = vpack.c.b16 %v3708, %v3700
    %v5853 = vpack.c.b16 %v3709, %v3701
    %v5854 = vpack.c.b16 %v3710, %v3702
    %v5855 = vpack.c.b16 %v3711, %v3703
    %v5856 = vpack.c.b16 %v3712, %v3704
    %v5857 = vpack.c.b16 %v3713, %v3705
    %v5858 = vpack.c.b16 %v3714, %v3706
    %v5859 = vpack.c.b16 %v3723, %v3715
    %v5860 = vpack.c.b16 %v3724, %v3716
    %v5861 = vpack.c.b16 %v3725, %v3717
    %v5862 = vpack.c.b16 %v3726, %v3718
    %v5863 = vpack.c.b16 %v3727, %v3719
    %v5864 = vpack.c.b16 %v3728, %v3720
    %v5865 = vpack.c.b16 %v3729, %v3721
    %v5866 = vpack.c.b16 %v3730, %v3722
    %v5867 = vpack.c.b16 %v3739, %v3731
    %v5868 = vpack.c.b16 %v3740, %v3732
    %v5869 = vpack.c.b16 %v3741, %v3733
    %v5870 = vpack.c.b16 %v3742, %v3734
    %v5871 = vpack.c.b16 %v3743, %v3735
    %v5872 = vpack.c.b16 %v3744, %v3736
    %v5873 = vpack.c.b16 %v3745, %v3737
    %v5874 = vpack.c.b16 %v3746, %v3738
    %v5875 = vpack.c.b16 %v3755, %v3747
    %v5876 = vpack.c.b16 %v3756, %v3748
    %v5877 = vpack.c.b16 %v3757, %v3749
    %v5878 = vpack.c.b16 %v3758, %v3750
    %v5879 = vpack.c.b16 %v3759, %v3751
    %v5880 = vpack.c.b16 %v3760, %v3752
    %v5881 = vpack.c.b16 %v3761, %v3753
    %v5882 = vpack.c.b16 %v3762, %v3754
    %v5883 = vpack.c.b16 %v3771, %v3763
    %v5884 = vpack.c.b16 %v3772, %v3764
    %v5885 = vpack.c.b16 %v3773, %v3765
    %v5886 = vpack.c.b16 %v3774, %v3766
    %v5887 = vpack.c.b16 %v3775, %v3767
    %v5888 = vpack.c.b16 %v3776, %v3768
    %v5889 = vpack.c.b16 %v3777, %v3769
    %v5890 = vpack.c.b16 %v3778, %v3770
    %v5891 = vpack.c.b16 %v3787, %v3779
    %v5892 = vpack.c.b16 %v3788, %v3780
    %v5893 = vpack.c.b16 %v3789, %v3781
    %v5894 = vpack.c.b16 %v3790, %v3782
    %v5895 = vpack.c.b16 %v3791, %v3783
    %v5896 = vpack.c.b16 %v3792, %v3784
    %v5897 = vpack.c.b16 %v3793, %v3785
    %v5898 = vpack.c.b16 %v3794, %v3786
    %v5899 = vpack.c.b16 %v3803, %v3795
    %v5900 = vpack.c.b16 %v3804, %v3796
    %v5901 = vpack.c.b16 %v3805, %v3797
    %v5902 = vpack.c.b16 %v3806, %v3798
    %v5903 = vpack.c.b16 %v3807, %v3799
    %v5904 = vpack.c.b16 %v3808, %v3800
    %v5905 = vpack.c.b16 %v3809, %v3801
    %v5906 = vpack.c.b16 %v3810, %v3802
    %v5907 = vpack.c.b16 %v3819, %v3811
    %v5908 = vpack.c.b16 %v3820, %v3812
    %v5909 = vpack.c.b16 %v3821, %v3813
    %v5910 = vpack.c.b16 %v3822, %v3814
    %v5911 = vpack.c.b16 %v3823, %v3815
    %v5912 = vpack.c.b16 %v3824, %v3816
    %v5913 = vpack.c.b16 %v3825, %v3817
    %v5914 = vpack.c.b16 %v3826, %v3818
    %v5915 = vpack.c.b16 %v3835, %v3827
    %v5916 = vpack.c.b16 %v3836, %v3828
    %v5917 = vpack.c.b16 %v3837, %v3829
    %v5918 = vpack.c.b16 %v3838, %v3830
    %v5919 = vpack.c.b16 %v3839, %v3831
    %v5920 = vpack.c.b16 %v3840, %v3832
    %v5921 = vpack.c.b16 %v3841, %v3833
    %v5922 = vpack.c.b16 %v3842, %v3834
    %v5923 = vpack.c.b16 %v3851, %v3843
    %v5924 = vpack.c.b16 %v3852, %v3844
    %v5925 = vpack.c.b16 %v3853, %v3845
    %v5926 = vpack.c.b16 %v3854, %v3846
    %v5927 = vpack.c.b16 %v3855, %v3847
    %v5928 = vpack.c.b16 %v3856, %v3848
    %v5929 = vpack.c.b16 %v3857, %v3849
    %v5930 = vpack.c.b16 %v3858, %v3850
    %v5931 = vpack.c.b16 %v3867, %v3859
    %v5932 = vpack.c.b16 %v3868, %v3860
    %v5933 = vpack.c.b16 %v3869, %v3861
    %v5934 = vpack.c.b16 %v3870, %v3862
    %v5935 = vpack.c.b16 %v3871, %v3863
    %v5936 = vpack.c.b16 %v3872, %v3864
    %v5937 = vpack.c.b16 %v3873, %v3865
    %v5938 = vpack.c.b16 %v3874, %v3866
    %v5939 = vpack.c.b16 %v3883, %v3875
    %v5940 = vpack.c.b16 %v3884, %v3876
    %v5941 = vpack.c.b16 %v3885, %v3877
    %v5942 = vpack.c.b16 %v3886, %v3878
    %v5943 = vpack.c.b16 %v3887, %v3879
    %v5944 = vpack.c.b16 %v3888, %v3880
    %v5945 = vpack.c.b16 %v3889, %v3881
    %v5946 = vpack.c.b16 %v3890, %v3882
    %v5947 = vpack.c.b16 %v3899, %v3891
    %v5948 = vpack.c.b16 %v3900, %v3892
    %v5949 = vpack.c.b16 %v3901, %v3893
    %v5950 = vpack.c.b16 %v3902, %v3894
    %v5951 = vpack.c.b16 %v3903, %v3895
    %v5952 = vpack.c.b16 %v3904, %v3896
    %v5953 = vpack.c.b16 %v3905, %v3897
    %v5954 = vpack.c.b16 %v3906, %v3898
    %v5955 = vpack.c.b16 %v3915, %v3907
    %v5956 = vpack.c.b16 %v3916, %v3908
    %v5957 = vpack.c.b16 %v3917, %v3909
    %v5958 = vpack.c.b16 %v3918, %v3910
    %v5959 = vpack.c.b16 %v3919, %v3911
    %v5960 = vpack.c.b16 %v3920, %v3912
    %v5961 = vpack.c.b16 %v3921, %v3913
    %v5962 = vpack.c.b16 %v3922, %v3914
    %v5963 = vpack.c.b16 %v3931, %v3923
    %v5964 = vpack.c.b16 %v3932, %v3924
    %v5965 = vpack.c.b16 %v3933, %v3925
    %v5966 = vpack.c.b16 %v3934, %v3926
    %v5967 = vpack.c.b16 %v3935, %v3927
    %v5968 = vpack.c.b16 %v3936, %v3928
    %v5969 = vpack.c.b16 %v3937, %v3929
    %v5970 = vpack.c.b16 %v3938, %v3930
    %v5971 = vpack.c.b16 %v3947, %v3939
    %v5972 = vpack.c.b16 %v3948, %v3940
    %v5973 = vpack.c.b16 %v3949, %v3941
    %v5974 = vpack.c.b16 %v3950, %v3942
    %v5975 = vpack.c.b16 %v3951, %v3943
    %v5976 = vpack.c.b16 %v3952, %v3944
    %v5977 = vpack.c.b16 %v3953, %v3945
    %v5978 = vpack.c.b16 %v3954, %v3946
    %v5979 = vpack.c.b16 %v3963, %v3955
    %v5980 = vpack.c.b16 %v3964, %v3956
    %v5981 = vpack.c.b16 %v3965, %v3957
    %v5982 = vpack.c.b16 %v3966, %v3958
    %v5983 = vpack.c.b16 %v3967, %v3959
    %v5984 = vpack.c.b16 %v3968, %v3960
    %v5985 = vpack.c.b16 %v3969, %v3961
    %v5986 = vpack.c.b16 %v3970, %v3962
    %v5987 = vpack.c.b16 %v3979, %v3971
    %v5988 = vpack.c.b16 %v3980, %v3972
    %v5989 = vpack.c.b16 %v3981, %v3973
    %v5990 = vpack.c.b16 %v3982, %v3974
    %v5991 = vpack.c.b16 %v3983, %v3975
    %v5992 = vpack.c.b16 %v3984, %v3976
    %v5993 = vpack.c.b16 %v3985, %v3977
    %v5994 = vpack.c.b16 %v3986, %v3978
    %v5995 = vpack.c.b16 %v3995, %v3987
    %v5996 = vpack.c.b16 %v3996, %v3988
    %v5997 = vpack.c.b16 %v3997, %v3989
    %v5998 = vpack.c.b16 %v3998, %v3990
    %v5999 = vpack.c.b16 %v3999, %v3991
    %v6000 = vpack.c.b16 %v4000, %v3992
    %v6001 = vpack.c.b16 %v4001, %v3993
    %v6002 = vpack.c.b16 %v4002, %v3994
    %v6003 = vpack.c.b16 %v4011, %v4003
    %v6004 = vpack.c.b16 %v4012, %v4004
    %v6005 = vpack.c.b16 %v4013, %v4005
    %v6006 = vpack.c.b16 %v4014, %v4006
    %v6007 = vpack.c.b16 %v4015, %v4007
    %v6008 = vpack.c.b16 %v4016, %v4008
    %v6009 = vpack.c.b16 %v4017, %v4009
    %v6010 = vpack.c.b16 %v4018, %v4010
    %v6011 = vpack.c.b16 %v4027, %v4019
    %v6012 = vpack.c.b16 %v4028, %v4020
    %v6013 = vpack.c.b16 %v4029, %v4021
    %v6014 = vpack.c.b16 %v4030, %v4022
    %v6015 = vpack.c.b16 %v4031, %v4023
    %v6016 = vpack.c.b16 %v4032, %v4024
    %v6017 = vpack.c.b16 %v4033, %v4025
    %v6018 = vpack.c.b16 %v4034, %v4026
    %v6019 = vpack.c.b16 %v4043, %v4035
    %v6020 = vpack.c.b16 %v4044, %v4036
    %v6021 = vpack.c.b16 %v4045, %v4037
    %v6022 = vpack.c.b16 %v4046, %v4038
    %v6023 = vpack.c.b16 %v4047, %v4039
    %v6024 = vpack.c.b16 %v4048, %v4040
    %v6025 = vpack.c.b16 %v4049, %v4041
    %v6026 = vpack.c.b16 %v4050, %v4042
    %v6027 = vpack.c.b16 %v4059, %v4051
    %v6028 = vpack.c.b16 %v4060, %v4052
    %v6029 = vpack.c.b16 %v4061, %v4053
    %v6030 = vpack.c.b16 %v4062, %v4054
    %v6031 = vpack.c.b16 %v4063, %v4055
    %v6032 = vpack.c.b16 %v4064, %v4056
    %v6033 = vpack.c.b16 %v4065, %v4057
    %v6034 = vpack.c.b16 %v4066, %v4058
    %v6035 = vpack.c.b16 %v4075, %v4067
    %v6036 = vpack.c.b16 %v4076, %v4068
    %v6037 = vpack.c.b16 %v4077, %v4069
    %v6038 = vpack.c.b16 %v4078, %v4070
    %v6039 = vpack.c.b16 %v4079, %v4071
    %v6040 = vpack.c.b16 %v4080, %v4072
    %v6041 = vpack.c.b16 %v4081, %v4073
    %v6042 = vpack.c.b16 %v4082, %v4074
    %v6043 = vpack.c.b16 %v4091, %v4083
    %v6044 = vpack.c.b16 %v4092, %v4084
    %v6045 = vpack.c.b16 %v4093, %v4085
    %v6046 = vpack.c.b16 %v4094, %v4086
    %v6047 = vpack.c.b16 %v4095, %v4087
    %v6048 = vpack.c.b16 %v4096, %v4088
    %v6049 = vpack.c.b16 %v4097, %v4089
    %v6050 = vpack.c.b16 %v4098, %v4090
    %v6051 = vpack.c.b16 %v4107, %v4099
    %v6052 = vpack.c.b16 %v4108, %v4100
    %v6053 = vpack.c.b16 %v4109, %v4101
    %v6054 = vpack.c.b16 %v4110, %v4102
    %v6055 = vpack.c.b16 %v4111, %v4103
    %v6056 = vpack.c.b16 %v4112, %v4104
    %v6057 = vpack.c.b16 %v4113, %v4105
    %v6058 = vpack.c.b16 %v4114, %v4106
    %v6059 = vpack.c.b16 %v4123, %v4115
    %v6060 = vpack.c.b16 %v4124, %v4116
    %v6061 = vpack.c.b16 %v4125, %v4117
    %v6062 = vpack.c.b16 %v4126, %v4118
    %v6063 = vpack.c.b16 %v4127, %v4119
    %v6064 = vpack.c.b16 %v4128, %v4120
    %v6065 = vpack.c.b16 %v4129, %v4121
    %v6066 = vpack.c.b16 %v4130, %v4122
    %v6067 = vpack.c.b16 %v4139, %v4131
    %v6068 = vpack.c.b16 %v4140, %v4132
    %v6069 = vpack.c.b16 %v4141, %v4133
    %v6070 = vpack.c.b16 %v4142, %v4134
    %v6071 = vpack.c.b16 %v4143, %v4135
    %v6072 = vpack.c.b16 %v4144, %v4136
    %v6073 = vpack.c.b16 %v4145, %v4137
    %v6074 = vpack.c.b16 %v4146, %v4138
    %v6075 = vpack.c.b16 %v4155, %v4147
    %v6076 = vpack.c.b16 %v4156, %v4148
    %v6077 = vpack.c.b16 %v4157, %v4149
    %v6078 = vpack.c.b16 %v4158, %v4150
    %v6079 = vpack.c.b16 %v4159, %v4151
    %v6080 = vpack.c.b16 %v4160, %v4152
    %v6081 = vpack.c.b16 %v4161, %v4153
    %v6082 = vpack.c.b16 %v4162, %v4154
    %v6083 = vpack.c.b16 %v4171, %v4163
    %v6084 = vpack.c.b16 %v4172, %v4164
    %v6085 = vpack.c.b16 %v4173, %v4165
    %v6086 = vpack.c.b16 %v4174, %v4166
    %v6087 = vpack.c.b16 %v4175, %v4167
    %v6088 = vpack.c.b16 %v4176, %v4168
    %v6089 = vpack.c.b16 %v4177, %v4169
    %v6090 = vpack.c.b16 %v4178, %v4170
    %v6091 = vpack.c.b16 %v4187, %v4179
    %v6092 = vpack.c.b16 %v4188, %v4180
    %v6093 = vpack.c.b16 %v4189, %v4181
    %v6094 = vpack.c.b16 %v4190, %v4182
    %v6095 = vpack.c.b16 %v4191, %v4183
    %v6096 = vpack.c.b16 %v4192, %v4184
    %v6097 = vpack.c.b16 %v4193, %v4185
    %v6098 = vpack.c.b16 %v4194, %v4186
    %v6099 = vpack.c.b16 %v4203, %v4195
    %v6100 = vpack.c.b16 %v4204, %v4196
    %v6101 = vpack.c.b16 %v4205, %v4197
    %v6102 = vpack.c.b16 %v4206, %v4198
    %v6103 = vpack.c.b16 %v4207, %v4199
    %v6104 = vpack.c.b16 %v4208, %v4200
    %v6105 = vpack.c.b16 %v4209, %v4201
    %v6106 = vpack.c.b16 %v4210, %v4202
    %v6107 = vpack.c.b16 %v4219, %v4211
    %v6108 = vpack.c.b16 %v4220, %v4212
    %v6109 = vpack.c.b16 %v4221, %v4213
    %v6110 = vpack.c.b16 %v4222, %v4214
    %v6111 = vpack.c.b16 %v4223, %v4215
    %v6112 = vpack.c.b16 %v4224, %v4216
    %v6113 = vpack.c.b16 %v4225, %v4217
    %v6114 = vpack.c.b16 %v4226, %v4218
    %v6115 = vpack.c.b16 %v4235, %v4227
    %v6116 = vpack.c.b16 %v4236, %v4228
    %v6117 = vpack.c.b16 %v4237, %v4229
    %v6118 = vpack.c.b16 %v4238, %v4230
    %v6119 = vpack.c.b16 %v4239, %v4231
    %v6120 = vpack.c.b16 %v4240, %v4232
    %v6121 = vpack.c.b16 %v4241, %v4233
    %v6122 = vpack.c.b16 %v4242, %v4234
    %v6123 = vpack.c.b16 %v4251, %v4243
    %v6124 = vpack.c.b16 %v4252, %v4244
    %v6125 = vpack.c.b16 %v4253, %v4245
    %v6126 = vpack.c.b16 %v4254, %v4246
    %v6127 = vpack.c.b16 %v4255, %v4247
    %v6128 = vpack.c.b16 %v4256, %v4248
    %v6129 = vpack.c.b16 %v4257, %v4249
    %v6130 = vpack.c.b16 %v4258, %v4250
    %v6131 = vpack.c.b16 %v4267, %v4259
    %v6132 = vpack.c.b16 %v4268, %v4260
    %v6133 = vpack.c.b16 %v4269, %v4261
    %v6134 = vpack.c.b16 %v4270, %v4262
    %v6135 = vpack.c.b16 %v4271, %v4263
    %v6136 = vpack.c.b16 %v4272, %v4264
    %v6137 = vpack.c.b16 %v4273, %v4265
    %v6138 = vpack.c.b16 %v4274, %v4266
    %v6139 = vpack.c.b16 %v4283, %v4275
    %v6140 = vpack.c.b16 %v4284, %v4276
    %v6141 = vpack.c.b16 %v4285, %v4277
    %v6142 = vpack.c.b16 %v4286, %v4278
    %v6143 = vpack.c.b16 %v4287, %v4279
    %v6144 = vpack.c.b16 %v4288, %v4280
    %v6145 = vpack.c.b16 %v4289, %v4281
    %v6146 = vpack.c.b16 %v4290, %v4282
    %v6147 = vpack.c.b16 %v4299, %v4291
    %v6148 = vpack.c.b16 %v4300, %v4292
    %v6149 = vpack.c.b16 %v4301, %v4293
    %v6150 = vpack.c.b16 %v4302, %v4294
    %v6151 = vpack.c.b16 %v4303, %v4295
    %v6152 = vpack.c.b16 %v4304, %v4296
    %v6153 = vpack.c.b16 %v4305, %v4297
    %v6154 = vpack.c.b16 %v4306, %v4298
    %v6155 = vpack.c.b16 %v4315, %v4307
    %v6156 = vpack.c.b16 %v4316, %v4308
    %v6157 = vpack.c.b16 %v4317, %v4309
    %v6158 = vpack.c.b16 %v4318, %v4310
    %v6159 = vpack.c.b16 %v4319, %v4311
    %v6160 = vpack.c.b16 %v4320, %v4312
    %v6161 = vpack.c.b16 %v4321, %v4313
    %v6162 = vpack.c.b16 %v4322, %v4314
    %v6163 = vpack.c.b16 %v4331, %v4323
    %v6164 = vpack.c.b16 %v4332, %v4324
    %v6165 = vpack.c.b16 %v4333, %v4325
    %v6166 = vpack.c.b16 %v4334, %v4326
    %v6167 = vpack.c.b16 %v4335, %v4327
    %v6168 = vpack.c.b16 %v4336, %v4328
    %v6169 = vpack.c.b16 %v4337, %v4329
    %v6170 = vpack.c.b16 %v4338, %v4330
    %v6171 = vpack.c.b16 %v4347, %v4339
    %v6172 = vpack.c.b16 %v4348, %v4340
    %v6173 = vpack.c.b16 %v4349, %v4341
    %v6174 = vpack.c.b16 %v4350, %v4342
    %v6175 = vpack.c.b16 %v4351, %v4343
    %v6176 = vpack.c.b16 %v4352, %v4344
    %v6177 = vpack.c.b16 %v4353, %v4345
    %v6178 = vpack.c.b16 %v4354, %v4346
    %v6179 = vpack.c.b16 %v4363, %v4355
    %v6180 = vpack.c.b16 %v4364, %v4356
    %v6181 = vpack.c.b16 %v4365, %v4357
    %v6182 = vpack.c.b16 %v4366, %v4358
    %v6183 = vpack.c.b16 %v4367, %v4359
    %v6184 = vpack.c.b16 %v4368, %v4360
    %v6185 = vpack.c.b16 %v4369, %v4361
    %v6186 = vpack.c.b16 %v4370, %v4362
    %v6187 = vpack.c.b16 %v4379, %v4371
    %v6188 = vpack.c.b16 %v4380, %v4372
    %v6189 = vpack.c.b16 %v4381, %v4373
    %v6190 = vpack.c.b16 %v4382, %v4374
    %v6191 = vpack.c.b16 %v4383, %v4375
    %v6192 = vpack.c.b16 %v4384, %v4376
    %v6193 = vpack.c.b16 %v4385, %v4377
    %v6194 = vpack.c.b16 %v4386, %v4378
    %v6195 = vpack.c.b16 %v4395, %v4387
    %v6196 = vpack.c.b16 %v4396, %v4388
    %v6197 = vpack.c.b16 %v4397, %v4389
    %v6198 = vpack.c.b16 %v4398, %v4390
    %v6199 = vpack.c.b16 %v4399, %v4391
    %v6200 = vpack.c.b16 %v4400, %v4392
    %v6201 = vpack.c.b16 %v4401, %v4393
    %v6202 = vpack.c.b16 %v4402, %v4394
    %v6203 = vpack.c.b16 %v4411, %v4403
    %v6204 = vpack.c.b16 %v4412, %v4404
    %v6205 = vpack.c.b16 %v4413, %v4405
    %v6206 = vpack.c.b16 %v4414, %v4406
    %v6207 = vpack.c.b16 %v4415, %v4407
    %v6208 = vpack.c.b16 %v4416, %v4408
    %v6209 = vpack.c.b16 %v4417, %v4409
    %v6210 = vpack.c.b16 %v4418, %v4410
    %v6211 = vpack.c.b16 %v4427, %v4419
    %v6212 = vpack.c.b16 %v4428, %v4420
    %v6213 = vpack.c.b16 %v4429, %v4421
    %v6214 = vpack.c.b16 %v4430, %v4422
    %v6215 = vpack.c.b16 %v4431, %v4423
    %v6216 = vpack.c.b16 %v4432, %v4424
    %v6217 = vpack.c.b16 %v4433, %v4425
    %v6218 = vpack.c.b16 %v4434, %v4426
    %v6219 = vpack.c.b16 %v4443, %v4435
    %v6220 = vpack.c.b16 %v4444, %v4436
    %v6221 = vpack.c.b16 %v4445, %v4437
    %v6222 = vpack.c.b16 %v4446, %v4438
    %v6223 = vpack.c.b16 %v4447, %v4439
    %v6224 = vpack.c.b16 %v4448, %v4440
    %v6225 = vpack.c.b16 %v4449, %v4441
    %v6226 = vpack.c.b16 %v4450, %v4442
    %v6227 = vpack.c.b16 %v4459, %v4451
    %v6228 = vpack.c.b16 %v4460, %v4452
    %v6229 = vpack.c.b16 %v4461, %v4453
    %v6230 = vpack.c.b16 %v4462, %v4454
    %v6231 = vpack.c.b16 %v4463, %v4455
    %v6232 = vpack.c.b16 %v4464, %v4456
    %v6233 = vpack.c.b16 %v4465, %v4457
    %v6234 = vpack.c.b16 %v4466, %v4458
    %v6235 = vpack.c.b16 %v4475, %v4467
    %v6236 = vpack.c.b16 %v4476, %v4468
    %v6237 = vpack.c.b16 %v4477, %v4469
    %v6238 = vpack.c.b16 %v4478, %v4470
    %v6239 = vpack.c.b16 %v4479, %v4471
    %v6240 = vpack.c.b16 %v4480, %v4472
    %v6241 = vpack.c.b16 %v4481, %v4473
    %v6242 = vpack.c.b16 %v4482, %v4474
    %v6243 = vpack.c.b16 %v4491, %v4483
    %v6244 = vpack.c.b16 %v4492, %v4484
    %v6245 = vpack.c.b16 %v4493, %v4485
    %v6246 = vpack.c.b16 %v4494, %v4486
    %v6247 = vpack.c.b16 %v4495, %v4487
    %v6248 = vpack.c.b16 %v4496, %v4488
    %v6249 = vpack.c.b16 %v4497, %v4489
    %v6250 = vpack.c.b16 %v4498, %v4490
    %v6251 = vpack.c.b16 %v4507, %v4499
    %v6252 = vpack.c.b16 %v4508, %v4500
    %v6253 = vpack.c.b16 %v4509, %v4501
    %v6254 = vpack.c.b16 %v4510, %v4502
    %v6255 = vpack.c.b16 %v4511, %v4503
    %v6256 = vpack.c.b16 %v4512, %v4504
    %v6257 = vpack.c.b16 %v4513, %v4505
    %v6258 = vpack.c.b16 %v4514, %v4506
    %v6259 = vpack.c.b16 %v4523, %v4515
    %v6260 = vpack.c.b16 %v4524, %v4516
    %v6261 = vpack.c.b16 %v4525, %v4517
    %v6262 = vpack.c.b16 %v4526, %v4518
    %v6263 = vpack.c.b16 %v4527, %v4519
    %v6264 = vpack.c.b16 %v4528, %v4520
    %v6265 = vpack.c.b16 %v4529, %v4521
    %v6266 = vpack.c.b16 %v4530, %v4522
    %v6267 = vpack.c.b16 %v4539, %v4531
    %v6268 = vpack.c.b16 %v4540, %v4532
    %v6269 = vpack.c.b16 %v4541, %v4533
    %v6270 = vpack.c.b16 %v4542, %v4534
    %v6271 = vpack.c.b16 %v4543, %v4535
    %v6272 = vpack.c.b16 %v4544, %v4536
    %v6273 = vpack.c.b16 %v4545, %v4537
    %v6274 = vpack.c.b16 %v4546, %v4538
    %v6275 = vpack.c.b16 %v4555, %v4547
    %v6276 = vpack.c.b16 %v4556, %v4548
    %v6277 = vpack.c.b16 %v4557, %v4549
    %v6278 = vpack.c.b16 %v4558, %v4550
    %v6279 = vpack.c.b16 %v4559, %v4551
    %v6280 = vpack.c.b16 %v4560, %v4552
    %v6281 = vpack.c.b16 %v4561, %v4553
    %v6282 = vpack.c.b16 %v4562, %v4554
    %v6283 = vpack.c.b16 %v4571, %v4563
    %v6284 = vpack.c.b16 %v4572, %v4564
    %v6285 = vpack.c.b16 %v4573, %v4565
    %v6286 = vpack.c.b16 %v4574, %v4566
    %v6287 = vpack.c.b16 %v4575, %v4567
    %v6288 = vpack.c.b16 %v4576, %v4568
    %v6289 = vpack.c.b16 %v4577, %v4569
    %v6290 = vpack.c.b16 %v4578, %v4570
    %v6291 = vpack.c.b16 %v4587, %v4579
    %v6292 = vpack.c.b16 %v4588, %v4580
    %v6293 = vpack.c.b16 %v4589, %v4581
    %v6294 = vpack.c.b16 %v4590, %v4582
    %v6295 = vpack.c.b16 %v4591, %v4583
    %v6296 = vpack.c.b16 %v4592, %v4584
    %v6297 = vpack.c.b16 %v4593, %v4585
    %v6298 = vpack.c.b16 %v4594, %v4586
    %v6299 = vpack.c.b16 %v4603, %v4595
    %v6300 = vpack.c.b16 %v4604, %v4596
    %v6301 = vpack.c.b16 %v4605, %v4597
    %v6302 = vpack.c.b16 %v4606, %v4598
    %v6303 = vpack.c.b16 %v4607, %v4599
    %v6304 = vpack.c.b16 %v4608, %v4600
    %v6305 = vpack.c.b16 %v4609, %v4601
    %v6306 = vpack.c.b16 %v4610, %v4602
    %v6307 = vpack.c.b16 %v4619, %v4611
    %v6308 = vpack.c.b16 %v4620, %v4612
    %v6309 = vpack.c.b16 %v4621, %v4613
    %v6310 = vpack.c.b16 %v4622, %v4614
    %v6311 = vpack.c.b16 %v4623, %v4615
    %v6312 = vpack.c.b16 %v4624, %v4616
    %v6313 = vpack.c.b16 %v4625, %v4617
    %v6314 = vpack.c.b16 %v4626, %v4618
    %v6315 = vpack.c.b16 %v4635, %v4627
    %v6316 = vpack.c.b16 %v4636, %v4628
    %v6317 = vpack.c.b16 %v4637, %v4629
    %v6318 = vpack.c.b16 %v4638, %v4630
    %v6319 = vpack.c.b16 %v4639, %v4631
    %v6320 = vpack.c.b16 %v4640, %v4632
    %v6321 = vpack.c.b16 %v4641, %v4633
    %v6322 = vpack.c.b16 %v4642, %v4634
    %v6323 = vpack.c.b16 %v4651, %v4643
    %v6324 = vpack.c.b16 %v4652, %v4644
    %v6325 = vpack.c.b16 %v4653, %v4645
    %v6326 = vpack.c.b16 %v4654, %v4646
    %v6327 = vpack.c.b16 %v4655, %v4647
    %v6328 = vpack.c.b16 %v4656, %v4648
    %v6329 = vpack.c.b16 %v4657, %v4649
    %v6330 = vpack.c.b16 %v4658, %v4650
    %v6331 = vpack.c.b16 %v4667, %v4659
    %v6332 = vpack.c.b16 %v4668, %v4660
    %v6333 = vpack.c.b16 %v4669, %v4661
    %v6334 = vpack.c.b16 %v4670, %v4662
    %v6335 = vpack.c.b16 %v4671, %v4663
    %v6336 = vpack.c.b16 %v4672, %v4664
    %v6337 = vpack.c.b16 %v4673, %v4665
    %v6338 = vpack.c.b16 %v4674, %v4666
    %v6339 = vpack.c.b16 %v4683, %v4675
    %v6340 = vpack.c.b16 %v4684, %v4676
    %v6341 = vpack.c.b16 %v4685, %v4677
    %v6342 = vpack.c.b16 %v4686, %v4678
    %v6343 = vpack.c.b16 %v4687, %v4679
    %v6344 = vpack.c.b16 %v4688, %v4680
    %v6345 = vpack.c.b16 %v4689, %v4681
    %v6346 = vpack.c.b16 %v4690, %v4682
    %v6347 = vpack.c.b16 %v4699, %v4691
    %v6348 = vpack.c.b16 %v4700, %v4692
    %v6349 = vpack.c.b16 %v4701, %v4693
    %v6350 = vpack.c.b16 %v4702, %v4694
    %v6351 = vpack.c.b16 %v4703, %v4695
    %v6352 = vpack.c.b16 %v4704, %v4696
    %v6353 = vpack.c.b16 %v4705, %v4697
    %v6354 = vpack.c.b16 %v4706, %v4698
    %v6355 = vpack.c.b16 %v4715, %v4707
    %v6356 = vpack.c.b16 %v4716, %v4708
    %v6357 = vpack.c.b16 %v4717, %v4709
    %v6358 = vpack.c.b16 %v4718, %v4710
    %v6359 = vpack.c.b16 %v4719, %v4711
    %v6360 = vpack.c.b16 %v4720, %v4712
    %v6361 = vpack.c.b16 %v4721, %v4713
    %v6362 = vpack.c.b16 %v4722, %v4714
    %v6363 = vpack.c.b16 %v4731, %v4723
    %v6364 = vpack.c.b16 %v4732, %v4724
    %v6365 = vpack.c.b16 %v4733, %v4725
    %v6366 = vpack.c.b16 %v4734, %v4726
    %v6367 = vpack.c.b16 %v4735, %v4727
    %v6368 = vpack.c.b16 %v4736, %v4728
    %v6369 = vpack.c.b16 %v4737, %v4729
    %v6370 = vpack.c.b16 %v4738, %v4730
    %v6371 = vpack.c.b16 %v4747, %v4739
    %v6372 = vpack.c.b16 %v4748, %v4740
    %v6373 = vpack.c.b16 %v4749, %v4741
    %v6374 = vpack.c.b16 %v4750, %v4742
    %v6375 = vpack.c.b16 %v4751, %v4743
    %v6376 = vpack.c.b16 %v4752, %v4744
    %v6377 = vpack.c.b16 %v4753, %v4745
    %v6378 = vpack.c.b16 %v4754, %v4746
    %v6379 = vpack.c.b16 %v4763, %v4755
    %v6380 = vpack.c.b16 %v4764, %v4756
    %v6381 = vpack.c.b16 %v4765, %v4757
    %v6382 = vpack.c.b16 %v4766, %v4758
    %v6383 = vpack.c.b16 %v4767, %v4759
    %v6384 = vpack.c.b16 %v4768, %v4760
    %v6385 = vpack.c.b16 %v4769, %v4761
    %v6386 = vpack.c.b16 %v4770, %v4762
    %v6387 = vpack.c.b16 %v4779, %v4771
    %v6388 = vpack.c.b16 %v4780, %v4772
    %v6389 = vpack.c.b16 %v4781, %v4773
    %v6390 = vpack.c.b16 %v4782, %v4774
    %v6391 = vpack.c.b16 %v4783, %v4775
    %v6392 = vpack.c.b16 %v4784, %v4776
    %v6393 = vpack.c.b16 %v4785, %v4777
    %v6394 = vpack.c.b16 %v4786, %v4778
    %v6395 = vpack.c.b16 %v4795, %v4787
    %v6396 = vpack.c.b16 %v4796, %v4788
    %v6397 = vpack.c.b16 %v4797, %v4789
    %v6398 = vpack.c.b16 %v4798, %v4790
    %v6399 = vpack.c.b16 %v4799, %v4791
    %v6400 = vpack.c.b16 %v4800, %v4792
    %v6401 = vpack.c.b16 %v4801, %v4793
    %v6402 = vpack.c.b16 %v4802, %v4794
    %v6403 = vpack.c.b16 %v4811, %v4803
    %v6404 = vpack.c.b16 %v4812, %v4804
    %v6405 = vpack.c.b16 %v4813, %v4805
    %v6406 = vpack.c.b16 %v4814, %v4806
    %v6407 = vpack.c.b16 %v4815, %v4807
    %v6408 = vpack.c.b16 %v4816, %v4808
    %v6409 = vpack.c.b16 %v4817, %v4809
    %v6410 = vpack.c.b16 %v4818, %v4810
    %v6411 = vpack.c.b16 %v4827, %v4819
    %v6412 = vpack.c.b16 %v4828, %v4820
    %v6413 = vpack.c.b16 %v4829, %v4821
    %v6414 = vpack.c.b16 %v4830, %v4822
    %v6415 = vpack.c.b16 %v4831, %v4823
    %v6416 = vpack.c.b16 %v4832, %v4824
    %v6417 = vpack.c.b16 %v4833, %v4825
    %v6418 = vpack.c.b16 %v4834, %v4826
    %v6419 = vpack.c.b16 %v4843, %v4835
    %v6420 = vpack.c.b16 %v4844, %v4836
    %v6421 = vpack.c.b16 %v4845, %v4837
    %v6422 = vpack.c.b16 %v4846, %v4838
    %v6423 = vpack.c.b16 %v4847, %v4839
    %v6424 = vpack.c.b16 %v4848, %v4840
    %v6425 = vpack.c.b16 %v4849, %v4841
    %v6426 = vpack.c.b16 %v4850, %v4842
    %v6427 = vpack.c.b16 %v4859, %v4851
    %v6428 = vpack.c.b16 %v4860, %v4852
    %v6429 = vpack.c.b16 %v4861, %v4853
    %v6430 = vpack.c.b16 %v4862, %v4854
    %v6431 = vpack.c.b16 %v4863, %v4855
    %v6432 = vpack.c.b16 %v4864, %v4856
    %v6433 = vpack.c.b16 %v4865, %v4857
    %v6434 = vpack.c.b16 %v4866, %v4858
    %v6435 = vpack.c.b16 %v4875, %v4867
    %v6436 = vpack.c.b16 %v4876, %v4868
    %v6437 = vpack.c.b16 %v4877, %v4869
    %v6438 = vpack.c.b16 %v4878, %v4870
    %v6439 = vpack.c.b16 %v4879, %v4871
    %v6440 = vpack.c.b16 %v4880, %v4872
    %v6441 = vpack.c.b16 %v4881, %v4873
    %v6442 = vpack.c.b16 %v4882, %v4874
    %v6443 = vpack.c.b16 %v4891, %v4883
    %v6444 = vpack.c.b16 %v4892, %v4884
    %v6445 = vpack.c.b16 %v4893, %v4885
    %v6446 = vpack.c.b16 %v4894, %v4886
    %v6447 = vpack.c.b16 %v4895, %v4887
    %v6448 = vpack.c.b16 %v4896, %v4888
    %v6449 = vpack.c.b16 %v4897, %v4889
    %v6450 = vpack.c.b16 %v4898, %v4890
    %v6451 = vpack.c.b16 %v4907, %v4899
    %v6452 = vpack.c.b16 %v4908, %v4900
    %v6453 = vpack.c.b16 %v4909, %v4901
    %v6454 = vpack.c.b16 %v4910, %v4902
    %v6455 = vpack.c.b16 %v4911, %v4903
    %v6456 = vpack.c.b16 %v4912, %v4904
    %v6457 = vpack.c.b16 %v4913, %v4905
    %v6458 = vpack.c.b16 %v4914, %v4906
    %v6459 = vpack.c.b16 %v4923, %v4915
    %v6460 = vpack.c.b16 %v4924, %v4916
    %v6461 = vpack.c.b16 %v4925, %v4917
    %v6462 = vpack.c.b16 %v4926, %v4918
    %v6463 = vpack.c.b16 %v4927, %v4919
    %v6464 = vpack.c.b16 %v4928, %v4920
    %v6465 = vpack.c.b16 %v4929, %v4921
    %v6466 = vpack.c.b16 %v4930, %v4922
    %v6467 = vpack.c.b16 %v4939, %v4931
    %v6468 = vpack.c.b16 %v4940, %v4932
    %v6469 = vpack.c.b16 %v4941, %v4933
    %v6470 = vpack.c.b16 %v4942, %v4934
    %v6471 = vpack.c.b16 %v4943, %v4935
    %v6472 = vpack.c.b16 %v4944, %v4936
    %v6473 = vpack.c.b16 %v4945, %v4937
    %v6474 = vpack.c.b16 %v4946, %v4938
    %v6475 = vpack.c.b16 %v4955, %v4947
    %v6476 = vpack.c.b16 %v4956, %v4948
    %v6477 = vpack.c.b16 %v4957, %v4949
    %v6478 = vpack.c.b16 %v4958, %v4950
    %v6479 = vpack.c.b16 %v4959, %v4951
    %v6480 = vpack.c.b16 %v4960, %v4952
    %v6481 = vpack.c.b16 %v4961, %v4953
    %v6482 = vpack.c.b16 %v4962, %v4954
    %v6483 = vpack.c.b16 %v4971, %v4963
    %v6484 = vpack.c.b16 %v4972, %v4964
    %v6485 = vpack.c.b16 %v4973, %v4965
    %v6486 = vpack.c.b16 %v4974, %v4966
    %v6487 = vpack.c.b16 %v4975, %v4967
    %v6488 = vpack.c.b16 %v4976, %v4968
    %v6489 = vpack.c.b16 %v4977, %v4969
    %v6490 = vpack.c.b16 %v4978, %v4970
    %v6491 = vpack.c.b16 %v4987, %v4979
    %v6492 = vpack.c.b16 %v4988, %v4980
    %v6493 = vpack.c.b16 %v4989, %v4981
    %v6494 = vpack.c.b16 %v4990, %v4982
    %v6495 = vpack.c.b16 %v4991, %v4983
    %v6496 = vpack.c.b16 %v4992, %v4984
    %v6497 = vpack.c.b16 %v4993, %v4985
    %v6498 = vpack.c.b16 %v4994, %v4986
    %v6499 = vpack.c.b16 %v5003, %v4995
    %v6500 = vpack.c.b16 %v5004, %v4996
    %v6501 = vpack.c.b16 %v5005, %v4997
    %v6502 = vpack.c.b16 %v5006, %v4998
    %v6503 = vpack.c.b16 %v5007, %v4999
    %v6504 = vpack.c.b16 %v5008, %v5000
    %v6505 = vpack.c.b16 %v5009, %v5001
    %v6506 = vpack.c.b16 %v5010, %v5002
    %v6507 = vpack.c.b16 %v5019, %v5011
    %v6508 = vpack.c.b16 %v5020, %v5012
    %v6509 = vpack.c.b16 %v5021, %v5013
    %v6510 = vpack.c.b16 %v5022, %v5014
    %v6511 = vpack.c.b16 %v5023, %v5015
    %v6512 = vpack.c.b16 %v5024, %v5016
    %v6513 = vpack.c.b16 %v5025, %v5017
    %v6514 = vpack.c.b16 %v5026, %v5018
    %v6515 = vpack.c.b16 %v5035, %v5027
    %v6516 = vpack.c.b16 %v5036, %v5028
    %v6517 = vpack.c.b16 %v5037, %v5029
    %v6518 = vpack.c.b16 %v5038, %v5030
    %v6519 = vpack.c.b16 %v5039, %v5031
    %v6520 = vpack.c.b16 %v5040, %v5032
    %v6521 = vpack.c.b16 %v5041, %v5033
    %v6522 = vpack.c.b16 %v5042, %v5034
    %v6523 = vpack.c.b16 %v5051, %v5043
    %v6524 = vpack.c.b16 %v5052, %v5044
    %v6525 = vpack.c.b16 %v5053, %v5045
    %v6526 = vpack.c.b16 %v5054, %v5046
    %v6527 = vpack.c.b16 %v5055, %v5047
    %v6528 = vpack.c.b16 %v5056, %v5048
    %v6529 = vpack.c.b16 %v5057, %v5049
    %v6530 = vpack.c.b16 %v5058, %v5050
    %v6531 = vpack.c.b16 %v5067, %v5059
    %v6532 = vpack.c.b16 %v5068, %v5060
    %v6533 = vpack.c.b16 %v5069, %v5061
    %v6534 = vpack.c.b16 %v5070, %v5062
    %v6535 = vpack.c.b16 %v5071, %v5063
    %v6536 = vpack.c.b16 %v5072, %v5064
    %v6537 = vpack.c.b16 %v5073, %v5065
    %v6538 = vpack.c.b16 %v5074, %v5066
    %v6539 = vpack.c.b16 %v5083, %v5075
    %v6540 = vpack.c.b16 %v5084, %v5076
    %v6541 = vpack.c.b16 %v5085, %v5077
    %v6542 = vpack.c.b16 %v5086, %v5078
    %v6543 = vpack.c.b16 %v5087, %v5079
    %v6544 = vpack.c.b16 %v5088, %v5080
    %v6545 = vpack.c.b16 %v5089, %v5081
    %v6546 = vpack.c.b16 %v5090, %v5082
    %v6547 = vpack.c.b16 %v5099, %v5091
    %v6548 = vpack.c.b16 %v5100, %v5092
    %v6549 = vpack.c.b16 %v5101, %v5093
    %v6550 = vpack.c.b16 %v5102, %v5094
    %v6551 = vpack.c.b16 %v5103, %v5095
    %v6552 = vpack.c.b16 %v5104, %v5096
    %v6553 = vpack.c.b16 %v5105, %v5097
    %v6554 = vpack.c.b16 %v5106, %v5098
    %v6555 = vpack.c.b16 %v5115, %v5107
    %v6556 = vpack.c.b16 %v5116, %v5108
    %v6557 = vpack.c.b16 %v5117, %v5109
    %v6558 = vpack.c.b16 %v5118, %v5110
    %v6559 = vpack.c.b16 %v5119, %v5111
    %v6560 = vpack.c.b16 %v5120, %v5112
    %v6561 = vpack.c.b16 %v5121, %v5113
    %v6562 = vpack.c.b16 %v5122, %v5114
    %v6563 = vpack.c.b16 %v5131, %v5123
    %v6564 = vpack.c.b16 %v5132, %v5124
    %v6565 = vpack.c.b16 %v5133, %v5125
    %v6566 = vpack.c.b16 %v5134, %v5126
    %v6567 = vpack.c.b16 %v5135, %v5127
    %v6568 = vpack.c.b16 %v5136, %v5128
    %v6569 = vpack.c.b16 %v5137, %v5129
    %v6570 = vpack.c.b16 %v5138, %v5130
    %v6571 = vpack.c.b16 %v5147, %v5139
    %v6572 = vpack.c.b16 %v5148, %v5140
    %v6573 = vpack.c.b16 %v5149, %v5141
    %v6574 = vpack.c.b16 %v5150, %v5142
    %v6575 = vpack.c.b16 %v5151, %v5143
    %v6576 = vpack.c.b16 %v5152, %v5144
    %v6577 = vpack.c.b16 %v5153, %v5145
    %v6578 = vpack.c.b16 %v5154, %v5146
    %v6579 = vpack.c.b16 %v5163, %v5155
    %v6580 = vpack.c.b16 %v5164, %v5156
    %v6581 = vpack.c.b16 %v5165, %v5157
    %v6582 = vpack.c.b16 %v5166, %v5158
    %v6583 = vpack.c.b16 %v5167, %v5159
    %v6584 = vpack.c.b16 %v5168, %v5160
    %v6585 = vpack.c.b16 %v5169, %v5161
    %v6586 = vpack.c.b16 %v5170, %v5162
    %v6587 = vpack.c.b16 %v5179, %v5171
    %v6588 = vpack.c.b16 %v5180, %v5172
    %v6589 = vpack.c.b16 %v5181, %v5173
    %v6590 = vpack.c.b16 %v5182, %v5174
    %v6591 = vpack.c.b16 %v5183, %v5175
    %v6592 = vpack.c.b16 %v5184, %v5176
    %v6593 = vpack.c.b16 %v5185, %v5177
    %v6594 = vpack.c.b16 %v5186, %v5178
    %v6595 = vpack.c.b16 %v5195, %v5187
    %v6596 = vpack.c.b16 %v5196, %v5188
    %v6597 = vpack.c.b16 %v5197, %v5189
    %v6598 = vpack.c.b16 %v5198, %v5190
    %v6599 = vpack.c.b16 %v5199, %v5191
    %v6600 = vpack.c.b16 %v5200, %v5192
    %v6601 = vpack.c.b16 %v5201, %v5193
    %v6602 = vpack.c.b16 %v5202, %v5194
    %v6603 = vpack.c.b16 %v5211, %v5203
    %v6604 = vpack.c.b16 %v5212, %v5204
    %v6605 = vpack.c.b16 %v5213, %v5205
    %v6606 = vpack.c.b16 %v5214, %v5206
    %v6607 = vpack.c.b16 %v5215, %v5207
    %v6608 = vpack.c.b16 %v5216, %v5208
    %v6609 = vpack.c.b16 %v5217, %v5209
    %v6610 = vpack.c.b16 %v5218, %v5210
    %v6611 = vpack.c.b16 %v5227, %v5219
    %v6612 = vpack.c.b16 %v5228, %v5220
    %v6613 = vpack.c.b16 %v5229, %v5221
    %v6614 = vpack.c.b16 %v5230, %v5222
    %v6615 = vpack.c.b16 %v5231, %v5223
    %v6616 = vpack.c.b16 %v5232, %v5224
    %v6617 = vpack.c.b16 %v5233, %v5225
    %v6618 = vpack.c.b16 %v5234, %v5226
    %v6619 = vpack.c.b16 %v5243, %v5235
    %v6620 = vpack.c.b16 %v5244, %v5236
    %v6621 = vpack.c.b16 %v5245, %v5237
    %v6622 = vpack.c.b16 %v5246, %v5238
    %v6623 = vpack.c.b16 %v5247, %v5239
    %v6624 = vpack.c.b16 %v5248, %v5240
    %v6625 = vpack.c.b16 %v5249, %v5241
    %v6626 = vpack.c.b16 %v5250, %v5242
    %v6627 = vpack.c.b16 %v5259, %v5251
    %v6628 = vpack.c.b16 %v5260, %v5252
    %v6629 = vpack.c.b16 %v5261, %v5253
    %v6630 = vpack.c.b16 %v5262, %v5254
    %v6631 = vpack.c.b16 %v5263, %v5255
    %v6632 = vpack.c.b16 %v5264, %v5256
    %v6633 = vpack.c.b16 %v5265, %v5257
    %v6634 = vpack.c.b16 %v5266, %v5258
    %v6635 = vpack.c.b16 %v5275, %v5267
    %v6636 = vpack.c.b16 %v5276, %v5268
    %v6637 = vpack.c.b16 %v5277, %v5269
    %v6638 = vpack.c.b16 %v5278, %v5270
    %v6639 = vpack.c.b16 %v5279, %v5271
    %v6640 = vpack.c.b16 %v5280, %v5272
    %v6641 = vpack.c.b16 %v5281, %v5273
    %v6642 = vpack.c.b16 %v5282, %v5274
    %v6643 = vpack.c.b16 %v5291, %v5283
    %v6644 = vpack.c.b16 %v5292, %v5284
    %v6645 = vpack.c.b16 %v5293, %v5285
    %v6646 = vpack.c.b16 %v5294, %v5286
    %v6647 = vpack.c.b16 %v5295, %v5287
    %v6648 = vpack.c.b16 %v5296, %v5288
    %v6649 = vpack.c.b16 %v5297, %v5289
    %v6650 = vpack.c.b16 %v5298, %v5290
    %v6651 = vpack.c.b16 %v5307, %v5299
    %v6652 = vpack.c.b16 %v5308, %v5300
    %v6653 = vpack.c.b16 %v5309, %v5301
    %v6654 = vpack.c.b16 %v5310, %v5302
    %v6655 = vpack.c.b16 %v5311, %v5303
    %v6656 = vpack.c.b16 %v5312, %v5304
    %v6657 = vpack.c.b16 %v5313, %v5305
    %v6658 = vpack.c.b16 %v5314, %v5306
    %v6659 = vpack.c.b16 %v5323, %v5315
    %v6660 = vpack.c.b16 %v5324, %v5316
    %v6661 = vpack.c.b16 %v5325, %v5317
    %v6662 = vpack.c.b16 %v5326, %v5318
    %v6663 = vpack.c.b16 %v5327, %v5319
    %v6664 = vpack.c.b16 %v5328, %v5320
    %v6665 = vpack.c.b16 %v5329, %v5321
    %v6666 = vpack.c.b16 %v5330, %v5322
    %v6667 = vpack.c.b16 %v5339, %v5331
    %v6668 = vpack.c.b16 %v5340, %v5332
    %v6669 = vpack.c.b16 %v5341, %v5333
    %v6670 = vpack.c.b16 %v5342, %v5334
    %v6671 = vpack.c.b16 %v5343, %v5335
    %v6672 = vpack.c.b16 %v5344, %v5336
    %v6673 = vpack.c.b16 %v5345, %v5337
    %v6674 = vpack.c.b16 %v5346, %v5338
    %v6675 = vpack.c.b16 %v5355, %v5347
    %v6676 = vpack.c.b16 %v5356, %v5348
    %v6677 = vpack.c.b16 %v5357, %v5349
    %v6678 = vpack.c.b16 %v5358, %v5350
    %v6679 = vpack.c.b16 %v5359, %v5351
    %v6680 = vpack.c.b16 %v5360, %v5352
    %v6681 = vpack.c.b16 %v5361, %v5353
    %v6682 = vpack.c.b16 %v5362, %v5354
    %v6683 = vpack.c.b16 %v5371, %v5363
    %v6684 = vpack.c.b16 %v5372, %v5364
    %v6685 = vpack.c.b16 %v5373, %v5365
    %v6686 = vpack.c.b16 %v5374, %v5366
    %v6687 = vpack.c.b16 %v5375, %v5367
    %v6688 = vpack.c.b16 %v5376, %v5368
    %v6689 = vpack.c.b16 %v5377, %v5369
    %v6690 = vpack.c.b16 %v5378, %v5370
    %v6691 = vpack.c.b16 %v5387, %v5379
    %v6692 = vpack.c.b16 %v5388, %v5380
    %v6693 = vpack.c.b16 %v5389, %v5381
    %v6694 = vpack.c.b16 %v5390, %v5382
    %v6695 = vpack.c.b16 %v5391, %v5383
    %v6696 = vpack.c.b16 %v5392, %v5384
    %v6697 = vpack.c.b16 %v5393, %v5385
    %v6698 = vpack.c.b16 %v5394, %v5386
    %v6699 = vpack.c.b16 %v5403, %v5395
    %v6700 = vpack.c.b16 %v5404, %v5396
    %v6701 = vpack.c.b16 %v5405, %v5397
    %v6702 = vpack.c.b16 %v5406, %v5398
    %v6703 = vpack.c.b16 %v5407, %v5399
    %v6704 = vpack.c.b16 %v5408, %v5400
    %v6705 = vpack.c.b16 %v5409, %v5401
    %v6706 = vpack.c.b16 %v5410, %v5402
    %vm8003 = vcmask 261120
    %v8005 = vsel %vm8003, %v1493, 0
    %8007 = vmatprep.subr.bf16.mxu0 %v5412
    %8008 = vmatpush1.bf16.msra.mxu0 %v5411
    %8009 = vmatprep.subr.bf16.mxu0 %v5420
    %8010 = vmatpush1.bf16.msra.mxu0 %v5419
    %8011 = vmatprep.subr.bf16.mxu0 %v5428
    %8012 = vmatpush1.bf16.msra.mxu0 %v5427
    %8013 = vmatprep.subr.bf16.mxu0 %v5436
    %8014 = vmatpush1.bf16.msra.mxu0 %v5435
    %8015 = vmatprep.subr.bf16.mxu0 %v5444
    %8016 = vmatpush1.bf16.msra.mxu0 %v5443
    %8017 = vmatprep.subr.bf16.mxu0 %v5452
    %8018 = vmatpush1.bf16.msra.mxu0 %v5451
    %8019 = vmatprep.subr.bf16.mxu0 %v5460
    %8020 = vmatpush1.bf16.msra.mxu0 %v5459
    %8021 = vmatprep.subr.bf16.mxu0 %v5468
    %8022 = vmatpush1.bf16.msra.mxu0 %v5467
    %8023 = vmatprep.subr.bf16.mxu0 %v5476
    %8024 = vmatpush1.bf16.msra.mxu0 %v5475
    %8025 = vmatprep.subr.bf16.mxu0 %v5484
    %8026 = vmatpush1.bf16.msra.mxu0 %v5483
    %8027 = vmatprep.subr.bf16.mxu0 %v5492
    %8028 = vmatpush1.bf16.msra.mxu0 %v5491
    %8029 = vmatprep.subr.bf16.mxu0 %v5500
    %8030 = vmatpush1.bf16.msra.mxu0 %v5499
    %8031 = vmatprep.subr.bf16.mxu0 %v5508
    %8032 = vmatpush1.bf16.msra.mxu0 %v5507
    %8033 = vmatprep.subr.bf16.mxu0 %v5516
    %8034 = vmatpush1.bf16.msra.mxu0 %v5515
    %8035 = vmatprep.subr.bf16.mxu0 %v5524
    %8036 = vmatpush1.bf16.msra.mxu0 %v5523
    %8037 = vmatprep.subr.bf16.mxu0 %v5532
    %8038 = vmatpush1.bf16.msra.mxu0 %v5531
    %8039 = vmatprep.mubr.bf16.mxu0 %v1403
    %8040 = vmatmul.mubr.bf16.gmra.mrb[0].mxu0 %v1389
    %v8041 = vpop.f32.mrb[0].mxu0
    %v8042 = vadd.f32 %v1326, %v8041
    %v8043 = vpop.f32.mrb[0].mxu0
    %v8044 = vadd.f32 %v1330, %v8043
    %v8045 = vpop.f32.mrb[0].mxu0
    %v8046 = vpop.f32.mrb[0].mxu0
    %8047 = vdwg.mxu0
    %8048 = vmatprep.subr.bf16.mxu0 %v5540
    %8049 = vmatpush1.bf16.msra.mxu0 %v5539
    %8050 = vmatprep.subr.bf16.mxu0 %v5548
    %8051 = vmatpush1.bf16.msra.mxu0 %v5547
    %8052 = vmatprep.subr.bf16.mxu0 %v5556
    %8053 = vmatpush1.bf16.msra.mxu0 %v5555
    %8054 = vmatprep.subr.bf16.mxu0 %v5564
    %8055 = vmatpush1.bf16.msra.mxu0 %v5563
    %8056 = vmatprep.subr.bf16.mxu0 %v5572
    %8057 = vmatpush1.bf16.msra.mxu0 %v5571
    %8058 = vmatprep.subr.bf16.mxu0 %v5580
    %8059 = vmatpush1.bf16.msra.mxu0 %v5579
    %8060 = vmatprep.subr.bf16.mxu0 %v5588
    %8061 = vmatpush1.bf16.msra.mxu0 %v5587
    %8062 = vmatprep.subr.bf16.mxu0 %v5596
    %8063 = vmatpush1.bf16.msra.mxu0 %v5595
    %8064 = vmatprep.subr.bf16.mxu0 %v5604
    %8065 = vmatpush1.bf16.msra.mxu0 %v5603
    %8066 = vmatprep.subr.bf16.mxu0 %v5612
    %8067 = vmatpush1.bf16.msra.mxu0 %v5611
    %8068 = vmatprep.subr.bf16.mxu0 %v5620
    %8069 = vmatpush1.bf16.msra.mxu0 %v5619
    %8070 = vmatprep.subr.bf16.mxu0 %v5628
    %8071 = vmatpush1.bf16.msra.mxu0 %v5627
    %8072 = vmatprep.subr.bf16.mxu0 %v5636
    %8073 = vmatpush1.bf16.msra.mxu0 %v5635
    %8074 = vmatprep.subr.bf16.mxu0 %v5644
    %8075 = vmatpush1.bf16.msra.mxu0 %v5643
    %8076 = vmatprep.subr.bf16.mxu0 %v5652
    %8077 = vmatpush1.bf16.msra.mxu0 %v5651
    %8078 = vmatprep.subr.bf16.mxu0 %v5660
    %8079 = vmatpush1.bf16.msra.mxu0 %v5659
    %8080 = vmatprep.mubr.bf16.mxu0 %v1413
    %8081 = vmatmul.mubr.bf16.gmra.mrb[0].mxu0 %v1411
    %v8082 = vpop.f32.mrb[0].mxu0
    %v8083 = vadd.f32 %v8042, %v8082
    %v8084 = vpop.f32.mrb[0].mxu0
    %v8085 = vadd.f32 %v8044, %v8084
    %v8086 = vpop.f32.mrb[0].mxu0
    %v8087 = vpop.f32.mrb[0].mxu0
    %8088 = vdwg.mxu0
    %8089 = vmatprep.subr.bf16.mxu0 %v5668
    %8090 = vmatpush1.bf16.msra.mxu0 %v5667
    %8091 = vmatprep.subr.bf16.mxu0 %v5676
    %8092 = vmatpush1.bf16.msra.mxu0 %v5675
    %8093 = vmatprep.subr.bf16.mxu0 %v5684
    %8094 = vmatpush1.bf16.msra.mxu0 %v5683
    %8095 = vmatprep.subr.bf16.mxu0 %v5692
    %8096 = vmatpush1.bf16.msra.mxu0 %v5691
    %8097 = vmatprep.subr.bf16.mxu0 %v5700
    %8098 = vmatpush1.bf16.msra.mxu0 %v5699
    %8099 = vmatprep.subr.bf16.mxu0 %v5708
    %8100 = vmatpush1.bf16.msra.mxu0 %v5707
    %8101 = vmatprep.subr.bf16.mxu0 %v5716
    %8102 = vmatpush1.bf16.msra.mxu0 %v5715
    %8103 = vmatprep.subr.bf16.mxu0 %v5724
    %8104 = vmatpush1.bf16.msra.mxu0 %v5723
    %8105 = vmatprep.subr.bf16.mxu0 %v5732
    %8106 = vmatpush1.bf16.msra.mxu0 %v5731
    %8107 = vmatprep.subr.bf16.mxu0 %v5740
    %8108 = vmatpush1.bf16.msra.mxu0 %v5739
    %8109 = vmatprep.subr.bf16.mxu0 %v5748
    %8110 = vmatpush1.bf16.msra.mxu0 %v5747
    %8111 = vmatprep.subr.bf16.mxu0 %v5756
    %8112 = vmatpush1.bf16.msra.mxu0 %v5755
    %8113 = vmatprep.subr.bf16.mxu0 %v5764
    %8114 = vmatpush1.bf16.msra.mxu0 %v5763
    %8115 = vmatprep.subr.bf16.mxu0 %v5772
    %8116 = vmatpush1.bf16.msra.mxu0 %v5771
    %8117 = vmatprep.subr.bf16.mxu0 %v5780
    %8118 = vmatpush1.bf16.msra.mxu0 %v5779
    %8119 = vmatprep.subr.bf16.mxu0 %v5788
    %8120 = vmatpush1.bf16.msra.mxu0 %v5787
    %8121 = vmatprep.mubr.bf16.mxu0 %v1410
    %8122 = vmatmul.mubr.bf16.gmra.mrb[0].mxu0 %v1396
    %v8123 = vpop.f32.mrb[0].mxu0
    %v8124 = vadd.f32 %v8083, %v8123
    %v8125 = vpop.f32.mrb[0].mxu0
    %v8126 = vadd.f32 %v8085, %v8125
    %v8127 = vpop.f32.mrb[0].mxu0
    %v8128 = vpop.f32.mrb[0].mxu0
    %8129 = vdwg.mxu0
    %8130 = vmatprep.subr.bf16.mxu0 %v5796
    %8131 = vmatpush1.bf16.msra.mxu0 %v5795
    %8132 = vmatprep.subr.bf16.mxu0 %v5804
    %8133 = vmatpush1.bf16.msra.mxu0 %v5803
    %8134 = vmatprep.subr.bf16.mxu0 %v5812
    %8135 = vmatpush1.bf16.msra.mxu0 %v5811
    %8136 = vmatprep.subr.bf16.mxu0 %v5820
    %8137 = vmatpush1.bf16.msra.mxu0 %v5819
    %8138 = vmatprep.subr.bf16.mxu0 %v5828
    %8139 = vmatpush1.bf16.msra.mxu0 %v5827
    %8140 = vmatprep.subr.bf16.mxu0 %v5836
    %8141 = vmatpush1.bf16.msra.mxu0 %v5835
    %8142 = vmatprep.subr.bf16.mxu0 %v5844
    %8143 = vmatpush1.bf16.msra.mxu0 %v5843
    %8144 = vmatprep.subr.bf16.mxu0 %v5852
    %8145 = vmatpush1.bf16.msra.mxu0 %v5851
    %8146 = vmatprep.subr.bf16.mxu0 %v5860
    %8147 = vmatpush1.bf16.msra.mxu0 %v5859
    %8148 = vmatprep.subr.bf16.mxu0 %v5868
    %8149 = vmatpush1.bf16.msra.mxu0 %v5867
    %8150 = vmatprep.subr.bf16.mxu0 %v5876
    %8151 = vmatpush1.bf16.msra.mxu0 %v5875
    %8152 = vmatprep.subr.bf16.mxu0 %v5884
    %8153 = vmatpush1.bf16.msra.mxu0 %v5883
    %8154 = vmatprep.subr.bf16.mxu0 %v5892
    %8155 = vmatpush1.bf16.msra.mxu0 %v5891
    %8156 = vmatprep.subr.bf16.mxu0 %v5900
    %8157 = vmatpush1.bf16.msra.mxu0 %v5899
    %8158 = vmatprep.subr.bf16.mxu0 %v5908
    %8159 = vmatpush1.bf16.msra.mxu0 %v5907
    %8160 = vmatprep.subr.bf16.mxu0 %v5916
    %8161 = vmatpush1.bf16.msra.mxu0 %v5915
    %8162 = vmatprep.mubr.bf16.mxu0 %v1414
    %8163 = vmatmul.mubr.bf16.gmra.mrb[0].mxu0 %v1412
    %v8164 = vpop.f32.mrb[0].mxu0
    %v8165 = vadd.f32 %v8124, %v8164
    %v8166 = vpop.f32.mrb[0].mxu0
    %v8167 = vadd.f32 %v8126, %v8166
    %v8168 = vpop.f32.mrb[0].mxu0
    %v8169 = vpop.f32.mrb[0].mxu0
    %8170 = vdwg.mxu0
    %8171 = vmatprep.subr.bf16.mxu0 %v5924
    %8172 = vmatpush1.bf16.msra.mxu0 %v5923
    %8173 = vmatprep.subr.bf16.mxu0 %v5932
    %8174 = vmatpush1.bf16.msra.mxu0 %v5931
    %8175 = vmatprep.subr.bf16.mxu0 %v5940
    %8176 = vmatpush1.bf16.msra.mxu0 %v5939
    %8177 = vmatprep.subr.bf16.mxu0 %v5948
    %8178 = vmatpush1.bf16.msra.mxu0 %v5947
    %8179 = vmatprep.subr.bf16.mxu0 %v5956
    %8180 = vmatpush1.bf16.msra.mxu0 %v5955
    %8181 = vmatprep.subr.bf16.mxu0 %v5964
    %8182 = vmatpush1.bf16.msra.mxu0 %v5963
    %8183 = vmatprep.subr.bf16.mxu0 %v5972
    %8184 = vmatpush1.bf16.msra.mxu0 %v5971
    %8185 = vmatprep.subr.bf16.mxu0 %v5980
    %8186 = vmatpush1.bf16.msra.mxu0 %v5979
    %8187 = vmatprep.subr.bf16.mxu0 %v5988
    %8188 = vmatpush1.bf16.msra.mxu0 %v5987
    %8189 = vmatprep.subr.bf16.mxu0 %v5996
    %8190 = vmatpush1.bf16.msra.mxu0 %v5995
    %8191 = vmatprep.subr.bf16.mxu0 %v6004
    %8192 = vmatpush1.bf16.msra.mxu0 %v6003
    %8193 = vmatprep.subr.bf16.mxu0 %v6012
    %8194 = vmatpush1.bf16.msra.mxu0 %v6011
    %8195 = vmatprep.subr.bf16.mxu0 %v6020
    %8196 = vmatpush1.bf16.msra.mxu0 %v6019
    %8197 = vmatprep.subr.bf16.mxu0 %v6028
    %8198 = vmatpush1.bf16.msra.mxu0 %v6027
    %8199 = vmatprep.subr.bf16.mxu0 %v6036
    %8200 = vmatpush1.bf16.msra.mxu0 %v6035
    %8201 = vmatprep.subr.bf16.mxu0 %v6044
    %8202 = vmatpush1.bf16.msra.mxu0 %v6043
    %8203 = vmatprep.mubr.bf16.mxu0 %v1452
    %8204 = vmatmul.mubr.bf16.gmra.mrb[0].mxu0 %v1438
    %v8205 = vpop.f32.mrb[0].mxu0
    %v8206 = vadd.f32 %v8165, %v8205
    %v8207 = vpop.f32.mrb[0].mxu0
    %v8208 = vadd.f32 %v8167, %v8207
    %v8209 = vpop.f32.mrb[0].mxu0
    %v8210 = vpop.f32.mrb[0].mxu0
    %8211 = vdwg.mxu0
    %8212 = vmatprep.subr.bf16.mxu0 %v6052
    %8213 = vmatpush1.bf16.msra.mxu0 %v6051
    %8214 = vmatprep.subr.bf16.mxu0 %v6060
    %8215 = vmatpush1.bf16.msra.mxu0 %v6059
    %8216 = vmatprep.subr.bf16.mxu0 %v6068
    %8217 = vmatpush1.bf16.msra.mxu0 %v6067
    %8218 = vmatprep.subr.bf16.mxu0 %v6076
    %8219 = vmatpush1.bf16.msra.mxu0 %v6075
    %8220 = vmatprep.subr.bf16.mxu0 %v6084
    %8221 = vmatpush1.bf16.msra.mxu0 %v6083
    %8222 = vmatprep.subr.bf16.mxu0 %v6092
    %8223 = vmatpush1.bf16.msra.mxu0 %v6091
    %8224 = vmatprep.subr.bf16.mxu0 %v6100
    %8225 = vmatpush1.bf16.msra.mxu0 %v6099
    %8226 = vmatprep.subr.bf16.mxu0 %v6108
    %8227 = vmatpush1.bf16.msra.mxu0 %v6107
    %8228 = vmatprep.subr.bf16.mxu0 %v6116
    %8229 = vmatpush1.bf16.msra.mxu0 %v6115
    %8230 = vmatprep.subr.bf16.mxu0 %v6124
    %8231 = vmatpush1.bf16.msra.mxu0 %v6123
    %8232 = vmatprep.subr.bf16.mxu0 %v6132
    %8233 = vmatpush1.bf16.msra.mxu0 %v6131
    %8234 = vmatprep.subr.bf16.mxu0 %v6140
    %8235 = vmatpush1.bf16.msra.mxu0 %v6139
    %8236 = vmatprep.subr.bf16.mxu0 %v6148
    %8237 = vmatpush1.bf16.msra.mxu0 %v6147
    %8238 = vmatprep.subr.bf16.mxu0 %v6156
    %8239 = vmatpush1.bf16.msra.mxu0 %v6155
    %8240 = vmatprep.subr.bf16.mxu0 %v6164
    %8241 = vmatpush1.bf16.msra.mxu0 %v6163
    %8242 = vmatprep.subr.bf16.mxu0 %v6172
    %8243 = vmatpush1.bf16.msra.mxu0 %v6171
    %8244 = vmatprep.mubr.bf16.mxu0 %v1462
    %8245 = vmatmul.mubr.bf16.gmra.mrb[0].mxu0 %v1460
    %v8246 = vpop.f32.mrb[0].mxu0
    %v8247 = vadd.f32 %v8206, %v8246
    %v8248 = vpop.f32.mrb[0].mxu0
    %v8249 = vadd.f32 %v8208, %v8248
    %v8250 = vpop.f32.mrb[0].mxu0
    %v8251 = vpop.f32.mrb[0].mxu0
    %8252 = vdwg.mxu0
    %8253 = vmatprep.subr.bf16.mxu0 %v6180
    %8254 = vmatpush1.bf16.msra.mxu0 %v6179
    %8255 = vmatprep.subr.bf16.mxu0 %v6188
    %8256 = vmatpush1.bf16.msra.mxu0 %v6187
    %8257 = vmatprep.subr.bf16.mxu0 %v6196
    %8258 = vmatpush1.bf16.msra.mxu0 %v6195
    %8259 = vmatprep.subr.bf16.mxu0 %v6204
    %8260 = vmatpush1.bf16.msra.mxu0 %v6203
    %8261 = vmatprep.subr.bf16.mxu0 %v6212
    %8262 = vmatpush1.bf16.msra.mxu0 %v6211
    %8263 = vmatprep.subr.bf16.mxu0 %v6220
    %8264 = vmatpush1.bf16.msra.mxu0 %v6219
    %8265 = vmatprep.subr.bf16.mxu0 %v6228
    %8266 = vmatpush1.bf16.msra.mxu0 %v6227
    %8267 = vmatprep.subr.bf16.mxu0 %v6236
    %8268 = vmatpush1.bf16.msra.mxu0 %v6235
    %8269 = vmatprep.subr.bf16.mxu0 %v6244
    %8270 = vmatpush1.bf16.msra.mxu0 %v6243
    %8271 = vmatprep.subr.bf16.mxu0 %v6252
    %8272 = vmatpush1.bf16.msra.mxu0 %v6251
    %8273 = vmatprep.subr.bf16.mxu0 %v6260
    %8274 = vmatpush1.bf16.msra.mxu0 %v6259
    %8275 = vmatprep.subr.bf16.mxu0 %v6268
    %8276 = vmatpush1.bf16.msra.mxu0 %v6267
    %8277 = vmatprep.subr.bf16.mxu0 %v6276
    %8278 = vmatpush1.bf16.msra.mxu0 %v6275
    %8279 = vmatprep.subr.bf16.mxu0 %v6284
    %8280 = vmatpush1.bf16.msra.mxu0 %v6283
    %8281 = vmatprep.subr.bf16.mxu0 %v6292
    %8282 = vmatpush1.bf16.msra.mxu0 %v6291
    %8283 = vmatprep.subr.bf16.mxu0 %v6300
    %8284 = vmatpush1.bf16.msra.mxu0 %v6299
    %8285 = vmatprep.mubr.bf16.mxu0 %v1459
    %8286 = vmatmul.mubr.bf16.gmra.mrb[0].mxu0 %v1445
    %v8287 = vpop.f32.mrb[0].mxu0
    %v8288 = vadd.f32 %v8247, %v8287
    %v8289 = vpop.f32.mrb[0].mxu0
    %v8290 = vadd.f32 %v8249, %v8289
    %v8291 = vpop.f32.mrb[0].mxu0
    %v8292 = vpop.f32.mrb[0].mxu0
    %8293 = vdwg.mxu0
    %8294 = vmatprep.subr.bf16.mxu0 %v6308
    %8295 = vmatpush1.bf16.msra.mxu0 %v6307
    %8296 = vmatprep.subr.bf16.mxu0 %v6316
    %8297 = vmatpush1.bf16.msra.mxu0 %v6315
    %8298 = vmatprep.subr.bf16.mxu0 %v6324
    %8299 = vmatpush1.bf16.msra.mxu0 %v6323
    %8300 = vmatprep.subr.bf16.mxu0 %v6332
    %8301 = vmatpush1.bf16.msra.mxu0 %v6331
    %8302 = vmatprep.subr.bf16.mxu0 %v6340
    %8303 = vmatpush1.bf16.msra.mxu0 %v6339
    %8304 = vmatprep.subr.bf16.mxu0 %v6348
    %8305 = vmatpush1.bf16.msra.mxu0 %v6347
    %8306 = vmatprep.subr.bf16.mxu0 %v6356
    %8307 = vmatpush1.bf16.msra.mxu0 %v6355
    %8308 = vmatprep.subr.bf16.mxu0 %v6364
    %8309 = vmatpush1.bf16.msra.mxu0 %v6363
    %8310 = vmatprep.subr.bf16.mxu0 %v6372
    %8311 = vmatpush1.bf16.msra.mxu0 %v6371
    %8312 = vmatprep.subr.bf16.mxu0 %v6380
    %8313 = vmatpush1.bf16.msra.mxu0 %v6379
    %8314 = vmatprep.subr.bf16.mxu0 %v6388
    %8315 = vmatpush1.bf16.msra.mxu0 %v6387
    %8316 = vmatprep.subr.bf16.mxu0 %v6396
    %8317 = vmatpush1.bf16.msra.mxu0 %v6395
    %8318 = vmatprep.subr.bf16.mxu0 %v6404
    %8319 = vmatpush1.bf16.msra.mxu0 %v6403
    %8320 = vmatprep.subr.bf16.mxu0 %v6412
    %8321 = vmatpush1.bf16.msra.mxu0 %v6411
    %8322 = vmatprep.subr.bf16.mxu0 %v6420
    %8323 = vmatpush1.bf16.msra.mxu0 %v6419
    %8324 = vmatprep.subr.bf16.mxu0 %v6428
    %8325 = vmatpush1.bf16.msra.mxu0 %v6427
    %8326 = vmatprep.mubr.bf16.mxu0 %v1463
    %8327 = vmatmul.mubr.bf16.gmra.mrb[0].mxu0 %v1461
    %v8328 = vpop.f32.mrb[0].mxu0
    %v8329 = vadd.f32 %v8288, %v8328
    %v8330 = vpop.f32.mrb[0].mxu0
    %v8331 = vadd.f32 %v8290, %v8330
    %v8332 = vpop.f32.mrb[0].mxu0
    %v8333 = vpop.f32.mrb[0].mxu0
    %8334 = vdwg.mxu0
    %8335 = vmatprep.subr.bf16.mxu0 %v6436
    %8336 = vmatpush1.bf16.msra.mxu0 %v6435
    %8337 = vmatprep.subr.bf16.mxu0 %v6444
    %8338 = vmatpush1.bf16.msra.mxu0 %v6443
    %8339 = vmatprep.subr.bf16.mxu0 %v6452
    %8340 = vmatpush1.bf16.msra.mxu0 %v6451
    %8341 = vmatprep.subr.bf16.mxu0 %v6460
    %8342 = vmatpush1.bf16.msra.mxu0 %v6459
    %8343 = vmatprep.subr.bf16.mxu0 %v6468
    %8344 = vmatpush1.bf16.msra.mxu0 %v6467
    %8345 = vmatprep.subr.bf16.mxu0 %v6476
    %8346 = vmatpush1.bf16.msra.mxu0 %v6475
    %8347 = vmatprep.subr.bf16.mxu0 %v6484
    %8348 = vmatpush1.bf16.msra.mxu0 %v6483
    %8349 = vmatprep.subr.bf16.mxu0 %v6492
    %8350 = vmatpush1.bf16.msra.mxu0 %v6491
    %8351 = vmatprep.subr.bf16.mxu0 %v6500
    %8352 = vmatpush1.bf16.msra.mxu0 %v6499
    %8353 = vmatprep.subr.bf16.mxu0 %v6508
    %8354 = vmatpush1.bf16.msra.mxu0 %v6507
    %8355 = vmatprep.subr.bf16.mxu0 %v6516
    %8356 = vmatpush1.bf16.msra.mxu0 %v6515
    %8357 = vmatprep.subr.bf16.mxu0 %v6524
    %8358 = vmatpush1.bf16.msra.mxu0 %v6523
    %8359 = vmatprep.subr.bf16.mxu0 %v6532
    %8360 = vmatpush1.bf16.msra.mxu0 %v6531
    %8361 = vmatprep.subr.bf16.mxu0 %v6540
    %8362 = vmatpush1.bf16.msra.mxu0 %v6539
    %8363 = vmatprep.subr.bf16.mxu0 %v6548
    %8364 = vmatpush1.bf16.msra.mxu0 %v6547
    %8365 = vmatprep.subr.bf16.mxu0 %v6556
    %8366 = vmatpush1.bf16.msra.mxu0 %v6555
    %8367 = vmatprep.mubr.bf16.mxu0 %v1500
    %8368 = vmatmul.mubr.bf16.gmra.mrb[0].mxu0 %v1486
    %v8369 = vpop.f32.mrb[0].mxu0
    %v8370 = vadd.f32 %v8329, %v8369
    %v8371 = vpop.f32.mrb[0].mxu0
    %v8372 = vadd.f32 %v8331, %v8371
    %v8373 = vpop.f32.mrb[0].mxu0
    %v8374 = vpop.f32.mrb[0].mxu0
    %8375 = vdwg.mxu0
    %8376 = vmatprep.subr.bf16.mxu0 %v6564
    %8377 = vmatpush1.bf16.msra.mxu0 %v6563
    %8378 = vmatprep.subr.bf16.mxu0 %v6572
    %8379 = vmatpush1.bf16.msra.mxu0 %v6571
    %8380 = vmatprep.subr.bf16.mxu0 %v6580
    %8381 = vmatpush1.bf16.msra.mxu0 %v6579
    %8382 = vmatprep.subr.bf16.mxu0 %v6588
    %8383 = vmatpush1.bf16.msra.mxu0 %v6587
    %8384 = vmatprep.subr.bf16.mxu0 %v6596
    %8385 = vmatpush1.bf16.msra.mxu0 %v6595
    %8386 = vmatprep.subr.bf16.mxu0 %v6604
    %8387 = vmatpush1.bf16.msra.mxu0 %v6603
    %8388 = vmatprep.subr.bf16.mxu0 %v6612
    %8389 = vmatpush1.bf16.msra.mxu0 %v6611
    %8390 = vmatprep.subr.bf16.mxu0 %v6620
    %8391 = vmatpush1.bf16.msra.mxu0 %v6619
    %8392 = vmatprep.subr.bf16.mxu0 %v6628
    %8393 = vmatpush1.bf16.msra.mxu0 %v6627
    %8394 = vmatprep.subr.bf16.mxu0 %v6636
    %8395 = vmatpush1.bf16.msra.mxu0 %v6635
    %8396 = vmatprep.subr.bf16.mxu0 %v6644
    %8397 = vmatpush1.bf16.msra.mxu0 %v6643
    %8398 = vmatprep.subr.bf16.mxu0 %v6652
    %8399 = vmatpush1.bf16.msra.mxu0 %v6651
    %8400 = vmatprep.subr.bf16.mxu0 %v6660
    %8401 = vmatpush1.bf16.msra.mxu0 %v6659
    %8402 = vmatprep.subr.bf16.mxu0 %v6668
    %8403 = vmatpush1.bf16.msra.mxu0 %v6667
    %8404 = vmatprep.subr.bf16.mxu0 %v6676
    %8405 = vmatpush1.bf16.msra.mxu0 %v6675
    %8406 = vmatprep.subr.bf16.mxu0 %v6684
    %8407 = vmatpush1.bf16.msra.mxu0 %v6683
    %8408 = vmatprep.mubr.bf16.mxu0 %v1502
    %8409 = vmatmul.mubr.bf16.gmra.mrb[0].mxu0 %v1501
    %v8410 = vpop.f32.mrb[0].mxu0
    %v8411 = vadd.f32 %v8370, %v8410
    %v8412 = vpop.f32.mrb[0].mxu0
    %v8413 = vadd.f32 %v8372, %v8412
    %v8414 = vpop.f32.mrb[0].mxu0
    %v8415 = vpop.f32.mrb[0].mxu0
    %8416 = vdwg.mxu0
    %8417 = vmatprep.subr.bf16.mxu0 %v6692
    %8418 = vmatpush1.bf16.msra.mxu0 %v6691
    %8419 = vmatprep.subr.bf16.mxu0 %v6700
    %8420 = vmatpush1.bf16.msra.mxu0 %v6699
    %8421 = vmatprep.subr.bf16.mxu0 0
    %8422 = vmatpush1.bf16.msra.mxu0 0
    %8423 = vmatprep.subr.bf16.mxu0 0
    %8424 = vmatpush1.bf16.msra.mxu0 0
    %8425 = vmatprep.subr.bf16.mxu0 0
    %8426 = vmatpush1.bf16.msra.mxu0 0
    %8427 = vmatprep.subr.bf16.mxu0 0
    %8428 = vmatpush1.bf16.msra.mxu0 0
    %8429 = vmatprep.subr.bf16.mxu0 0
    %8430 = vmatpush1.bf16.msra.mxu0 0
    %8431 = vmatprep.subr.bf16.mxu0 0
    %8432 = vmatpush1.bf16.msra.mxu0 0
    %8433 = vmatprep.subr.bf16.mxu0 0
    %8434 = vmatpush1.bf16.msra.mxu0 0
    %8435 = vmatprep.subr.bf16.mxu0 0
    %8436 = vmatpush1.bf16.msra.mxu0 0
    %8437 = vmatprep.subr.bf16.mxu0 0
    %8438 = vmatpush1.bf16.msra.mxu0 0
    %8439 = vmatprep.subr.bf16.mxu0 0
    %8440 = vmatpush1.bf16.msra.mxu0 0
    %8441 = vmatprep.subr.bf16.mxu0 0
    %8442 = vmatpush1.bf16.msra.mxu0 0
    %8443 = vmatprep.subr.bf16.mxu0 0
    %8444 = vmatpush1.bf16.msra.mxu0 0
    %8445 = vmatprep.subr.bf16.mxu0 0
    %8446 = vmatpush1.bf16.msra.mxu0 0
    %8447 = vmatprep.subr.bf16.mxu0 0
    %8448 = vmatpush1.bf16.msra.mxu0 0
    %8449 = vmatprep.mubr.bf16.mxu0 0
    %8450 = vmatmul.mubr.bf16.gmra.mrb[0].mxu0 %v8005
    %v8451 = vpop.f32.mrb[0].mxu0
    %v8452 = vadd.f32 %v8411, %v8451
    %v8453 = vpop.f32.mrb[0].mxu0
    %v8454 = vadd.f32 %v8413, %v8453
    %v8455 = vpop.f32.mrb[0].mxu0
    %v8456 = vpop.f32.mrb[0].mxu0
    %8457 = vdwg.mxu0
    %8458 = vmatprep.subr.bf16.mxu0 %v5414
    %8459 = vmatpush1.bf16.msra.mxu0 %v5413
    %8460 = vmatprep.subr.bf16.mxu0 %v5422
    %8461 = vmatpush1.bf16.msra.mxu0 %v5421
    %8462 = vmatprep.subr.bf16.mxu0 %v5430
    %8463 = vmatpush1.bf16.msra.mxu0 %v5429
    %8464 = vmatprep.subr.bf16.mxu0 %v5438
    %8465 = vmatpush1.bf16.msra.mxu0 %v5437
    %8466 = vmatprep.subr.bf16.mxu0 %v5446
    %8467 = vmatpush1.bf16.msra.mxu0 %v5445
    %8468 = vmatprep.subr.bf16.mxu0 %v5454
    %8469 = vmatpush1.bf16.msra.mxu0 %v5453
    %8470 = vmatprep.subr.bf16.mxu0 %v5462
    %8471 = vmatpush1.bf16.msra.mxu0 %v5461
    %8472 = vmatprep.subr.bf16.mxu0 %v5470
    %8473 = vmatpush1.bf16.msra.mxu0 %v5469
    %8474 = vmatprep.subr.bf16.mxu0 %v5478
    %8475 = vmatpush1.bf16.msra.mxu0 %v5477
    %8476 = vmatprep.subr.bf16.mxu0 %v5486
    %8477 = vmatpush1.bf16.msra.mxu0 %v5485
    %8478 = vmatprep.subr.bf16.mxu0 %v5494
    %8479 = vmatpush1.bf16.msra.mxu0 %v5493
    %8480 = vmatprep.subr.bf16.mxu0 %v5502
    %8481 = vmatpush1.bf16.msra.mxu0 %v5501
    %8482 = vmatprep.subr.bf16.mxu0 %v5510
    %8483 = vmatpush1.bf16.msra.mxu0 %v5509
    %8484 = vmatprep.subr.bf16.mxu0 %v5518
    %8485 = vmatpush1.bf16.msra.mxu0 %v5517
    %8486 = vmatprep.subr.bf16.mxu0 %v5526
    %8487 = vmatpush1.bf16.msra.mxu0 %v5525
    %8488 = vmatprep.subr.bf16.mxu0 %v5534
    %8489 = vmatpush1.bf16.msra.mxu0 %v5533
    %8490 = vmatprep.mubr.bf16.mxu0 %v1403
    %8491 = vmatmul.mubr.bf16.gmra.mrb[0].mxu0 %v1389
    %v8492 = vpop.f32.mrb[0].mxu0
    %v8493 = vadd.f32 %v1334, %v8492
    %v8494 = vpop.f32.mrb[0].mxu0
    %v8495 = vadd.f32 %v1338, %v8494
    %v8496 = vpop.f32.mrb[0].mxu0
    %v8497 = vpop.f32.mrb[0].mxu0
    %8498 = vdwg.mxu0
    %8499 = vmatprep.subr.bf16.mxu0 %v5542
    %8500 = vmatpush1.bf16.msra.mxu0 %v5541
    %8501 = vmatprep.subr.bf16.mxu0 %v5550
    %8502 = vmatpush1.bf16.msra.mxu0 %v5549
    %8503 = vmatprep.subr.bf16.mxu0 %v5558
    %8504 = vmatpush1.bf16.msra.mxu0 %v5557
    %8505 = vmatprep.subr.bf16.mxu0 %v5566
    %8506 = vmatpush1.bf16.msra.mxu0 %v5565
    %8507 = vmatprep.subr.bf16.mxu0 %v5574
    %8508 = vmatpush1.bf16.msra.mxu0 %v5573
    %8509 = vmatprep.subr.bf16.mxu0 %v5582
    %8510 = vmatpush1.bf16.msra.mxu0 %v5581
    %8511 = vmatprep.subr.bf16.mxu0 %v5590
    %8512 = vmatpush1.bf16.msra.mxu0 %v5589
    %8513 = vmatprep.subr.bf16.mxu0 %v5598
    %8514 = vmatpush1.bf16.msra.mxu0 %v5597
    %8515 = vmatprep.subr.bf16.mxu0 %v5606
    %8516 = vmatpush1.bf16.msra.mxu0 %v5605
    %8517 = vmatprep.subr.bf16.mxu0 %v5614
    %8518 = vmatpush1.bf16.msra.mxu0 %v5613
    %8519 = vmatprep.subr.bf16.mxu0 %v5622
    %8520 = vmatpush1.bf16.msra.mxu0 %v5621
    %8521 = vmatprep.subr.bf16.mxu0 %v5630
    %8522 = vmatpush1.bf16.msra.mxu0 %v5629
    %8523 = vmatprep.subr.bf16.mxu0 %v5638
    %8524 = vmatpush1.bf16.msra.mxu0 %v5637
    %8525 = vmatprep.subr.bf16.mxu0 %v5646
    %8526 = vmatpush1.bf16.msra.mxu0 %v5645
    %8527 = vmatprep.subr.bf16.mxu0 %v5654
    %8528 = vmatpush1.bf16.msra.mxu0 %v5653
    %8529 = vmatprep.subr.bf16.mxu0 %v5662
    %8530 = vmatpush1.bf16.msra.mxu0 %v5661
    %8531 = vmatprep.mubr.bf16.mxu0 %v1413
    %8532 = vmatmul.mubr.bf16.gmra.mrb[0].mxu0 %v1411
    %v8533 = vpop.f32.mrb[0].mxu0
    %v8534 = vadd.f32 %v8493, %v8533
    %v8535 = vpop.f32.mrb[0].mxu0
    %v8536 = vadd.f32 %v8495, %v8535
    %v8537 = vpop.f32.mrb[0].mxu0
    %v8538 = vpop.f32.mrb[0].mxu0
    %8539 = vdwg.mxu0
    %8540 = vmatprep.subr.bf16.mxu0 %v5670
    %8541 = vmatpush1.bf16.msra.mxu0 %v5669
    %8542 = vmatprep.subr.bf16.mxu0 %v5678
    %8543 = vmatpush1.bf16.msra.mxu0 %v5677
    %8544 = vmatprep.subr.bf16.mxu0 %v5686
    %8545 = vmatpush1.bf16.msra.mxu0 %v5685
    %8546 = vmatprep.subr.bf16.mxu0 %v5694
    %8547 = vmatpush1.bf16.msra.mxu0 %v5693
    %8548 = vmatprep.subr.bf16.mxu0 %v5702
    %8549 = vmatpush1.bf16.msra.mxu0 %v5701
    %8550 = vmatprep.subr.bf16.mxu0 %v5710
    %8551 = vmatpush1.bf16.msra.mxu0 %v5709
    %8552 = vmatprep.subr.bf16.mxu0 %v5718
    %8553 = vmatpush1.bf16.msra.mxu0 %v5717
    %8554 = vmatprep.subr.bf16.mxu0 %v5726
    %8555 = vmatpush1.bf16.msra.mxu0 %v5725
    %8556 = vmatprep.subr.bf16.mxu0 %v5734
    %8557 = vmatpush1.bf16.msra.mxu0 %v5733
    %8558 = vmatprep.subr.bf16.mxu0 %v5742
    %8559 = vmatpush1.bf16.msra.mxu0 %v5741
    %8560 = vmatprep.subr.bf16.mxu0 %v5750
    %8561 = vmatpush1.bf16.msra.mxu0 %v5749
    %8562 = vmatprep.subr.bf16.mxu0 %v5758
    %8563 = vmatpush1.bf16.msra.mxu0 %v5757
    %8564 = vmatprep.subr.bf16.mxu0 %v5766
    %8565 = vmatpush1.bf16.msra.mxu0 %v5765
    %8566 = vmatprep.subr.bf16.mxu0 %v5774
    %8567 = vmatpush1.bf16.msra.mxu0 %v5773
    %8568 = vmatprep.subr.bf16.mxu0 %v5782
    %8569 = vmatpush1.bf16.msra.mxu0 %v5781
    %8570 = vmatprep.subr.bf16.mxu0 %v5790
    %8571 = vmatpush1.bf16.msra.mxu0 %v5789
    %8572 = vmatprep.mubr.bf16.mxu0 %v1410
    %8573 = vmatmul.mubr.bf16.gmra.mrb[0].mxu0 %v1396
    %v8574 = vpop.f32.mrb[0].mxu0
    %v8575 = vadd.f32 %v8534, %v8574
    %v8576 = vpop.f32.mrb[0].mxu0
    %v8577 = vadd.f32 %v8536, %v8576
    %v8578 = vpop.f32.mrb[0].mxu0
    %v8579 = vpop.f32.mrb[0].mxu0
    %8580 = vdwg.mxu0
    %8581 = vmatprep.subr.bf16.mxu0 %v5798
    %8582 = vmatpush1.bf16.msra.mxu0 %v5797
    %8583 = vmatprep.subr.bf16.mxu0 %v5806
    %8584 = vmatpush1.bf16.msra.mxu0 %v5805
    %8585 = vmatprep.subr.bf16.mxu0 %v5814
    %8586 = vmatpush1.bf16.msra.mxu0 %v5813
    %8587 = vmatprep.subr.bf16.mxu0 %v5822
    %8588 = vmatpush1.bf16.msra.mxu0 %v5821
    %8589 = vmatprep.subr.bf16.mxu0 %v5830
    %8590 = vmatpush1.bf16.msra.mxu0 %v5829
    %8591 = vmatprep.subr.bf16.mxu0 %v5838
    %8592 = vmatpush1.bf16.msra.mxu0 %v5837
    %8593 = vmatprep.subr.bf16.mxu0 %v5846
    %8594 = vmatpush1.bf16.msra.mxu0 %v5845
    %8595 = vmatprep.subr.bf16.mxu0 %v5854
    %8596 = vmatpush1.bf16.msra.mxu0 %v5853
    %8597 = vmatprep.subr.bf16.mxu0 %v5862
    %8598 = vmatpush1.bf16.msra.mxu0 %v5861
    %8599 = vmatprep.subr.bf16.mxu0 %v5870
    %8600 = vmatpush1.bf16.msra.mxu0 %v5869
    %8601 = vmatprep.subr.bf16.mxu0 %v5878
    %8602 = vmatpush1.bf16.msra.mxu0 %v5877
    %8603 = vmatprep.subr.bf16.mxu0 %v5886
    %8604 = vmatpush1.bf16.msra.mxu0 %v5885
    %8605 = vmatprep.subr.bf16.mxu0 %v5894
    %8606 = vmatpush1.bf16.msra.mxu0 %v5893
    %8607 = vmatprep.subr.bf16.mxu0 %v5902
    %8608 = vmatpush1.bf16.msra.mxu0 %v5901
    %8609 = vmatprep.subr.bf16.mxu0 %v5910
    %8610 = vmatpush1.bf16.msra.mxu0 %v5909
    %8611 = vmatprep.subr.bf16.mxu0 %v5918
    %8612 = vmatpush1.bf16.msra.mxu0 %v5917
    %8613 = vmatprep.mubr.bf16.mxu0 %v1414
    %8614 = vmatmul.mubr.bf16.gmra.mrb[0].mxu0 %v1412
    %v8615 = vpop.f32.mrb[0].mxu0
    %v8616 = vadd.f32 %v8575, %v8615
    %v8617 = vpop.f32.mrb[0].mxu0
    %v8618 = vadd.f32 %v8577, %v8617
    %v8619 = vpop.f32.mrb[0].mxu0
    %v8620 = vpop.f32.mrb[0].mxu0
    %8621 = vdwg.mxu0
    %8622 = vmatprep.subr.bf16.mxu0 %v5926
    %8623 = vmatpush1.bf16.msra.mxu0 %v5925
    %8624 = vmatprep.subr.bf16.mxu0 %v5934
    %8625 = vmatpush1.bf16.msra.mxu0 %v5933
    %8626 = vmatprep.subr.bf16.mxu0 %v5942
    %8627 = vmatpush1.bf16.msra.mxu0 %v5941
    %8628 = vmatprep.subr.bf16.mxu0 %v5950
    %8629 = vmatpush1.bf16.msra.mxu0 %v5949
    %8630 = vmatprep.subr.bf16.mxu0 %v5958
    %8631 = vmatpush1.bf16.msra.mxu0 %v5957
    %8632 = vmatprep.subr.bf16.mxu0 %v5966
    %8633 = vmatpush1.bf16.msra.mxu0 %v5965
    %8634 = vmatprep.subr.bf16.mxu0 %v5974
    %8635 = vmatpush1.bf16.msra.mxu0 %v5973
    %8636 = vmatprep.subr.bf16.mxu0 %v5982
    %8637 = vmatpush1.bf16.msra.mxu0 %v5981
    %8638 = vmatprep.subr.bf16.mxu0 %v5990
    %8639 = vmatpush1.bf16.msra.mxu0 %v5989
    %8640 = vmatprep.subr.bf16.mxu0 %v5998
    %8641 = vmatpush1.bf16.msra.mxu0 %v5997
    %8642 = vmatprep.subr.bf16.mxu0 %v6006
    %8643 = vmatpush1.bf16.msra.mxu0 %v6005
    %8644 = vmatprep.subr.bf16.mxu0 %v6014
    %8645 = vmatpush1.bf16.msra.mxu0 %v6013
    %8646 = vmatprep.subr.bf16.mxu0 %v6022
    %8647 = vmatpush1.bf16.msra.mxu0 %v6021
    %8648 = vmatprep.subr.bf16.mxu0 %v6030
    %8649 = vmatpush1.bf16.msra.mxu0 %v6029
    %8650 = vmatprep.subr.bf16.mxu0 %v6038
    %8651 = vmatpush1.bf16.msra.mxu0 %v6037
    %8652 = vmatprep.subr.bf16.mxu0 %v6046
    %8653 = vmatpush1.bf16.msra.mxu0 %v6045
    %8654 = vmatprep.mubr.bf16.mxu0 %v1452
    %8655 = vmatmul.mubr.bf16.gmra.mrb[0].mxu0 %v1438
    %v8656 = vpop.f32.mrb[0].mxu0
    %v8657 = vadd.f32 %v8616, %v8656
    %v8658 = vpop.f32.mrb[0].mxu0
    %v8659 = vadd.f32 %v8618, %v8658
    %v8660 = vpop.f32.mrb[0].mxu0
    %v8661 = vpop.f32.mrb[0].mxu0
    %8662 = vdwg.mxu0
    %8663 = vmatprep.subr.bf16.mxu0 %v6054
    %8664 = vmatpush1.bf16.msra.mxu0 %v6053
    %8665 = vmatprep.subr.bf16.mxu0 %v6062
    %8666 = vmatpush1.bf16.msra.mxu0 %v6061
    %8667 = vmatprep.subr.bf16.mxu0 %v6070
    %8668 = vmatpush1.bf16.msra.mxu0 %v6069
    %8669 = vmatprep.subr.bf16.mxu0 %v6078
    %8670 = vmatpush1.bf16.msra.mxu0 %v6077
    %8671 = vmatprep.subr.bf16.mxu0 %v6086
    %8672 = vmatpush1.bf16.msra.mxu0 %v6085
    %8673 = vmatprep.subr.bf16.mxu0 %v6094
    %8674 = vmatpush1.bf16.msra.mxu0 %v6093
    %8675 = vmatprep.subr.bf16.mxu0 %v6102
    %8676 = vmatpush1.bf16.msra.mxu0 %v6101
    %8677 = vmatprep.subr.bf16.mxu0 %v6110
    %8678 = vmatpush1.bf16.msra.mxu0 %v6109
    %8679 = vmatprep.subr.bf16.mxu0 %v6118
    %8680 = vmatpush1.bf16.msra.mxu0 %v6117
    %8681 = vmatprep.subr.bf16.mxu0 %v6126
    %8682 = vmatpush1.bf16.msra.mxu0 %v6125
    %8683 = vmatprep.subr.bf16.mxu0 %v6134
    %8684 = vmatpush1.bf16.msra.mxu0 %v6133
    %8685 = vmatprep.subr.bf16.mxu0 %v6142
    %8686 = vmatpush1.bf16.msra.mxu0 %v6141
    %8687 = vmatprep.subr.bf16.mxu0 %v6150
    %8688 = vmatpush1.bf16.msra.mxu0 %v6149
    %8689 = vmatprep.subr.bf16.mxu0 %v6158
    %8690 = vmatpush1.bf16.msra.mxu0 %v6157
    %8691 = vmatprep.subr.bf16.mxu0 %v6166
    %8692 = vmatpush1.bf16.msra.mxu0 %v6165
    %8693 = vmatprep.subr.bf16.mxu0 %v6174
    %8694 = vmatpush1.bf16.msra.mxu0 %v6173
    %8695 = vmatprep.mubr.bf16.mxu0 %v1462
    %8696 = vmatmul.mubr.bf16.gmra.mrb[0].mxu0 %v1460
    %v8697 = vpop.f32.mrb[0].mxu0
    %v8698 = vadd.f32 %v8657, %v8697
    %v8699 = vpop.f32.mrb[0].mxu0
    %v8700 = vadd.f32 %v8659, %v8699
    %v8701 = vpop.f32.mrb[0].mxu0
    %v8702 = vpop.f32.mrb[0].mxu0
    %8703 = vdwg.mxu0
    %8704 = vmatprep.subr.bf16.mxu0 %v6182
    %8705 = vmatpush1.bf16.msra.mxu0 %v6181
    %8706 = vmatprep.subr.bf16.mxu0 %v6190
    %8707 = vmatpush1.bf16.msra.mxu0 %v6189
    %8708 = vmatprep.subr.bf16.mxu0 %v6198
    %8709 = vmatpush1.bf16.msra.mxu0 %v6197
    %8710 = vmatprep.subr.bf16.mxu0 %v6206
    %8711 = vmatpush1.bf16.msra.mxu0 %v6205
    %8712 = vmatprep.subr.bf16.mxu0 %v6214
    %8713 = vmatpush1.bf16.msra.mxu0 %v6213
    %8714 = vmatprep.subr.bf16.mxu0 %v6222
    %8715 = vmatpush1.bf16.msra.mxu0 %v6221
    %8716 = vmatprep.subr.bf16.mxu0 %v6230
    %8717 = vmatpush1.bf16.msra.mxu0 %v6229
    %8718 = vmatprep.subr.bf16.mxu0 %v6238
    %8719 = vmatpush1.bf16.msra.mxu0 %v6237
    %8720 = vmatprep.subr.bf16.mxu0 %v6246
    %8721 = vmatpush1.bf16.msra.mxu0 %v6245
    %8722 = vmatprep.subr.bf16.mxu0 %v6254
    %8723 = vmatpush1.bf16.msra.mxu0 %v6253
    %8724 = vmatprep.subr.bf16.mxu0 %v6262
    %8725 = vmatpush1.bf16.msra.mxu0 %v6261
    %8726 = vmatprep.subr.bf16.mxu0 %v6270
    %8727 = vmatpush1.bf16.msra.mxu0 %v6269
    %8728 = vmatprep.subr.bf16.mxu0 %v6278
    %8729 = vmatpush1.bf16.msra.mxu0 %v6277
    %8730 = vmatprep.subr.bf16.mxu0 %v6286
    %8731 = vmatpush1.bf16.msra.mxu0 %v6285
    %8732 = vmatprep.subr.bf16.mxu0 %v6294
    %8733 = vmatpush1.bf16.msra.mxu0 %v6293
    %8734 = vmatprep.subr.bf16.mxu0 %v6302
    %8735 = vmatpush1.bf16.msra.mxu0 %v6301
    %8736 = vmatprep.mubr.bf16.mxu0 %v1459
    %8737 = vmatmul.mubr.bf16.gmra.mrb[0].mxu0 %v1445
    %v8738 = vpop.f32.mrb[0].mxu0
    %v8739 = vadd.f32 %v8698, %v8738
    %v8740 = vpop.f32.mrb[0].mxu0
    %v8741 = vadd.f32 %v8700, %v8740
    %v8742 = vpop.f32.mrb[0].mxu0
    %v8743 = vpop.f32.mrb[0].mxu0
    %8744 = vdwg.mxu0
    %8745 = vmatprep.subr.bf16.mxu0 %v6310
    %8746 = vmatpush1.bf16.msra.mxu0 %v6309
    %8747 = vmatprep.subr.bf16.mxu0 %v6318
    %8748 = vmatpush1.bf16.msra.mxu0 %v6317
    %8749 = vmatprep.subr.bf16.mxu0 %v6326
    %8750 = vmatpush1.bf16.msra.mxu0 %v6325
    %8751 = vmatprep.subr.bf16.mxu0 %v6334
    %8752 = vmatpush1.bf16.msra.mxu0 %v6333
    %8753 = vmatprep.subr.bf16.mxu0 %v6342
    %8754 = vmatpush1.bf16.msra.mxu0 %v6341
    %8755 = vmatprep.subr.bf16.mxu0 %v6350
    %8756 = vmatpush1.bf16.msra.mxu0 %v6349
    %8757 = vmatprep.subr.bf16.mxu0 %v6358
    %8758 = vmatpush1.bf16.msra.mxu0 %v6357
    %8759 = vmatprep.subr.bf16.mxu0 %v6366
    %8760 = vmatpush1.bf16.msra.mxu0 %v6365
    %8761 = vmatprep.subr.bf16.mxu0 %v6374
    %8762 = vmatpush1.bf16.msra.mxu0 %v6373
    %8763 = vmatprep.subr.bf16.mxu0 %v6382
    %8764 = vmatpush1.bf16.msra.mxu0 %v6381
    %8765 = vmatprep.subr.bf16.mxu0 %v6390
    %8766 = vmatpush1.bf16.msra.mxu0 %v6389
    %8767 = vmatprep.subr.bf16.mxu0 %v6398
    %8768 = vmatpush1.bf16.msra.mxu0 %v6397
    %8769 = vmatprep.subr.bf16.mxu0 %v6406
    %8770 = vmatpush1.bf16.msra.mxu0 %v6405
    %8771 = vmatprep.subr.bf16.mxu0 %v6414
    %8772 = vmatpush1.bf16.msra.mxu0 %v6413
    %8773 = vmatprep.subr.bf16.mxu0 %v6422
    %8774 = vmatpush1.bf16.msra.mxu0 %v6421
    %8775 = vmatprep.subr.bf16.mxu0 %v6430
    %8776 = vmatpush1.bf16.msra.mxu0 %v6429
    %8777 = vmatprep.mubr.bf16.mxu0 %v1463
    %8778 = vmatmul.mubr.bf16.gmra.mrb[0].mxu0 %v1461
    %v8779 = vpop.f32.mrb[0].mxu0
    %v8780 = vadd.f32 %v8739, %v8779
    %v8781 = vpop.f32.mrb[0].mxu0
    %v8782 = vadd.f32 %v8741, %v8781
    %v8783 = vpop.f32.mrb[0].mxu0
    %v8784 = vpop.f32.mrb[0].mxu0
    %8785 = vdwg.mxu0
    %8786 = vmatprep.subr.bf16.mxu0 %v6438
    %8787 = vmatpush1.bf16.msra.mxu0 %v6437
    %8788 = vmatprep.subr.bf16.mxu0 %v6446
    %8789 = vmatpush1.bf16.msra.mxu0 %v6445
    %8790 = vmatprep.subr.bf16.mxu0 %v6454
    %8791 = vmatpush1.bf16.msra.mxu0 %v6453
    %8792 = vmatprep.subr.bf16.mxu0 %v6462
    %8793 = vmatpush1.bf16.msra.mxu0 %v6461
    %8794 = vmatprep.subr.bf16.mxu0 %v6470
    %8795 = vmatpush1.bf16.msra.mxu0 %v6469
    %8796 = vmatprep.subr.bf16.mxu0 %v6478
    %8797 = vmatpush1.bf16.msra.mxu0 %v6477
    %8798 = vmatprep.subr.bf16.mxu0 %v6486
    %8799 = vmatpush1.bf16.msra.mxu0 %v6485
    %8800 = vmatprep.subr.bf16.mxu0 %v6494
    %8801 = vmatpush1.bf16.msra.mxu0 %v6493
    %8802 = vmatprep.subr.bf16.mxu0 %v6502
    %8803 = vmatpush1.bf16.msra.mxu0 %v6501
    %8804 = vmatprep.subr.bf16.mxu0 %v6510
    %8805 = vmatpush1.bf16.msra.mxu0 %v6509
    %8806 = vmatprep.subr.bf16.mxu0 %v6518
    %8807 = vmatpush1.bf16.msra.mxu0 %v6517
    %8808 = vmatprep.subr.bf16.mxu0 %v6526
    %8809 = vmatpush1.bf16.msra.mxu0 %v6525
    %8810 = vmatprep.subr.bf16.mxu0 %v6534
    %8811 = vmatpush1.bf16.msra.mxu0 %v6533
    %8812 = vmatprep.subr.bf16.mxu0 %v6542
    %8813 = vmatpush1.bf16.msra.mxu0 %v6541
    %8814 = vmatprep.subr.bf16.mxu0 %v6550
    %8815 = vmatpush1.bf16.msra.mxu0 %v6549
    %8816 = vmatprep.subr.bf16.mxu0 %v6558
    %8817 = vmatpush1.bf16.msra.mxu0 %v6557
    %8818 = vmatprep.mubr.bf16.mxu0 %v1500
    %8819 = vmatmul.mubr.bf16.gmra.mrb[0].mxu0 %v1486
    %v8820 = vpop.f32.mrb[0].mxu0
    %v8821 = vadd.f32 %v8780, %v8820
    %v8822 = vpop.f32.mrb[0].mxu0
    %v8823 = vadd.f32 %v8782, %v8822
    %v8824 = vpop.f32.mrb[0].mxu0
    %v8825 = vpop.f32.mrb[0].mxu0
    %8826 = vdwg.mxu0
    %8827 = vmatprep.subr.bf16.mxu0 %v6566
    %8828 = vmatpush1.bf16.msra.mxu0 %v6565
    %8829 = vmatprep.subr.bf16.mxu0 %v6574
    %8830 = vmatpush1.bf16.msra.mxu0 %v6573
    %8831 = vmatprep.subr.bf16.mxu0 %v6582
    %8832 = vmatpush1.bf16.msra.mxu0 %v6581
    %8833 = vmatprep.subr.bf16.mxu0 %v6590
    %8834 = vmatpush1.bf16.msra.mxu0 %v6589
    %8835 = vmatprep.subr.bf16.mxu0 %v6598
    %8836 = vmatpush1.bf16.msra.mxu0 %v6597
    %8837 = vmatprep.subr.bf16.mxu0 %v6606
    %8838 = vmatpush1.bf16.msra.mxu0 %v6605
    %8839 = vmatprep.subr.bf16.mxu0 %v6614
    %8840 = vmatpush1.bf16.msra.mxu0 %v6613
    %8841 = vmatprep.subr.bf16.mxu0 %v6622
    %8842 = vmatpush1.bf16.msra.mxu0 %v6621
    %8843 = vmatprep.subr.bf16.mxu0 %v6630
    %8844 = vmatpush1.bf16.msra.mxu0 %v6629
    %8845 = vmatprep.subr.bf16.mxu0 %v6638
    %8846 = vmatpush1.bf16.msra.mxu0 %v6637
    %8847 = vmatprep.subr.bf16.mxu0 %v6646
    %8848 = vmatpush1.bf16.msra.mxu0 %v6645
    %8849 = vmatprep.subr.bf16.mxu0 %v6654
    %8850 = vmatpush1.bf16.msra.mxu0 %v6653
    %8851 = vmatprep.subr.bf16.mxu0 %v6662
    %8852 = vmatpush1.bf16.msra.mxu0 %v6661
    %8853 = vmatprep.subr.bf16.mxu0 %v6670
    %8854 = vmatpush1.bf16.msra.mxu0 %v6669
    %8855 = vmatprep.subr.bf16.mxu0 %v6678
    %8856 = vmatpush1.bf16.msra.mxu0 %v6677
    %8857 = vmatprep.subr.bf16.mxu0 %v6686
    %8858 = vmatpush1.bf16.msra.mxu0 %v6685
    %8859 = vmatprep.mubr.bf16.mxu0 %v1502
    %8860 = vmatmul.mubr.bf16.gmra.mrb[0].mxu0 %v1501
    %v8861 = vpop.f32.mrb[0].mxu0
    %v8862 = vadd.f32 %v8821, %v8861
    %v8863 = vpop.f32.mrb[0].mxu0
    %v8864 = vadd.f32 %v8823, %v8863
    %v8865 = vpop.f32.mrb[0].mxu0
    %v8866 = vpop.f32.mrb[0].mxu0
    %8867 = vdwg.mxu0
    %8868 = vmatprep.subr.bf16.mxu0 %v6694
    %8869 = vmatpush1.bf16.msra.mxu0 %v6693
    %8870 = vmatprep.subr.bf16.mxu0 %v6702
    %8871 = vmatpush1.bf16.msra.mxu0 %v6701
    %8872 = vmatprep.subr.bf16.mxu0 0
    %8873 = vmatpush1.bf16.msra.mxu0 0
    %8874 = vmatprep.subr.bf16.mxu0 0
    %8875 = vmatpush1.bf16.msra.mxu0 0
    %8876 = vmatprep.subr.bf16.mxu0 0
    %8877 = vmatpush1.bf16.msra.mxu0 0
    %8878 = vmatprep.subr.bf16.mxu0 0
    %8879 = vmatpush1.bf16.msra.mxu0 0
    %8880 = vmatprep.subr.bf16.mxu0 0
    %8881 = vmatpush1.bf16.msra.mxu0 0
    %8882 = vmatprep.subr.bf16.mxu0 0
    %8883 = vmatpush1.bf16.msra.mxu0 0
    %8884 = vmatprep.subr.bf16.mxu0 0
    %8885 = vmatpush1.bf16.msra.mxu0 0
    %8886 = vmatprep.subr.bf16.mxu0 0
    %8887 = vmatpush1.bf16.msra.mxu0 0
    %8888 = vmatprep.subr.bf16.mxu0 0
    %8889 = vmatpush1.bf16.msra.mxu0 0
    %8890 = vmatprep.subr.bf16.mxu0 0
    %8891 = vmatpush1.bf16.msra.mxu0 0
    %8892 = vmatprep.subr.bf16.mxu0 0
    %8893 = vmatpush1.bf16.msra.mxu0 0
    %8894 = vmatprep.subr.bf16.mxu0 0
    %8895 = vmatpush1.bf16.msra.mxu0 0
    %8896 = vmatprep.subr.bf16.mxu0 0
    %8897 = vmatpush1.bf16.msra.mxu0 0
    %8898 = vmatprep.subr.bf16.mxu0 0
    %8899 = vmatpush1.bf16.msra.mxu0 0
    %8900 = vmatprep.mubr.bf16.mxu0 0
    %8901 = vmatmul.mubr.bf16.gmra.mrb[0].mxu0 %v8005
    %v8902 = vpop.f32.mrb[0].mxu0
    %v8903 = vadd.f32 %v8862, %v8902
    %v8904 = vpop.f32.mrb[0].mxu0
    %v8905 = vadd.f32 %v8864, %v8904
    %v8906 = vpop.f32.mrb[0].mxu0
    %v8907 = vpop.f32.mrb[0].mxu0
    %8908 = vdwg.mxu0
    %8909 = vmatprep.subr.bf16.mxu0 %v5416
    %8910 = vmatpush1.bf16.msra.mxu0 %v5415
    %8911 = vmatprep.subr.bf16.mxu0 %v5424
    %8912 = vmatpush1.bf16.msra.mxu0 %v5423
    %8913 = vmatprep.subr.bf16.mxu0 %v5432
    %8914 = vmatpush1.bf16.msra.mxu0 %v5431
    %8915 = vmatprep.subr.bf16.mxu0 %v5440
    %8916 = vmatpush1.bf16.msra.mxu0 %v5439
    %8917 = vmatprep.subr.bf16.mxu0 %v5448
    %8918 = vmatpush1.bf16.msra.mxu0 %v5447
    %8919 = vmatprep.subr.bf16.mxu0 %v5456
    %8920 = vmatpush1.bf16.msra.mxu0 %v5455
    %8921 = vmatprep.subr.bf16.mxu0 %v5464
    %8922 = vmatpush1.bf16.msra.mxu0 %v5463
    %8923 = vmatprep.subr.bf16.mxu0 %v5472
    %8924 = vmatpush1.bf16.msra.mxu0 %v5471
    %8925 = vmatprep.subr.bf16.mxu0 %v5480
    %8926 = vmatpush1.bf16.msra.mxu0 %v5479
    %8927 = vmatprep.subr.bf16.mxu0 %v5488
    %8928 = vmatpush1.bf16.msra.mxu0 %v5487
    %8929 = vmatprep.subr.bf16.mxu0 %v5496
    %8930 = vmatpush1.bf16.msra.mxu0 %v5495
    %8931 = vmatprep.subr.bf16.mxu0 %v5504
    %8932 = vmatpush1.bf16.msra.mxu0 %v5503
    %8933 = vmatprep.subr.bf16.mxu0 %v5512
    %8934 = vmatpush1.bf16.msra.mxu0 %v5511
    %8935 = vmatprep.subr.bf16.mxu0 %v5520
    %8936 = vmatpush1.bf16.msra.mxu0 %v5519
    %8937 = vmatprep.subr.bf16.mxu0 %v5528
    %8938 = vmatpush1.bf16.msra.mxu0 %v5527
    %8939 = vmatprep.subr.bf16.mxu0 %v5536
    %8940 = vmatpush1.bf16.msra.mxu0 %v5535
    %8941 = vmatprep.mubr.bf16.mxu0 %v1403
    %8942 = vmatmul.mubr.bf16.gmra.mrb[0].mxu0 %v1389
    %v8943 = vpop.f32.mrb[0].mxu0
    %v8944 = vadd.f32 %v1342, %v8943
    %v8945 = vpop.f32.mrb[0].mxu0
    %v8946 = vadd.f32 %v1346, %v8945
    %v8947 = vpop.f32.mrb[0].mxu0
    %v8948 = vpop.f32.mrb[0].mxu0
    %8949 = vdwg.mxu0
    %8950 = vmatprep.subr.bf16.mxu0 %v5544
    %8951 = vmatpush1.bf16.msra.mxu0 %v5543
    %8952 = vmatprep.subr.bf16.mxu0 %v5552
    %8953 = vmatpush1.bf16.msra.mxu0 %v5551
    %8954 = vmatprep.subr.bf16.mxu0 %v5560
    %8955 = vmatpush1.bf16.msra.mxu0 %v5559
    %8956 = vmatprep.subr.bf16.mxu0 %v5568
    %8957 = vmatpush1.bf16.msra.mxu0 %v5567
    %8958 = vmatprep.subr.bf16.mxu0 %v5576
    %8959 = vmatpush1.bf16.msra.mxu0 %v5575
    %8960 = vmatprep.subr.bf16.mxu0 %v5584
    %8961 = vmatpush1.bf16.msra.mxu0 %v5583
    %8962 = vmatprep.subr.bf16.mxu0 %v5592
    %8963 = vmatpush1.bf16.msra.mxu0 %v5591
    %8964 = vmatprep.subr.bf16.mxu0 %v5600
    %8965 = vmatpush1.bf16.msra.mxu0 %v5599
    %8966 = vmatprep.subr.bf16.mxu0 %v5608
    %8967 = vmatpush1.bf16.msra.mxu0 %v5607
    %8968 = vmatprep.subr.bf16.mxu0 %v5616
    %8969 = vmatpush1.bf16.msra.mxu0 %v5615
    %8970 = vmatprep.subr.bf16.mxu0 %v5624
    %8971 = vmatpush1.bf16.msra.mxu0 %v5623
    %8972 = vmatprep.subr.bf16.mxu0 %v5632
    %8973 = vmatpush1.bf16.msra.mxu0 %v5631
    %8974 = vmatprep.subr.bf16.mxu0 %v5640
    %8975 = vmatpush1.bf16.msra.mxu0 %v5639
    %8976 = vmatprep.subr.bf16.mxu0 %v5648
    %8977 = vmatpush1.bf16.msra.mxu0 %v5647
    %8978 = vmatprep.subr.bf16.mxu0 %v5656
    %8979 = vmatpush1.bf16.msra.mxu0 %v5655
    %8980 = vmatprep.subr.bf16.mxu0 %v5664
    %8981 = vmatpush1.bf16.msra.mxu0 %v5663
    %8982 = vmatprep.mubr.bf16.mxu0 %v1413
    %8983 = vmatmul.mubr.bf16.gmra.mrb[0].mxu0 %v1411
    %v8984 = vpop.f32.mrb[0].mxu0
    %v8985 = vadd.f32 %v8944, %v8984
    %v8986 = vpop.f32.mrb[0].mxu0
    %v8987 = vadd.f32 %v8946, %v8986
    %v8988 = vpop.f32.mrb[0].mxu0
    %v8989 = vpop.f32.mrb[0].mxu0
    %8990 = vdwg.mxu0
    %8991 = vmatprep.subr.bf16.mxu0 %v5672
    %8992 = vmatpush1.bf16.msra.mxu0 %v5671
    %8993 = vmatprep.subr.bf16.mxu0 %v5680
    %8994 = vmatpush1.bf16.msra.mxu0 %v5679
    %8995 = vmatprep.subr.bf16.mxu0 %v5688
    %8996 = vmatpush1.bf16.msra.mxu0 %v5687
    %8997 = vmatprep.subr.bf16.mxu0 %v5696
    %8998 = vmatpush1.bf16.msra.mxu0 %v5695
    %8999 = vmatprep.subr.bf16.mxu0 %v5704
    %9000 = vmatpush1.bf16.msra.mxu0 %v5703
    %9001 = vmatprep.subr.bf16.mxu0 %v5712
    %9002 = vmatpush1.bf16.msra.mxu0 %v5711
    %9003 = vmatprep.subr.bf16.mxu0 %v5720
    %9004 = vmatpush1.bf16.msra.mxu0 %v5719
    %9005 = vmatprep.subr.bf16.mxu0 %v5728
    %9006 = vmatpush1.bf16.msra.mxu0 %v5727
    %9007 = vmatprep.subr.bf16.mxu0 %v5736
    %9008 = vmatpush1.bf16.msra.mxu0 %v5735
    %9009 = vmatprep.subr.bf16.mxu0 %v5744
    %9010 = vmatpush1.bf16.msra.mxu0 %v5743
    %9011 = vmatprep.subr.bf16.mxu0 %v5752
    %9012 = vmatpush1.bf16.msra.mxu0 %v5751
    %9013 = vmatprep.subr.bf16.mxu0 %v5760
    %9014 = vmatpush1.bf16.msra.mxu0 %v5759
    %9015 = vmatprep.subr.bf16.mxu0 %v5768
    %9016 = vmatpush1.bf16.msra.mxu0 %v5767
    %9017 = vmatprep.subr.bf16.mxu0 %v5776
    %9018 = vmatpush1.bf16.msra.mxu0 %v5775
    %9019 = vmatprep.subr.bf16.mxu0 %v5784
    %9020 = vmatpush1.bf16.msra.mxu0 %v5783
    %9021 = vmatprep.subr.bf16.mxu0 %v5792
    %9022 = vmatpush1.bf16.msra.mxu0 %v5791
    %9023 = vmatprep.mubr.bf16.mxu0 %v1410
    %9024 = vmatmul.mubr.bf16.gmra.mrb[0].mxu0 %v1396
    %v9025 = vpop.f32.mrb[0].mxu0
    %v9026 = vadd.f32 %v8985, %v9025
    %v9027 = vpop.f32.mrb[0].mxu0
    %v9028 = vadd.f32 %v8987, %v9027
    %v9029 = vpop.f32.mrb[0].mxu0
    %v9030 = vpop.f32.mrb[0].mxu0
    %9031 = vdwg.mxu0
    %9032 = vmatprep.subr.bf16.mxu0 %v5800
    %9033 = vmatpush1.bf16.msra.mxu0 %v5799
    %9034 = vmatprep.subr.bf16.mxu0 %v5808
    %9035 = vmatpush1.bf16.msra.mxu0 %v5807
    %9036 = vmatprep.subr.bf16.mxu0 %v5816
    %9037 = vmatpush1.bf16.msra.mxu0 %v5815
    %9038 = vmatprep.subr.bf16.mxu0 %v5824
    %9039 = vmatpush1.bf16.msra.mxu0 %v5823
    %9040 = vmatprep.subr.bf16.mxu0 %v5832
    %9041 = vmatpush1.bf16.msra.mxu0 %v5831
    %9042 = vmatprep.subr.bf16.mxu0 %v5840
    %9043 = vmatpush1.bf16.msra.mxu0 %v5839
    %9044 = vmatprep.subr.bf16.mxu0 %v5848
    %9045 = vmatpush1.bf16.msra.mxu0 %v5847
    %9046 = vmatprep.subr.bf16.mxu0 %v5856
    %9047 = vmatpush1.bf16.msra.mxu0 %v5855
    %9048 = vmatprep.subr.bf16.mxu0 %v5864
    %9049 = vmatpush1.bf16.msra.mxu0 %v5863
    %9050 = vmatprep.subr.bf16.mxu0 %v5872
    %9051 = vmatpush1.bf16.msra.mxu0 %v5871
    %9052 = vmatprep.subr.bf16.mxu0 %v5880
    %9053 = vmatpush1.bf16.msra.mxu0 %v5879
    %9054 = vmatprep.subr.bf16.mxu0 %v5888
    %9055 = vmatpush1.bf16.msra.mxu0 %v5887
    %9056 = vmatprep.subr.bf16.mxu0 %v5896
    %9057 = vmatpush1.bf16.msra.mxu0 %v5895
    %9058 = vmatprep.subr.bf16.mxu0 %v5904
    %9059 = vmatpush1.bf16.msra.mxu0 %v5903
    %9060 = vmatprep.subr.bf16.mxu0 %v5912
    %9061 = vmatpush1.bf16.msra.mxu0 %v5911
    %9062 = vmatprep.subr.bf16.mxu0 %v5920
    %9063 = vmatpush1.bf16.msra.mxu0 %v5919
    %9064 = vmatprep.mubr.bf16.mxu0 %v1414
    %9065 = vmatmul.mubr.bf16.gmra.mrb[0].mxu0 %v1412
    %v9066 = vpop.f32.mrb[0].mxu0
    %v9067 = vadd.f32 %v9026, %v9066
    %v9068 = vpop.f32.mrb[0].mxu0
    %v9069 = vadd.f32 %v9028, %v9068
    %v9070 = vpop.f32.mrb[0].mxu0
    %v9071 = vpop.f32.mrb[0].mxu0
    %9072 = vdwg.mxu0
    %9073 = vmatprep.subr.bf16.mxu0 %v5928
    %9074 = vmatpush1.bf16.msra.mxu0 %v5927
    %9075 = vmatprep.subr.bf16.mxu0 %v5936
    %9076 = vmatpush1.bf16.msra.mxu0 %v5935
    %9077 = vmatprep.subr.bf16.mxu0 %v5944
    %9078 = vmatpush1.bf16.msra.mxu0 %v5943
    %9079 = vmatprep.subr.bf16.mxu0 %v5952
    %9080 = vmatpush1.bf16.msra.mxu0 %v5951
    %9081 = vmatprep.subr.bf16.mxu0 %v5960
    %9082 = vmatpush1.bf16.msra.mxu0 %v5959
    %9083 = vmatprep.subr.bf16.mxu0 %v5968
    %9084 = vmatpush1.bf16.msra.mxu0 %v5967
    %9085 = vmatprep.subr.bf16.mxu0 %v5976
    %9086 = vmatpush1.bf16.msra.mxu0 %v5975
    %9087 = vmatprep.subr.bf16.mxu0 %v5984
    %9088 = vmatpush1.bf16.msra.mxu0 %v5983
    %9089 = vmatprep.subr.bf16.mxu0 %v5992
    %9090 = vmatpush1.bf16.msra.mxu0 %v5991
    %9091 = vmatprep.subr.bf16.mxu0 %v6000
    %9092 = vmatpush1.bf16.msra.mxu0 %v5999
    %9093 = vmatprep.subr.bf16.mxu0 %v6008
    %9094 = vmatpush1.bf16.msra.mxu0 %v6007
    %9095 = vmatprep.subr.bf16.mxu0 %v6016
    %9096 = vmatpush1.bf16.msra.mxu0 %v6015
    %9097 = vmatprep.subr.bf16.mxu0 %v6024
    %9098 = vmatpush1.bf16.msra.mxu0 %v6023
    %9099 = vmatprep.subr.bf16.mxu0 %v6032
    %9100 = vmatpush1.bf16.msra.mxu0 %v6031
    %9101 = vmatprep.subr.bf16.mxu0 %v6040
    %9102 = vmatpush1.bf16.msra.mxu0 %v6039
    %9103 = vmatprep.subr.bf16.mxu0 %v6048
    %9104 = vmatpush1.bf16.msra.mxu0 %v6047
    %9105 = vmatprep.mubr.bf16.mxu0 %v1452
    %9106 = vmatmul.mubr.bf16.gmra.mrb[0].mxu0 %v1438
    %v9107 = vpop.f32.mrb[0].mxu0
    %v9108 = vadd.f32 %v9067, %v9107
    %v9109 = vpop.f32.mrb[0].mxu0
    %v9110 = vadd.f32 %v9069, %v9109
    %v9111 = vpop.f32.mrb[0].mxu0
    %v9112 = vpop.f32.mrb[0].mxu0
    %9113 = vdwg.mxu0
    %9114 = vmatprep.subr.bf16.mxu0 %v6056
    %9115 = vmatpush1.bf16.msra.mxu0 %v6055
    %9116 = vmatprep.subr.bf16.mxu0 %v6064
    %9117 = vmatpush1.bf16.msra.mxu0 %v6063
    %9118 = vmatprep.subr.bf16.mxu0 %v6072
    %9119 = vmatpush1.bf16.msra.mxu0 %v6071
    %9120 = vmatprep.subr.bf16.mxu0 %v6080
    %9121 = vmatpush1.bf16.msra.mxu0 %v6079
    %9122 = vmatprep.subr.bf16.mxu0 %v6088
    %9123 = vmatpush1.bf16.msra.mxu0 %v6087
    %9124 = vmatprep.subr.bf16.mxu0 %v6096
    %9125 = vmatpush1.bf16.msra.mxu0 %v6095
    %9126 = vmatprep.subr.bf16.mxu0 %v6104
    %9127 = vmatpush1.bf16.msra.mxu0 %v6103
    %9128 = vmatprep.subr.bf16.mxu0 %v6112
    %9129 = vmatpush1.bf16.msra.mxu0 %v6111
    %9130 = vmatprep.subr.bf16.mxu0 %v6120
    %9131 = vmatpush1.bf16.msra.mxu0 %v6119
    %9132 = vmatprep.subr.bf16.mxu0 %v6128
    %9133 = vmatpush1.bf16.msra.mxu0 %v6127
    %9134 = vmatprep.subr.bf16.mxu0 %v6136
    %9135 = vmatpush1.bf16.msra.mxu0 %v6135
    %9136 = vmatprep.subr.bf16.mxu0 %v6144
    %9137 = vmatpush1.bf16.msra.mxu0 %v6143
    %9138 = vmatprep.subr.bf16.mxu0 %v6152
    %9139 = vmatpush1.bf16.msra.mxu0 %v6151
    %9140 = vmatprep.subr.bf16.mxu0 %v6160
    %9141 = vmatpush1.bf16.msra.mxu0 %v6159
    %9142 = vmatprep.subr.bf16.mxu0 %v6168
    %9143 = vmatpush1.bf16.msra.mxu0 %v6167
    %9144 = vmatprep.subr.bf16.mxu0 %v6176
    %9145 = vmatpush1.bf16.msra.mxu0 %v6175
    %9146 = vmatprep.mubr.bf16.mxu0 %v1462
    %9147 = vmatmul.mubr.bf16.gmra.mrb[0].mxu0 %v1460
    %v9148 = vpop.f32.mrb[0].mxu0
    %v9149 = vadd.f32 %v9108, %v9148
    %v9150 = vpop.f32.mrb[0].mxu0
    %v9151 = vadd.f32 %v9110, %v9150
    %v9152 = vpop.f32.mrb[0].mxu0
    %v9153 = vpop.f32.mrb[0].mxu0
    %9154 = vdwg.mxu0
    %9155 = vmatprep.subr.bf16.mxu0 %v6184
    %9156 = vmatpush1.bf16.msra.mxu0 %v6183
    %9157 = vmatprep.subr.bf16.mxu0 %v6192
    %9158 = vmatpush1.bf16.msra.mxu0 %v6191
    %9159 = vmatprep.subr.bf16.mxu0 %v6200
    %9160 = vmatpush1.bf16.msra.mxu0 %v6199
    %9161 = vmatprep.subr.bf16.mxu0 %v6208
    %9162 = vmatpush1.bf16.msra.mxu0 %v6207
    %9163 = vmatprep.subr.bf16.mxu0 %v6216
    %9164 = vmatpush1.bf16.msra.mxu0 %v6215
    %9165 = vmatprep.subr.bf16.mxu0 %v6224
    %9166 = vmatpush1.bf16.msra.mxu0 %v6223
    %9167 = vmatprep.subr.bf16.mxu0 %v6232
    %9168 = vmatpush1.bf16.msra.mxu0 %v6231
    %9169 = vmatprep.subr.bf16.mxu0 %v6240
    %9170 = vmatpush1.bf16.msra.mxu0 %v6239
    %9171 = vmatprep.subr.bf16.mxu0 %v6248
    %9172 = vmatpush1.bf16.msra.mxu0 %v6247
    %9173 = vmatprep.subr.bf16.mxu0 %v6256
    %9174 = vmatpush1.bf16.msra.mxu0 %v6255
    %9175 = vmatprep.subr.bf16.mxu0 %v6264
    %9176 = vmatpush1.bf16.msra.mxu0 %v6263
    %9177 = vmatprep.subr.bf16.mxu0 %v6272
    %9178 = vmatpush1.bf16.msra.mxu0 %v6271
    %9179 = vmatprep.subr.bf16.mxu0 %v6280
    %9180 = vmatpush1.bf16.msra.mxu0 %v6279
    %9181 = vmatprep.subr.bf16.mxu0 %v6288
    %9182 = vmatpush1.bf16.msra.mxu0 %v6287
    %9183 = vmatprep.subr.bf16.mxu0 %v6296
    %9184 = vmatpush1.bf16.msra.mxu0 %v6295
    %9185 = vmatprep.subr.bf16.mxu0 %v6304
    %9186 = vmatpush1.bf16.msra.mxu0 %v6303
    %9187 = vmatprep.mubr.bf16.mxu0 %v1459
    %9188 = vmatmul.mubr.bf16.gmra.mrb[0].mxu0 %v1445
    %v9189 = vpop.f32.mrb[0].mxu0
    %v9190 = vadd.f32 %v9149, %v9189
    %v9191 = vpop.f32.mrb[0].mxu0
    %v9192 = vadd.f32 %v9151, %v9191
    %v9193 = vpop.f32.mrb[0].mxu0
    %v9194 = vpop.f32.mrb[0].mxu0
    %9195 = vdwg.mxu0
    %9196 = vmatprep.subr.bf16.mxu0 %v6312
    %9197 = vmatpush1.bf16.msra.mxu0 %v6311
    %9198 = vmatprep.subr.bf16.mxu0 %v6320
    %9199 = vmatpush1.bf16.msra.mxu0 %v6319
    %9200 = vmatprep.subr.bf16.mxu0 %v6328
    %9201 = vmatpush1.bf16.msra.mxu0 %v6327
    %9202 = vmatprep.subr.bf16.mxu0 %v6336
    %9203 = vmatpush1.bf16.msra.mxu0 %v6335
    %9204 = vmatprep.subr.bf16.mxu0 %v6344
    %9205 = vmatpush1.bf16.msra.mxu0 %v6343
    %9206 = vmatprep.subr.bf16.mxu0 %v6352
    %9207 = vmatpush1.bf16.msra.mxu0 %v6351
    %9208 = vmatprep.subr.bf16.mxu0 %v6360
    %9209 = vmatpush1.bf16.msra.mxu0 %v6359
    %9210 = vmatprep.subr.bf16.mxu0 %v6368
    %9211 = vmatpush1.bf16.msra.mxu0 %v6367
    %9212 = vmatprep.subr.bf16.mxu0 %v6376
    %9213 = vmatpush1.bf16.msra.mxu0 %v6375
    %9214 = vmatprep.subr.bf16.mxu0 %v6384
    %9215 = vmatpush1.bf16.msra.mxu0 %v6383
    %9216 = vmatprep.subr.bf16.mxu0 %v6392
    %9217 = vmatpush1.bf16.msra.mxu0 %v6391
    %9218 = vmatprep.subr.bf16.mxu0 %v6400
    %9219 = vmatpush1.bf16.msra.mxu0 %v6399
    %9220 = vmatprep.subr.bf16.mxu0 %v6408
    %9221 = vmatpush1.bf16.msra.mxu0 %v6407
    %9222 = vmatprep.subr.bf16.mxu0 %v6416
    %9223 = vmatpush1.bf16.msra.mxu0 %v6415
    %9224 = vmatprep.subr.bf16.mxu0 %v6424
    %9225 = vmatpush1.bf16.msra.mxu0 %v6423
    %9226 = vmatprep.subr.bf16.mxu0 %v6432
    %9227 = vmatpush1.bf16.msra.mxu0 %v6431
    %9228 = vmatprep.mubr.bf16.mxu0 %v1463
    %9229 = vmatmul.mubr.bf16.gmra.mrb[0].mxu0 %v1461
    %v9230 = vpop.f32.mrb[0].mxu0
    %v9231 = vadd.f32 %v9190, %v9230
    %v9232 = vpop.f32.mrb[0].mxu0
    %v9233 = vadd.f32 %v9192, %v9232
    %v9234 = vpop.f32.mrb[0].mxu0
    %v9235 = vpop.f32.mrb[0].mxu0
    %9236 = vdwg.mxu0
    %9237 = vmatprep.subr.bf16.mxu0 %v6440
    %9238 = vmatpush1.bf16.msra.mxu0 %v6439
    %9239 = vmatprep.subr.bf16.mxu0 %v6448
    %9240 = vmatpush1.bf16.msra.mxu0 %v6447
    %9241 = vmatprep.subr.bf16.mxu0 %v6456
    %9242 = vmatpush1.bf16.msra.mxu0 %v6455
    %9243 = vmatprep.subr.bf16.mxu0 %v6464
    %9244 = vmatpush1.bf16.msra.mxu0 %v6463
    %9245 = vmatprep.subr.bf16.mxu0 %v6472
    %9246 = vmatpush1.bf16.msra.mxu0 %v6471
    %9247 = vmatprep.subr.bf16.mxu0 %v6480
    %9248 = vmatpush1.bf16.msra.mxu0 %v6479
    %9249 = vmatprep.subr.bf16.mxu0 %v6488
    %9250 = vmatpush1.bf16.msra.mxu0 %v6487
    %9251 = vmatprep.subr.bf16.mxu0 %v6496
    %9252 = vmatpush1.bf16.msra.mxu0 %v6495
    %9253 = vmatprep.subr.bf16.mxu0 %v6504
    %9254 = vmatpush1.bf16.msra.mxu0 %v6503
    %9255 = vmatprep.subr.bf16.mxu0 %v6512
    %9256 = vmatpush1.bf16.msra.mxu0 %v6511
    %9257 = vmatprep.subr.bf16.mxu0 %v6520
    %9258 = vmatpush1.bf16.msra.mxu0 %v6519
    %9259 = vmatprep.subr.bf16.mxu0 %v6528
    %9260 = vmatpush1.bf16.msra.mxu0 %v6527
    %9261 = vmatprep.subr.bf16.mxu0 %v6536
    %9262 = vmatpush1.bf16.msra.mxu0 %v6535
    %9263 = vmatprep.subr.bf16.mxu0 %v6544
    %9264 = vmatpush1.bf16.msra.mxu0 %v6543
    %9265 = vmatprep.subr.bf16.mxu0 %v6552
    %9266 = vmatpush1.bf16.msra.mxu0 %v6551
    %9267 = vmatprep.subr.bf16.mxu0 %v6560
    %9268 = vmatpush1.bf16.msra.mxu0 %v6559
    %9269 = vmatprep.mubr.bf16.mxu0 %v1500
    %9270 = vmatmul.mubr.bf16.gmra.mrb[0].mxu0 %v1486
    %v9271 = vpop.f32.mrb[0].mxu0
    %v9272 = vadd.f32 %v9231, %v9271
    %v9273 = vpop.f32.mrb[0].mxu0
    %v9274 = vadd.f32 %v9233, %v9273
    %v9275 = vpop.f32.mrb[0].mxu0
    %v9276 = vpop.f32.mrb[0].mxu0
    %9277 = vdwg.mxu0
    %9278 = vmatprep.subr.bf16.mxu0 %v6568
    %9279 = vmatpush1.bf16.msra.mxu0 %v6567
    %9280 = vmatprep.subr.bf16.mxu0 %v6576
    %9281 = vmatpush1.bf16.msra.mxu0 %v6575
    %9282 = vmatprep.subr.bf16.mxu0 %v6584
    %9283 = vmatpush1.bf16.msra.mxu0 %v6583
    %9284 = vmatprep.subr.bf16.mxu0 %v6592
    %9285 = vmatpush1.bf16.msra.mxu0 %v6591
    %9286 = vmatprep.subr.bf16.mxu0 %v6600
    %9287 = vmatpush1.bf16.msra.mxu0 %v6599
    %9288 = vmatprep.subr.bf16.mxu0 %v6608
    %9289 = vmatpush1.bf16.msra.mxu0 %v6607
    %9290 = vmatprep.subr.bf16.mxu0 %v6616
    %9291 = vmatpush1.bf16.msra.mxu0 %v6615
    %9292 = vmatprep.subr.bf16.mxu0 %v6624
    %9293 = vmatpush1.bf16.msra.mxu0 %v6623
    %9294 = vmatprep.subr.bf16.mxu0 %v6632
    %9295 = vmatpush1.bf16.msra.mxu0 %v6631
    %9296 = vmatprep.subr.bf16.mxu0 %v6640
    %9297 = vmatpush1.bf16.msra.mxu0 %v6639
    %9298 = vmatprep.subr.bf16.mxu0 %v6648
    %9299 = vmatpush1.bf16.msra.mxu0 %v6647
    %9300 = vmatprep.subr.bf16.mxu0 %v6656
    %9301 = vmatpush1.bf16.msra.mxu0 %v6655
    %9302 = vmatprep.subr.bf16.mxu0 %v6664
    %9303 = vmatpush1.bf16.msra.mxu0 %v6663
    %9304 = vmatprep.subr.bf16.mxu0 %v6672
    %9305 = vmatpush1.bf16.msra.mxu0 %v6671
    %9306 = vmatprep.subr.bf16.mxu0 %v6680
    %9307 = vmatpush1.bf16.msra.mxu0 %v6679
    %9308 = vmatprep.subr.bf16.mxu0 %v6688
    %9309 = vmatpush1.bf16.msra.mxu0 %v6687
    %9310 = vmatprep.mubr.bf16.mxu0 %v1502
    %9311 = vmatmul.mubr.bf16.gmra.mrb[0].mxu0 %v1501
    %v9312 = vpop.f32.mrb[0].mxu0
    %v9313 = vadd.f32 %v9272, %v9312
    %v9314 = vpop.f32.mrb[0].mxu0
    %v9315 = vadd.f32 %v9274, %v9314
    %v9316 = vpop.f32.mrb[0].mxu0
    %v9317 = vpop.f32.mrb[0].mxu0
    %9318 = vdwg.mxu0
    %9319 = vmatprep.subr.bf16.mxu0 %v6696
    %9320 = vmatpush1.bf16.msra.mxu0 %v6695
    %9321 = vmatprep.subr.bf16.mxu0 %v6704
    %9322 = vmatpush1.bf16.msra.mxu0 %v6703
    %9323 = vmatprep.subr.bf16.mxu0 0
    %9324 = vmatpush1.bf16.msra.mxu0 0
    %9325 = vmatprep.subr.bf16.mxu0 0
    %9326 = vmatpush1.bf16.msra.mxu0 0
    %9327 = vmatprep.subr.bf16.mxu0 0
    %9328 = vmatpush1.bf16.msra.mxu0 0
    %9329 = vmatprep.subr.bf16.mxu0 0
    %9330 = vmatpush1.bf16.msra.mxu0 0
    %9331 = vmatprep.subr.bf16.mxu0 0
    %9332 = vmatpush1.bf16.msra.mxu0 0
    %9333 = vmatprep.subr.bf16.mxu0 0
    %9334 = vmatpush1.bf16.msra.mxu0 0
    %9335 = vmatprep.subr.bf16.mxu0 0
    %9336 = vmatpush1.bf16.msra.mxu0 0
    %9337 = vmatprep.subr.bf16.mxu0 0
    %9338 = vmatpush1.bf16.msra.mxu0 0
    %9339 = vmatprep.subr.bf16.mxu0 0
    %9340 = vmatpush1.bf16.msra.mxu0 0
    %9341 = vmatprep.subr.bf16.mxu0 0
    %9342 = vmatpush1.bf16.msra.mxu0 0
    %9343 = vmatprep.subr.bf16.mxu0 0
    %9344 = vmatpush1.bf16.msra.mxu0 0
    %9345 = vmatprep.subr.bf16.mxu0 0
    %9346 = vmatpush1.bf16.msra.mxu0 0
    %9347 = vmatprep.subr.bf16.mxu0 0
    %9348 = vmatpush1.bf16.msra.mxu0 0
    %9349 = vmatprep.subr.bf16.mxu0 0
    %9350 = vmatpush1.bf16.msra.mxu0 0
    %9351 = vmatprep.mubr.bf16.mxu0 0
    %9352 = vmatmul.mubr.bf16.gmra.mrb[0].mxu0 %v8005
    %v9353 = vpop.f32.mrb[0].mxu0
    %v9354 = vadd.f32 %v9313, %v9353
    %v9355 = vpop.f32.mrb[0].mxu0
    %v9356 = vadd.f32 %v9315, %v9355
    %v9357 = vpop.f32.mrb[0].mxu0
    %v9358 = vpop.f32.mrb[0].mxu0
    %9359 = vdwg.mxu0
    %9360 = vmatprep.subr.bf16.mxu0 %v5418
    %9361 = vmatpush1.bf16.msra.mxu0 %v5417
    %9362 = vmatprep.subr.bf16.mxu0 %v5426
    %9363 = vmatpush1.bf16.msra.mxu0 %v5425
    %9364 = vmatprep.subr.bf16.mxu0 %v5434
    %9365 = vmatpush1.bf16.msra.mxu0 %v5433
    %9366 = vmatprep.subr.bf16.mxu0 %v5442
    %9367 = vmatpush1.bf16.msra.mxu0 %v5441
    %9368 = vmatprep.subr.bf16.mxu0 %v5450
    %9369 = vmatpush1.bf16.msra.mxu0 %v5449
    %9370 = vmatprep.subr.bf16.mxu0 %v5458
    %9371 = vmatpush1.bf16.msra.mxu0 %v5457
    %9372 = vmatprep.subr.bf16.mxu0 %v5466
    %9373 = vmatpush1.bf16.msra.mxu0 %v5465
    %9374 = vmatprep.subr.bf16.mxu0 %v5474
    %9375 = vmatpush1.bf16.msra.mxu0 %v5473
    %9376 = vmatprep.subr.bf16.mxu0 %v5482
    %9377 = vmatpush1.bf16.msra.mxu0 %v5481
    %9378 = vmatprep.subr.bf16.mxu0 %v5490
    %9379 = vmatpush1.bf16.msra.mxu0 %v5489
    %9380 = vmatprep.subr.bf16.mxu0 %v5498
    %9381 = vmatpush1.bf16.msra.mxu0 %v5497
    %9382 = vmatprep.subr.bf16.mxu0 %v5506
    %9383 = vmatpush1.bf16.msra.mxu0 %v5505
    %9384 = vmatprep.subr.bf16.mxu0 %v5514
    %9385 = vmatpush1.bf16.msra.mxu0 %v5513
    %9386 = vmatprep.subr.bf16.mxu0 %v5522
    %9387 = vmatpush1.bf16.msra.mxu0 %v5521
    %9388 = vmatprep.subr.bf16.mxu0 %v5530
    %9389 = vmatpush1.bf16.msra.mxu0 %v5529
    %9390 = vmatprep.subr.bf16.mxu0 %v5538
    %9391 = vmatpush1.bf16.msra.mxu0 %v5537
    %9392 = vmatprep.mubr.bf16.mxu0 %v1403
    %9393 = vmatmul.mubr.bf16.gmra.mrb[0].mxu0 %v1389
    %v9394 = vpop.f32.mrb[0].mxu0
    %v9395 = vadd.f32 %v1350, %v9394
    %v9396 = vpop.f32.mrb[0].mxu0
    %v9397 = vadd.f32 %v1354, %v9396
    %v9398 = vpop.f32.mrb[0].mxu0
    %v9399 = vpop.f32.mrb[0].mxu0
    %9400 = vdwg.mxu0
    %9401 = vmatprep.subr.bf16.mxu0 %v5546
    %9402 = vmatpush1.bf16.msra.mxu0 %v5545
    %9403 = vmatprep.subr.bf16.mxu0 %v5554
    %9404 = vmatpush1.bf16.msra.mxu0 %v5553
    %9405 = vmatprep.subr.bf16.mxu0 %v5562
    %9406 = vmatpush1.bf16.msra.mxu0 %v5561
    %9407 = vmatprep.subr.bf16.mxu0 %v5570
    %9408 = vmatpush1.bf16.msra.mxu0 %v5569
    %9409 = vmatprep.subr.bf16.mxu0 %v5578
    %9410 = vmatpush1.bf16.msra.mxu0 %v5577
    %9411 = vmatprep.subr.bf16.mxu0 %v5586
    %9412 = vmatpush1.bf16.msra.mxu0 %v5585
    %9413 = vmatprep.subr.bf16.mxu0 %v5594
    %9414 = vmatpush1.bf16.msra.mxu0 %v5593
    %9415 = vmatprep.subr.bf16.mxu0 %v5602
    %9416 = vmatpush1.bf16.msra.mxu0 %v5601
    %9417 = vmatprep.subr.bf16.mxu0 %v5610
    %9418 = vmatpush1.bf16.msra.mxu0 %v5609
    %9419 = vmatprep.subr.bf16.mxu0 %v5618
    %9420 = vmatpush1.bf16.msra.mxu0 %v5617
    %9421 = vmatprep.subr.bf16.mxu0 %v5626
    %9422 = vmatpush1.bf16.msra.mxu0 %v5625
    %9423 = vmatprep.subr.bf16.mxu0 %v5634
    %9424 = vmatpush1.bf16.msra.mxu0 %v5633
    %9425 = vmatprep.subr.bf16.mxu0 %v5642
    %9426 = vmatpush1.bf16.msra.mxu0 %v5641
    %9427 = vmatprep.subr.bf16.mxu0 %v5650
    %9428 = vmatpush1.bf16.msra.mxu0 %v5649
    %9429 = vmatprep.subr.bf16.mxu0 %v5658
    %9430 = vmatpush1.bf16.msra.mxu0 %v5657
    %9431 = vmatprep.subr.bf16.mxu0 %v5666
    %9432 = vmatpush1.bf16.msra.mxu0 %v5665
    %9433 = vmatprep.mubr.bf16.mxu0 %v1413
    %9434 = vmatmul.mubr.bf16.gmra.mrb[0].mxu0 %v1411
    %v9435 = vpop.f32.mrb[0].mxu0
    %v9436 = vadd.f32 %v9395, %v9435
    %v9437 = vpop.f32.mrb[0].mxu0
    %v9438 = vadd.f32 %v9397, %v9437
    %v9439 = vpop.f32.mrb[0].mxu0
    %v9440 = vpop.f32.mrb[0].mxu0
    %9441 = vdwg.mxu0
    %9442 = vmatprep.subr.bf16.mxu0 %v5674
    %9443 = vmatpush1.bf16.msra.mxu0 %v5673
    %9444 = vmatprep.subr.bf16.mxu0 %v5682
    %9445 = vmatpush1.bf16.msra.mxu0 %v5681
    %9446 = vmatprep.subr.bf16.mxu0 %v5690
    %9447 = vmatpush1.bf16.msra.mxu0 %v5689
    %9448 = vmatprep.subr.bf16.mxu0 %v5698
    %9449 = vmatpush1.bf16.msra.mxu0 %v5697
    %9450 = vmatprep.subr.bf16.mxu0 %v5706
    %9451 = vmatpush1.bf16.msra.mxu0 %v5705
    %9452 = vmatprep.subr.bf16.mxu0 %v5714
    %9453 = vmatpush1.bf16.msra.mxu0 %v5713
    %9454 = vmatprep.subr.bf16.mxu0 %v5722
    %9455 = vmatpush1.bf16.msra.mxu0 %v5721
    %9456 = vmatprep.subr.bf16.mxu0 %v5730
    %9457 = vmatpush1.bf16.msra.mxu0 %v5729
    %9458 = vmatprep.subr.bf16.mxu0 %v5738
    %9459 = vmatpush1.bf16.msra.mxu0 %v5737
    %9460 = vmatprep.subr.bf16.mxu0 %v5746
    %9461 = vmatpush1.bf16.msra.mxu0 %v5745
    %9462 = vmatprep.subr.bf16.mxu0 %v5754
    %9463 = vmatpush1.bf16.msra.mxu0 %v5753
    %9464 = vmatprep.subr.bf16.mxu0 %v5762
    %9465 = vmatpush1.bf16.msra.mxu0 %v5761
    %9466 = vmatprep.subr.bf16.mxu0 %v5770
    %9467 = vmatpush1.bf16.msra.mxu0 %v5769
    %9468 = vmatprep.subr.bf16.mxu0 %v5778
    %9469 = vmatpush1.bf16.msra.mxu0 %v5777
    %9470 = vmatprep.subr.bf16.mxu0 %v5786
    %9471 = vmatpush1.bf16.msra.mxu0 %v5785
    %9472 = vmatprep.subr.bf16.mxu0 %v5794
    %9473 = vmatpush1.bf16.msra.mxu0 %v5793
    %9474 = vmatprep.mubr.bf16.mxu0 %v1410
    %9475 = vmatmul.mubr.bf16.gmra.mrb[0].mxu0 %v1396
    %v9476 = vpop.f32.mrb[0].mxu0
    %v9477 = vadd.f32 %v9436, %v9476
    %v9478 = vpop.f32.mrb[0].mxu0
    %v9479 = vadd.f32 %v9438, %v9478
    %v9480 = vpop.f32.mrb[0].mxu0
    %v9481 = vpop.f32.mrb[0].mxu0
    %9482 = vdwg.mxu0
    %9483 = vmatprep.subr.bf16.mxu0 %v5802
    %9484 = vmatpush1.bf16.msra.mxu0 %v5801
    %9485 = vmatprep.subr.bf16.mxu0 %v5810
    %9486 = vmatpush1.bf16.msra.mxu0 %v5809
    %9487 = vmatprep.subr.bf16.mxu0 %v5818
    %9488 = vmatpush1.bf16.msra.mxu0 %v5817
    %9489 = vmatprep.subr.bf16.mxu0 %v5826
    %9490 = vmatpush1.bf16.msra.mxu0 %v5825
    %9491 = vmatprep.subr.bf16.mxu0 %v5834
    %9492 = vmatpush1.bf16.msra.mxu0 %v5833
    %9493 = vmatprep.subr.bf16.mxu0 %v5842
    %9494 = vmatpush1.bf16.msra.mxu0 %v5841
    %9495 = vmatprep.subr.bf16.mxu0 %v5850
    %9496 = vmatpush1.bf16.msra.mxu0 %v5849
    %9497 = vmatprep.subr.bf16.mxu0 %v5858
    %9498 = vmatpush1.bf16.msra.mxu0 %v5857
    %9499 = vmatprep.subr.bf16.mxu0 %v5866
    %9500 = vmatpush1.bf16.msra.mxu0 %v5865
    %9501 = vmatprep.subr.bf16.mxu0 %v5874
    %9502 = vmatpush1.bf16.msra.mxu0 %v5873
    %9503 = vmatprep.subr.bf16.mxu0 %v5882
    %9504 = vmatpush1.bf16.msra.mxu0 %v5881
    %9505 = vmatprep.subr.bf16.mxu0 %v5890
    %9506 = vmatpush1.bf16.msra.mxu0 %v5889
    %9507 = vmatprep.subr.bf16.mxu0 %v5898
    %9508 = vmatpush1.bf16.msra.mxu0 %v5897
    %9509 = vmatprep.subr.bf16.mxu0 %v5906
    %9510 = vmatpush1.bf16.msra.mxu0 %v5905
    %9511 = vmatprep.subr.bf16.mxu0 %v5914
    %9512 = vmatpush1.bf16.msra.mxu0 %v5913
    %9513 = vmatprep.subr.bf16.mxu0 %v5922
    %9514 = vmatpush1.bf16.msra.mxu0 %v5921
    %9515 = vmatprep.mubr.bf16.mxu0 %v1414
    %9516 = vmatmul.mubr.bf16.gmra.mrb[0].mxu0 %v1412
    %v9517 = vpop.f32.mrb[0].mxu0
    %v9518 = vadd.f32 %v9477, %v9517
    %v9519 = vpop.f32.mrb[0].mxu0
    %v9520 = vadd.f32 %v9479, %v9519
    %v9521 = vpop.f32.mrb[0].mxu0
    %v9522 = vpop.f32.mrb[0].mxu0
    %9523 = vdwg.mxu0
    %9524 = vmatprep.subr.bf16.mxu0 %v5930
    %9525 = vmatpush1.bf16.msra.mxu0 %v5929
    %9526 = vmatprep.subr.bf16.mxu0 %v5938
    %9527 = vmatpush1.bf16.msra.mxu0 %v5937
    %9528 = vmatprep.subr.bf16.mxu0 %v5946
    %9529 = vmatpush1.bf16.msra.mxu0 %v5945
    %9530 = vmatprep.subr.bf16.mxu0 %v5954
    %9531 = vmatpush1.bf16.msra.mxu0 %v5953
    %9532 = vmatprep.subr.bf16.mxu0 %v5962
    %9533 = vmatpush1.bf16.msra.mxu0 %v5961
    %9534 = vmatprep.subr.bf16.mxu0 %v5970
    %9535 = vmatpush1.bf16.msra.mxu0 %v5969
    %9536 = vmatprep.subr.bf16.mxu0 %v5978
    %9537 = vmatpush1.bf16.msra.mxu0 %v5977
    %9538 = vmatprep.subr.bf16.mxu0 %v5986
    %9539 = vmatpush1.bf16.msra.mxu0 %v5985
    %9540 = vmatprep.subr.bf16.mxu0 %v5994
    %9541 = vmatpush1.bf16.msra.mxu0 %v5993
    %9542 = vmatprep.subr.bf16.mxu0 %v6002
    %9543 = vmatpush1.bf16.msra.mxu0 %v6001
    %9544 = vmatprep.subr.bf16.mxu0 %v6010
    %9545 = vmatpush1.bf16.msra.mxu0 %v6009
    %9546 = vmatprep.subr.bf16.mxu0 %v6018
    %9547 = vmatpush1.bf16.msra.mxu0 %v6017
    %9548 = vmatprep.subr.bf16.mxu0 %v6026
    %9549 = vmatpush1.bf16.msra.mxu0 %v6025
    %9550 = vmatprep.subr.bf16.mxu0 %v6034
    %9551 = vmatpush1.bf16.msra.mxu0 %v6033
    %9552 = vmatprep.subr.bf16.mxu0 %v6042
    %9553 = vmatpush1.bf16.msra.mxu0 %v6041
    %9554 = vmatprep.subr.bf16.mxu0 %v6050
    %9555 = vmatpush1.bf16.msra.mxu0 %v6049
    %9556 = vmatprep.mubr.bf16.mxu0 %v1452
    %9557 = vmatmul.mubr.bf16.gmra.mrb[0].mxu0 %v1438
    %v9558 = vpop.f32.mrb[0].mxu0
    %v9559 = vadd.f32 %v9518, %v9558
    %v9560 = vpop.f32.mrb[0].mxu0
    %v9561 = vadd.f32 %v9520, %v9560
    %v9562 = vpop.f32.mrb[0].mxu0
    %v9563 = vpop.f32.mrb[0].mxu0
    %9564 = vdwg.mxu0
    %9565 = vmatprep.subr.bf16.mxu0 %v6058
    %9566 = vmatpush1.bf16.msra.mxu0 %v6057
    %9567 = vmatprep.subr.bf16.mxu0 %v6066
    %9568 = vmatpush1.bf16.msra.mxu0 %v6065
    %9569 = vmatprep.subr.bf16.mxu0 %v6074
    %9570 = vmatpush1.bf16.msra.mxu0 %v6073
    %9571 = vmatprep.subr.bf16.mxu0 %v6082
    %9572 = vmatpush1.bf16.msra.mxu0 %v6081
    %9573 = vmatprep.subr.bf16.mxu0 %v6090
    %9574 = vmatpush1.bf16.msra.mxu0 %v6089
    %9575 = vmatprep.subr.bf16.mxu0 %v6098
    %9576 = vmatpush1.bf16.msra.mxu0 %v6097
    %9577 = vmatprep.subr.bf16.mxu0 %v6106
    %9578 = vmatpush1.bf16.msra.mxu0 %v6105
    %9579 = vmatprep.subr.bf16.mxu0 %v6114
    %9580 = vmatpush1.bf16.msra.mxu0 %v6113
    %9581 = vmatprep.subr.bf16.mxu0 %v6122
    %9582 = vmatpush1.bf16.msra.mxu0 %v6121
    %9583 = vmatprep.subr.bf16.mxu0 %v6130
    %9584 = vmatpush1.bf16.msra.mxu0 %v6129
    %9585 = vmatprep.subr.bf16.mxu0 %v6138
    %9586 = vmatpush1.bf16.msra.mxu0 %v6137
    %9587 = vmatprep.subr.bf16.mxu0 %v6146
    %9588 = vmatpush1.bf16.msra.mxu0 %v6145
    %9589 = vmatprep.subr.bf16.mxu0 %v6154
    %9590 = vmatpush1.bf16.msra.mxu0 %v6153
    %9591 = vmatprep.subr.bf16.mxu0 %v6162
    %9592 = vmatpush1.bf16.msra.mxu0 %v6161
    %9593 = vmatprep.subr.bf16.mxu0 %v6170
    %9594 = vmatpush1.bf16.msra.mxu0 %v6169
    %9595 = vmatprep.subr.bf16.mxu0 %v6178
    %9596 = vmatpush1.bf16.msra.mxu0 %v6177
    %9597 = vmatprep.mubr.bf16.mxu0 %v1462
    %9598 = vmatmul.mubr.bf16.gmra.mrb[0].mxu0 %v1460
    %v9599 = vpop.f32.mrb[0].mxu0
    %v9600 = vadd.f32 %v9559, %v9599
    %v9601 = vpop.f32.mrb[0].mxu0
    %v9602 = vadd.f32 %v9561, %v9601
    %v9603 = vpop.f32.mrb[0].mxu0
    %v9604 = vpop.f32.mrb[0].mxu0
    %9605 = vdwg.mxu0
    %9606 = vmatprep.subr.bf16.mxu0 %v6186
    %9607 = vmatpush1.bf16.msra.mxu0 %v6185
    %9608 = vmatprep.subr.bf16.mxu0 %v6194
    %9609 = vmatpush1.bf16.msra.mxu0 %v6193
    %9610 = vmatprep.subr.bf16.mxu0 %v6202
    %9611 = vmatpush1.bf16.msra.mxu0 %v6201
    %9612 = vmatprep.subr.bf16.mxu0 %v6210
    %9613 = vmatpush1.bf16.msra.mxu0 %v6209
    %9614 = vmatprep.subr.bf16.mxu0 %v6218
    %9615 = vmatpush1.bf16.msra.mxu0 %v6217
    %9616 = vmatprep.subr.bf16.mxu0 %v6226
    %9617 = vmatpush1.bf16.msra.mxu0 %v6225
    %9618 = vmatprep.subr.bf16.mxu0 %v6234
    %9619 = vmatpush1.bf16.msra.mxu0 %v6233
    %9620 = vmatprep.subr.bf16.mxu0 %v6242
    %9621 = vmatpush1.bf16.msra.mxu0 %v6241
    %9622 = vmatprep.subr.bf16.mxu0 %v6250
    %9623 = vmatpush1.bf16.msra.mxu0 %v6249
    %9624 = vmatprep.subr.bf16.mxu0 %v6258
    %9625 = vmatpush1.bf16.msra.mxu0 %v6257
    %9626 = vmatprep.subr.bf16.mxu0 %v6266
    %9627 = vmatpush1.bf16.msra.mxu0 %v6265
    %9628 = vmatprep.subr.bf16.mxu0 %v6274
    %9629 = vmatpush1.bf16.msra.mxu0 %v6273
    %9630 = vmatprep.subr.bf16.mxu0 %v6282
    %9631 = vmatpush1.bf16.msra.mxu0 %v6281
    %9632 = vmatprep.subr.bf16.mxu0 %v6290
    %9633 = vmatpush1.bf16.msra.mxu0 %v6289
    %9634 = vmatprep.subr.bf16.mxu0 %v6298
    %9635 = vmatpush1.bf16.msra.mxu0 %v6297
    %9636 = vmatprep.subr.bf16.mxu0 %v6306
    %9637 = vmatpush1.bf16.msra.mxu0 %v6305
    %9638 = vmatprep.mubr.bf16.mxu0 %v1459
    %9639 = vmatmul.mubr.bf16.gmra.mrb[0].mxu0 %v1445
    %v9640 = vpop.f32.mrb[0].mxu0
    %v9641 = vadd.f32 %v9600, %v9640
    %v9642 = vpop.f32.mrb[0].mxu0
    %v9643 = vadd.f32 %v9602, %v9642
    %v9644 = vpop.f32.mrb[0].mxu0
    %v9645 = vpop.f32.mrb[0].mxu0
    %9646 = vdwg.mxu0
    %9647 = vmatprep.subr.bf16.mxu0 %v6314
    %9648 = vmatpush1.bf16.msra.mxu0 %v6313
    %9649 = vmatprep.subr.bf16.mxu0 %v6322
    %9650 = vmatpush1.bf16.msra.mxu0 %v6321
    %9651 = vmatprep.subr.bf16.mxu0 %v6330
    %9652 = vmatpush1.bf16.msra.mxu0 %v6329
    %9653 = vmatprep.subr.bf16.mxu0 %v6338
    %9654 = vmatpush1.bf16.msra.mxu0 %v6337
    %9655 = vmatprep.subr.bf16.mxu0 %v6346
    %9656 = vmatpush1.bf16.msra.mxu0 %v6345
    %9657 = vmatprep.subr.bf16.mxu0 %v6354
    %9658 = vmatpush1.bf16.msra.mxu0 %v6353
    %9659 = vmatprep.subr.bf16.mxu0 %v6362
    %9660 = vmatpush1.bf16.msra.mxu0 %v6361
    %9661 = vmatprep.subr.bf16.mxu0 %v6370
    %9662 = vmatpush1.bf16.msra.mxu0 %v6369
    %9663 = vmatprep.subr.bf16.mxu0 %v6378
    %9664 = vmatpush1.bf16.msra.mxu0 %v6377
    %9665 = vmatprep.subr.bf16.mxu0 %v6386
    %9666 = vmatpush1.bf16.msra.mxu0 %v6385
    %9667 = vmatprep.subr.bf16.mxu0 %v6394
    %9668 = vmatpush1.bf16.msra.mxu0 %v6393
    %9669 = vmatprep.subr.bf16.mxu0 %v6402
    %9670 = vmatpush1.bf16.msra.mxu0 %v6401
    %9671 = vmatprep.subr.bf16.mxu0 %v6410
    %9672 = vmatpush1.bf16.msra.mxu0 %v6409
    %9673 = vmatprep.subr.bf16.mxu0 %v6418
    %9674 = vmatpush1.bf16.msra.mxu0 %v6417
    %9675 = vmatprep.subr.bf16.mxu0 %v6426
    %9676 = vmatpush1.bf16.msra.mxu0 %v6425
    %9677 = vmatprep.subr.bf16.mxu0 %v6434
    %9678 = vmatpush1.bf16.msra.mxu0 %v6433
    %9679 = vmatprep.mubr.bf16.mxu0 %v1463
    %9680 = vmatmul.mubr.bf16.gmra.mrb[0].mxu0 %v1461
    %v9681 = vpop.f32.mrb[0].mxu0
    %v9682 = vadd.f32 %v9641, %v9681
    %v9683 = vpop.f32.mrb[0].mxu0
    %v9684 = vadd.f32 %v9643, %v9683
    %v9685 = vpop.f32.mrb[0].mxu0
    %v9686 = vpop.f32.mrb[0].mxu0
    %9687 = vdwg.mxu0
    %9688 = vmatprep.subr.bf16.mxu0 %v6442
    %9689 = vmatpush1.bf16.msra.mxu0 %v6441
    %9690 = vmatprep.subr.bf16.mxu0 %v6450
    %9691 = vmatpush1.bf16.msra.mxu0 %v6449
    %9692 = vmatprep.subr.bf16.mxu0 %v6458
    %9693 = vmatpush1.bf16.msra.mxu0 %v6457
    %9694 = vmatprep.subr.bf16.mxu0 %v6466
    %9695 = vmatpush1.bf16.msra.mxu0 %v6465
    %9696 = vmatprep.subr.bf16.mxu0 %v6474
    %9697 = vmatpush1.bf16.msra.mxu0 %v6473
    %9698 = vmatprep.subr.bf16.mxu0 %v6482
    %9699 = vmatpush1.bf16.msra.mxu0 %v6481
    %9700 = vmatprep.subr.bf16.mxu0 %v6490
    %9701 = vmatpush1.bf16.msra.mxu0 %v6489
    %9702 = vmatprep.subr.bf16.mxu0 %v6498
    %9703 = vmatpush1.bf16.msra.mxu0 %v6497
    %9704 = vmatprep.subr.bf16.mxu0 %v6506
    %9705 = vmatpush1.bf16.msra.mxu0 %v6505
    %9706 = vmatprep.subr.bf16.mxu0 %v6514
    %9707 = vmatpush1.bf16.msra.mxu0 %v6513
    %9708 = vmatprep.subr.bf16.mxu0 %v6522
    %9709 = vmatpush1.bf16.msra.mxu0 %v6521
    %9710 = vmatprep.subr.bf16.mxu0 %v6530
    %9711 = vmatpush1.bf16.msra.mxu0 %v6529
    %9712 = vmatprep.subr.bf16.mxu0 %v6538
    %9713 = vmatpush1.bf16.msra.mxu0 %v6537
    %9714 = vmatprep.subr.bf16.mxu0 %v6546
    %9715 = vmatpush1.bf16.msra.mxu0 %v6545
    %9716 = vmatprep.subr.bf16.mxu0 %v6554
    %9717 = vmatpush1.bf16.msra.mxu0 %v6553
    %9718 = vmatprep.subr.bf16.mxu0 %v6562
    %9719 = vmatpush1.bf16.msra.mxu0 %v6561
    %9720 = vmatprep.mubr.bf16.mxu0 %v1500
    %9721 = vmatmul.mubr.bf16.gmra.mrb[0].mxu0 %v1486
    %v9722 = vpop.f32.mrb[0].mxu0
    %v9723 = vadd.f32 %v9682, %v9722
    %v9724 = vpop.f32.mrb[0].mxu0
    %v9725 = vadd.f32 %v9684, %v9724
    %v9726 = vpop.f32.mrb[0].mxu0
    %v9727 = vpop.f32.mrb[0].mxu0
    %9728 = vdwg.mxu0
    %9729 = vmatprep.subr.bf16.mxu0 %v6570
    %9730 = vmatpush1.bf16.msra.mxu0 %v6569
    %9731 = vmatprep.subr.bf16.mxu0 %v6578
    %9732 = vmatpush1.bf16.msra.mxu0 %v6577
    %9733 = vmatprep.subr.bf16.mxu0 %v6586
    %9734 = vmatpush1.bf16.msra.mxu0 %v6585
    %9735 = vmatprep.subr.bf16.mxu0 %v6594
    %9736 = vmatpush1.bf16.msra.mxu0 %v6593
    %9737 = vmatprep.subr.bf16.mxu0 %v6602
    %9738 = vmatpush1.bf16.msra.mxu0 %v6601
    %9739 = vmatprep.subr.bf16.mxu0 %v6610
    %9740 = vmatpush1.bf16.msra.mxu0 %v6609
    %9741 = vmatprep.subr.bf16.mxu0 %v6618
    %9742 = vmatpush1.bf16.msra.mxu0 %v6617
    %9743 = vmatprep.subr.bf16.mxu0 %v6626
    %9744 = vmatpush1.bf16.msra.mxu0 %v6625
    %9745 = vmatprep.subr.bf16.mxu0 %v6634
    %9746 = vmatpush1.bf16.msra.mxu0 %v6633
    %9747 = vmatprep.subr.bf16.mxu0 %v6642
    %9748 = vmatpush1.bf16.msra.mxu0 %v6641
    %9749 = vmatprep.subr.bf16.mxu0 %v6650
    %9750 = vmatpush1.bf16.msra.mxu0 %v6649
    %9751 = vmatprep.subr.bf16.mxu0 %v6658
    %9752 = vmatpush1.bf16.msra.mxu0 %v6657
    %9753 = vmatprep.subr.bf16.mxu0 %v6666
    %9754 = vmatpush1.bf16.msra.mxu0 %v6665
    %9755 = vmatprep.subr.bf16.mxu0 %v6674
    %9756 = vmatpush1.bf16.msra.mxu0 %v6673
    %9757 = vmatprep.subr.bf16.mxu0 %v6682
    %9758 = vmatpush1.bf16.msra.mxu0 %v6681
    %9759 = vmatprep.subr.bf16.mxu0 %v6690
    %9760 = vmatpush1.bf16.msra.mxu0 %v6689
    %9761 = vmatprep.mubr.bf16.mxu0 %v1502
    %9762 = vmatmul.mubr.bf16.gmra.mrb[0].mxu0 %v1501
    %v9763 = vpop.f32.mrb[0].mxu0
    %v9764 = vadd.f32 %v9723, %v9763
    %v9765 = vpop.f32.mrb[0].mxu0
    %v9766 = vadd.f32 %v9725, %v9765
    %v9767 = vpop.f32.mrb[0].mxu0
    %v9768 = vpop.f32.mrb[0].mxu0
    %9769 = vdwg.mxu0
    %9770 = vmatprep.subr.bf16.mxu0 %v6698
    %9771 = vmatpush1.bf16.msra.mxu0 %v6697
    %9772 = vmatprep.subr.bf16.mxu0 %v6706
    %9773 = vmatpush1.bf16.msra.mxu0 %v6705
    %9774 = vmatprep.subr.bf16.mxu0 0
    %9775 = vmatpush1.bf16.msra.mxu0 0
    %9776 = vmatprep.subr.bf16.mxu0 0
    %9777 = vmatpush1.bf16.msra.mxu0 0
    %9778 = vmatprep.subr.bf16.mxu0 0
    %9779 = vmatpush1.bf16.msra.mxu0 0
    %9780 = vmatprep.subr.bf16.mxu0 0
    %9781 = vmatpush1.bf16.msra.mxu0 0
    %9782 = vmatprep.subr.bf16.mxu0 0
    %9783 = vmatpush1.bf16.msra.mxu0 0
    %9784 = vmatprep.subr.bf16.mxu0 0
    %9785 = vmatpush1.bf16.msra.mxu0 0
    %9786 = vmatprep.subr.bf16.mxu0 0
    %9787 = vmatpush1.bf16.msra.mxu0 0
    %9788 = vmatprep.subr.bf16.mxu0 0
    %9789 = vmatpush1.bf16.msra.mxu0 0
    %9790 = vmatprep.subr.bf16.mxu0 0
    %9791 = vmatpush1.bf16.msra.mxu0 0
    %9792 = vmatprep.subr.bf16.mxu0 0
    %9793 = vmatpush1.bf16.msra.mxu0 0
    %9794 = vmatprep.subr.bf16.mxu0 0
    %9795 = vmatpush1.bf16.msra.mxu0 0
    %9796 = vmatprep.subr.bf16.mxu0 0
    %9797 = vmatpush1.bf16.msra.mxu0 0
    %9798 = vmatprep.subr.bf16.mxu0 0
    %9799 = vmatpush1.bf16.msra.mxu0 0
    %9800 = vmatprep.subr.bf16.mxu0 0
    %9801 = vmatpush1.bf16.msra.mxu0 0
    %9802 = vmatprep.mubr.bf16.mxu0 0
    %9803 = vmatmul.mubr.bf16.gmra.mrb[0].mxu0 %v8005
    %v9804 = vpop.f32.mrb[0].mxu0
    %v9805 = vadd.f32 %v9764, %v9804
    %v9806 = vpop.f32.mrb[0].mxu0
    %v9807 = vadd.f32 %v9766, %v9806
    %v9808 = vpop.f32.mrb[0].mxu0
    %v9809 = vpop.f32.mrb[0].mxu0
    %9810 = vdwg.mxu0
    %v9811 = vmax.f32 %v8452, 0.0
    %v9812 = vmax.f32 %v8454, 0.0
    %v9813 = vmax.f32 %v8903, 0.0
    %v9814 = vmax.f32 %v8905, 0.0
    %v9815 = vmax.f32 %v9354, 0.0
    %v9816 = vmax.f32 %v9356, 0.0
    %v9817 = vmax.f32 %v9805, 0.0
    %v9818 = vmax.f32 %v9807, 0.0
    %v9819 = vld [vmem:[%s3] sm:$0xff]
    %v9820 = vld [vmem:[%s3 + $0x8] sm:$0xff]
    %v9821 = vld [vmem:[%s3 + $0x10] sm:$0xff]
    %v9822 = vld [vmem:[%s3 + $0x18] sm:$0xff]
    %v9823 = vld [vmem:[%s3 + $0x20] sm:$0xff]
    %v9824 = vld [vmem:[%s3 + $0x28] sm:$0xff]
    %v9825 = vld [vmem:[%s3 + $0x30] sm:$0xff]
    %v9826 = vld [vmem:[%s3 + $0x38] sm:$0xff]
    %v9827 = vld [vmem:[%s3 + $0x40] sm:$0xff]
    %v9828 = vld [vmem:[%s3 + $0x48] sm:$0xff]
    %v9829 = vld [vmem:[%s3 + $0x50] sm:$0xff]
    %v9830 = vld [vmem:[%s3 + $0x58] sm:$0xff]
    %v9831 = vld [vmem:[%s3 + $0x60] sm:$0xff]
    %v9832 = vld [vmem:[%s3 + $0x68] sm:$0xff]
    %v9833 = vld [vmem:[%s3 + $0x70] sm:$0xff]
    %v9834 = vld [vmem:[%s3 + $0x78] sm:$0xff]
    %v9835 = vld [vmem:[%s3 + $0x80] sm:$0xff]
    %v9836 = vld [vmem:[%s3 + $0x88] sm:$0xff]
    %v9837 = vld [vmem:[%s3 + $0x90] sm:$0xff]
    %v9838 = vld [vmem:[%s3 + $0x98] sm:$0xff]
    %v9839 = vld [vmem:[%s3 + $0xa0] sm:$0xff]
    %v9840 = vld [vmem:[%s3 + $0xa8] sm:$0xff]
    %v9841 = vld [vmem:[%s3 + $0xb0] sm:$0xff]
    %v9842 = vld [vmem:[%s3 + $0xb8] sm:$0xff]
    %v9843 = vld [vmem:[%s3 + $0xc0] sm:$0xff]
    %v9844 = vld [vmem:[%s3 + $0xc8] sm:$0xff]
    %v9845 = vld [vmem:[%s3 + $0xd0] sm:$0xff]
    %v9846 = vld [vmem:[%s3 + $0xd8] sm:$0xff]
    %v9847 = vld [vmem:[%s3 + $0xe0] sm:$0xff]
    %v9848 = vld [vmem:[%s3 + $0xe8] sm:$0xff]
    %v9849 = vld [vmem:[%s3 + $0xf0] sm:$0xff]
    %v9850 = vld [vmem:[%s3 + $0xf8] sm:$0xff]
    %v9851 = vld [vmem:[%s3 + $0x100] sm:$0xff]
    %v9852 = vld [vmem:[%s3 + $0x108] sm:$0xff]
    %v9853 = vld [vmem:[%s3 + $0x110] sm:$0xff]
    %v9854 = vld [vmem:[%s3 + $0x118] sm:$0xff]
    %v9855 = vld [vmem:[%s3 + $0x120] sm:$0xff]
    %v9856 = vld [vmem:[%s3 + $0x128] sm:$0xff]
    %v9857 = vld [vmem:[%s3 + $0x130] sm:$0xff]
    %v9858 = vld [vmem:[%s3 + $0x138] sm:$0xff]
    %v9859 = vld [vmem:[%s3 + $0x140] sm:$0xff]
    %v9860 = vld [vmem:[%s3 + $0x148] sm:$0xff]
    %v9861 = vld [vmem:[%s3 + $0x150] sm:$0xff]
    %v9862 = vld [vmem:[%s3 + $0x158] sm:$0xff]
    %v9863 = vld [vmem:[%s3 + $0x160] sm:$0xff]
    %v9864 = vld [vmem:[%s3 + $0x168] sm:$0xff]
    %v9865 = vld [vmem:[%s3 + $0x170] sm:$0xff]
    %v9866 = vld [vmem:[%s3 + $0x178] sm:$0xff]
    %v9867 = vld [vmem:[%s3 + $0x180] sm:$0xff]
    %v9868 = vld [vmem:[%s3 + $0x188] sm:$0xff]
    %v9869 = vld [vmem:[%s3 + $0x190] sm:$0xff]
    %v9870 = vld [vmem:[%s3 + $0x198] sm:$0xff]
    %v9871 = vld [vmem:[%s3 + $0x1a0] sm:$0xff]
    %v9872 = vld [vmem:[%s3 + $0x1a8] sm:$0xff]
    %v9873 = vld [vmem:[%s3 + $0x1b0] sm:$0xff]
    %v9874 = vld [vmem:[%s3 + $0x1b8] sm:$0xff]
    %v9875 = vld [vmem:[%s3 + $0x1c0] sm:$0xff]
    %v9876 = vld [vmem:[%s3 + $0x1c8] sm:$0xff]
    %v9877 = vld [vmem:[%s3 + $0x1d0] sm:$0xff]
    %v9878 = vld [vmem:[%s3 + $0x1d8] sm:$0xff]
    %v9879 = vld [vmem:[%s3 + $0x1e0] sm:$0xff]
    %v9880 = vld [vmem:[%s3 + $0x1e8] sm:$0xff]
    %v9881 = vld [vmem:[%s3 + $0x1f0] sm:$0xff]
    %v9882 = vld [vmem:[%s3 + $0x1f8] sm:$0xff]
    %v9883 = vld [vmem:[%s3 + $0x200] sm:$0xff]
    %v9884 = vld [vmem:[%s3 + $0x208] sm:$0xff]
    %v9885 = vld [vmem:[%s3 + $0x210] sm:$0xff]
    %v9886 = vld [vmem:[%s3 + $0x218] sm:$0xff]
    %v9887 = vld [vmem:[%s3 + $0x220] sm:$0xff]
    %v9888 = vld [vmem:[%s3 + $0x228] sm:$0xff]
    %v9889 = vld [vmem:[%s3 + $0x230] sm:$0xff]
    %v9890 = vld [vmem:[%s3 + $0x238] sm:$0xff]
    %v9891 = vld [vmem:[%s3 + $0x240] sm:$0xff]
    %v9892 = vld [vmem:[%s3 + $0x248] sm:$0xff]
    %v9893 = vld [vmem:[%s3 + $0x250] sm:$0xff]
    %v9894 = vld [vmem:[%s3 + $0x258] sm:$0xff]
    %v9895 = vld [vmem:[%s3 + $0x260] sm:$0xff]
    %v9896 = vld [vmem:[%s3 + $0x268] sm:$0xff]
    %v9897 = vld [vmem:[%s3 + $0x270] sm:$0xff]
    %v9898 = vld [vmem:[%s3 + $0x278] sm:$0xff]
    %v9899 = vld [vmem:[%s3 + $0x280] sm:$0xff]
    %v9900 = vld [vmem:[%s3 + $0x288] sm:$0xff]
    %v9901 = vld [vmem:[%s3 + $0x290] sm:$0xff]
    %v9902 = vld [vmem:[%s3 + $0x298] sm:$0xff]
    %v9903 = vld [vmem:[%s3 + $0x2a0] sm:$0xff]
    %v9904 = vld [vmem:[%s3 + $0x2a8] sm:$0xff]
    %v9905 = vld [vmem:[%s3 + $0x2b0] sm:$0xff]
    %v9906 = vld [vmem:[%s3 + $0x2b8] sm:$0xff]
    %v9907 = vld [vmem:[%s3 + $0x2c0] sm:$0xff]
    %v9908 = vld [vmem:[%s3 + $0x2c8] sm:$0xff]
    %v9909 = vld [vmem:[%s3 + $0x2d0] sm:$0xff]
    %v9910 = vld [vmem:[%s3 + $0x2d8] sm:$0xff]
    %v9911 = vld [vmem:[%s3 + $0x2e0] sm:$0xff]
    %v9912 = vld [vmem:[%s3 + $0x2e8] sm:$0xff]
    %v9913 = vld [vmem:[%s3 + $0x2f0] sm:$0xff]
    %v9914 = vld [vmem:[%s3 + $0x2f8] sm:$0xff]
    %v9915 = vld [vmem:[%s3 + $0x300] sm:$0xff]
    %v9916 = vld [vmem:[%s3 + $0x308] sm:$0xff]
    %v9917 = vld [vmem:[%s3 + $0x310] sm:$0xff]
    %v9918 = vld [vmem:[%s3 + $0x318] sm:$0xff]
    %v9919 = vld [vmem:[%s3 + $0x320] sm:$0xff]
    %v9920 = vld [vmem:[%s3 + $0x328] sm:$0xff]
    %v9921 = vld [vmem:[%s3 + $0x330] sm:$0xff]
    %v9922 = vld [vmem:[%s3 + $0x338] sm:$0xff]
    %v9923 = vld [vmem:[%s3 + $0x340] sm:$0xff]
    %v9924 = vld [vmem:[%s3 + $0x348] sm:$0xff]
    %v9925 = vld [vmem:[%s3 + $0x350] sm:$0xff]
    %v9926 = vld [vmem:[%s3 + $0x358] sm:$0xff]
    %v9927 = vld [vmem:[%s3 + $0x360] sm:$0xff]
    %v9928 = vld [vmem:[%s3 + $0x368] sm:$0xff]
    %v9929 = vld [vmem:[%s3 + $0x370] sm:$0xff]
    %v9930 = vld [vmem:[%s3 + $0x378] sm:$0xff]
    %v9931 = vld [vmem:[%s3 + $0x380] sm:$0xff]
    %v9932 = vld [vmem:[%s3 + $0x388] sm:$0xff]
    %v9933 = vld [vmem:[%s3 + $0x390] sm:$0xff]
    %v9934 = vld [vmem:[%s3 + $0x398] sm:$0xff]
    %v9935 = vld [vmem:[%s3 + $0x3a0] sm:$0xff]
    %v9936 = vld [vmem:[%s3 + $0x3a8] sm:$0xff]
    %v9937 = vld [vmem:[%s3 + $0x3b0] sm:$0xff]
    %v9938 = vld [vmem:[%s3 + $0x3b8] sm:$0xff]
    %v9939 = vld [vmem:[%s3 + $0x3c0] sm:$0xff]
    %v9940 = vld [vmem:[%s3 + $0x3c8] sm:$0xff]
    %v9941 = vld [vmem:[%s3 + $0x3d0] sm:$0xff]
    %v9942 = vld [vmem:[%s3 + $0x3d8] sm:$0xff]
    %v9943 = vld [vmem:[%s3 + $0x3e0] sm:$0xff]
    %v9944 = vld [vmem:[%s3 + $0x3e8] sm:$0xff]
    %v9945 = vld [vmem:[%s3 + $0x3f0] sm:$0xff]
    %v9946 = vld [vmem:[%s3 + $0x3f8] sm:$0xff]
    %v9947 = vld [vmem:[%s4] sm:$0x1]
    %v9949 = vlaneseq
    %v9950 = vshrl.u32 %v9949, 7
    %v9951 = vsub.s32 0, %v9950
    %v9952 = vrot.slane %v9947, %v9951
    %9954 = vmatprep.subr.mxu0 0.0
    %9955 = vmatpush1.msra.mxu0 %v9819
    %9956 = vmatprep.subr.mxu0 0.0
    %9957 = vmatpush1.msra.mxu0 %v9820
    %9958 = vmatprep.subr.mxu0 0.0
    %9959 = vmatpush1.msra.mxu0 %v9821
    %9960 = vmatprep.subr.mxu0 0.0
    %9961 = vmatpush1.msra.mxu0 %v9822
    %9962 = vmatprep.subr.mxu0 0.0
    %9963 = vmatpush1.msra.mxu0 %v9823
    %9964 = vmatprep.subr.mxu0 0.0
    %9965 = vmatpush1.msra.mxu0 %v9824
    %9966 = vmatprep.subr.mxu0 0.0
    %9967 = vmatpush1.msra.mxu0 %v9825
    %9968 = vmatprep.subr.mxu0 0.0
    %9969 = vmatpush1.msra.mxu0 %v9826
    %9970 = vmatprep.subr.mxu0 0.0
    %9971 = vmatpush1.msra.mxu0 %v9827
    %9972 = vmatprep.subr.mxu0 0.0
    %9973 = vmatpush1.msra.mxu0 %v9828
    %9974 = vmatprep.subr.mxu0 0.0
    %9975 = vmatpush1.msra.mxu0 %v9829
    %9976 = vmatprep.subr.mxu0 0.0
    %9977 = vmatpush1.msra.mxu0 %v9830
    %9978 = vmatprep.subr.mxu0 0.0
    %9979 = vmatpush1.msra.mxu0 %v9831
    %9980 = vmatprep.subr.mxu0 0.0
    %9981 = vmatpush1.msra.mxu0 %v9832
    %9982 = vmatprep.subr.mxu0 0.0
    %9983 = vmatpush1.msra.mxu0 %v9833
    %9984 = vmatprep.subr.mxu0 0.0
    %9985 = vmatpush1.msra.mxu0 %v9834
    %9986 = vmatprep.subr.mxu0 0.0
    %9987 = vmatpush1.msra.mxu0 %v9835
    %9988 = vmatprep.subr.mxu0 0.0
    %9989 = vmatpush1.msra.mxu0 %v9836
    %9990 = vmatprep.subr.mxu0 0.0
    %9991 = vmatpush1.msra.mxu0 %v9837
    %9992 = vmatprep.subr.mxu0 0.0
    %9993 = vmatpush1.msra.mxu0 %v9838
    %9994 = vmatprep.subr.mxu0 0.0
    %9995 = vmatpush1.msra.mxu0 %v9839
    %9996 = vmatprep.subr.mxu0 0.0
    %9997 = vmatpush1.msra.mxu0 %v9840
    %9998 = vmatprep.subr.mxu0 0.0
    %9999 = vmatpush1.msra.mxu0 %v9841
    %10000 = vmatprep.subr.mxu0 0.0
    %10001 = vmatpush1.msra.mxu0 %v9842
    %10002 = vmatprep.subr.mxu0 0.0
    %10003 = vmatpush1.msra.mxu0 %v9843
    %10004 = vmatprep.subr.mxu0 0.0
    %10005 = vmatpush1.msra.mxu0 %v9844
    %10006 = vmatprep.subr.mxu0 0.0
    %10007 = vmatpush1.msra.mxu0 %v9845
    %10008 = vmatprep.subr.mxu0 0.0
    %10009 = vmatpush1.msra.mxu0 %v9846
    %10010 = vmatprep.subr.mxu0 0.0
    %10011 = vmatpush1.msra.mxu0 %v9847
    %10012 = vmatprep.subr.mxu0 0.0
    %10013 = vmatpush1.msra.mxu0 %v9848
    %10014 = vmatprep.subr.mxu0 0.0
    %10015 = vmatpush1.msra.mxu0 %v9849
    %10016 = vmatprep.subr.mxu0 0.0
    %10017 = vmatpush1.msra.mxu0 %v9850
    %10018 = vmatprep.mubr.f32.mxu0 %v9812
    %10019 = vmatmul.mubr.f32.gmra.mrb[0].mxu0 %v9811
    %v10020 = vpop.f32.mrb[0].mxu0
    %v10021 = vadd.f32 %v9952, %v10020
    %v10022 = vpop.f32.mrb[0].mxu0
    %10023 = vdwg.mxu0
    %10024 = vmatprep.subr.mxu0 0.0
    %10025 = vmatpush1.msra.mxu0 %v9851
    %10026 = vmatprep.subr.mxu0 0.0
    %10027 = vmatpush1.msra.mxu0 %v9852
    %10028 = vmatprep.subr.mxu0 0.0
    %10029 = vmatpush1.msra.mxu0 %v9853
    %10030 = vmatprep.subr.mxu0 0.0
    %10031 = vmatpush1.msra.mxu0 %v9854
    %10032 = vmatprep.subr.mxu0 0.0
    %10033 = vmatpush1.msra.mxu0 %v9855
    %10034 = vmatprep.subr.mxu0 0.0
    %10035 = vmatpush1.msra.mxu0 %v9856
    %10036 = vmatprep.subr.mxu0 0.0
    %10037 = vmatpush1.msra.mxu0 %v9857
    %10038 = vmatprep.subr.mxu0 0.0
    %10039 = vmatpush1.msra.mxu0 %v9858
    %10040 = vmatprep.subr.mxu0 0.0
    %10041 = vmatpush1.msra.mxu0 %v9859
    %10042 = vmatprep.subr.mxu0 0.0
    %10043 = vmatpush1.msra.mxu0 %v9860
    %10044 = vmatprep.subr.mxu0 0.0
    %10045 = vmatpush1.msra.mxu0 %v9861
    %10046 = vmatprep.subr.mxu0 0.0
    %10047 = vmatpush1.msra.mxu0 %v9862
    %10048 = vmatprep.subr.mxu0 0.0
    %10049 = vmatpush1.msra.mxu0 %v9863
    %10050 = vmatprep.subr.mxu0 0.0
    %10051 = vmatpush1.msra.mxu0 %v9864
    %10052 = vmatprep.subr.mxu0 0.0
    %10053 = vmatpush1.msra.mxu0 %v9865
    %10054 = vmatprep.subr.mxu0 0.0
    %10055 = vmatpush1.msra.mxu0 %v9866
    %10056 = vmatprep.subr.mxu0 0.0
    %10057 = vmatpush1.msra.mxu0 %v9867
    %10058 = vmatprep.subr.mxu0 0.0
    %10059 = vmatpush1.msra.mxu0 %v9868
    %10060 = vmatprep.subr.mxu0 0.0
    %10061 = vmatpush1.msra.mxu0 %v9869
    %10062 = vmatprep.subr.mxu0 0.0
    %10063 = vmatpush1.msra.mxu0 %v9870
    %10064 = vmatprep.subr.mxu0 0.0
    %10065 = vmatpush1.msra.mxu0 %v9871
    %10066 = vmatprep.subr.mxu0 0.0
    %10067 = vmatpush1.msra.mxu0 %v9872
    %10068 = vmatprep.subr.mxu0 0.0
    %10069 = vmatpush1.msra.mxu0 %v9873
    %10070 = vmatprep.subr.mxu0 0.0
    %10071 = vmatpush1.msra.mxu0 %v9874
    %10072 = vmatprep.subr.mxu0 0.0
    %10073 = vmatpush1.msra.mxu0 %v9875
    %10074 = vmatprep.subr.mxu0 0.0
    %10075 = vmatpush1.msra.mxu0 %v9876
    %10076 = vmatprep.subr.mxu0 0.0
    %10077 = vmatpush1.msra.mxu0 %v9877
    %10078 = vmatprep.subr.mxu0 0.0
    %10079 = vmatpush1.msra.mxu0 %v9878
    %10080 = vmatprep.subr.mxu0 0.0
    %10081 = vmatpush1.msra.mxu0 %v9879
    %10082 = vmatprep.subr.mxu0 0.0
    %10083 = vmatpush1.msra.mxu0 %v9880
    %10084 = vmatprep.subr.mxu0 0.0
    %10085 = vmatpush1.msra.mxu0 %v9881
    %10086 = vmatprep.subr.mxu0 0.0
    %10087 = vmatpush1.msra.mxu0 %v9882
    %10088 = vmatprep.mubr.f32.mxu0 %v9814
    %10089 = vmatmul.mubr.f32.gmra.mrb[0].mxu0 %v9813
    %v10090 = vpop.f32.mrb[0].mxu0
    %v10091 = vadd.f32 %v10021, %v10090
    %v10092 = vpop.f32.mrb[0].mxu0
    %10093 = vdwg.mxu0
    %10094 = vmatprep.subr.mxu0 0.0
    %10095 = vmatpush1.msra.mxu0 %v9883
    %10096 = vmatprep.subr.mxu0 0.0
    %10097 = vmatpush1.msra.mxu0 %v9884
    %10098 = vmatprep.subr.mxu0 0.0
    %10099 = vmatpush1.msra.mxu0 %v9885
    %10100 = vmatprep.subr.mxu0 0.0
    %10101 = vmatpush1.msra.mxu0 %v9886
    %10102 = vmatprep.subr.mxu0 0.0
    %10103 = vmatpush1.msra.mxu0 %v9887
    %10104 = vmatprep.subr.mxu0 0.0
    %10105 = vmatpush1.msra.mxu0 %v9888
    %10106 = vmatprep.subr.mxu0 0.0
    %10107 = vmatpush1.msra.mxu0 %v9889
    %10108 = vmatprep.subr.mxu0 0.0
    %10109 = vmatpush1.msra.mxu0 %v9890
    %10110 = vmatprep.subr.mxu0 0.0
    %10111 = vmatpush1.msra.mxu0 %v9891
    %10112 = vmatprep.subr.mxu0 0.0
    %10113 = vmatpush1.msra.mxu0 %v9892
    %10114 = vmatprep.subr.mxu0 0.0
    %10115 = vmatpush1.msra.mxu0 %v9893
    %10116 = vmatprep.subr.mxu0 0.0
    %10117 = vmatpush1.msra.mxu0 %v9894
    %10118 = vmatprep.subr.mxu0 0.0
    %10119 = vmatpush1.msra.mxu0 %v9895
    %10120 = vmatprep.subr.mxu0 0.0
    %10121 = vmatpush1.msra.mxu0 %v9896
    %10122 = vmatprep.subr.mxu0 0.0
    %10123 = vmatpush1.msra.mxu0 %v9897
    %10124 = vmatprep.subr.mxu0 0.0
    %10125 = vmatpush1.msra.mxu0 %v9898
    %10126 = vmatprep.subr.mxu0 0.0
    %10127 = vmatpush1.msra.mxu0 %v9899
    %10128 = vmatprep.subr.mxu0 0.0
    %10129 = vmatpush1.msra.mxu0 %v9900
    %10130 = vmatprep.subr.mxu0 0.0
    %10131 = vmatpush1.msra.mxu0 %v9901
    %10132 = vmatprep.subr.mxu0 0.0
    %10133 = vmatpush1.msra.mxu0 %v9902
    %10134 = vmatprep.subr.mxu0 0.0
    %10135 = vmatpush1.msra.mxu0 %v9903
    %10136 = vmatprep.subr.mxu0 0.0
    %10137 = vmatpush1.msra.mxu0 %v9904
    %10138 = vmatprep.subr.mxu0 0.0
    %10139 = vmatpush1.msra.mxu0 %v9905
    %10140 = vmatprep.subr.mxu0 0.0
    %10141 = vmatpush1.msra.mxu0 %v9906
    %10142 = vmatprep.subr.mxu0 0.0
    %10143 = vmatpush1.msra.mxu0 %v9907
    %10144 = vmatprep.subr.mxu0 0.0
    %10145 = vmatpush1.msra.mxu0 %v9908
    %10146 = vmatprep.subr.mxu0 0.0
    %10147 = vmatpush1.msra.mxu0 %v9909
    %10148 = vmatprep.subr.mxu0 0.0
    %10149 = vmatpush1.msra.mxu0 %v9910
    %10150 = vmatprep.subr.mxu0 0.0
    %10151 = vmatpush1.msra.mxu0 %v9911
    %10152 = vmatprep.subr.mxu0 0.0
    %10153 = vmatpush1.msra.mxu0 %v9912
    %10154 = vmatprep.subr.mxu0 0.0
    %10155 = vmatpush1.msra.mxu0 %v9913
    %10156 = vmatprep.subr.mxu0 0.0
    %10157 = vmatpush1.msra.mxu0 %v9914
    %10158 = vmatprep.mubr.f32.mxu0 %v9816
    %10159 = vmatmul.mubr.f32.gmra.mrb[0].mxu0 %v9815
    %v10160 = vpop.f32.mrb[0].mxu0
    %v10161 = vadd.f32 %v10091, %v10160
    %v10162 = vpop.f32.mrb[0].mxu0
    %10163 = vdwg.mxu0
    %10164 = vmatprep.subr.mxu0 0.0
    %10165 = vmatpush1.msra.mxu0 %v9915
    %10166 = vmatprep.subr.mxu0 0.0
    %10167 = vmatpush1.msra.mxu0 %v9916
    %10168 = vmatprep.subr.mxu0 0.0
    %10169 = vmatpush1.msra.mxu0 %v9917
    %10170 = vmatprep.subr.mxu0 0.0
    %10171 = vmatpush1.msra.mxu0 %v9918
    %10172 = vmatprep.subr.mxu0 0.0
    %10173 = vmatpush1.msra.mxu0 %v9919
    %10174 = vmatprep.subr.mxu0 0.0
    %10175 = vmatpush1.msra.mxu0 %v9920
    %10176 = vmatprep.subr.mxu0 0.0
    %10177 = vmatpush1.msra.mxu0 %v9921
    %10178 = vmatprep.subr.mxu0 0.0
    %10179 = vmatpush1.msra.mxu0 %v9922
    %10180 = vmatprep.subr.mxu0 0.0
    %10181 = vmatpush1.msra.mxu0 %v9923
    %10182 = vmatprep.subr.mxu0 0.0
    %10183 = vmatpush1.msra.mxu0 %v9924
    %10184 = vmatprep.subr.mxu0 0.0
    %10185 = vmatpush1.msra.mxu0 %v9925
    %10186 = vmatprep.subr.mxu0 0.0
    %10187 = vmatpush1.msra.mxu0 %v9926
    %10188 = vmatprep.subr.mxu0 0.0
    %10189 = vmatpush1.msra.mxu0 %v9927
    %10190 = vmatprep.subr.mxu0 0.0
    %10191 = vmatpush1.msra.mxu0 %v9928
    %10192 = vmatprep.subr.mxu0 0.0
    %10193 = vmatpush1.msra.mxu0 %v9929
    %10194 = vmatprep.subr.mxu0 0.0
    %10195 = vmatpush1.msra.mxu0 %v9930
    %10196 = vmatprep.subr.mxu0 0.0
    %10197 = vmatpush1.msra.mxu0 %v9931
    %10198 = vmatprep.subr.mxu0 0.0
    %10199 = vmatpush1.msra.mxu0 %v9932
    %10200 = vmatprep.subr.mxu0 0.0
    %10201 = vmatpush1.msra.mxu0 %v9933
    %10202 = vmatprep.subr.mxu0 0.0
    %10203 = vmatpush1.msra.mxu0 %v9934
    %10204 = vmatprep.subr.mxu0 0.0
    %10205 = vmatpush1.msra.mxu0 %v9935
    %10206 = vmatprep.subr.mxu0 0.0
    %10207 = vmatpush1.msra.mxu0 %v9936
    %10208 = vmatprep.subr.mxu0 0.0
    %10209 = vmatpush1.msra.mxu0 %v9937
    %10210 = vmatprep.subr.mxu0 0.0
    %10211 = vmatpush1.msra.mxu0 %v9938
    %10212 = vmatprep.subr.mxu0 0.0
    %10213 = vmatpush1.msra.mxu0 %v9939
    %10214 = vmatprep.subr.mxu0 0.0
    %10215 = vmatpush1.msra.mxu0 %v9940
    %10216 = vmatprep.subr.mxu0 0.0
    %10217 = vmatpush1.msra.mxu0 %v9941
    %10218 = vmatprep.subr.mxu0 0.0
    %10219 = vmatpush1.msra.mxu0 %v9942
    %10220 = vmatprep.subr.mxu0 0.0
    %10221 = vmatpush1.msra.mxu0 %v9943
    %10222 = vmatprep.subr.mxu0 0.0
    %10223 = vmatpush1.msra.mxu0 %v9944
    %10224 = vmatprep.subr.mxu0 0.0
    %10225 = vmatpush1.msra.mxu0 %v9945
    %10226 = vmatprep.subr.mxu0 0.0
    %10227 = vmatpush1.msra.mxu0 %v9946
    %10228 = vmatprep.mubr.f32.mxu0 %v9818
    %10229 = vmatmul.mubr.f32.gmra.mrb[0].mxu0 %v9817
    %v10230 = vpop.f32.mrb[0].mxu0
    %v10231 = vadd.f32 %v10161, %v10230
    %v10232 = vpop.f32.mrb[0].mxu0
    %10233 = vdwg.mxu0
    %vm10234 = vcmask 107520
    %10235 = vst.msk [vmem:[#allocation2] sm:$0x3] %vm10234, %v10231
    // Predicated region
    $region22: #{mini_model_forward.5} parent=1 // pred_check
      _
    $region23: #{mini_model_forward.5} parent=1 // pred_check_branch
      %10237 = sbr.rel (0) target = $region25
    $region24: #{mini_model_forward.5} parent=1 // pred_region
      %s10239 = ssub.s32 32, 32
      %10240 = vsyncadd [#allocation3], %s10239
      %s10242 = sshll.u32 [#allocation2], 4
      %s10243 = int_to_ptr.vmem [resolvable:$true] %s10242
      %10245 = dma.vmem_to_hbm [thread:$0]  %s10243, 32, %s5, [#allocation3]
    $region25: #{mini_model_forward.5} parent=1 // pred_fallthru
      _
    // Predicated region
    $region26: #{mini_model_forward.5} parent=1 // pred_check
      _
    $region27: #{mini_model_forward.5} parent=1 // pred_check_branch
      %10247 = sbr.rel (0) target = $region29
    $region28: #{mini_model_forward.5} parent=1 // pred_region
      %10248 = dma.done [#allocation3], 32
    $region29: #{mini_model_forward.5} parent=1 // pred_fallthru
      _
    %10249 = vsyncpa [#allocation3], 1

</llo_original>
